<compile_context>
chip_gen: v5e
topology: v5e:2x2
jax: 0.10.0
libtpu: 0.0.40
codegen_flags: <defaults>
</compile_context>

<pallas_src>
import numpy as np
import jax
import jax.numpy as jnp
from jax.experimental import pallas as pl
from jax.experimental.pallas import tpu as pltpu


# ---------------------------------------------------------------------------
# Kernel 1: fused conv (as im2col MXU matmul) + bias + 2x2 max-pool + ReLU.
# One batch element per grid step.  p_ref holds the 4 pooling phases of the
# im2col patch matrix, so pooling is just an elementwise max of 4 matmul results.
# ---------------------------------------------------------------------------
def _conv_pool_relu_kernel(p_ref, w_ref, b_ref, o_ref):
    # p_ref: (1, 4, PP, K)   w_ref: (K, Cout)   b_ref: (1, Cout)   o_ref: (1, PP, Cout)
    w = w_ref[...]
    y0 = jnp.dot(p_ref[0, 0], w, preferred_element_type=jnp.float32)
    y1 = jnp.dot(p_ref[0, 1], w, preferred_element_type=jnp.float32)
    y2 = jnp.dot(p_ref[0, 2], w, preferred_element_type=jnp.float32)
    y3 = jnp.dot(p_ref[0, 3], w, preferred_element_type=jnp.float32)
    m = jnp.maximum(jnp.maximum(y0, y1), jnp.maximum(y2, y3))
    o_ref[0] = jnp.maximum(m + b_ref[...], 0.0)


def conv_pool_relu(patches, w2d, bias):
    # patches: (N, 4, PP, K)   w2d: (K, Cout)   bias: (Cout,)
    N, _, PP, K = patches.shape
    Cout = w2d.shape[1]
    return pl.pallas_call(
        _conv_pool_relu_kernel,
        out_shape=jax.ShapeDtypeStruct((N, PP, Cout), jnp.float32),
        grid=(N,),
        in_specs=[
            pl.BlockSpec((1, 4, PP, K), lambda n: (n, 0, 0, 0)),
            pl.BlockSpec((K, Cout), lambda n: (0, 0)),
            pl.BlockSpec((1, Cout), lambda n: (0, 0)),
        ],
        out_specs=pl.BlockSpec((1, PP, Cout), lambda n: (n, 0, 0)),
        # batch axis parallel -> shards across the 2 TensorCores on v7x
        compiler_params=pltpu.CompilerParams(dimension_semantics=("parallel",)),
    )(patches, w2d, bias.reshape(1, -1))


# ---------------------------------------------------------------------------
# Kernel 2: fused FC head: fc1 (bf16 weights, f32 acc) -> ReLU -> fc2 -> log_softmax.
# Single pallas_call, whole arrays as one block (everything fits VMEM easily).
# ---------------------------------------------------------------------------
def _fc_head_kernel(x_ref, w1_ref, b1_ref, w2_ref, b2_ref, o_ref):
    x = x_ref[...].astype(jnp.bfloat16)
    h = jnp.dot(x, w1_ref[...], preferred_element_type=jnp.float32) + b1_ref[...]
    h = jnp.maximum(h, 0.0)
    y = jnp.dot(h, w2_ref[...], preferred_element_type=jnp.float32) + b2_ref[...]
    m = jnp.max(y, axis=-1, keepdims=True)
    s = y - m
    lse = jnp.log(jnp.sum(jnp.exp(s), axis=-1, keepdims=True))
    o_ref[...] = s - lse


def fc_head(x, w1_bf16, b1, w2_pad, b2_pad):
    M, K = x.shape
    H = w1_bf16.shape[1]
    Nout = w2_pad.shape[1]
    return pl.pallas_call(
        _fc_head_kernel,
        out_shape=jax.ShapeDtypeStruct((M, Nout), jnp.float32),
        grid=(1,),
        in_specs=[
            pl.BlockSpec((M, K), lambda i: (0, 0)),
            pl.BlockSpec((K, H), lambda i: (0, 0)),
            pl.BlockSpec((1, H), lambda i: (0, 0)),
            pl.BlockSpec((H, Nout), lambda i: (0, 0)),
            pl.BlockSpec((1, Nout), lambda i: (0, 0)),
        ],
        out_specs=pl.BlockSpec((M, Nout), lambda i: (0, 0)),
        compiler_params=pltpu.CompilerParams(dimension_semantics=("arbitrary",)),
    )(x, w1_bf16, b1.reshape(1, -1), w2_pad, b2_pad.reshape(1, -1))


# ---------------------------------------------------------------------------
# Plain-JAX glue: build the pooling-phase-major im2col patch tensor.
#   out[n, a*2+b, pi*POW+pj, (kh*KW+kw)*Cin+ci] = x[n, 2*pi+a+kh, 2*pj+b+kw, ci]
# ---------------------------------------------------------------------------
def _make_pool_patches(x_nhwc, kh, kw):
    N, H, W, Cin = x_nhwc.shape
    OH, OW = H - kh + 1, W - kw + 1
    POH, POW = OH // 2, OW // 2
    cols = []
    for i in range(kh):
        for j in range(kw):
            cols.append(x_nhwc[:, i:i + OH, j:j + OW, :])      # (N, OH, OW, Cin)
    pat = jnp.concatenate(cols, axis=-1)                       # (N, OH, OW, KH*KW*Cin)
    pat = pat[:, :2 * POH, :2 * POW, :]
    pat = pat.reshape(N, POH, 2, POW, 2, kh * kw * Cin)
    pat = pat.transpose(0, 2, 4, 1, 3, 5)                      # (N, 2, 2, POH, POW, K)
    return pat.reshape(N, 4, POH * POW, kh * kw * Cin)


# ---------------------------------------------------------------------------
# One-time parameter prep (host/trace-time, outside the hot path).
# ---------------------------------------------------------------------------
_OUT_PAD = 128  # lane-dense fc2 output


def prepare_params(params):
    w1, b1, w2, b2, wf1, bf1, wf2, bf2 = params
    kw1 = w1.reshape(-1, w1.shape[-1])                         # (25, 6)
    kw2 = w2.reshape(-1, w2.shape[-1])                         # (150, 16)
    # Our conv2-stage output flattens in (i, j, c) order; torch's x.view(-1, 2704)
    # flattens in (c, i, j) order.  Move that permutation into wf1's rows once.
    perm = np.arange(2704).reshape(16, 13, 13).transpose(1, 2, 0).reshape(-1)
    kwf1 = wf1[jnp.asarray(perm)].astype(jnp.bfloat16)         # (2704, 240) bf16
    # Zero-pad fc2 to 128 output lanes; padded logits get bias -1e9 so they vanish
    # in the softmax.  Logits are sliced back to 36 in the wrapper.
    kwf2 = jnp.zeros((wf2.shape[0], _OUT_PAD), jnp.float32).at[:, :wf2.shape[1]].set(wf2)
    kbf2 = jnp.full((_OUT_PAD,), -1e9, jnp.float32).at[:bf2.shape[0]].set(bf2)
    return (kw1, b1, kw2, b2, kwf1, bf1, kwf2, kbf2)


# ---------------------------------------------------------------------------
# Full forward pass (eval mode).
# ---------------------------------------------------------------------------
def net_forward(x_nchw, kparams):
    kw1, b1, kw2, b2, kwf1, bf1, kwf2, kbf2 = kparams
    N = x_nchw.shape[0]
    x = jnp.transpose(x_nchw, (0, 2, 3, 1))                    # NCHW -> NHWC (N, 64, 64, 1)
    p1 = _make_pool_patches(x, 5, 5)                           # (N, 4, 900, 25)
    y1 = conv_pool_relu(p1, kw1, b1)                           # relu(pool(conv1)) (N, 900, 6)
    y1 = y1.reshape(N, 30, 30, 6)
    # TODO(synk): conv2_drop / F.dropout are identity in eval mode; training-mode
    # stochastic dropout is intentionally not implemented.
    p2 = _make_pool_patches(y1, 5, 5)                          # (N, 4, 169, 150)
    y2 = conv_pool_relu(p2, kw2, b2)                           # relu(pool(conv2)) (N, 169, 16)
    feat = y2.reshape(N, 2704)                                 # (i, j, c) order; wf1 rows pre-permuted
    out = fc_head(feat, kwf1, bf1, kwf2, kbf2)                 # (N, 128)
    return out[:, :36]


# ---------------------------------------------------------------------------
# Pure-JAX reference (same math, XLA ops, original f32 params) for sanity check.
# ---------------------------------------------------------------------------
def reference_forward(x_nchw, params):
    w1, b1, w2, b2, wf1, bf1, wf2, bf2 = params
    hp = jax.lax.Precision.HIGHEST
    dn = ('NHWC', 'HWIO', 'NHWC')
    x = jnp.transpose(x_nchw, (0, 2, 3, 1))
    y = jax.lax.conv_general_dilated(x, w1, (1, 1), 'VALID',
                                     dimension_numbers=dn, precision=hp) + b1
    y = jax.lax.reduce_window(y, -jnp.inf, jax.lax.max,
                              (1, 2, 2, 1), (1, 2, 2, 1), 'VALID')
    y = jnp.maximum(y, 0.0)
    y = jax.lax.conv_general_dilated(y, w2, (1, 1), 'VALID',
                                     dimension_numbers=dn, precision=hp) + b2
    y = jax.lax.reduce_window(y, -jnp.inf, jax.lax.max,
                              (1, 2, 2, 1), (1, 2, 2, 1), 'VALID')
    y = jnp.maximum(y, 0.0)
    feat = jnp.transpose(y, (0, 3, 1, 2)).reshape(x.shape[0], -1)   # torch NCHW flatten
    h = jnp.maximum(jnp.dot(feat, wf1, precision=hp) + bf1, 0.0)
    logits = jnp.dot(h, wf2, precision=hp) + bf2
    return jax.nn.log_softmax(logits, axis=-1)


if __name__ == "__main__":
    key = jax.random.PRNGKey(0)
    ks = jax.random.split(key, 9)
    N = 2
    # Input consistent with the module: fc1 expects 2704 = 16*13*13 -> input 64x64, 1 channel.
    x = jax.random.normal(ks[0], (N, 1, 64, 64), jnp.float32)          # NCHW, like PyTorch

    # Deterministic synthetic parameters (HWIO conv weights, (in, out) fc weights).
    w1 = jax.random.normal(ks[1], (5, 5, 1, 6), jnp.float32) * 0.10    # conv1
    b1 = jax.random.normal(ks[2], (6,), jnp.float32) * 0.10
    w2 = jax.random.normal(ks[3], (5, 5, 6, 16), jnp.float32) * 0.05   # conv2
    b2 = jax.random.normal(ks[4], (16,), jnp.float32) * 0.05
    wf1 = jax.random.normal(ks[5], (2704, 240), jnp.float32) * 0.02    # fc1
    bf1 = jax.random.normal(ks[6], (240,), jnp.float32) * 0.02
    wf2 = jax.random.normal(ks[7], (240, 36), jnp.float32) * 0.30      # fc2
    bf2 = jax.random.normal(ks[8], (36,), jnp.float32) * 0.10
    params = (w1, b1, w2, b2, wf1, bf1, wf2, bf2)

    kparams = prepare_params(params)                                   # one-time prep
    out = jax.jit(net_forward)(x, kparams)
    out = jax.block_until_ready(out)

    assert out.shape == (N, 36) and out.dtype == jnp.float32

    # log_softmax self-consistency: rows of exp(out) sum to 1.
    assert bool(jnp.allclose(jnp.sum(jnp.exp(out), axis=1), 1.0, atol=1e-3))

    # Compare against the pure-JAX reference (loose tol for MXU / bf16-fc1 precision).
    ref = jax.block_until_ready(reference_forward(x, params))
    assert bool(jnp.allclose(out, ref, atol=5e-2, rtol=5e-2)), "mismatch vs reference"

    print("KERNEL_OK")
</pallas_src>

<mosaic_0001>
module attributes {stable_mosaic.version = 11 : i64} {
  func.func @_conv_pool_relu_kernel(%arg0: i32, %arg1: memref<1x4x900x25xf32, #tpu.memory_space<vmem>>, %arg2: memref<25x6xf32, #tpu.memory_space<vmem>>, %arg3: memref<1x6xf32, #tpu.memory_space<vmem>>, %arg4: memref<1x900x6xf32, #tpu.memory_space<vmem>>) attributes {dimension_semantics = [#tpu.dimension_semantics<parallel>], iteration_bounds = array<i64: 2>, scalar_prefetch = 0 : i64, scratch_operands = 0 : i64, tpu.core_type = #tpu.core_type<tc>, window_params = [{transform_indices = @transform_0, window_bounds = array<i64: 1, 4, 900, 25>}, {pipeline_mode = #tpu.pipeline_mode<synchronous>, transform_indices = @transform_1, window_bounds = array<i64: 25, 6>}, {pipeline_mode = #tpu.pipeline_mode<synchronous>, transform_indices = @transform_2, window_bounds = array<i64: 1, 6>}, {transform_indices = @transform_3, window_bounds = array<i64: 1, 900, 6>}]} {
    %c0 = arith.constant 0 : index
    %c0_0 = arith.constant 0 : index
    %0 = vector.load %arg2[%c0, %c0_0] : memref<25x6xf32, #tpu.memory_space<vmem>>, vector<25x6xf32>
    %c0_1 = arith.constant 0 : index
    %c0_2 = arith.constant 0 : index
    %c0_3 = arith.constant 0 : index
    %c0_4 = arith.constant 0 : index
    %1 = vector.load %arg1[%c0_1, %c0_2, %c0_3, %c0_4] : memref<1x4x900x25xf32, #tpu.memory_space<vmem>>, vector<1x1x900x25xf32>
    %2 = vector.shape_cast %1 : vector<1x1x900x25xf32> to vector<900x25xf32>
    %cst = arith.constant dense<0.000000e+00> : vector<900x6xf32>
    %3 = tpu.matmul %2, %0, %cst {dimension_numbers = #tpu.dot_dimension_numbers<[1], [0], [0], [1], [0, 0, 1, 1], [], []>} : vector<900x25xf32>, vector<25x6xf32>, vector<900x6xf32> -> vector<900x6xf32>
    %c0_5 = arith.constant 0 : index
    %c1 = arith.constant 1 : index
    %c0_6 = arith.constant 0 : index
    %c0_7 = arith.constant 0 : index
    %4 = vector.load %arg1[%c0_5, %c1, %c0_6, %c0_7] : memref<1x4x900x25xf32, #tpu.memory_space<vmem>>, vector<1x1x900x25xf32>
    %5 = vector.shape_cast %4 : vector<1x1x900x25xf32> to vector<900x25xf32>
    %cst_8 = arith.constant dense<0.000000e+00> : vector<900x6xf32>
    %6 = tpu.matmul %5, %0, %cst_8 {dimension_numbers = #tpu.dot_dimension_numbers<[1], [0], [0], [1], [0, 0, 1, 1], [], []>} : vector<900x25xf32>, vector<25x6xf32>, vector<900x6xf32> -> vector<900x6xf32>
    %c0_9 = arith.constant 0 : index
    %c2 = arith.constant 2 : index
    %c0_10 = arith.constant 0 : index
    %c0_11 = arith.constant 0 : index
    %7 = vector.load %arg1[%c0_9, %c2, %c0_10, %c0_11] : memref<1x4x900x25xf32, #tpu.memory_space<vmem>>, vector<1x1x900x25xf32>
    %8 = vector.shape_cast %7 : vector<1x1x900x25xf32> to vector<900x25xf32>
    %cst_12 = arith.constant dense<0.000000e+00> : vector<900x6xf32>
    %9 = tpu.matmul %8, %0, %cst_12 {dimension_numbers = #tpu.dot_dimension_numbers<[1], [0], [0], [1], [0, 0, 1, 1], [], []>} : vector<900x25xf32>, vector<25x6xf32>, vector<900x6xf32> -> vector<900x6xf32>
    %c0_13 = arith.constant 0 : index
    %c3 = arith.constant 3 : index
    %c0_14 = arith.constant 0 : index
    %c0_15 = arith.constant 0 : index
    %10 = vector.load %arg1[%c0_13, %c3, %c0_14, %c0_15] : memref<1x4x900x25xf32, #tpu.memory_space<vmem>>, vector<1x1x900x25xf32>
    %11 = vector.shape_cast %10 : vector<1x1x900x25xf32> to vector<900x25xf32>
    %cst_16 = arith.constant dense<0.000000e+00> : vector<900x6xf32>
    %12 = tpu.matmul %11, %0, %cst_16 {dimension_numbers = #tpu.dot_dimension_numbers<[1], [0], [0], [1], [0, 0, 1, 1], [], []>} : vector<900x25xf32>, vector<25x6xf32>, vector<900x6xf32> -> vector<900x6xf32>
    %13 = arith.maximumf %3, %6 : vector<900x6xf32>
    %14 = arith.maximumf %9, %12 : vector<900x6xf32>
    %15 = arith.maximumf %13, %14 : vector<900x6xf32>
    %c0_17 = arith.constant 0 : index
    %c0_18 = arith.constant 0 : index
    %16 = vector.load %arg3[%c0_17, %c0_18] : memref<1x6xf32, #tpu.memory_space<vmem>>, vector<1x6xf32>
    %17 = vector.broadcast %16 : vector<1x6xf32> to vector<900x6xf32>
    %18 = arith.addf %15, %17 : vector<900x6xf32>
    %cst_19 = arith.constant 0.000000e+00 : f32
    %19 = vector.broadcast %cst_19 : f32 to vector<900x6xf32>
    %20 = arith.maximumf %18, %19 : vector<900x6xf32>
    %c0_20 = arith.constant 0 : index
    %c0_21 = arith.constant 0 : index
    %c0_22 = arith.constant 0 : index
    %21 = vector.load %arg4[%c0_20, %c0_21, %c0_22] : memref<1x900x6xf32, #tpu.memory_space<vmem>>, vector<1x900x6xf32>
    %22 = vector.shape_cast %21 : vector<1x900x6xf32> to vector<900x6xf32>
    %23 = vector.shape_cast %20 : vector<900x6xf32> to vector<1x900x6xf32>
    tpu.vector_store %arg4[%c0_20, %c0_21, %c0_22], %23 {strides = array<i32>} : memref<1x900x6xf32, #tpu.memory_space<vmem>>, vector<1x900x6xf32>,
    return
  }
  func.func @transform_0(%arg0: i32) -> (i32, i32, i32, i32) {
    %c0_i32 = arith.constant 0 : i32
    %c0_i32_0 = arith.constant 0 : i32
    %c0_i32_1 = arith.constant 0 : i32
    %c0_i32_2 = arith.constant 0 : i32
    return %arg0, %c0_i32, %c0_i32_0, %c0_i32_1 : i32, i32, i32, i32
  }
  func.func @transform_1(%arg0: i32) -> (i32, i32) {
    %c0_i32 = arith.constant 0 : i32
    %c0_i32_0 = arith.constant 0 : i32
    %c0_i32_1 = arith.constant 0 : i32
    return %c0_i32, %c0_i32_0 : i32, i32
  }
  func.func @transform_2(%arg0: i32) -> (i32, i32) {
    %c0_i32 = arith.constant 0 : i32
    %c0_i32_0 = arith.constant 0 : i32
    %c0_i32_1 = arith.constant 0 : i32
    return %c0_i32, %c0_i32_0 : i32, i32
  }
  func.func @transform_3(%arg0: i32) -> (i32, i32, i32) {
    %c0_i32 = arith.constant 0 : i32
    %c0_i32_0 = arith.constant 0 : i32
    %c0_i32_1 = arith.constant 0 : i32
    return %arg0, %c0_i32, %c0_i32_0 : i32, i32, i32
  }
}

module attributes {stable_mosaic.version = 11 : i64} {
  func.func @_conv_pool_relu_kernel(%arg0: i32, %arg1: memref<1x4x169x150xf32, #tpu.memory_space<vmem>>, %arg2: memref<150x16xf32, #tpu.memory_space<vmem>>, %arg3: memref<1x16xf32, #tpu.memory_space<vmem>>, %arg4: memref<1x169x16xf32, #tpu.memory_space<vmem>>) attributes {dimension_semantics = [#tpu.dimension_semantics<parallel>], iteration_bounds = array<i64: 2>, scalar_prefetch = 0 : i64, scratch_operands = 0 : i64, tpu.core_type = #tpu.core_type<tc>, window_params = [{transform_indices = @transform_0, window_bounds = array<i64: 1, 4, 169, 150>}, {pipeline_mode = #tpu.pipeline_mode<synchronous>, transform_indices = @transform_1, window_bounds = array<i64: 150, 16>}, {pipeline_mode = #tpu.pipeline_mode<synchronous>, transform_indices = @transform_2, window_bounds = array<i64: 1, 16>}, {transform_indices = @transform_3, window_bounds = array<i64: 1, 169, 16>}]} {
    %c0 = arith.constant 0 : index
    %c0_0 = arith.constant 0 : index
    %0 = vector.load %arg2[%c0, %c0_0] : memref<150x16xf32, #tpu.memory_space<vmem>>, vector<150x16xf32>
    %c0_1 = arith.constant 0 : index
    %c0_2 = arith.constant 0 : index
    %c0_3 = arith.constant 0 : index
    %c0_4 = arith.constant 0 : index
    %1 = vector.load %arg1[%c0_1, %c0_2, %c0_3, %c0_4] : memref<1x4x169x150xf32, #tpu.memory_space<vmem>>, vector<1x1x169x150xf32>
    %2 = vector.shape_cast %1 : vector<1x1x169x150xf32> to vector<169x150xf32>
    %cst = arith.constant dense<0.000000e+00> : vector<169x16xf32>
    %3 = tpu.matmul %2, %0, %cst {dimension_numbers = #tpu.dot_dimension_numbers<[1], [0], [0], [1], [0, 0, 1, 1], [], []>} : vector<169x150xf32>, vector<150x16xf32>, vector<169x16xf32> -> vector<169x16xf32>
    %c0_5 = arith.constant 0 : index
    %c1 = arith.constant 1 : index
    %c0_6 = arith.constant 0 : index
    %c0_7 = arith.constant 0 : index
    %4 = vector.load %arg1[%c0_5, %c1, %c0_6, %c0_7] : memref<1x4x169x150xf32, #tpu.memory_space<vmem>>, vector<1x1x169x150xf32>
    %5 = vector.shape_cast %4 : vector<1x1x169x150xf32> to vector<169x150xf32>
    %cst_8 = arith.constant dense<0.000000e+00> : vector<169x16xf32>
    %6 = tpu.matmul %5, %0, %cst_8 {dimension_numbers = #tpu.dot_dimension_numbers<[1], [0], [0], [1], [0, 0, 1, 1], [], []>} : vector<169x150xf32>, vector<150x16xf32>, vector<169x16xf32> -> vector<169x16xf32>
    %c0_9 = arith.constant 0 : index
    %c2 = arith.constant 2 : index
    %c0_10 = arith.constant 0 : index
    %c0_11 = arith.constant 0 : index
    %7 = vector.load %arg1[%c0_9, %c2, %c0_10, %c0_11] : memref<1x4x169x150xf32, #tpu.memory_space<vmem>>, vector<1x1x169x150xf32>
    %8 = vector.shape_cast %7 : vector<1x1x169x150xf32> to vector<169x150xf32>
    %cst_12 = arith.constant dense<0.000000e+00> : vector<169x16xf32>
    %9 = tpu.matmul %8, %0, %cst_12 {dimension_numbers = #tpu.dot_dimension_numbers<[1], [0], [0], [1], [0, 0, 1, 1], [], []>} : vector<169x150xf32>, vector<150x16xf32>, vector<169x16xf32> -> vector<169x16xf32>
    %c0_13 = arith.constant 0 : index
    %c3 = arith.constant 3 : index
    %c0_14 = arith.constant 0 : index
    %c0_15 = arith.constant 0 : index
    %10 = vector.load %arg1[%c0_13, %c3, %c0_14, %c0_15] : memref<1x4x169x150xf32, #tpu.memory_space<vmem>>, vector<1x1x169x150xf32>
    %11 = vector.shape_cast %10 : vector<1x1x169x150xf32> to vector<169x150xf32>
    %cst_16 = arith.constant dense<0.000000e+00> : vector<169x16xf32>
    %12 = tpu.matmul %11, %0, %cst_16 {dimension_numbers = #tpu.dot_dimension_numbers<[1], [0], [0], [1], [0, 0, 1, 1], [], []>} : vector<169x150xf32>, vector<150x16xf32>, vector<169x16xf32> -> vector<169x16xf32>
    %13 = arith.maximumf %3, %6 : vector<169x16xf32>
    %14 = arith.maximumf %9, %12 : vector<169x16xf32>
    %15 = arith.maximumf %13, %14 : vector<169x16xf32>
    %c0_17 = arith.constant 0 : index
    %c0_18 = arith.constant 0 : index
    %16 = vector.load %arg3[%c0_17, %c0_18] : memref<1x16xf32, #tpu.memory_space<vmem>>, vector<1x16xf32>
    %17 = vector.broadcast %16 : vector<1x16xf32> to vector<169x16xf32>
    %18 = arith.addf %15, %17 : vector<169x16xf32>
    %cst_19 = arith.constant 0.000000e+00 : f32
    %19 = vector.broadcast %cst_19 : f32 to vector<169x16xf32>
    %20 = arith.maximumf %18, %19 : vector<169x16xf32>
    %c0_20 = arith.constant 0 : index
    %c0_21 = arith.constant 0 : index
    %c0_22 = arith.constant 0 : index
    %21 = vector.load %arg4[%c0_20, %c0_21, %c0_22] : memref<1x169x16xf32, #tpu.memory_space<vmem>>, vector<1x169x16xf32>
    %22 = vector.shape_cast %21 : vector<1x169x16xf32> to vector<169x16xf32>
    %23 = vector.shape_cast %20 : vector<169x16xf32> to vector<1x169x16xf32>
    tpu.vector_store %arg4[%c0_20, %c0_21, %c0_22], %23 {strides = array<i32>} : memref<1x169x16xf32, #tpu.memory_space<vmem>>, vector<1x169x16xf32>,
    return
  }
  func.func @transform_0(%arg0: i32) -> (i32, i32, i32, i32) {
    %c0_i32 = arith.constant 0 : i32
    %c0_i32_0 = arith.constant 0 : i32
    %c0_i32_1 = arith.constant 0 : i32
    %c0_i32_2 = arith.constant 0 : i32
    return %arg0, %c0_i32, %c0_i32_0, %c0_i32_1 : i32, i32, i32, i32
  }
  func.func @transform_1(%arg0: i32) -> (i32, i32) {
    %c0_i32 = arith.constant 0 : i32
    %c0_i32_0 = arith.constant 0 : i32
    %c0_i32_1 = arith.constant 0 : i32
    return %c0_i32, %c0_i32_0 : i32, i32
  }
  func.func @transform_2(%arg0: i32) -> (i32, i32) {
    %c0_i32 = arith.constant 0 : i32
    %c0_i32_0 = arith.constant 0 : i32
    %c0_i32_1 = arith.constant 0 : i32
    return %c0_i32, %c0_i32_0 : i32, i32
  }
  func.func @transform_3(%arg0: i32) -> (i32, i32, i32) {
    %c0_i32 = arith.constant 0 : i32
    %c0_i32_0 = arith.constant 0 : i32
    %c0_i32_1 = arith.constant 0 : i32
    return %arg0, %c0_i32, %c0_i32_0 : i32, i32, i32
  }
}

module attributes {stable_mosaic.version = 11 : i64} {
  func.func @_fc_head_kernel(%arg0: i32, %arg1: memref<2x2704xf32, #tpu.memory_space<vmem>>, %arg2: memref<2704x240xbf16, #tpu.memory_space<vmem>>, %arg3: memref<1x240xf32, #tpu.memory_space<vmem>>, %arg4: memref<240x128xf32, #tpu.memory_space<vmem>>, %arg5: memref<1x128xf32, #tpu.memory_space<vmem>>, %arg6: memref<2x128xf32, #tpu.memory_space<vmem>>) attributes {dimension_semantics = [#tpu.dimension_semantics<arbitrary>], iteration_bounds = array<i64: 1>, scalar_prefetch = 0 : i64, scratch_operands = 0 : i64, tpu.core_type = #tpu.core_type<tc>, window_params = [{pipeline_mode = #tpu.pipeline_mode<synchronous>, transform_indices = @transform_0, window_bounds = array<i64: 2, 2704>}, {pipeline_mode = #tpu.pipeline_mode<synchronous>, transform_indices = @transform_1, window_bounds = array<i64: 2704, 240>}, {pipeline_mode = #tpu.pipeline_mode<synchronous>, transform_indices = @transform_2, window_bounds = array<i64: 1, 240>}, {pipeline_mode = #tpu.pipeline_mode<synchronous>, transform_indices = @transform_3, window_bounds = array<i64: 240, 128>}, {pipeline_mode = #tpu.pipeline_mode<synchronous>, transform_indices = @transform_4, window_bounds = array<i64: 1, 128>}, {pipeline_mode = #tpu.pipeline_mode<synchronous>, transform_indices = @transform_5, window_bounds = array<i64: 2, 128>}]} {
    %c0 = arith.constant 0 : index
    %c0_0 = arith.constant 0 : index
    %0 = vector.load %arg1[%c0, %c0_0] : memref<2x2704xf32, #tpu.memory_space<vmem>>, vector<2x2704xf32>
    %1 = arith.truncf %0 : vector<2x2704xf32> to vector<2x2704xbf16>
    %c0_1 = arith.constant 0 : index
    %c0_2 = arith.constant 0 : index
    %2 = vector.load %arg2[%c0_1, %c0_2] : memref<2704x240xbf16, #tpu.memory_space<vmem>>, vector<2704x240xbf16>
    %cst = arith.constant dense<0.000000e+00> : vector<2x240xf32>
    %3 = tpu.matmul %1, %2, %cst {dimension_numbers = #tpu.dot_dimension_numbers<[1], [0], [0], [1], [0, 0, 1, 1], [], []>} : vector<2x2704xbf16>, vector<2704x240xbf16>, vector<2x240xf32> -> vector<2x240xf32>
    %c0_3 = arith.constant 0 : index
    %c0_4 = arith.constant 0 : index
    %4 = vector.load %arg3[%c0_3, %c0_4] : memref<1x240xf32, #tpu.memory_space<vmem>>, vector<1x240xf32>
    %5 = vector.broadcast %4 : vector<1x240xf32> to vector<2x240xf32>
    %6 = arith.addf %3, %5 : vector<2x240xf32>
    %cst_5 = arith.constant 0.000000e+00 : f32
    %7 = vector.broadcast %cst_5 : f32 to vector<2x240xf32>
    %8 = arith.maximumf %6, %7 : vector<2x240xf32>
    %c0_6 = arith.constant 0 : index
    %c0_7 = arith.constant 0 : index
    %9 = vector.load %arg4[%c0_6, %c0_7] : memref<240x128xf32, #tpu.memory_space<vmem>>, vector<240x128xf32>
    %cst_8 = arith.constant dense<0.000000e+00> : vector<2x128xf32>
    %10 = tpu.matmul %8, %9, %cst_8 {dimension_numbers = #tpu.dot_dimension_numbers<[1], [0], [0], [1], [0, 0, 1, 1], [], []>} : vector<2x240xf32>, vector<240x128xf32>, vector<2x128xf32> -> vector<2x128xf32>
    %c0_9 = arith.constant 0 : index
    %c0_10 = arith.constant 0 : index
    %11 = vector.load %arg5[%c0_9, %c0_10] : memref<1x128xf32, #tpu.memory_space<vmem>>, vector<1x128xf32>
    %12 = vector.broadcast %11 : vector<1x128xf32> to vector<2x128xf32>
    %13 = arith.addf %10, %12 : vector<2x128xf32>
    %cst_11 = arith.constant dense<0xFF800000> : vector<2xf32>
    %14 = vector.multi_reduction <maximumf>, %13, %cst_11 [1] : vector<2x128xf32> to vector<2xf32>
    %15 = vector.shape_cast %14 : vector<2xf32> to vector<2x1xf32>
    %16 = vector.broadcast %15 : vector<2x1xf32> to vector<2x128xf32>
    %17 = arith.subf %13, %16 : vector<2x128xf32>
    %18 = math.exp %17 : vector<2x128xf32>
    %cst_12 = arith.constant dense<0.000000e+00> : vector<2xf32>
    %19 = vector.multi_reduction <add>, %18, %cst_12 [1] : vector<2x128xf32> to vector<2xf32>
    %20 = vector.shape_cast %19 : vector<2xf32> to vector<2x1xf32>
    %21 = math.log %20 : vector<2x1xf32>
    %22 = vector.broadcast %21 : vector<2x1xf32> to vector<2x128xf32>
    %23 = arith.subf %17, %22 : vector<2x128xf32>
    %c0_13 = arith.constant 0 : index
    %c0_14 = arith.constant 0 : index
    %24 = vector.load %arg6[%c0_13, %c0_14] : memref<2x128xf32, #tpu.memory_space<vmem>>, vector<2x128xf32>
    tpu.vector_store %arg6[%c0_13, %c0_14], %23 {strides = array<i32>} : memref<2x128xf32, #tpu.memory_space<vmem>>, vector<2x128xf32>,
    return
  }
  func.func @transform_0(%arg0: i32) -> (i32, i32) {
    %c0_i32 = arith.constant 0 : i32
    %c0_i32_0 = arith.constant 0 : i32
    %c0_i32_1 = arith.constant 0 : i32
    return %c0_i32, %c0_i32_0 : i32, i32
  }
  func.func @transform_1(%arg0: i32) -> (i32, i32) {
    %c0_i32 = arith.constant 0 : i32
    %c0_i32_0 = arith.constant 0 : i32
    %c0_i32_1 = arith.constant 0 : i32
    return %c0_i32, %c0_i32_0 : i32, i32
  }
  func.func @transform_2(%arg0: i32) -> (i32, i32) {
    %c0_i32 = arith.constant 0 : i32
    %c0_i32_0 = arith.constant 0 : i32
    %c0_i32_1 = arith.constant 0 : i32
    return %c0_i32, %c0_i32_0 : i32, i32
  }
  func.func @transform_3(%arg0: i32) -> (i32, i32) {
    %c0_i32 = arith.constant 0 : i32
    %c0_i32_0 = arith.constant 0 : i32
    %c0_i32_1 = arith.constant 0 : i32
    return %c0_i32, %c0_i32_0 : i32, i32
  }
  func.func @transform_4(%arg0: i32) -> (i32, i32) {
    %c0_i32 = arith.constant 0 : i32
    %c0_i32_0 = arith.constant 0 : i32
    %c0_i32_1 = arith.constant 0 : i32
    return %c0_i32, %c0_i32_0 : i32, i32
  }
  func.func @transform_5(%arg0: i32) -> (i32, i32) {
    %c0_i32 = arith.constant 0 : i32
    %c0_i32_0 = arith.constant 0 : i32
    %c0_i32_1 = arith.constant 0 : i32
    return %c0_i32, %c0_i32_0 : i32, i32
  }
}

</mosaic_0001>

<llo_original>
// kernel: net_forward.3
$region0: #{net_forward.3}
  #allocation0 [shape = 'u32[]', space=smem, size = 0x4, offset = 0x4, fixed_abs, tag = 'smem constant byte address 0x4 - core index']
  #allocation1 [shape = 'u32[72,128]{1,0:T(1,128)}', space=vmem, size = 0x9000, scoped, tag = 'internal scratch']
  %s0 = inlined_call_operand.vmem [shape: f32[2,4,900,25], index: 0, kind: input, shape index: {}]
  %s1 = inlined_call_operand.vmem [shape: f32[25,6], index: 1, kind: input, shape index: {}]
  %s2 = inlined_call_operand.vmem [shape: f32[1,6], index: 2, kind: input, shape index: {}]
  %s3 = inlined_call_operand.vmem [shape: f32[2,900,6], index: 3, kind: output, shape index: {}]
  %s4 = sld [smem:[#allocation0]]
  $region45: #{net_forward.3} parent=0
    _
  %s6 = ssub.s32 1, %s4
  %s7 = scalar_select 0, %s6, %s4
  loop: start=0, step=1, limit=4
  $region2: #{net_forward.3} parent=0 // loop_pre_header
    _
  $region3: #{net_forward.3} parent=0 // loop_header
    %s9 = sphi 0, %s13
    %p10 = scmp.ge.s32.totalorder %s9, 4
    %s19 = sphi 0, %s21
    %s22 = sphi 0, %s19
    %s23 = sphi 0, %s22
    %s39 = sphi 0, %s23
    %s43 = sphi 0, %s43
    %s45 = sphi 0, %s43
    %s46 = sphi 0, %s45
    %s60 = sphi 0, %s46
    %s64 = sphi 0, %s64
    %s66 = sphi 0, %s64
    %s67 = sphi 0, %s66
    %s81 = sphi 0, %s67
    %s87 = sphi 0, %s89
    %s90 = sphi 0, %s87
    %s91 = sphi 0, %s90
    %s107 = sphi 0, %s91
  $region4: #{net_forward.3} parent=0 // loop_header_branch
    %12 = sbr.rel (%p10) target = $region8
  $region5: #{net_forward.3} parent=0 // loop_body
    %s14 = ssub.s32 %s9, 1
    %s15 = ssub.s32 %s9, 2
    %s16 = sadd.s32 %s9, 1
    %s17 = ssub.s32 %s9, %s16
    %p18 = scmp.eq.s32.totalorder %s17, 0
    %s20 = sadd.s32 %s19, 1
    %s21 = scalar_select %p18, %s19, %s20
    %p24 = pneg %p18
    %p25 = scmp.eq.s32.totalorder %s9, 1
    %p26 = por %p24, %p25
    %p27 = scmp.ne.s32.totalorder %s19, %s22
    %p28 = scmp.eq.s32.totalorder %s9, 0
    %p29 = por %p27, %p28
    %p30 = scmp.ne.s32.totalorder %s19, %s22
    %p31 = scmp.eq.s32.totalorder %s14, 1
    %p32 = por %p30, %p31
    %p33 = scmp.ne.s32.totalorder %s22, %s23
    %p34 = scmp.eq.s32.totalorder %s14, 0
    %p35 = por %p33, %p34
    %p36 = scmp.ne.s32.totalorder %s22, %s23
    %p37 = scmp.eq.s32.totalorder %s15, 1
    %p38 = por %p36, %p37
    %p40 = scmp.ne.s32.totalorder %s23, %s39
    %p41 = scmp.eq.s32.totalorder %s15, 0
    %p42 = por %p40, %p41
    %s44 = sadd.s32 %s43, 1
    %p47 = scmp.eq.s32.totalorder %s9, 1
    %p48 = scmp.ne.s32.totalorder %s43, %s45
    %p49 = scmp.eq.s32.totalorder %s9, 0
    %p50 = por %p48, %p49
    %p51 = scmp.ne.s32.totalorder %s43, %s45
    %p52 = scmp.eq.s32.totalorder %s14, 1
    %p53 = por %p51, %p52
    %p54 = scmp.ne.s32.totalorder %s45, %s46
    %p55 = scmp.eq.s32.totalorder %s14, 0
    %p56 = por %p54, %p55
    %p57 = scmp.ne.s32.totalorder %s45, %s46
    %p58 = scmp.eq.s32.totalorder %s15, 1
    %p59 = por %p57, %p58
    %p61 = scmp.ne.s32.totalorder %s46, %s60
    %p62 = scmp.eq.s32.totalorder %s15, 0
    %p63 = por %p61, %p62
    %s65 = sadd.s32 %s64, 1
    %p68 = scmp.eq.s32.totalorder %s9, 1
    %p69 = scmp.ne.s32.totalorder %s64, %s66
    %p70 = scmp.eq.s32.totalorder %s9, 0
    %p71 = por %p69, %p70
    %p72 = scmp.ne.s32.totalorder %s64, %s66
    %p73 = scmp.eq.s32.totalorder %s14, 1
    %p74 = por %p72, %p73
    %p75 = scmp.ne.s32.totalorder %s66, %s67
    %p76 = scmp.eq.s32.totalorder %s14, 0
    %p77 = por %p75, %p76
    %p78 = scmp.ne.s32.totalorder %s66, %s67
    %p79 = scmp.eq.s32.totalorder %s15, 1
    %p80 = por %p78, %p79
    %p82 = scmp.ne.s32.totalorder %s67, %s81
    %p83 = scmp.eq.s32.totalorder %s15, 0
    %p84 = por %p82, %p83
    %s85 = ssub.s32 %s9, %s16
    %p86 = scmp.eq.s32.totalorder %s85, 0
    %s88 = sadd.s32 %s87, 1
    %s89 = scalar_select %p86, %s87, %s88
    %p92 = pneg %p86
    %p93 = scmp.eq.s32.totalorder %s9, 1
    %p94 = por %p92, %p93
    %p95 = scmp.ne.s32.totalorder %s87, %s90
    %p96 = scmp.eq.s32.totalorder %s9, 0
    %p97 = por %p95, %p96
    %p98 = scmp.ne.s32.totalorder %s87, %s90
    %p99 = scmp.eq.s32.totalorder %s14, 1
    %p100 = por %p98, %p99
    %p101 = scmp.ne.s32.totalorder %s90, %s91
    %p102 = scmp.eq.s32.totalorder %s14, 0
    %p103 = por %p101, %p102
    %p104 = scmp.ne.s32.totalorder %s90, %s91
    %p105 = scmp.eq.s32.totalorder %s15, 1
    %p106 = por %p104, %p105
    %p108 = scmp.ne.s32.totalorder %s91, %s107
    %p109 = scmp.eq.s32.totalorder %s15, 0
    %p110 = por %p108, %p109
    %p111 = scmp.le.s32.totalorder 1, %s9
    %p112 = scmp.lt.s32.totalorder %s9, 3
    %p113 = pnand %p111, %p112
    %p114 = pneg %p113
    // Predicated region
    $region9: #{net_forward.3} parent=5 // pred_check
      _
    $region10: #{net_forward.3} parent=5 // pred_check_branch
      %116 = sbr.rel (%p113) target = $region12
    $region11: #{net_forward.3} parent=5 // pred_region
      %s117 = ssub.s32 %s9, 1
      // Predicated region
      $region13: #{net_forward.3} parent=11 // pred_check
        %p118 = pneg %p56
      $region14: #{net_forward.3} parent=11 // pred_check_branch
        %120 = sbr.rel (%p118) target = $region16
      $region15: #{net_forward.3} parent=11 // pred_region
        _
      $region16: #{net_forward.3} parent=11 // pred_fallthru
        _
      // Predicated region
      $region17: #{net_forward.3} parent=11 // pred_check
        %p121 = pneg %p77
      $region18: #{net_forward.3} parent=11 // pred_check_branch
        %123 = sbr.rel (%p121) target = $region20
      $region19: #{net_forward.3} parent=11 // pred_region
        _
      $region20: #{net_forward.3} parent=11 // pred_fallthru
        _
    $region12: #{net_forward.3} parent=5 // pred_fallthru
      _
    %p124 = scmp.lt.s32.totalorder %s9, 2
    // Predicated region
    $region21: #{net_forward.3} parent=5 // pred_check
      %p125 = pneg %p124
    $region22: #{net_forward.3} parent=5 // pred_check_branch
      %127 = sbr.rel (%p125) target = $region24
    $region23: #{net_forward.3} parent=5 // pred_region
      // Predicated region
      $region25: #{net_forward.3} parent=23 // pred_check
        %p128 = pneg %p29
      $region26: #{net_forward.3} parent=23 // pred_check_branch
        %130 = sbr.rel (%p128) target = $region28
      $region27: #{net_forward.3} parent=23 // pred_region
        %p131 = scmp.lt.s32.totalorder %s9, 1
        %s132 = scalar_select %p131, %s9, 1
        %s133 = smul.addr %s132, 452
        %s134 = smul.addr %s133, 8
        %s135 = scalar_lea.vmem %s0, %s134
      $region28: #{net_forward.3} parent=23 // pred_fallthru
        _
    $region24: #{net_forward.3} parent=5 // pred_fallthru
      _
    %p136 = scmp.le.s32.totalorder 1, %s9
    %p137 = scmp.lt.s32.totalorder %s9, 3
    %p138 = pnand %p136, %p137
    %p139 = pneg %p138
    // Predicated region
    $region29: #{net_forward.3} parent=5 // pred_check
      _
    $region30: #{net_forward.3} parent=5 // pred_check_branch
      %141 = sbr.rel (%p138) target = $region32
    $region31: #{net_forward.3} parent=5 // pred_region
      %s142 = ssub.s32 %s9, 1
      %p143 = scmp.lt.s32.totalorder %s14, 1
      %s144 = scalar_select %p143, %s14, 1
      %s145 = smul.addr %s144, 452
      %s146 = smul.addr %s145, 8
      %s147 = scalar_lea.vmem %s0, %s146
      %p148 = pneg %p35
      %p149 = pneg %p32
      %p150 = pneg %p56
      %p151 = pneg %p53
      %p152 = pneg %p77
      %p153 = pneg %p74
      %p154 = pneg %p103
      %p155 = pneg %p100
      %p156 = scmp.lt.s32.totalorder %s14, 1
      %s157 = scalar_select %p156, %s14, 1
      %s158 = smul.addr %s157, 113
      %s159 = smul.addr %s158, 8
      %s160 = scalar_lea.vmem %s3, %s159
      %p161 = scmp.lt.s32.totalorder %s14, 1
      %s162 = scalar_select %p161, %s14, 1
      %s163 = smul.addr %s162, 452
      %s164 = smul.addr %s163, 8
      %s165 = scalar_lea.vmem %s0, %s164
      %p166 = scmp.lt.s32.totalorder %s14, 1
      %s167 = scalar_select %p166, %s14, 1
      %s168 = smul.addr %s167, 113
      %s169 = smul.addr %s168, 8
      %s170 = scalar_lea.vmem %s3, %s169
      %v171 = vld [vmem:[%s1] sm:$0xff]
      %v172 = vld [vmem:[%s1 + $0x8] sm:$0xff]
      %v173 = vld [vmem:[%s1 + $0x10] sm:$0xff]
      %v174 = vld [vmem:[%s1 + $0x18] sm:$0x1]
      %v175 = vld [vmem:[%s165] sm:$0xff]
      %v176 = vld [vmem:[%s165 + $0x8] sm:$0xff]
      %v177 = vld [vmem:[%s165 + $0x10] sm:$0xff]
      %v178 = vld [vmem:[%s165 + $0x18] sm:$0xff]
      %v179 = vld [vmem:[%s165 + $0x20] sm:$0xff]
      %v180 = vld [vmem:[%s165 + $0x28] sm:$0xff]
      %v181 = vld [vmem:[%s165 + $0x30] sm:$0xff]
      %v182 = vld [vmem:[%s165 + $0x38] sm:$0xff]
      %v183 = vld [vmem:[%s165 + $0x40] sm:$0xff]
      %v184 = vld [vmem:[%s165 + $0x48] sm:$0xff]
      %v185 = vld [vmem:[%s165 + $0x50] sm:$0xff]
      %v186 = vld [vmem:[%s165 + $0x58] sm:$0xff]
      %v187 = vld [vmem:[%s165 + $0x60] sm:$0xff]
      %v188 = vld [vmem:[%s165 + $0x68] sm:$0xff]
      %v189 = vld [vmem:[%s165 + $0x70] sm:$0xff]
      %v190 = vld [vmem:[%s165 + $0x78] sm:$0xff]
      %v191 = vld [vmem:[%s165 + $0x80] sm:$0xff]
      %v192 = vld [vmem:[%s165 + $0x88] sm:$0xff]
      %v193 = vld [vmem:[%s165 + $0x90] sm:$0xff]
      %v194 = vld [vmem:[%s165 + $0x98] sm:$0xff]
      %v195 = vld [vmem:[%s165 + $0xa0] sm:$0xff]
      %v196 = vld [vmem:[%s165 + $0xa8] sm:$0xff]
      %v197 = vld [vmem:[%s165 + $0xb0] sm:$0xff]
      %v198 = vld [vmem:[%s165 + $0xb8] sm:$0xff]
      %v199 = vld [vmem:[%s165 + $0xc0] sm:$0xff]
      %v200 = vld [vmem:[%s165 + $0xc8] sm:$0xff]
      %v201 = vld [vmem:[%s165 + $0xd0] sm:$0xff]
      %v202 = vld [vmem:[%s165 + $0xd8] sm:$0xff]
      %v203 = vld [vmem:[%s165 + $0xe0] sm:$0xff]
      %v204 = vld [vmem:[%s165 + $0xe8] sm:$0xff]
      %v205 = vld [vmem:[%s165 + $0xf0] sm:$0xff]
      %v206 = vld [vmem:[%s165 + $0xf8] sm:$0xff]
      %v207 = vld [vmem:[%s165 + $0x100] sm:$0xff]
      %v208 = vld [vmem:[%s165 + $0x108] sm:$0xff]
      %v209 = vld [vmem:[%s165 + $0x110] sm:$0xff]
      %v210 = vld [vmem:[%s165 + $0x118] sm:$0xff]
      %v211 = vld [vmem:[%s165 + $0x120] sm:$0xff]
      %v212 = vld [vmem:[%s165 + $0x128] sm:$0xff]
      %v213 = vld [vmem:[%s165 + $0x130] sm:$0xff]
      %v214 = vld [vmem:[%s165 + $0x138] sm:$0xff]
      %v215 = vld [vmem:[%s165 + $0x140] sm:$0xff]
      %v216 = vld [vmem:[%s165 + $0x148] sm:$0xff]
      %v217 = vld [vmem:[%s165 + $0x150] sm:$0xff]
      %v218 = vld [vmem:[%s165 + $0x158] sm:$0xff]
      %v219 = vld [vmem:[%s165 + $0x160] sm:$0xff]
      %v220 = vld [vmem:[%s165 + $0x168] sm:$0xff]
      %v221 = vld [vmem:[%s165 + $0x170] sm:$0xff]
      %v222 = vld [vmem:[%s165 + $0x178] sm:$0xff]
      %v223 = vld [vmem:[%s165 + $0x180] sm:$0xff]
      %v224 = vld [vmem:[%s165 + $0x188] sm:$0xff]
      %v225 = vld [vmem:[%s165 + $0x190] sm:$0xff]
      %v226 = vld [vmem:[%s165 + $0x198] sm:$0xff]
      %v227 = vld [vmem:[%s165 + $0x1a0] sm:$0xff]
      %v228 = vld [vmem:[%s165 + $0x1a8] sm:$0xff]
      %v229 = vld [vmem:[%s165 + $0x1b0] sm:$0xff]
      %v230 = vld [vmem:[%s165 + $0x1b8] sm:$0xff]
      %v231 = vld [vmem:[%s165 + $0x1c0] sm:$0xff]
      %v232 = vld [vmem:[%s165 + $0x1c8] sm:$0xff]
      %v233 = vld [vmem:[%s165 + $0x1d0] sm:$0xff]
      %v234 = vld [vmem:[%s165 + $0x1d8] sm:$0xff]
      %v235 = vld [vmem:[%s165 + $0x1e0] sm:$0xff]
      %v236 = vld [vmem:[%s165 + $0x1e8] sm:$0xff]
      %v237 = vld [vmem:[%s165 + $0x1f0] sm:$0xff]
      %v238 = vld [vmem:[%s165 + $0x1f8] sm:$0xff]
      %v239 = vld [vmem:[%s165 + $0x200] sm:$0xff]
      %v240 = vld [vmem:[%s165 + $0x208] sm:$0xff]
      %v241 = vld [vmem:[%s165 + $0x210] sm:$0xff]
      %v242 = vld [vmem:[%s165 + $0x218] sm:$0xff]
      %v243 = vld [vmem:[%s165 + $0x220] sm:$0xff]
      %v244 = vld [vmem:[%s165 + $0x228] sm:$0xff]
      %v245 = vld [vmem:[%s165 + $0x230] sm:$0xff]
      %v246 = vld [vmem:[%s165 + $0x238] sm:$0xff]
      %v247 = vld [vmem:[%s165 + $0x240] sm:$0xff]
      %v248 = vld [vmem:[%s165 + $0x248] sm:$0xff]
      %v249 = vld [vmem:[%s165 + $0x250] sm:$0xff]
      %v250 = vld [vmem:[%s165 + $0x258] sm:$0xff]
      %v251 = vld [vmem:[%s165 + $0x260] sm:$0xff]
      %v252 = vld [vmem:[%s165 + $0x268] sm:$0xff]
      %v253 = vld [vmem:[%s165 + $0x270] sm:$0xff]
      %v254 = vld [vmem:[%s165 + $0x278] sm:$0xff]
      %v255 = vld [vmem:[%s165 + $0x280] sm:$0xff]
      %v256 = vld [vmem:[%s165 + $0x288] sm:$0xff]
      %v257 = vld [vmem:[%s165 + $0x290] sm:$0xff]
      %v258 = vld [vmem:[%s165 + $0x298] sm:$0xff]
      %v259 = vld [vmem:[%s165 + $0x2a0] sm:$0xff]
      %v260 = vld [vmem:[%s165 + $0x2a8] sm:$0xff]
      %v261 = vld [vmem:[%s165 + $0x2b0] sm:$0xff]
      %v262 = vld [vmem:[%s165 + $0x2b8] sm:$0xff]
      %v263 = vld [vmem:[%s165 + $0x2c0] sm:$0xff]
      %v264 = vld [vmem:[%s165 + $0x2c8] sm:$0xff]
      %v265 = vld [vmem:[%s165 + $0x2d0] sm:$0xff]
      %v266 = vld [vmem:[%s165 + $0x2d8] sm:$0xff]
      %v267 = vld [vmem:[%s165 + $0x2e0] sm:$0xff]
      %v268 = vld [vmem:[%s165 + $0x2e8] sm:$0xff]
      %v269 = vld [vmem:[%s165 + $0x2f0] sm:$0xff]
      %v270 = vld [vmem:[%s165 + $0x2f8] sm:$0xff]
      %v271 = vld [vmem:[%s165 + $0x300] sm:$0xff]
      %v272 = vld [vmem:[%s165 + $0x308] sm:$0xff]
      %v273 = vld [vmem:[%s165 + $0x310] sm:$0xff]
      %v274 = vld [vmem:[%s165 + $0x318] sm:$0xff]
      %v275 = vld [vmem:[%s165 + $0x320] sm:$0xff]
      %v276 = vld [vmem:[%s165 + $0x328] sm:$0xff]
      %v277 = vld [vmem:[%s165 + $0x330] sm:$0xff]
      %v278 = vld [vmem:[%s165 + $0x338] sm:$0xff]
      %v279 = vld [vmem:[%s165 + $0x340] sm:$0xff]
      %v280 = vld [vmem:[%s165 + $0x348] sm:$0xff]
      %v281 = vld [vmem:[%s165 + $0x350] sm:$0xff]
      %v282 = vld [vmem:[%s165 + $0x358] sm:$0xff]
      %v283 = vld [vmem:[%s165 + $0x360] sm:$0xff]
      %v284 = vld [vmem:[%s165 + $0x368] sm:$0xff]
      %v285 = vld [vmem:[%s165 + $0x370] sm:$0xff]
      %v286 = vld [vmem:[%s165 + $0x378] sm:$0xff]
      %v287 = vld [vmem:[%s165 + $0x380] sm:$0xf]
      %vm288 = vcmask 203776
      %v290 = vsel %vm288, %v175, 0
      %v293 = vsel %vm288, %v176, 0
      %v296 = vsel %vm288, %v177, 0
      %v299 = vsel %vm288, %v178, 0
      %v302 = vsel %vm288, %v179, 0
      %v305 = vsel %vm288, %v180, 0
      %v308 = vsel %vm288, %v181, 0
      %v311 = vsel %vm288, %v182, 0
      %v314 = vsel %vm288, %v183, 0
      %v317 = vsel %vm288, %v184, 0
      %v320 = vsel %vm288, %v185, 0
      %v323 = vsel %vm288, %v186, 0
      %v326 = vsel %vm288, %v187, 0
      %v329 = vsel %vm288, %v188, 0
      %v332 = vsel %vm288, %v189, 0
      %v335 = vsel %vm288, %v190, 0
      %v338 = vsel %vm288, %v191, 0
      %v341 = vsel %vm288, %v192, 0
      %v344 = vsel %vm288, %v193, 0
      %v347 = vsel %vm288, %v194, 0
      %v350 = vsel %vm288, %v195, 0
      %v353 = vsel %vm288, %v196, 0
      %v356 = vsel %vm288, %v197, 0
      %v359 = vsel %vm288, %v198, 0
      %v362 = vsel %vm288, %v199, 0
      %v365 = vsel %vm288, %v200, 0
      %v368 = vsel %vm288, %v201, 0
      %v371 = vsel %vm288, %v202, 0
      %v374 = vsel %vm288, %v203, 0
      %v377 = vsel %vm288, %v204, 0
      %v380 = vsel %vm288, %v205, 0
      %v383 = vsel %vm288, %v206, 0
      %v386 = vsel %vm288, %v207, 0
      %v389 = vsel %vm288, %v208, 0
      %v392 = vsel %vm288, %v209, 0
      %v395 = vsel %vm288, %v210, 0
      %v398 = vsel %vm288, %v211, 0
      %v401 = vsel %vm288, %v212, 0
      %v404 = vsel %vm288, %v213, 0
      %v407 = vsel %vm288, %v214, 0
      %v410 = vsel %vm288, %v215, 0
      %v413 = vsel %vm288, %v216, 0
      %v416 = vsel %vm288, %v217, 0
      %v419 = vsel %vm288, %v218, 0
      %v422 = vsel %vm288, %v219, 0
      %v425 = vsel %vm288, %v220, 0
      %v428 = vsel %vm288, %v221, 0
      %v431 = vsel %vm288, %v222, 0
      %v434 = vsel %vm288, %v223, 0
      %v437 = vsel %vm288, %v224, 0
      %v440 = vsel %vm288, %v225, 0
      %v443 = vsel %vm288, %v226, 0
      %v446 = vsel %vm288, %v227, 0
      %v449 = vsel %vm288, %v228, 0
      %v452 = vsel %vm288, %v229, 0
      %v455 = vsel %vm288, %v230, 0
      %v458 = vsel %vm288, %v231, 0
      %v461 = vsel %vm288, %v232, 0
      %v464 = vsel %vm288, %v233, 0
      %v467 = vsel %vm288, %v234, 0
      %v470 = vsel %vm288, %v235, 0
      %v473 = vsel %vm288, %v236, 0
      %v476 = vsel %vm288, %v237, 0
      %v479 = vsel %vm288, %v238, 0
      %v482 = vsel %vm288, %v239, 0
      %v485 = vsel %vm288, %v240, 0
      %v488 = vsel %vm288, %v241, 0
      %v491 = vsel %vm288, %v242, 0
      %v494 = vsel %vm288, %v243, 0
      %v497 = vsel %vm288, %v244, 0
      %v500 = vsel %vm288, %v245, 0
      %v503 = vsel %vm288, %v246, 0
      %v506 = vsel %vm288, %v247, 0
      %v509 = vsel %vm288, %v248, 0
      %v512 = vsel %vm288, %v249, 0
      %v515 = vsel %vm288, %v250, 0
      %v518 = vsel %vm288, %v251, 0
      %v521 = vsel %vm288, %v252, 0
      %v524 = vsel %vm288, %v253, 0
      %v527 = vsel %vm288, %v254, 0
      %v530 = vsel %vm288, %v255, 0
      %v533 = vsel %vm288, %v256, 0
      %v536 = vsel %vm288, %v257, 0
      %v539 = vsel %vm288, %v258, 0
      %v542 = vsel %vm288, %v259, 0
      %v545 = vsel %vm288, %v260, 0
      %v548 = vsel %vm288, %v261, 0
      %v551 = vsel %vm288, %v262, 0
      %v554 = vsel %vm288, %v263, 0
      %v557 = vsel %vm288, %v264, 0
      %v560 = vsel %vm288, %v265, 0
      %v563 = vsel %vm288, %v266, 0
      %v566 = vsel %vm288, %v267, 0
      %v569 = vsel %vm288, %v268, 0
      %v572 = vsel %vm288, %v269, 0
      %v575 = vsel %vm288, %v270, 0
      %v578 = vsel %vm288, %v271, 0
      %v581 = vsel %vm288, %v272, 0
      %v584 = vsel %vm288, %v273, 0
      %v587 = vsel %vm288, %v274, 0
      %v590 = vsel %vm288, %v275, 0
      %v593 = vsel %vm288, %v276, 0
      %v596 = vsel %vm288, %v277, 0
      %v599 = vsel %vm288, %v278, 0
      %v602 = vsel %vm288, %v279, 0
      %v605 = vsel %vm288, %v280, 0
      %v608 = vsel %vm288, %v281, 0
      %v611 = vsel %vm288, %v282, 0
      %v614 = vsel %vm288, %v283, 0
      %v617 = vsel %vm288, %v284, 0
      %v620 = vsel %vm288, %v285, 0
      %v623 = vsel %vm288, %v286, 0
      %v626 = vsel %vm288, %v287, 0
      %vm628 = vcmask 1040384
      %v630 = vsel %vm628, %v174, 0
      %632 = vmatpush.msra.mxu0 0.0
      %633 = vmatpush.msra.mxu0 0.0
      %634 = vmatpush.msra.mxu0 0.0
      %635 = vmatpush.msra.mxu0 0.0
      %636 = vmatpush.msra.mxu0 0.0
      %637 = vmatpush.msra.mxu0 0.0
      %638 = vmatpush.msra.mxu0 0.0
      %639 = vmatpush.msra.mxu0 0.0
      %640 = vmatpush.msra.mxu0 0.0
      %641 = vmatpush.msra.mxu0 0.0
      %642 = vmatpush.msra.mxu0 0.0
      %643 = vmatpush.msra.mxu0 0.0
      %644 = vmatpush.msra.mxu0 %v630
      %645 = vmatpush.msra.mxu0 %v173
      %646 = vmatpush.msra.mxu0 %v172
      %647 = vmatpush.msra.mxu0 %v171
      %648 = vmatmul.f32.gmra.mxu0 %v290
      %v649 = vpop.f32.mrf.mxu0
      %v650 = vadd.f32 0.0, %v649
      %651 = vmatmul.f32.gmra.mxu0 %v293
      %v652 = vpop.f32.mrf.mxu0
      %v653 = vadd.f32 0.0, %v652
      %654 = vmatmul.f32.gmra.mxu0 %v296
      %v655 = vpop.f32.mrf.mxu0
      %v656 = vadd.f32 0.0, %v655
      %657 = vmatmul.f32.gmra.mxu0 %v299
      %v658 = vpop.f32.mrf.mxu0
      %v659 = vadd.f32 0.0, %v658
      %660 = vmatmul.f32.gmra.mxu0 %v302
      %v661 = vpop.f32.mrf.mxu0
      %v662 = vadd.f32 0.0, %v661
      %663 = vmatmul.f32.gmra.mxu0 %v305
      %v664 = vpop.f32.mrf.mxu0
      %v665 = vadd.f32 0.0, %v664
      %666 = vmatmul.f32.gmra.mxu0 %v308
      %v667 = vpop.f32.mrf.mxu0
      %v668 = vadd.f32 0.0, %v667
      %669 = vmatmul.f32.gmra.mxu0 %v311
      %v670 = vpop.f32.mrf.mxu0
      %v671 = vadd.f32 0.0, %v670
      %672 = vmatmul.f32.gmra.mxu0 %v314
      %v673 = vpop.f32.mrf.mxu0
      %v674 = vadd.f32 0.0, %v673
      %675 = vmatmul.f32.gmra.mxu0 %v317
      %v676 = vpop.f32.mrf.mxu0
      %v677 = vadd.f32 0.0, %v676
      %678 = vmatmul.f32.gmra.mxu0 %v320
      %v679 = vpop.f32.mrf.mxu0
      %v680 = vadd.f32 0.0, %v679
      %681 = vmatmul.f32.gmra.mxu0 %v323
      %v682 = vpop.f32.mrf.mxu0
      %v683 = vadd.f32 0.0, %v682
      %684 = vmatmul.f32.gmra.mxu0 %v326
      %v685 = vpop.f32.mrf.mxu0
      %v686 = vadd.f32 0.0, %v685
      %687 = vmatmul.f32.gmra.mxu0 %v329
      %v688 = vpop.f32.mrf.mxu0
      %v689 = vadd.f32 0.0, %v688
      %690 = vmatmul.f32.gmra.mxu0 %v332
      %v691 = vpop.f32.mrf.mxu0
      %v692 = vadd.f32 0.0, %v691
      %693 = vmatmul.f32.gmra.mxu0 %v335
      %v694 = vpop.f32.mrf.mxu0
      %v695 = vadd.f32 0.0, %v694
      %696 = vmatmul.f32.gmra.mxu0 %v338
      %v697 = vpop.f32.mrf.mxu0
      %v698 = vadd.f32 0.0, %v697
      %699 = vmatmul.f32.gmra.mxu0 %v341
      %v700 = vpop.f32.mrf.mxu0
      %v701 = vadd.f32 0.0, %v700
      %702 = vmatmul.f32.gmra.mxu0 %v344
      %v703 = vpop.f32.mrf.mxu0
      %v704 = vadd.f32 0.0, %v703
      %705 = vmatmul.f32.gmra.mxu0 %v347
      %v706 = vpop.f32.mrf.mxu0
      %v707 = vadd.f32 0.0, %v706
      %708 = vmatmul.f32.gmra.mxu0 %v350
      %v709 = vpop.f32.mrf.mxu0
      %v710 = vadd.f32 0.0, %v709
      %711 = vmatmul.f32.gmra.mxu0 %v353
      %v712 = vpop.f32.mrf.mxu0
      %v713 = vadd.f32 0.0, %v712
      %714 = vmatmul.f32.gmra.mxu0 %v356
      %v715 = vpop.f32.mrf.mxu0
      %v716 = vadd.f32 0.0, %v715
      %717 = vmatmul.f32.gmra.mxu0 %v359
      %v718 = vpop.f32.mrf.mxu0
      %v719 = vadd.f32 0.0, %v718
      %720 = vmatmul.f32.gmra.mxu0 %v362
      %v721 = vpop.f32.mrf.mxu0
      %v722 = vadd.f32 0.0, %v721
      %723 = vmatmul.f32.gmra.mxu0 %v365
      %v724 = vpop.f32.mrf.mxu0
      %v725 = vadd.f32 0.0, %v724
      %726 = vmatmul.f32.gmra.mxu0 %v368
      %v727 = vpop.f32.mrf.mxu0
      %v728 = vadd.f32 0.0, %v727
      %729 = vmatmul.f32.gmra.mxu0 %v371
      %v730 = vpop.f32.mrf.mxu0
      %v731 = vadd.f32 0.0, %v730
      %732 = vmatmul.f32.gmra.mxu0 %v374
      %v733 = vpop.f32.mrf.mxu0
      %v734 = vadd.f32 0.0, %v733
      %735 = vmatmul.f32.gmra.mxu0 %v377
      %v736 = vpop.f32.mrf.mxu0
      %v737 = vadd.f32 0.0, %v736
      %738 = vmatmul.f32.gmra.mxu0 %v380
      %v739 = vpop.f32.mrf.mxu0
      %v740 = vadd.f32 0.0, %v739
      %741 = vmatmul.f32.gmra.mxu0 %v383
      %v742 = vpop.f32.mrf.mxu0
      %v743 = vadd.f32 0.0, %v742
      %744 = vmatmul.f32.gmra.mxu0 %v386
      %v745 = vpop.f32.mrf.mxu0
      %v746 = vadd.f32 0.0, %v745
      %747 = vmatmul.f32.gmra.mxu0 %v389
      %v748 = vpop.f32.mrf.mxu0
      %v749 = vadd.f32 0.0, %v748
      %750 = vmatmul.f32.gmra.mxu0 %v392
      %v751 = vpop.f32.mrf.mxu0
      %v752 = vadd.f32 0.0, %v751
      %753 = vmatmul.f32.gmra.mxu0 %v395
      %v754 = vpop.f32.mrf.mxu0
      %v755 = vadd.f32 0.0, %v754
      %756 = vmatmul.f32.gmra.mxu0 %v398
      %v757 = vpop.f32.mrf.mxu0
      %v758 = vadd.f32 0.0, %v757
      %759 = vmatmul.f32.gmra.mxu0 %v401
      %v760 = vpop.f32.mrf.mxu0
      %v761 = vadd.f32 0.0, %v760
      %762 = vmatmul.f32.gmra.mxu0 %v404
      %v763 = vpop.f32.mrf.mxu0
      %v764 = vadd.f32 0.0, %v763
      %765 = vmatmul.f32.gmra.mxu0 %v407
      %v766 = vpop.f32.mrf.mxu0
      %v767 = vadd.f32 0.0, %v766
      %768 = vmatmul.f32.gmra.mxu0 %v410
      %v769 = vpop.f32.mrf.mxu0
      %v770 = vadd.f32 0.0, %v769
      %771 = vmatmul.f32.gmra.mxu0 %v413
      %v772 = vpop.f32.mrf.mxu0
      %v773 = vadd.f32 0.0, %v772
      %774 = vmatmul.f32.gmra.mxu0 %v416
      %v775 = vpop.f32.mrf.mxu0
      %v776 = vadd.f32 0.0, %v775
      %777 = vmatmul.f32.gmra.mxu0 %v419
      %v778 = vpop.f32.mrf.mxu0
      %v779 = vadd.f32 0.0, %v778
      %780 = vmatmul.f32.gmra.mxu0 %v422
      %v781 = vpop.f32.mrf.mxu0
      %v782 = vadd.f32 0.0, %v781
      %783 = vmatmul.f32.gmra.mxu0 %v425
      %v784 = vpop.f32.mrf.mxu0
      %v785 = vadd.f32 0.0, %v784
      %786 = vmatmul.f32.gmra.mxu0 %v428
      %v787 = vpop.f32.mrf.mxu0
      %v788 = vadd.f32 0.0, %v787
      %789 = vmatmul.f32.gmra.mxu0 %v431
      %v790 = vpop.f32.mrf.mxu0
      %v791 = vadd.f32 0.0, %v790
      %792 = vmatmul.f32.gmra.mxu0 %v434
      %v793 = vpop.f32.mrf.mxu0
      %v794 = vadd.f32 0.0, %v793
      %795 = vmatmul.f32.gmra.mxu0 %v437
      %v796 = vpop.f32.mrf.mxu0
      %v797 = vadd.f32 0.0, %v796
      %798 = vmatmul.f32.gmra.mxu0 %v440
      %v799 = vpop.f32.mrf.mxu0
      %v800 = vadd.f32 0.0, %v799
      %801 = vmatmul.f32.gmra.mxu0 %v443
      %v802 = vpop.f32.mrf.mxu0
      %v803 = vadd.f32 0.0, %v802
      %804 = vmatmul.f32.gmra.mxu0 %v446
      %v805 = vpop.f32.mrf.mxu0
      %v806 = vadd.f32 0.0, %v805
      %807 = vmatmul.f32.gmra.mxu0 %v449
      %v808 = vpop.f32.mrf.mxu0
      %v809 = vadd.f32 0.0, %v808
      %810 = vmatmul.f32.gmra.mxu0 %v452
      %v811 = vpop.f32.mrf.mxu0
      %v812 = vadd.f32 0.0, %v811
      %813 = vmatmul.f32.gmra.mxu0 %v455
      %v814 = vpop.f32.mrf.mxu0
      %v815 = vadd.f32 0.0, %v814
      %816 = vmatmul.f32.gmra.mxu0 %v458
      %v817 = vpop.f32.mrf.mxu0
      %v818 = vadd.f32 0.0, %v817
      %819 = vmatmul.f32.gmra.mxu0 %v461
      %v820 = vpop.f32.mrf.mxu0
      %v821 = vadd.f32 0.0, %v820
      %822 = vmatmul.f32.gmra.mxu0 %v464
      %v823 = vpop.f32.mrf.mxu0
      %v824 = vadd.f32 0.0, %v823
      %825 = vmatmul.f32.gmra.mxu0 %v467
      %v826 = vpop.f32.mrf.mxu0
      %v827 = vadd.f32 0.0, %v826
      %828 = vmatmul.f32.gmra.mxu0 %v470
      %v829 = vpop.f32.mrf.mxu0
      %v830 = vadd.f32 0.0, %v829
      %831 = vmatmul.f32.gmra.mxu0 %v473
      %v832 = vpop.f32.mrf.mxu0
      %v833 = vadd.f32 0.0, %v832
      %834 = vmatmul.f32.gmra.mxu0 %v476
      %v835 = vpop.f32.mrf.mxu0
      %v836 = vadd.f32 0.0, %v835
      %837 = vmatmul.f32.gmra.mxu0 %v479
      %v838 = vpop.f32.mrf.mxu0
      %v839 = vadd.f32 0.0, %v838
      %840 = vmatmul.f32.gmra.mxu0 %v482
      %v841 = vpop.f32.mrf.mxu0
      %v842 = vadd.f32 0.0, %v841
      %843 = vmatmul.f32.gmra.mxu0 %v485
      %v844 = vpop.f32.mrf.mxu0
      %v845 = vadd.f32 0.0, %v844
      %846 = vmatmul.f32.gmra.mxu0 %v488
      %v847 = vpop.f32.mrf.mxu0
      %v848 = vadd.f32 0.0, %v847
      %849 = vmatmul.f32.gmra.mxu0 %v491
      %v850 = vpop.f32.mrf.mxu0
      %v851 = vadd.f32 0.0, %v850
      %852 = vmatmul.f32.gmra.mxu0 %v494
      %v853 = vpop.f32.mrf.mxu0
      %v854 = vadd.f32 0.0, %v853
      %855 = vmatmul.f32.gmra.mxu0 %v497
      %v856 = vpop.f32.mrf.mxu0
      %v857 = vadd.f32 0.0, %v856
      %858 = vmatmul.f32.gmra.mxu0 %v500
      %v859 = vpop.f32.mrf.mxu0
      %v860 = vadd.f32 0.0, %v859
      %861 = vmatmul.f32.gmra.mxu0 %v503
      %v862 = vpop.f32.mrf.mxu0
      %v863 = vadd.f32 0.0, %v862
      %864 = vmatmul.f32.gmra.mxu0 %v506
      %v865 = vpop.f32.mrf.mxu0
      %v866 = vadd.f32 0.0, %v865
      %867 = vmatmul.f32.gmra.mxu0 %v509
      %v868 = vpop.f32.mrf.mxu0
      %v869 = vadd.f32 0.0, %v868
      %870 = vmatmul.f32.gmra.mxu0 %v512
      %v871 = vpop.f32.mrf.mxu0
      %v872 = vadd.f32 0.0, %v871
      %873 = vmatmul.f32.gmra.mxu0 %v515
      %v874 = vpop.f32.mrf.mxu0
      %v875 = vadd.f32 0.0, %v874
      %876 = vmatmul.f32.gmra.mxu0 %v518
      %v877 = vpop.f32.mrf.mxu0
      %v878 = vadd.f32 0.0, %v877
      %879 = vmatmul.f32.gmra.mxu0 %v521
      %v880 = vpop.f32.mrf.mxu0
      %v881 = vadd.f32 0.0, %v880
      %882 = vmatmul.f32.gmra.mxu0 %v524
      %v883 = vpop.f32.mrf.mxu0
      %v884 = vadd.f32 0.0, %v883
      %885 = vmatmul.f32.gmra.mxu0 %v527
      %v886 = vpop.f32.mrf.mxu0
      %v887 = vadd.f32 0.0, %v886
      %888 = vmatmul.f32.gmra.mxu0 %v530
      %v889 = vpop.f32.mrf.mxu0
      %v890 = vadd.f32 0.0, %v889
      %891 = vmatmul.f32.gmra.mxu0 %v533
      %v892 = vpop.f32.mrf.mxu0
      %v893 = vadd.f32 0.0, %v892
      %894 = vmatmul.f32.gmra.mxu0 %v536
      %v895 = vpop.f32.mrf.mxu0
      %v896 = vadd.f32 0.0, %v895
      %897 = vmatmul.f32.gmra.mxu0 %v539
      %v898 = vpop.f32.mrf.mxu0
      %v899 = vadd.f32 0.0, %v898
      %900 = vmatmul.f32.gmra.mxu0 %v542
      %v901 = vpop.f32.mrf.mxu0
      %v902 = vadd.f32 0.0, %v901
      %903 = vmatmul.f32.gmra.mxu0 %v545
      %v904 = vpop.f32.mrf.mxu0
      %v905 = vadd.f32 0.0, %v904
      %906 = vmatmul.f32.gmra.mxu0 %v548
      %v907 = vpop.f32.mrf.mxu0
      %v908 = vadd.f32 0.0, %v907
      %909 = vmatmul.f32.gmra.mxu0 %v551
      %v910 = vpop.f32.mrf.mxu0
      %v911 = vadd.f32 0.0, %v910
      %912 = vmatmul.f32.gmra.mxu0 %v554
      %v913 = vpop.f32.mrf.mxu0
      %v914 = vadd.f32 0.0, %v913
      %915 = vmatmul.f32.gmra.mxu0 %v557
      %v916 = vpop.f32.mrf.mxu0
      %v917 = vadd.f32 0.0, %v916
      %918 = vmatmul.f32.gmra.mxu0 %v560
      %v919 = vpop.f32.mrf.mxu0
      %v920 = vadd.f32 0.0, %v919
      %921 = vmatmul.f32.gmra.mxu0 %v563
      %v922 = vpop.f32.mrf.mxu0
      %v923 = vadd.f32 0.0, %v922
      %924 = vmatmul.f32.gmra.mxu0 %v566
      %v925 = vpop.f32.mrf.mxu0
      %v926 = vadd.f32 0.0, %v925
      %927 = vmatmul.f32.gmra.mxu0 %v569
      %v928 = vpop.f32.mrf.mxu0
      %v929 = vadd.f32 0.0, %v928
      %930 = vmatmul.f32.gmra.mxu0 %v572
      %v931 = vpop.f32.mrf.mxu0
      %v932 = vadd.f32 0.0, %v931
      %933 = vmatmul.f32.gmra.mxu0 %v575
      %v934 = vpop.f32.mrf.mxu0
      %v935 = vadd.f32 0.0, %v934
      %936 = vmatmul.f32.gmra.mxu0 %v578
      %v937 = vpop.f32.mrf.mxu0
      %v938 = vadd.f32 0.0, %v937
      %939 = vmatmul.f32.gmra.mxu0 %v581
      %v940 = vpop.f32.mrf.mxu0
      %v941 = vadd.f32 0.0, %v940
      %942 = vmatmul.f32.gmra.mxu0 %v584
      %v943 = vpop.f32.mrf.mxu0
      %v944 = vadd.f32 0.0, %v943
      %945 = vmatmul.f32.gmra.mxu0 %v587
      %v946 = vpop.f32.mrf.mxu0
      %v947 = vadd.f32 0.0, %v946
      %948 = vmatmul.f32.gmra.mxu0 %v590
      %v949 = vpop.f32.mrf.mxu0
      %v950 = vadd.f32 0.0, %v949
      %951 = vmatmul.f32.gmra.mxu0 %v593
      %v952 = vpop.f32.mrf.mxu0
      %v953 = vadd.f32 0.0, %v952
      %954 = vmatmul.f32.gmra.mxu0 %v596
      %v955 = vpop.f32.mrf.mxu0
      %v956 = vadd.f32 0.0, %v955
      %957 = vmatmul.f32.gmra.mxu0 %v599
      %v958 = vpop.f32.mrf.mxu0
      %v959 = vadd.f32 0.0, %v958
      %960 = vmatmul.f32.gmra.mxu0 %v602
      %v961 = vpop.f32.mrf.mxu0
      %v962 = vadd.f32 0.0, %v961
      %963 = vmatmul.f32.gmra.mxu0 %v605
      %v964 = vpop.f32.mrf.mxu0
      %v965 = vadd.f32 0.0, %v964
      %966 = vmatmul.f32.gmra.mxu0 %v608
      %v967 = vpop.f32.mrf.mxu0
      %v968 = vadd.f32 0.0, %v967
      %969 = vmatmul.f32.gmra.mxu0 %v611
      %v970 = vpop.f32.mrf.mxu0
      %v971 = vadd.f32 0.0, %v970
      %972 = vmatmul.f32.gmra.mxu0 %v614
      %v973 = vpop.f32.mrf.mxu0
      %v974 = vadd.f32 0.0, %v973
      %975 = vmatmul.f32.gmra.mxu0 %v617
      %v976 = vpop.f32.mrf.mxu0
      %v977 = vadd.f32 0.0, %v976
      %978 = vmatmul.f32.gmra.mxu0 %v620
      %v979 = vpop.f32.mrf.mxu0
      %v980 = vadd.f32 0.0, %v979
      %981 = vmatmul.f32.gmra.mxu0 %v623
      %v982 = vpop.f32.mrf.mxu0
      %v983 = vadd.f32 0.0, %v982
      %984 = vmatmul.f32.gmra.mxu0 %v626
      %v985 = vpop.f32.mrf.mxu0
      %v986 = vadd.f32 0.0, %v985
      %987 = vdwg.mxu0
      %s988 = scalar_lea.vmem %s165, 904
      %v989 = vld [vmem:[%s988] sm:$0xff]
      %v990 = vld [vmem:[%s988 + $0x8] sm:$0xff]
      %v991 = vld [vmem:[%s988 + $0x10] sm:$0xff]
      %v992 = vld [vmem:[%s988 + $0x18] sm:$0xff]
      %v993 = vld [vmem:[%s988 + $0x20] sm:$0xff]
      %v994 = vld [vmem:[%s988 + $0x28] sm:$0xff]
      %v995 = vld [vmem:[%s988 + $0x30] sm:$0xff]
      %v996 = vld [vmem:[%s988 + $0x38] sm:$0xff]
      %v997 = vld [vmem:[%s988 + $0x40] sm:$0xff]
      %v998 = vld [vmem:[%s988 + $0x48] sm:$0xff]
      %v999 = vld [vmem:[%s988 + $0x50] sm:$0xff]
      %v1000 = vld [vmem:[%s988 + $0x58] sm:$0xff]
      %v1001 = vld [vmem:[%s988 + $0x60] sm:$0xff]
      %v1002 = vld [vmem:[%s988 + $0x68] sm:$0xff]
      %v1003 = vld [vmem:[%s988 + $0x70] sm:$0xff]
      %v1004 = vld [vmem:[%s988 + $0x78] sm:$0xff]
      %v1005 = vld [vmem:[%s988 + $0x80] sm:$0xff]
      %v1006 = vld [vmem:[%s988 + $0x88] sm:$0xff]
      %v1007 = vld [vmem:[%s988 + $0x90] sm:$0xff]
      %v1008 = vld [vmem:[%s988 + $0x98] sm:$0xff]
      %v1009 = vld [vmem:[%s988 + $0xa0] sm:$0xff]
      %v1010 = vld [vmem:[%s988 + $0xa8] sm:$0xff]
      %v1011 = vld [vmem:[%s988 + $0xb0] sm:$0xff]
      %v1012 = vld [vmem:[%s988 + $0xb8] sm:$0xff]
      %v1013 = vld [vmem:[%s988 + $0xc0] sm:$0xff]
      %v1014 = vld [vmem:[%s988 + $0xc8] sm:$0xff]
      %v1015 = vld [vmem:[%s988 + $0xd0] sm:$0xff]
      %v1016 = vld [vmem:[%s988 + $0xd8] sm:$0xff]
      %v1017 = vld [vmem:[%s988 + $0xe0] sm:$0xff]
      %v1018 = vld [vmem:[%s988 + $0xe8] sm:$0xff]
      %v1019 = vld [vmem:[%s988 + $0xf0] sm:$0xff]
      %v1020 = vld [vmem:[%s988 + $0xf8] sm:$0xff]
      %v1021 = vld [vmem:[%s988 + $0x100] sm:$0xff]
      %v1022 = vld [vmem:[%s988 + $0x108] sm:$0xff]
      %v1023 = vld [vmem:[%s988 + $0x110] sm:$0xff]
      %v1024 = vld [vmem:[%s988 + $0x118] sm:$0xff]
      %v1025 = vld [vmem:[%s988 + $0x120] sm:$0xff]
      %v1026 = vld [vmem:[%s988 + $0x128] sm:$0xff]
      %v1027 = vld [vmem:[%s988 + $0x130] sm:$0xff]
      %v1028 = vld [vmem:[%s988 + $0x138] sm:$0xff]
      %v1029 = vld [vmem:[%s988 + $0x140] sm:$0xff]
      %v1030 = vld [vmem:[%s988 + $0x148] sm:$0xff]
      %v1031 = vld [vmem:[%s988 + $0x150] sm:$0xff]
      %v1032 = vld [vmem:[%s988 + $0x158] sm:$0xff]
      %v1033 = vld [vmem:[%s988 + $0x160] sm:$0xff]
      %v1034 = vld [vmem:[%s988 + $0x168] sm:$0xff]
      %v1035 = vld [vmem:[%s988 + $0x170] sm:$0xff]
      %v1036 = vld [vmem:[%s988 + $0x178] sm:$0xff]
      %v1037 = vld [vmem:[%s988 + $0x180] sm:$0xff]
      %v1038 = vld [vmem:[%s988 + $0x188] sm:$0xff]
      %v1039 = vld [vmem:[%s988 + $0x190] sm:$0xff]
      %v1040 = vld [vmem:[%s988 + $0x198] sm:$0xff]
      %v1041 = vld [vmem:[%s988 + $0x1a0] sm:$0xff]
      %v1042 = vld [vmem:[%s988 + $0x1a8] sm:$0xff]
      %v1043 = vld [vmem:[%s988 + $0x1b0] sm:$0xff]
      %v1044 = vld [vmem:[%s988 + $0x1b8] sm:$0xff]
      %v1045 = vld [vmem:[%s988 + $0x1c0] sm:$0xff]
      %v1046 = vld [vmem:[%s988 + $0x1c8] sm:$0xff]
      %v1047 = vld [vmem:[%s988 + $0x1d0] sm:$0xff]
      %v1048 = vld [vmem:[%s988 + $0x1d8] sm:$0xff]
      %v1049 = vld [vmem:[%s988 + $0x1e0] sm:$0xff]
      %v1050 = vld [vmem:[%s988 + $0x1e8] sm:$0xff]
      %v1051 = vld [vmem:[%s988 + $0x1f0] sm:$0xff]
      %v1052 = vld [vmem:[%s988 + $0x1f8] sm:$0xff]
      %v1053 = vld [vmem:[%s988 + $0x200] sm:$0xff]
      %v1054 = vld [vmem:[%s988 + $0x208] sm:$0xff]
      %v1055 = vld [vmem:[%s988 + $0x210] sm:$0xff]
      %v1056 = vld [vmem:[%s988 + $0x218] sm:$0xff]
      %v1057 = vld [vmem:[%s988 + $0x220] sm:$0xff]
      %v1058 = vld [vmem:[%s988 + $0x228] sm:$0xff]
      %v1059 = vld [vmem:[%s988 + $0x230] sm:$0xff]
      %v1060 = vld [vmem:[%s988 + $0x238] sm:$0xff]
      %v1061 = vld [vmem:[%s988 + $0x240] sm:$0xff]
      %v1062 = vld [vmem:[%s988 + $0x248] sm:$0xff]
      %v1063 = vld [vmem:[%s988 + $0x250] sm:$0xff]
      %v1064 = vld [vmem:[%s988 + $0x258] sm:$0xff]
      %v1065 = vld [vmem:[%s988 + $0x260] sm:$0xff]
      %v1066 = vld [vmem:[%s988 + $0x268] sm:$0xff]
      %v1067 = vld [vmem:[%s988 + $0x270] sm:$0xff]
      %v1068 = vld [vmem:[%s988 + $0x278] sm:$0xff]
      %v1069 = vld [vmem:[%s988 + $0x280] sm:$0xff]
      %v1070 = vld [vmem:[%s988 + $0x288] sm:$0xff]
      %v1071 = vld [vmem:[%s988 + $0x290] sm:$0xff]
      %v1072 = vld [vmem:[%s988 + $0x298] sm:$0xff]
      %v1073 = vld [vmem:[%s988 + $0x2a0] sm:$0xff]
      %v1074 = vld [vmem:[%s988 + $0x2a8] sm:$0xff]
      %v1075 = vld [vmem:[%s988 + $0x2b0] sm:$0xff]
      %v1076 = vld [vmem:[%s988 + $0x2b8] sm:$0xff]
      %v1077 = vld [vmem:[%s988 + $0x2c0] sm:$0xff]
      %v1078 = vld [vmem:[%s988 + $0x2c8] sm:$0xff]
      %v1079 = vld [vmem:[%s988 + $0x2d0] sm:$0xff]
      %v1080 = vld [vmem:[%s988 + $0x2d8] sm:$0xff]
      %v1081 = vld [vmem:[%s988 + $0x2e0] sm:$0xff]
      %v1082 = vld [vmem:[%s988 + $0x2e8] sm:$0xff]
      %v1083 = vld [vmem:[%s988 + $0x2f0] sm:$0xff]
      %v1084 = vld [vmem:[%s988 + $0x2f8] sm:$0xff]
      %v1085 = vld [vmem:[%s988 + $0x300] sm:$0xff]
      %v1086 = vld [vmem:[%s988 + $0x308] sm:$0xff]
      %v1087 = vld [vmem:[%s988 + $0x310] sm:$0xff]
      %v1088 = vld [vmem:[%s988 + $0x318] sm:$0xff]
      %v1089 = vld [vmem:[%s988 + $0x320] sm:$0xff]
      %v1090 = vld [vmem:[%s988 + $0x328] sm:$0xff]
      %v1091 = vld [vmem:[%s988 + $0x330] sm:$0xff]
      %v1092 = vld [vmem:[%s988 + $0x338] sm:$0xff]
      %v1093 = vld [vmem:[%s988 + $0x340] sm:$0xff]
      %v1094 = vld [vmem:[%s988 + $0x348] sm:$0xff]
      %v1095 = vld [vmem:[%s988 + $0x350] sm:$0xff]
      %v1096 = vld [vmem:[%s988 + $0x358] sm:$0xff]
      %v1097 = vld [vmem:[%s988 + $0x360] sm:$0xff]
      %v1098 = vld [vmem:[%s988 + $0x368] sm:$0xff]
      %v1099 = vld [vmem:[%s988 + $0x370] sm:$0xff]
      %v1100 = vld [vmem:[%s988 + $0x378] sm:$0xff]
      %v1101 = vld [vmem:[%s988 + $0x380] sm:$0xf]
      %v1103 = vsel %vm288, %v989, 0
      %v1106 = vsel %vm288, %v990, 0
      %v1109 = vsel %vm288, %v991, 0
      %v1112 = vsel %vm288, %v992, 0
      %v1115 = vsel %vm288, %v993, 0
      %v1118 = vsel %vm288, %v994, 0
      %v1121 = vsel %vm288, %v995, 0
      %v1124 = vsel %vm288, %v996, 0
      %v1127 = vsel %vm288, %v997, 0
      %v1130 = vsel %vm288, %v998, 0
      %v1133 = vsel %vm288, %v999, 0
      %v1136 = vsel %vm288, %v1000, 0
      %v1139 = vsel %vm288, %v1001, 0
      %v1142 = vsel %vm288, %v1002, 0
      %v1145 = vsel %vm288, %v1003, 0
      %v1148 = vsel %vm288, %v1004, 0
      %v1151 = vsel %vm288, %v1005, 0
      %v1154 = vsel %vm288, %v1006, 0
      %v1157 = vsel %vm288, %v1007, 0
      %v1160 = vsel %vm288, %v1008, 0
      %v1163 = vsel %vm288, %v1009, 0
      %v1166 = vsel %vm288, %v1010, 0
      %v1169 = vsel %vm288, %v1011, 0
      %v1172 = vsel %vm288, %v1012, 0
      %v1175 = vsel %vm288, %v1013, 0
      %v1178 = vsel %vm288, %v1014, 0
      %v1181 = vsel %vm288, %v1015, 0
      %v1184 = vsel %vm288, %v1016, 0
      %v1187 = vsel %vm288, %v1017, 0
      %v1190 = vsel %vm288, %v1018, 0
      %v1193 = vsel %vm288, %v1019, 0
      %v1196 = vsel %vm288, %v1020, 0
      %v1199 = vsel %vm288, %v1021, 0
      %v1202 = vsel %vm288, %v1022, 0
      %v1205 = vsel %vm288, %v1023, 0
      %v1208 = vsel %vm288, %v1024, 0
      %v1211 = vsel %vm288, %v1025, 0
      %v1214 = vsel %vm288, %v1026, 0
      %v1217 = vsel %vm288, %v1027, 0
      %v1220 = vsel %vm288, %v1028, 0
      %v1223 = vsel %vm288, %v1029, 0
      %v1226 = vsel %vm288, %v1030, 0
      %v1229 = vsel %vm288, %v1031, 0
      %v1232 = vsel %vm288, %v1032, 0
      %v1235 = vsel %vm288, %v1033, 0
      %v1238 = vsel %vm288, %v1034, 0
      %v1241 = vsel %vm288, %v1035, 0
      %v1244 = vsel %vm288, %v1036, 0
      %v1247 = vsel %vm288, %v1037, 0
      %v1250 = vsel %vm288, %v1038, 0
      %v1253 = vsel %vm288, %v1039, 0
      %v1256 = vsel %vm288, %v1040, 0
      %v1259 = vsel %vm288, %v1041, 0
      %v1262 = vsel %vm288, %v1042, 0
      %v1265 = vsel %vm288, %v1043, 0
      %v1268 = vsel %vm288, %v1044, 0
      %v1271 = vsel %vm288, %v1045, 0
      %v1274 = vsel %vm288, %v1046, 0
      %v1277 = vsel %vm288, %v1047, 0
      %v1280 = vsel %vm288, %v1048, 0
      %v1283 = vsel %vm288, %v1049, 0
      %v1286 = vsel %vm288, %v1050, 0
      %v1289 = vsel %vm288, %v1051, 0
      %v1292 = vsel %vm288, %v1052, 0
      %v1295 = vsel %vm288, %v1053, 0
      %v1298 = vsel %vm288, %v1054, 0
      %v1301 = vsel %vm288, %v1055, 0
      %v1304 = vsel %vm288, %v1056, 0
      %v1307 = vsel %vm288, %v1057, 0
      %v1310 = vsel %vm288, %v1058, 0
      %v1313 = vsel %vm288, %v1059, 0
      %v1316 = vsel %vm288, %v1060, 0
      %v1319 = vsel %vm288, %v1061, 0
      %v1322 = vsel %vm288, %v1062, 0
      %v1325 = vsel %vm288, %v1063, 0
      %v1328 = vsel %vm288, %v1064, 0
      %v1331 = vsel %vm288, %v1065, 0
      %v1334 = vsel %vm288, %v1066, 0
      %v1337 = vsel %vm288, %v1067, 0
      %v1340 = vsel %vm288, %v1068, 0
      %v1343 = vsel %vm288, %v1069, 0
      %v1346 = vsel %vm288, %v1070, 0
      %v1349 = vsel %vm288, %v1071, 0
      %v1352 = vsel %vm288, %v1072, 0
      %v1355 = vsel %vm288, %v1073, 0
      %v1358 = vsel %vm288, %v1074, 0
      %v1361 = vsel %vm288, %v1075, 0
      %v1364 = vsel %vm288, %v1076, 0
      %v1367 = vsel %vm288, %v1077, 0
      %v1370 = vsel %vm288, %v1078, 0
      %v1373 = vsel %vm288, %v1079, 0
      %v1376 = vsel %vm288, %v1080, 0
      %v1379 = vsel %vm288, %v1081, 0
      %v1382 = vsel %vm288, %v1082, 0
      %v1385 = vsel %vm288, %v1083, 0
      %v1388 = vsel %vm288, %v1084, 0
      %v1391 = vsel %vm288, %v1085, 0
      %v1394 = vsel %vm288, %v1086, 0
      %v1397 = vsel %vm288, %v1087, 0
      %v1400 = vsel %vm288, %v1088, 0
      %v1403 = vsel %vm288, %v1089, 0
      %v1406 = vsel %vm288, %v1090, 0
      %v1409 = vsel %vm288, %v1091, 0
      %v1412 = vsel %vm288, %v1092, 0
      %v1415 = vsel %vm288, %v1093, 0
      %v1418 = vsel %vm288, %v1094, 0
      %v1421 = vsel %vm288, %v1095, 0
      %v1424 = vsel %vm288, %v1096, 0
      %v1427 = vsel %vm288, %v1097, 0
      %v1430 = vsel %vm288, %v1098, 0
      %v1433 = vsel %vm288, %v1099, 0
      %v1436 = vsel %vm288, %v1100, 0
      %v1439 = vsel %vm288, %v1101, 0
      %1441 = vmatpush.msra.mxu0 0.0
      %1442 = vmatpush.msra.mxu0 0.0
      %1443 = vmatpush.msra.mxu0 0.0
      %1444 = vmatpush.msra.mxu0 0.0
      %1445 = vmatpush.msra.mxu0 0.0
      %1446 = vmatpush.msra.mxu0 0.0
      %1447 = vmatpush.msra.mxu0 0.0
      %1448 = vmatpush.msra.mxu0 0.0
      %1449 = vmatpush.msra.mxu0 0.0
      %1450 = vmatpush.msra.mxu0 0.0
      %1451 = vmatpush.msra.mxu0 0.0
      %1452 = vmatpush.msra.mxu0 0.0
      %1453 = vmatpush.msra.mxu0 %v630
      %1454 = vmatpush.msra.mxu0 %v173
      %1455 = vmatpush.msra.mxu0 %v172
      %1456 = vmatpush.msra.mxu0 %v171
      %1457 = vmatmul.f32.gmra.mxu0 %v1103
      %v1458 = vpop.f32.mrf.mxu0
      %v1459 = vadd.f32 0.0, %v1458
      %1460 = vmatmul.f32.gmra.mxu0 %v1106
      %v1461 = vpop.f32.mrf.mxu0
      %v1462 = vadd.f32 0.0, %v1461
      %1463 = vmatmul.f32.gmra.mxu0 %v1109
      %v1464 = vpop.f32.mrf.mxu0
      %v1465 = vadd.f32 0.0, %v1464
      %1466 = vmatmul.f32.gmra.mxu0 %v1112
      %v1467 = vpop.f32.mrf.mxu0
      %v1468 = vadd.f32 0.0, %v1467
      %1469 = vmatmul.f32.gmra.mxu0 %v1115
      %v1470 = vpop.f32.mrf.mxu0
      %v1471 = vadd.f32 0.0, %v1470
      %1472 = vmatmul.f32.gmra.mxu0 %v1118
      %v1473 = vpop.f32.mrf.mxu0
      %v1474 = vadd.f32 0.0, %v1473
      %1475 = vmatmul.f32.gmra.mxu0 %v1121
      %v1476 = vpop.f32.mrf.mxu0
      %v1477 = vadd.f32 0.0, %v1476
      %1478 = vmatmul.f32.gmra.mxu0 %v1124
      %v1479 = vpop.f32.mrf.mxu0
      %v1480 = vadd.f32 0.0, %v1479
      %1481 = vmatmul.f32.gmra.mxu0 %v1127
      %v1482 = vpop.f32.mrf.mxu0
      %v1483 = vadd.f32 0.0, %v1482
      %1484 = vmatmul.f32.gmra.mxu0 %v1130
      %v1485 = vpop.f32.mrf.mxu0
      %v1486 = vadd.f32 0.0, %v1485
      %1487 = vmatmul.f32.gmra.mxu0 %v1133
      %v1488 = vpop.f32.mrf.mxu0
      %v1489 = vadd.f32 0.0, %v1488
      %1490 = vmatmul.f32.gmra.mxu0 %v1136
      %v1491 = vpop.f32.mrf.mxu0
      %v1492 = vadd.f32 0.0, %v1491
      %1493 = vmatmul.f32.gmra.mxu0 %v1139
      %v1494 = vpop.f32.mrf.mxu0
      %v1495 = vadd.f32 0.0, %v1494
      %1496 = vmatmul.f32.gmra.mxu0 %v1142
      %v1497 = vpop.f32.mrf.mxu0
      %v1498 = vadd.f32 0.0, %v1497
      %1499 = vmatmul.f32.gmra.mxu0 %v1145
      %v1500 = vpop.f32.mrf.mxu0
      %v1501 = vadd.f32 0.0, %v1500
      %1502 = vmatmul.f32.gmra.mxu0 %v1148
      %v1503 = vpop.f32.mrf.mxu0
      %v1504 = vadd.f32 0.0, %v1503
      %1505 = vmatmul.f32.gmra.mxu0 %v1151
      %v1506 = vpop.f32.mrf.mxu0
      %v1507 = vadd.f32 0.0, %v1506
      %1508 = vmatmul.f32.gmra.mxu0 %v1154
      %v1509 = vpop.f32.mrf.mxu0
      %v1510 = vadd.f32 0.0, %v1509
      %1511 = vmatmul.f32.gmra.mxu0 %v1157
      %v1512 = vpop.f32.mrf.mxu0
      %v1513 = vadd.f32 0.0, %v1512
      %1514 = vmatmul.f32.gmra.mxu0 %v1160
      %v1515 = vpop.f32.mrf.mxu0
      %v1516 = vadd.f32 0.0, %v1515
      %1517 = vmatmul.f32.gmra.mxu0 %v1163
      %v1518 = vpop.f32.mrf.mxu0
      %v1519 = vadd.f32 0.0, %v1518
      %1520 = vmatmul.f32.gmra.mxu0 %v1166
      %v1521 = vpop.f32.mrf.mxu0
      %v1522 = vadd.f32 0.0, %v1521
      %1523 = vmatmul.f32.gmra.mxu0 %v1169
      %v1524 = vpop.f32.mrf.mxu0
      %v1525 = vadd.f32 0.0, %v1524
      %1526 = vmatmul.f32.gmra.mxu0 %v1172
      %v1527 = vpop.f32.mrf.mxu0
      %v1528 = vadd.f32 0.0, %v1527
      %1529 = vmatmul.f32.gmra.mxu0 %v1175
      %v1530 = vpop.f32.mrf.mxu0
      %v1531 = vadd.f32 0.0, %v1530
      %1532 = vmatmul.f32.gmra.mxu0 %v1178
      %v1533 = vpop.f32.mrf.mxu0
      %v1534 = vadd.f32 0.0, %v1533
      %1535 = vmatmul.f32.gmra.mxu0 %v1181
      %v1536 = vpop.f32.mrf.mxu0
      %v1537 = vadd.f32 0.0, %v1536
      %1538 = vmatmul.f32.gmra.mxu0 %v1184
      %v1539 = vpop.f32.mrf.mxu0
      %v1540 = vadd.f32 0.0, %v1539
      %1541 = vmatmul.f32.gmra.mxu0 %v1187
      %v1542 = vpop.f32.mrf.mxu0
      %v1543 = vadd.f32 0.0, %v1542
      %1544 = vmatmul.f32.gmra.mxu0 %v1190
      %v1545 = vpop.f32.mrf.mxu0
      %v1546 = vadd.f32 0.0, %v1545
      %1547 = vmatmul.f32.gmra.mxu0 %v1193
      %v1548 = vpop.f32.mrf.mxu0
      %v1549 = vadd.f32 0.0, %v1548
      %1550 = vmatmul.f32.gmra.mxu0 %v1196
      %v1551 = vpop.f32.mrf.mxu0
      %v1552 = vadd.f32 0.0, %v1551
      %1553 = vmatmul.f32.gmra.mxu0 %v1199
      %v1554 = vpop.f32.mrf.mxu0
      %v1555 = vadd.f32 0.0, %v1554
      %1556 = vmatmul.f32.gmra.mxu0 %v1202
      %v1557 = vpop.f32.mrf.mxu0
      %v1558 = vadd.f32 0.0, %v1557
      %1559 = vmatmul.f32.gmra.mxu0 %v1205
      %v1560 = vpop.f32.mrf.mxu0
      %v1561 = vadd.f32 0.0, %v1560
      %1562 = vmatmul.f32.gmra.mxu0 %v1208
      %v1563 = vpop.f32.mrf.mxu0
      %v1564 = vadd.f32 0.0, %v1563
      %1565 = vmatmul.f32.gmra.mxu0 %v1211
      %v1566 = vpop.f32.mrf.mxu0
      %v1567 = vadd.f32 0.0, %v1566
      %1568 = vmatmul.f32.gmra.mxu0 %v1214
      %v1569 = vpop.f32.mrf.mxu0
      %v1570 = vadd.f32 0.0, %v1569
      %1571 = vmatmul.f32.gmra.mxu0 %v1217
      %v1572 = vpop.f32.mrf.mxu0
      %v1573 = vadd.f32 0.0, %v1572
      %1574 = vmatmul.f32.gmra.mxu0 %v1220
      %v1575 = vpop.f32.mrf.mxu0
      %v1576 = vadd.f32 0.0, %v1575
      %1577 = vmatmul.f32.gmra.mxu0 %v1223
      %v1578 = vpop.f32.mrf.mxu0
      %v1579 = vadd.f32 0.0, %v1578
      %1580 = vmatmul.f32.gmra.mxu0 %v1226
      %v1581 = vpop.f32.mrf.mxu0
      %v1582 = vadd.f32 0.0, %v1581
      %1583 = vmatmul.f32.gmra.mxu0 %v1229
      %v1584 = vpop.f32.mrf.mxu0
      %v1585 = vadd.f32 0.0, %v1584
      %1586 = vmatmul.f32.gmra.mxu0 %v1232
      %v1587 = vpop.f32.mrf.mxu0
      %v1588 = vadd.f32 0.0, %v1587
      %1589 = vmatmul.f32.gmra.mxu0 %v1235
      %v1590 = vpop.f32.mrf.mxu0
      %v1591 = vadd.f32 0.0, %v1590
      %1592 = vmatmul.f32.gmra.mxu0 %v1238
      %v1593 = vpop.f32.mrf.mxu0
      %v1594 = vadd.f32 0.0, %v1593
      %1595 = vmatmul.f32.gmra.mxu0 %v1241
      %v1596 = vpop.f32.mrf.mxu0
      %v1597 = vadd.f32 0.0, %v1596
      %1598 = vmatmul.f32.gmra.mxu0 %v1244
      %v1599 = vpop.f32.mrf.mxu0
      %v1600 = vadd.f32 0.0, %v1599
      %1601 = vmatmul.f32.gmra.mxu0 %v1247
      %v1602 = vpop.f32.mrf.mxu0
      %v1603 = vadd.f32 0.0, %v1602
      %1604 = vmatmul.f32.gmra.mxu0 %v1250
      %v1605 = vpop.f32.mrf.mxu0
      %v1606 = vadd.f32 0.0, %v1605
      %1607 = vmatmul.f32.gmra.mxu0 %v1253
      %v1608 = vpop.f32.mrf.mxu0
      %v1609 = vadd.f32 0.0, %v1608
      %1610 = vmatmul.f32.gmra.mxu0 %v1256
      %v1611 = vpop.f32.mrf.mxu0
      %v1612 = vadd.f32 0.0, %v1611
      %1613 = vmatmul.f32.gmra.mxu0 %v1259
      %v1614 = vpop.f32.mrf.mxu0
      %v1615 = vadd.f32 0.0, %v1614
      %1616 = vmatmul.f32.gmra.mxu0 %v1262
      %v1617 = vpop.f32.mrf.mxu0
      %v1618 = vadd.f32 0.0, %v1617
      %1619 = vmatmul.f32.gmra.mxu0 %v1265
      %v1620 = vpop.f32.mrf.mxu0
      %v1621 = vadd.f32 0.0, %v1620
      %1622 = vmatmul.f32.gmra.mxu0 %v1268
      %v1623 = vpop.f32.mrf.mxu0
      %v1624 = vadd.f32 0.0, %v1623
      %1625 = vmatmul.f32.gmra.mxu0 %v1271
      %v1626 = vpop.f32.mrf.mxu0
      %v1627 = vadd.f32 0.0, %v1626
      %1628 = vmatmul.f32.gmra.mxu0 %v1274
      %v1629 = vpop.f32.mrf.mxu0
      %v1630 = vadd.f32 0.0, %v1629
      %1631 = vmatmul.f32.gmra.mxu0 %v1277
      %v1632 = vpop.f32.mrf.mxu0
      %v1633 = vadd.f32 0.0, %v1632
      %1634 = vmatmul.f32.gmra.mxu0 %v1280
      %v1635 = vpop.f32.mrf.mxu0
      %v1636 = vadd.f32 0.0, %v1635
      %1637 = vmatmul.f32.gmra.mxu0 %v1283
      %v1638 = vpop.f32.mrf.mxu0
      %v1639 = vadd.f32 0.0, %v1638
      %1640 = vmatmul.f32.gmra.mxu0 %v1286
      %v1641 = vpop.f32.mrf.mxu0
      %v1642 = vadd.f32 0.0, %v1641
      %1643 = vmatmul.f32.gmra.mxu0 %v1289
      %v1644 = vpop.f32.mrf.mxu0
      %v1645 = vadd.f32 0.0, %v1644
      %1646 = vmatmul.f32.gmra.mxu0 %v1292
      %v1647 = vpop.f32.mrf.mxu0
      %v1648 = vadd.f32 0.0, %v1647
      %1649 = vmatmul.f32.gmra.mxu0 %v1295
      %v1650 = vpop.f32.mrf.mxu0
      %v1651 = vadd.f32 0.0, %v1650
      %1652 = vmatmul.f32.gmra.mxu0 %v1298
      %v1653 = vpop.f32.mrf.mxu0
      %v1654 = vadd.f32 0.0, %v1653
      %1655 = vmatmul.f32.gmra.mxu0 %v1301
      %v1656 = vpop.f32.mrf.mxu0
      %v1657 = vadd.f32 0.0, %v1656
      %1658 = vmatmul.f32.gmra.mxu0 %v1304
      %v1659 = vpop.f32.mrf.mxu0
      %v1660 = vadd.f32 0.0, %v1659
      %1661 = vmatmul.f32.gmra.mxu0 %v1307
      %v1662 = vpop.f32.mrf.mxu0
      %v1663 = vadd.f32 0.0, %v1662
      %1664 = vmatmul.f32.gmra.mxu0 %v1310
      %v1665 = vpop.f32.mrf.mxu0
      %v1666 = vadd.f32 0.0, %v1665
      %1667 = vmatmul.f32.gmra.mxu0 %v1313
      %v1668 = vpop.f32.mrf.mxu0
      %v1669 = vadd.f32 0.0, %v1668
      %1670 = vmatmul.f32.gmra.mxu0 %v1316
      %v1671 = vpop.f32.mrf.mxu0
      %v1672 = vadd.f32 0.0, %v1671
      %1673 = vmatmul.f32.gmra.mxu0 %v1319
      %v1674 = vpop.f32.mrf.mxu0
      %v1675 = vadd.f32 0.0, %v1674
      %1676 = vmatmul.f32.gmra.mxu0 %v1322
      %v1677 = vpop.f32.mrf.mxu0
      %v1678 = vadd.f32 0.0, %v1677
      %1679 = vmatmul.f32.gmra.mxu0 %v1325
      %v1680 = vpop.f32.mrf.mxu0
      %v1681 = vadd.f32 0.0, %v1680
      %1682 = vmatmul.f32.gmra.mxu0 %v1328
      %v1683 = vpop.f32.mrf.mxu0
      %v1684 = vadd.f32 0.0, %v1683
      %1685 = vmatmul.f32.gmra.mxu0 %v1331
      %v1686 = vpop.f32.mrf.mxu0
      %v1687 = vadd.f32 0.0, %v1686
      %1688 = vmatmul.f32.gmra.mxu0 %v1334
      %v1689 = vpop.f32.mrf.mxu0
      %v1690 = vadd.f32 0.0, %v1689
      %1691 = vmatmul.f32.gmra.mxu0 %v1337
      %v1692 = vpop.f32.mrf.mxu0
      %v1693 = vadd.f32 0.0, %v1692
      %1694 = vmatmul.f32.gmra.mxu0 %v1340
      %v1695 = vpop.f32.mrf.mxu0
      %v1696 = vadd.f32 0.0, %v1695
      %1697 = vmatmul.f32.gmra.mxu0 %v1343
      %v1698 = vpop.f32.mrf.mxu0
      %v1699 = vadd.f32 0.0, %v1698
      %1700 = vmatmul.f32.gmra.mxu0 %v1346
      %v1701 = vpop.f32.mrf.mxu0
      %v1702 = vadd.f32 0.0, %v1701
      %1703 = vmatmul.f32.gmra.mxu0 %v1349
      %v1704 = vpop.f32.mrf.mxu0
      %v1705 = vadd.f32 0.0, %v1704
      %1706 = vmatmul.f32.gmra.mxu0 %v1352
      %v1707 = vpop.f32.mrf.mxu0
      %v1708 = vadd.f32 0.0, %v1707
      %1709 = vmatmul.f32.gmra.mxu0 %v1355
      %v1710 = vpop.f32.mrf.mxu0
      %v1711 = vadd.f32 0.0, %v1710
      %1712 = vmatmul.f32.gmra.mxu0 %v1358
      %v1713 = vpop.f32.mrf.mxu0
      %v1714 = vadd.f32 0.0, %v1713
      %1715 = vmatmul.f32.gmra.mxu0 %v1361
      %v1716 = vpop.f32.mrf.mxu0
      %v1717 = vadd.f32 0.0, %v1716
      %1718 = vmatmul.f32.gmra.mxu0 %v1364
      %v1719 = vpop.f32.mrf.mxu0
      %v1720 = vadd.f32 0.0, %v1719
      %1721 = vmatmul.f32.gmra.mxu0 %v1367
      %v1722 = vpop.f32.mrf.mxu0
      %v1723 = vadd.f32 0.0, %v1722
      %1724 = vmatmul.f32.gmra.mxu0 %v1370
      %v1725 = vpop.f32.mrf.mxu0
      %v1726 = vadd.f32 0.0, %v1725
      %1727 = vmatmul.f32.gmra.mxu0 %v1373
      %v1728 = vpop.f32.mrf.mxu0
      %v1729 = vadd.f32 0.0, %v1728
      %1730 = vmatmul.f32.gmra.mxu0 %v1376
      %v1731 = vpop.f32.mrf.mxu0
      %v1732 = vadd.f32 0.0, %v1731
      %1733 = vmatmul.f32.gmra.mxu0 %v1379
      %v1734 = vpop.f32.mrf.mxu0
      %v1735 = vadd.f32 0.0, %v1734
      %1736 = vmatmul.f32.gmra.mxu0 %v1382
      %v1737 = vpop.f32.mrf.mxu0
      %v1738 = vadd.f32 0.0, %v1737
      %1739 = vmatmul.f32.gmra.mxu0 %v1385
      %v1740 = vpop.f32.mrf.mxu0
      %v1741 = vadd.f32 0.0, %v1740
      %1742 = vmatmul.f32.gmra.mxu0 %v1388
      %v1743 = vpop.f32.mrf.mxu0
      %v1744 = vadd.f32 0.0, %v1743
      %1745 = vmatmul.f32.gmra.mxu0 %v1391
      %v1746 = vpop.f32.mrf.mxu0
      %v1747 = vadd.f32 0.0, %v1746
      %1748 = vmatmul.f32.gmra.mxu0 %v1394
      %v1749 = vpop.f32.mrf.mxu0
      %v1750 = vadd.f32 0.0, %v1749
      %1751 = vmatmul.f32.gmra.mxu0 %v1397
      %v1752 = vpop.f32.mrf.mxu0
      %v1753 = vadd.f32 0.0, %v1752
      %1754 = vmatmul.f32.gmra.mxu0 %v1400
      %v1755 = vpop.f32.mrf.mxu0
      %v1756 = vadd.f32 0.0, %v1755
      %1757 = vmatmul.f32.gmra.mxu0 %v1403
      %v1758 = vpop.f32.mrf.mxu0
      %v1759 = vadd.f32 0.0, %v1758
      %1760 = vmatmul.f32.gmra.mxu0 %v1406
      %v1761 = vpop.f32.mrf.mxu0
      %v1762 = vadd.f32 0.0, %v1761
      %1763 = vmatmul.f32.gmra.mxu0 %v1409
      %v1764 = vpop.f32.mrf.mxu0
      %v1765 = vadd.f32 0.0, %v1764
      %1766 = vmatmul.f32.gmra.mxu0 %v1412
      %v1767 = vpop.f32.mrf.mxu0
      %v1768 = vadd.f32 0.0, %v1767
      %1769 = vmatmul.f32.gmra.mxu0 %v1415
      %v1770 = vpop.f32.mrf.mxu0
      %v1771 = vadd.f32 0.0, %v1770
      %1772 = vmatmul.f32.gmra.mxu0 %v1418
      %v1773 = vpop.f32.mrf.mxu0
      %v1774 = vadd.f32 0.0, %v1773
      %1775 = vmatmul.f32.gmra.mxu0 %v1421
      %v1776 = vpop.f32.mrf.mxu0
      %v1777 = vadd.f32 0.0, %v1776
      %1778 = vmatmul.f32.gmra.mxu0 %v1424
      %v1779 = vpop.f32.mrf.mxu0
      %v1780 = vadd.f32 0.0, %v1779
      %1781 = vmatmul.f32.gmra.mxu0 %v1427
      %v1782 = vpop.f32.mrf.mxu0
      %v1783 = vadd.f32 0.0, %v1782
      %1784 = vmatmul.f32.gmra.mxu0 %v1430
      %v1785 = vpop.f32.mrf.mxu0
      %v1786 = vadd.f32 0.0, %v1785
      %1787 = vmatmul.f32.gmra.mxu0 %v1433
      %v1788 = vpop.f32.mrf.mxu0
      %v1789 = vadd.f32 0.0, %v1788
      %1790 = vmatmul.f32.gmra.mxu0 %v1436
      %v1791 = vpop.f32.mrf.mxu0
      %v1792 = vadd.f32 0.0, %v1791
      %1793 = vmatmul.f32.gmra.mxu0 %v1439
      %v1794 = vpop.f32.mrf.mxu0
      %v1795 = vadd.f32 0.0, %v1794
      %1796 = vdwg.mxu0
      %s1797 = scalar_lea.vmem %s165, 1808
      %v1798 = vld [vmem:[%s1797] sm:$0xff]
      %v1799 = vld [vmem:[%s1797 + $0x8] sm:$0xff]
      %v1800 = vld [vmem:[%s1797 + $0x10] sm:$0xff]
      %v1801 = vld [vmem:[%s1797 + $0x18] sm:$0xff]
      %v1802 = vld [vmem:[%s1797 + $0x20] sm:$0xff]
      %v1803 = vld [vmem:[%s1797 + $0x28] sm:$0xff]
      %v1804 = vld [vmem:[%s1797 + $0x30] sm:$0xff]
      %v1805 = vld [vmem:[%s1797 + $0x38] sm:$0xff]
      %v1806 = vld [vmem:[%s1797 + $0x40] sm:$0xff]
      %v1807 = vld [vmem:[%s1797 + $0x48] sm:$0xff]
      %v1808 = vld [vmem:[%s1797 + $0x50] sm:$0xff]
      %v1809 = vld [vmem:[%s1797 + $0x58] sm:$0xff]
      %v1810 = vld [vmem:[%s1797 + $0x60] sm:$0xff]
      %v1811 = vld [vmem:[%s1797 + $0x68] sm:$0xff]
      %v1812 = vld [vmem:[%s1797 + $0x70] sm:$0xff]
      %v1813 = vld [vmem:[%s1797 + $0x78] sm:$0xff]
      %v1814 = vld [vmem:[%s1797 + $0x80] sm:$0xff]
      %v1815 = vld [vmem:[%s1797 + $0x88] sm:$0xff]
      %v1816 = vld [vmem:[%s1797 + $0x90] sm:$0xff]
      %v1817 = vld [vmem:[%s1797 + $0x98] sm:$0xff]
      %v1818 = vld [vmem:[%s1797 + $0xa0] sm:$0xff]
      %v1819 = vld [vmem:[%s1797 + $0xa8] sm:$0xff]
      %v1820 = vld [vmem:[%s1797 + $0xb0] sm:$0xff]
      %v1821 = vld [vmem:[%s1797 + $0xb8] sm:$0xff]
      %v1822 = vld [vmem:[%s1797 + $0xc0] sm:$0xff]
      %v1823 = vld [vmem:[%s1797 + $0xc8] sm:$0xff]
      %v1824 = vld [vmem:[%s1797 + $0xd0] sm:$0xff]
      %v1825 = vld [vmem:[%s1797 + $0xd8] sm:$0xff]
      %v1826 = vld [vmem:[%s1797 + $0xe0] sm:$0xff]
      %v1827 = vld [vmem:[%s1797 + $0xe8] sm:$0xff]
      %v1828 = vld [vmem:[%s1797 + $0xf0] sm:$0xff]
      %v1829 = vld [vmem:[%s1797 + $0xf8] sm:$0xff]
      %v1830 = vld [vmem:[%s1797 + $0x100] sm:$0xff]
      %v1831 = vld [vmem:[%s1797 + $0x108] sm:$0xff]
      %v1832 = vld [vmem:[%s1797 + $0x110] sm:$0xff]
      %v1833 = vld [vmem:[%s1797 + $0x118] sm:$0xff]
      %v1834 = vld [vmem:[%s1797 + $0x120] sm:$0xff]
      %v1835 = vld [vmem:[%s1797 + $0x128] sm:$0xff]
      %v1836 = vld [vmem:[%s1797 + $0x130] sm:$0xff]
      %v1837 = vld [vmem:[%s1797 + $0x138] sm:$0xff]
      %v1838 = vld [vmem:[%s1797 + $0x140] sm:$0xff]
      %v1839 = vld [vmem:[%s1797 + $0x148] sm:$0xff]
      %v1840 = vld [vmem:[%s1797 + $0x150] sm:$0xff]
      %v1841 = vld [vmem:[%s1797 + $0x158] sm:$0xff]
      %v1842 = vld [vmem:[%s1797 + $0x160] sm:$0xff]
      %v1843 = vld [vmem:[%s1797 + $0x168] sm:$0xff]
      %v1844 = vld [vmem:[%s1797 + $0x170] sm:$0xff]
      %v1845 = vld [vmem:[%s1797 + $0x178] sm:$0xff]
      %v1846 = vld [vmem:[%s1797 + $0x180] sm:$0xff]
      %v1847 = vld [vmem:[%s1797 + $0x188] sm:$0xff]
      %v1848 = vld [vmem:[%s1797 + $0x190] sm:$0xff]
      %v1849 = vld [vmem:[%s1797 + $0x198] sm:$0xff]
      %v1850 = vld [vmem:[%s1797 + $0x1a0] sm:$0xff]
      %v1851 = vld [vmem:[%s1797 + $0x1a8] sm:$0xff]
      %v1852 = vld [vmem:[%s1797 + $0x1b0] sm:$0xff]
      %v1853 = vld [vmem:[%s1797 + $0x1b8] sm:$0xff]
      %v1854 = vld [vmem:[%s1797 + $0x1c0] sm:$0xff]
      %v1855 = vld [vmem:[%s1797 + $0x1c8] sm:$0xff]
      %v1856 = vld [vmem:[%s1797 + $0x1d0] sm:$0xff]
      %v1857 = vld [vmem:[%s1797 + $0x1d8] sm:$0xff]
      %v1858 = vld [vmem:[%s1797 + $0x1e0] sm:$0xff]
      %v1859 = vld [vmem:[%s1797 + $0x1e8] sm:$0xff]
      %v1860 = vld [vmem:[%s1797 + $0x1f0] sm:$0xff]
      %v1861 = vld [vmem:[%s1797 + $0x1f8] sm:$0xff]
      %v1862 = vld [vmem:[%s1797 + $0x200] sm:$0xff]
      %v1863 = vld [vmem:[%s1797 + $0x208] sm:$0xff]
      %v1864 = vld [vmem:[%s1797 + $0x210] sm:$0xff]
      %v1865 = vld [vmem:[%s1797 + $0x218] sm:$0xff]
      %v1866 = vld [vmem:[%s1797 + $0x220] sm:$0xff]
      %v1867 = vld [vmem:[%s1797 + $0x228] sm:$0xff]
      %v1868 = vld [vmem:[%s1797 + $0x230] sm:$0xff]
      %v1869 = vld [vmem:[%s1797 + $0x238] sm:$0xff]
      %v1870 = vld [vmem:[%s1797 + $0x240] sm:$0xff]
      %v1871 = vld [vmem:[%s1797 + $0x248] sm:$0xff]
      %v1872 = vld [vmem:[%s1797 + $0x250] sm:$0xff]
      %v1873 = vld [vmem:[%s1797 + $0x258] sm:$0xff]
      %v1874 = vld [vmem:[%s1797 + $0x260] sm:$0xff]
      %v1875 = vld [vmem:[%s1797 + $0x268] sm:$0xff]
      %v1876 = vld [vmem:[%s1797 + $0x270] sm:$0xff]
      %v1877 = vld [vmem:[%s1797 + $0x278] sm:$0xff]
      %v1878 = vld [vmem:[%s1797 + $0x280] sm:$0xff]
      %v1879 = vld [vmem:[%s1797 + $0x288] sm:$0xff]
      %v1880 = vld [vmem:[%s1797 + $0x290] sm:$0xff]
      %v1881 = vld [vmem:[%s1797 + $0x298] sm:$0xff]
      %v1882 = vld [vmem:[%s1797 + $0x2a0] sm:$0xff]
      %v1883 = vld [vmem:[%s1797 + $0x2a8] sm:$0xff]
      %v1884 = vld [vmem:[%s1797 + $0x2b0] sm:$0xff]
      %v1885 = vld [vmem:[%s1797 + $0x2b8] sm:$0xff]
      %v1886 = vld [vmem:[%s1797 + $0x2c0] sm:$0xff]
      %v1887 = vld [vmem:[%s1797 + $0x2c8] sm:$0xff]
      %v1888 = vld [vmem:[%s1797 + $0x2d0] sm:$0xff]
      %v1889 = vld [vmem:[%s1797 + $0x2d8] sm:$0xff]
      %v1890 = vld [vmem:[%s1797 + $0x2e0] sm:$0xff]
      %v1891 = vld [vmem:[%s1797 + $0x2e8] sm:$0xff]
      %v1892 = vld [vmem:[%s1797 + $0x2f0] sm:$0xff]
      %v1893 = vld [vmem:[%s1797 + $0x2f8] sm:$0xff]
      %v1894 = vld [vmem:[%s1797 + $0x300] sm:$0xff]
      %v1895 = vld [vmem:[%s1797 + $0x308] sm:$0xff]
      %v1896 = vld [vmem:[%s1797 + $0x310] sm:$0xff]
      %v1897 = vld [vmem:[%s1797 + $0x318] sm:$0xff]
      %v1898 = vld [vmem:[%s1797 + $0x320] sm:$0xff]
      %v1899 = vld [vmem:[%s1797 + $0x328] sm:$0xff]
      %v1900 = vld [vmem:[%s1797 + $0x330] sm:$0xff]
      %v1901 = vld [vmem:[%s1797 + $0x338] sm:$0xff]
      %v1902 = vld [vmem:[%s1797 + $0x340] sm:$0xff]
      %v1903 = vld [vmem:[%s1797 + $0x348] sm:$0xff]
      %v1904 = vld [vmem:[%s1797 + $0x350] sm:$0xff]
      %v1905 = vld [vmem:[%s1797 + $0x358] sm:$0xff]
      %v1906 = vld [vmem:[%s1797 + $0x360] sm:$0xff]
      %v1907 = vld [vmem:[%s1797 + $0x368] sm:$0xff]
      %v1908 = vld [vmem:[%s1797 + $0x370] sm:$0xff]
      %v1909 = vld [vmem:[%s1797 + $0x378] sm:$0xff]
      %v1910 = vld [vmem:[%s1797 + $0x380] sm:$0xf]
      %v1912 = vsel %vm288, %v1798, 0
      %v1915 = vsel %vm288, %v1799, 0
      %v1918 = vsel %vm288, %v1800, 0
      %v1921 = vsel %vm288, %v1801, 0
      %v1924 = vsel %vm288, %v1802, 0
      %v1927 = vsel %vm288, %v1803, 0
      %v1930 = vsel %vm288, %v1804, 0
      %v1933 = vsel %vm288, %v1805, 0
      %v1936 = vsel %vm288, %v1806, 0
      %v1939 = vsel %vm288, %v1807, 0
      %v1942 = vsel %vm288, %v1808, 0
      %v1945 = vsel %vm288, %v1809, 0
      %v1948 = vsel %vm288, %v1810, 0
      %v1951 = vsel %vm288, %v1811, 0
      %v1954 = vsel %vm288, %v1812, 0
      %v1957 = vsel %vm288, %v1813, 0
      %v1960 = vsel %vm288, %v1814, 0
      %v1963 = vsel %vm288, %v1815, 0
      %v1966 = vsel %vm288, %v1816, 0
      %v1969 = vsel %vm288, %v1817, 0
      %v1972 = vsel %vm288, %v1818, 0
      %v1975 = vsel %vm288, %v1819, 0
      %v1978 = vsel %vm288, %v1820, 0
      %v1981 = vsel %vm288, %v1821, 0
      %v1984 = vsel %vm288, %v1822, 0
      %v1987 = vsel %vm288, %v1823, 0
      %v1990 = vsel %vm288, %v1824, 0
      %v1993 = vsel %vm288, %v1825, 0
      %v1996 = vsel %vm288, %v1826, 0
      %v1999 = vsel %vm288, %v1827, 0
      %v2002 = vsel %vm288, %v1828, 0
      %v2005 = vsel %vm288, %v1829, 0
      %v2008 = vsel %vm288, %v1830, 0
      %v2011 = vsel %vm288, %v1831, 0
      %v2014 = vsel %vm288, %v1832, 0
      %v2017 = vsel %vm288, %v1833, 0
      %v2020 = vsel %vm288, %v1834, 0
      %v2023 = vsel %vm288, %v1835, 0
      %v2026 = vsel %vm288, %v1836, 0
      %v2029 = vsel %vm288, %v1837, 0
      %v2032 = vsel %vm288, %v1838, 0
      %v2035 = vsel %vm288, %v1839, 0
      %v2038 = vsel %vm288, %v1840, 0
      %v2041 = vsel %vm288, %v1841, 0
      %v2044 = vsel %vm288, %v1842, 0
      %v2047 = vsel %vm288, %v1843, 0
      %v2050 = vsel %vm288, %v1844, 0
      %v2053 = vsel %vm288, %v1845, 0
      %v2056 = vsel %vm288, %v1846, 0
      %v2059 = vsel %vm288, %v1847, 0
      %v2062 = vsel %vm288, %v1848, 0
      %v2065 = vsel %vm288, %v1849, 0
      %v2068 = vsel %vm288, %v1850, 0
      %v2071 = vsel %vm288, %v1851, 0
      %v2074 = vsel %vm288, %v1852, 0
      %v2077 = vsel %vm288, %v1853, 0
      %v2080 = vsel %vm288, %v1854, 0
      %v2083 = vsel %vm288, %v1855, 0
      %v2086 = vsel %vm288, %v1856, 0
      %v2089 = vsel %vm288, %v1857, 0
      %v2092 = vsel %vm288, %v1858, 0
      %v2095 = vsel %vm288, %v1859, 0
      %v2098 = vsel %vm288, %v1860, 0
      %v2101 = vsel %vm288, %v1861, 0
      %v2104 = vsel %vm288, %v1862, 0
      %v2107 = vsel %vm288, %v1863, 0
      %v2110 = vsel %vm288, %v1864, 0
      %v2113 = vsel %vm288, %v1865, 0
      %v2116 = vsel %vm288, %v1866, 0
      %v2119 = vsel %vm288, %v1867, 0
      %v2122 = vsel %vm288, %v1868, 0
      %v2125 = vsel %vm288, %v1869, 0
      %v2128 = vsel %vm288, %v1870, 0
      %v2131 = vsel %vm288, %v1871, 0
      %v2134 = vsel %vm288, %v1872, 0
      %v2137 = vsel %vm288, %v1873, 0
      %v2140 = vsel %vm288, %v1874, 0
      %v2143 = vsel %vm288, %v1875, 0
      %v2146 = vsel %vm288, %v1876, 0
      %v2149 = vsel %vm288, %v1877, 0
      %v2152 = vsel %vm288, %v1878, 0
      %v2155 = vsel %vm288, %v1879, 0
      %v2158 = vsel %vm288, %v1880, 0
      %v2161 = vsel %vm288, %v1881, 0
      %v2164 = vsel %vm288, %v1882, 0
      %v2167 = vsel %vm288, %v1883, 0
      %v2170 = vsel %vm288, %v1884, 0
      %v2173 = vsel %vm288, %v1885, 0
      %v2176 = vsel %vm288, %v1886, 0
      %v2179 = vsel %vm288, %v1887, 0
      %v2182 = vsel %vm288, %v1888, 0
      %v2185 = vsel %vm288, %v1889, 0
      %v2188 = vsel %vm288, %v1890, 0
      %v2191 = vsel %vm288, %v1891, 0
      %v2194 = vsel %vm288, %v1892, 0
      %v2197 = vsel %vm288, %v1893, 0
      %v2200 = vsel %vm288, %v1894, 0
      %v2203 = vsel %vm288, %v1895, 0
      %v2206 = vsel %vm288, %v1896, 0
      %v2209 = vsel %vm288, %v1897, 0
      %v2212 = vsel %vm288, %v1898, 0
      %v2215 = vsel %vm288, %v1899, 0
      %v2218 = vsel %vm288, %v1900, 0
      %v2221 = vsel %vm288, %v1901, 0
      %v2224 = vsel %vm288, %v1902, 0
      %v2227 = vsel %vm288, %v1903, 0
      %v2230 = vsel %vm288, %v1904, 0
      %v2233 = vsel %vm288, %v1905, 0
      %v2236 = vsel %vm288, %v1906, 0
      %v2239 = vsel %vm288, %v1907, 0
      %v2242 = vsel %vm288, %v1908, 0
      %v2245 = vsel %vm288, %v1909, 0
      %v2248 = vsel %vm288, %v1910, 0
      %2250 = vmatpush.msra.mxu0 0.0
      %2251 = vmatpush.msra.mxu0 0.0
      %2252 = vmatpush.msra.mxu0 0.0
      %2253 = vmatpush.msra.mxu0 0.0
      %2254 = vmatpush.msra.mxu0 0.0
      %2255 = vmatpush.msra.mxu0 0.0
      %2256 = vmatpush.msra.mxu0 0.0
      %2257 = vmatpush.msra.mxu0 0.0
      %2258 = vmatpush.msra.mxu0 0.0
      %2259 = vmatpush.msra.mxu0 0.0
      %2260 = vmatpush.msra.mxu0 0.0
      %2261 = vmatpush.msra.mxu0 0.0
      %2262 = vmatpush.msra.mxu0 %v630
      %2263 = vmatpush.msra.mxu0 %v173
      %2264 = vmatpush.msra.mxu0 %v172
      %2265 = vmatpush.msra.mxu0 %v171
      %2266 = vmatmul.f32.gmra.mxu0 %v1912
      %v2267 = vpop.f32.mrf.mxu0
      %v2268 = vadd.f32 0.0, %v2267
      %2269 = vmatmul.f32.gmra.mxu0 %v1915
      %v2270 = vpop.f32.mrf.mxu0
      %v2271 = vadd.f32 0.0, %v2270
      %2272 = vmatmul.f32.gmra.mxu0 %v1918
      %v2273 = vpop.f32.mrf.mxu0
      %v2274 = vadd.f32 0.0, %v2273
      %2275 = vmatmul.f32.gmra.mxu0 %v1921
      %v2276 = vpop.f32.mrf.mxu0
      %v2277 = vadd.f32 0.0, %v2276
      %2278 = vmatmul.f32.gmra.mxu0 %v1924
      %v2279 = vpop.f32.mrf.mxu0
      %v2280 = vadd.f32 0.0, %v2279
      %2281 = vmatmul.f32.gmra.mxu0 %v1927
      %v2282 = vpop.f32.mrf.mxu0
      %v2283 = vadd.f32 0.0, %v2282
      %2284 = vmatmul.f32.gmra.mxu0 %v1930
      %v2285 = vpop.f32.mrf.mxu0
      %v2286 = vadd.f32 0.0, %v2285
      %2287 = vmatmul.f32.gmra.mxu0 %v1933
      %v2288 = vpop.f32.mrf.mxu0
      %v2289 = vadd.f32 0.0, %v2288
      %2290 = vmatmul.f32.gmra.mxu0 %v1936
      %v2291 = vpop.f32.mrf.mxu0
      %v2292 = vadd.f32 0.0, %v2291
      %2293 = vmatmul.f32.gmra.mxu0 %v1939
      %v2294 = vpop.f32.mrf.mxu0
      %v2295 = vadd.f32 0.0, %v2294
      %2296 = vmatmul.f32.gmra.mxu0 %v1942
      %v2297 = vpop.f32.mrf.mxu0
      %v2298 = vadd.f32 0.0, %v2297
      %2299 = vmatmul.f32.gmra.mxu0 %v1945
      %v2300 = vpop.f32.mrf.mxu0
      %v2301 = vadd.f32 0.0, %v2300
      %2302 = vmatmul.f32.gmra.mxu0 %v1948
      %v2303 = vpop.f32.mrf.mxu0
      %v2304 = vadd.f32 0.0, %v2303
      %2305 = vmatmul.f32.gmra.mxu0 %v1951
      %v2306 = vpop.f32.mrf.mxu0
      %v2307 = vadd.f32 0.0, %v2306
      %2308 = vmatmul.f32.gmra.mxu0 %v1954
      %v2309 = vpop.f32.mrf.mxu0
      %v2310 = vadd.f32 0.0, %v2309
      %2311 = vmatmul.f32.gmra.mxu0 %v1957
      %v2312 = vpop.f32.mrf.mxu0
      %v2313 = vadd.f32 0.0, %v2312
      %2314 = vmatmul.f32.gmra.mxu0 %v1960
      %v2315 = vpop.f32.mrf.mxu0
      %v2316 = vadd.f32 0.0, %v2315
      %2317 = vmatmul.f32.gmra.mxu0 %v1963
      %v2318 = vpop.f32.mrf.mxu0
      %v2319 = vadd.f32 0.0, %v2318
      %2320 = vmatmul.f32.gmra.mxu0 %v1966
      %v2321 = vpop.f32.mrf.mxu0
      %v2322 = vadd.f32 0.0, %v2321
      %2323 = vmatmul.f32.gmra.mxu0 %v1969
      %v2324 = vpop.f32.mrf.mxu0
      %v2325 = vadd.f32 0.0, %v2324
      %2326 = vmatmul.f32.gmra.mxu0 %v1972
      %v2327 = vpop.f32.mrf.mxu0
      %v2328 = vadd.f32 0.0, %v2327
      %2329 = vmatmul.f32.gmra.mxu0 %v1975
      %v2330 = vpop.f32.mrf.mxu0
      %v2331 = vadd.f32 0.0, %v2330
      %2332 = vmatmul.f32.gmra.mxu0 %v1978
      %v2333 = vpop.f32.mrf.mxu0
      %v2334 = vadd.f32 0.0, %v2333
      %2335 = vmatmul.f32.gmra.mxu0 %v1981
      %v2336 = vpop.f32.mrf.mxu0
      %v2337 = vadd.f32 0.0, %v2336
      %2338 = vmatmul.f32.gmra.mxu0 %v1984
      %v2339 = vpop.f32.mrf.mxu0
      %v2340 = vadd.f32 0.0, %v2339
      %2341 = vmatmul.f32.gmra.mxu0 %v1987
      %v2342 = vpop.f32.mrf.mxu0
      %v2343 = vadd.f32 0.0, %v2342
      %2344 = vmatmul.f32.gmra.mxu0 %v1990
      %v2345 = vpop.f32.mrf.mxu0
      %v2346 = vadd.f32 0.0, %v2345
      %2347 = vmatmul.f32.gmra.mxu0 %v1993
      %v2348 = vpop.f32.mrf.mxu0
      %v2349 = vadd.f32 0.0, %v2348
      %2350 = vmatmul.f32.gmra.mxu0 %v1996
      %v2351 = vpop.f32.mrf.mxu0
      %v2352 = vadd.f32 0.0, %v2351
      %2353 = vmatmul.f32.gmra.mxu0 %v1999
      %v2354 = vpop.f32.mrf.mxu0
      %v2355 = vadd.f32 0.0, %v2354
      %2356 = vmatmul.f32.gmra.mxu0 %v2002
      %v2357 = vpop.f32.mrf.mxu0
      %v2358 = vadd.f32 0.0, %v2357
      %2359 = vmatmul.f32.gmra.mxu0 %v2005
      %v2360 = vpop.f32.mrf.mxu0
      %v2361 = vadd.f32 0.0, %v2360
      %2362 = vmatmul.f32.gmra.mxu0 %v2008
      %v2363 = vpop.f32.mrf.mxu0
      %v2364 = vadd.f32 0.0, %v2363
      %2365 = vmatmul.f32.gmra.mxu0 %v2011
      %v2366 = vpop.f32.mrf.mxu0
      %v2367 = vadd.f32 0.0, %v2366
      %2368 = vmatmul.f32.gmra.mxu0 %v2014
      %v2369 = vpop.f32.mrf.mxu0
      %v2370 = vadd.f32 0.0, %v2369
      %2371 = vmatmul.f32.gmra.mxu0 %v2017
      %v2372 = vpop.f32.mrf.mxu0
      %v2373 = vadd.f32 0.0, %v2372
      %2374 = vmatmul.f32.gmra.mxu0 %v2020
      %v2375 = vpop.f32.mrf.mxu0
      %v2376 = vadd.f32 0.0, %v2375
      %2377 = vmatmul.f32.gmra.mxu0 %v2023
      %v2378 = vpop.f32.mrf.mxu0
      %v2379 = vadd.f32 0.0, %v2378
      %2380 = vmatmul.f32.gmra.mxu0 %v2026
      %v2381 = vpop.f32.mrf.mxu0
      %v2382 = vadd.f32 0.0, %v2381
      %2383 = vmatmul.f32.gmra.mxu0 %v2029
      %v2384 = vpop.f32.mrf.mxu0
      %v2385 = vadd.f32 0.0, %v2384
      %2386 = vmatmul.f32.gmra.mxu0 %v2032
      %v2387 = vpop.f32.mrf.mxu0
      %v2388 = vadd.f32 0.0, %v2387
      %2389 = vmatmul.f32.gmra.mxu0 %v2035
      %v2390 = vpop.f32.mrf.mxu0
      %v2391 = vadd.f32 0.0, %v2390
      %2392 = vmatmul.f32.gmra.mxu0 %v2038
      %v2393 = vpop.f32.mrf.mxu0
      %v2394 = vadd.f32 0.0, %v2393
      %2395 = vmatmul.f32.gmra.mxu0 %v2041
      %v2396 = vpop.f32.mrf.mxu0
      %v2397 = vadd.f32 0.0, %v2396
      %2398 = vmatmul.f32.gmra.mxu0 %v2044
      %v2399 = vpop.f32.mrf.mxu0
      %v2400 = vadd.f32 0.0, %v2399
      %2401 = vmatmul.f32.gmra.mxu0 %v2047
      %v2402 = vpop.f32.mrf.mxu0
      %v2403 = vadd.f32 0.0, %v2402
      %2404 = vmatmul.f32.gmra.mxu0 %v2050
      %v2405 = vpop.f32.mrf.mxu0
      %v2406 = vadd.f32 0.0, %v2405
      %2407 = vmatmul.f32.gmra.mxu0 %v2053
      %v2408 = vpop.f32.mrf.mxu0
      %v2409 = vadd.f32 0.0, %v2408
      %2410 = vmatmul.f32.gmra.mxu0 %v2056
      %v2411 = vpop.f32.mrf.mxu0
      %v2412 = vadd.f32 0.0, %v2411
      %2413 = vmatmul.f32.gmra.mxu0 %v2059
      %v2414 = vpop.f32.mrf.mxu0
      %v2415 = vadd.f32 0.0, %v2414
      %2416 = vmatmul.f32.gmra.mxu0 %v2062
      %v2417 = vpop.f32.mrf.mxu0
      %v2418 = vadd.f32 0.0, %v2417
      %2419 = vmatmul.f32.gmra.mxu0 %v2065
      %v2420 = vpop.f32.mrf.mxu0
      %v2421 = vadd.f32 0.0, %v2420
      %2422 = vmatmul.f32.gmra.mxu0 %v2068
      %v2423 = vpop.f32.mrf.mxu0
      %v2424 = vadd.f32 0.0, %v2423
      %2425 = vmatmul.f32.gmra.mxu0 %v2071
      %v2426 = vpop.f32.mrf.mxu0
      %v2427 = vadd.f32 0.0, %v2426
      %2428 = vmatmul.f32.gmra.mxu0 %v2074
      %v2429 = vpop.f32.mrf.mxu0
      %v2430 = vadd.f32 0.0, %v2429
      %2431 = vmatmul.f32.gmra.mxu0 %v2077
      %v2432 = vpop.f32.mrf.mxu0
      %v2433 = vadd.f32 0.0, %v2432
      %2434 = vmatmul.f32.gmra.mxu0 %v2080
      %v2435 = vpop.f32.mrf.mxu0
      %v2436 = vadd.f32 0.0, %v2435
      %2437 = vmatmul.f32.gmra.mxu0 %v2083
      %v2438 = vpop.f32.mrf.mxu0
      %v2439 = vadd.f32 0.0, %v2438
      %2440 = vmatmul.f32.gmra.mxu0 %v2086
      %v2441 = vpop.f32.mrf.mxu0
      %v2442 = vadd.f32 0.0, %v2441
      %2443 = vmatmul.f32.gmra.mxu0 %v2089
      %v2444 = vpop.f32.mrf.mxu0
      %v2445 = vadd.f32 0.0, %v2444
      %2446 = vmatmul.f32.gmra.mxu0 %v2092
      %v2447 = vpop.f32.mrf.mxu0
      %v2448 = vadd.f32 0.0, %v2447
      %2449 = vmatmul.f32.gmra.mxu0 %v2095
      %v2450 = vpop.f32.mrf.mxu0
      %v2451 = vadd.f32 0.0, %v2450
      %2452 = vmatmul.f32.gmra.mxu0 %v2098
      %v2453 = vpop.f32.mrf.mxu0
      %v2454 = vadd.f32 0.0, %v2453
      %2455 = vmatmul.f32.gmra.mxu0 %v2101
      %v2456 = vpop.f32.mrf.mxu0
      %v2457 = vadd.f32 0.0, %v2456
      %2458 = vmatmul.f32.gmra.mxu0 %v2104
      %v2459 = vpop.f32.mrf.mxu0
      %v2460 = vadd.f32 0.0, %v2459
      %2461 = vmatmul.f32.gmra.mxu0 %v2107
      %v2462 = vpop.f32.mrf.mxu0
      %v2463 = vadd.f32 0.0, %v2462
      %2464 = vmatmul.f32.gmra.mxu0 %v2110
      %v2465 = vpop.f32.mrf.mxu0
      %v2466 = vadd.f32 0.0, %v2465
      %2467 = vmatmul.f32.gmra.mxu0 %v2113
      %v2468 = vpop.f32.mrf.mxu0
      %v2469 = vadd.f32 0.0, %v2468
      %2470 = vmatmul.f32.gmra.mxu0 %v2116
      %v2471 = vpop.f32.mrf.mxu0
      %v2472 = vadd.f32 0.0, %v2471
      %2473 = vmatmul.f32.gmra.mxu0 %v2119
      %v2474 = vpop.f32.mrf.mxu0
      %v2475 = vadd.f32 0.0, %v2474
      %2476 = vmatmul.f32.gmra.mxu0 %v2122
      %v2477 = vpop.f32.mrf.mxu0
      %v2478 = vadd.f32 0.0, %v2477
      %2479 = vmatmul.f32.gmra.mxu0 %v2125
      %v2480 = vpop.f32.mrf.mxu0
      %v2481 = vadd.f32 0.0, %v2480
      %2482 = vmatmul.f32.gmra.mxu0 %v2128
      %v2483 = vpop.f32.mrf.mxu0
      %v2484 = vadd.f32 0.0, %v2483
      %2485 = vmatmul.f32.gmra.mxu0 %v2131
      %v2486 = vpop.f32.mrf.mxu0
      %v2487 = vadd.f32 0.0, %v2486
      %2488 = vmatmul.f32.gmra.mxu0 %v2134
      %v2489 = vpop.f32.mrf.mxu0
      %v2490 = vadd.f32 0.0, %v2489
      %2491 = vmatmul.f32.gmra.mxu0 %v2137
      %v2492 = vpop.f32.mrf.mxu0
      %v2493 = vadd.f32 0.0, %v2492
      %2494 = vmatmul.f32.gmra.mxu0 %v2140
      %v2495 = vpop.f32.mrf.mxu0
      %v2496 = vadd.f32 0.0, %v2495
      %2497 = vmatmul.f32.gmra.mxu0 %v2143
      %v2498 = vpop.f32.mrf.mxu0
      %v2499 = vadd.f32 0.0, %v2498
      %2500 = vmatmul.f32.gmra.mxu0 %v2146
      %v2501 = vpop.f32.mrf.mxu0
      %v2502 = vadd.f32 0.0, %v2501
      %2503 = vmatmul.f32.gmra.mxu0 %v2149
      %v2504 = vpop.f32.mrf.mxu0
      %v2505 = vadd.f32 0.0, %v2504
      %2506 = vmatmul.f32.gmra.mxu0 %v2152
      %v2507 = vpop.f32.mrf.mxu0
      %v2508 = vadd.f32 0.0, %v2507
      %2509 = vmatmul.f32.gmra.mxu0 %v2155
      %v2510 = vpop.f32.mrf.mxu0
      %v2511 = vadd.f32 0.0, %v2510
      %2512 = vmatmul.f32.gmra.mxu0 %v2158
      %v2513 = vpop.f32.mrf.mxu0
      %v2514 = vadd.f32 0.0, %v2513
      %2515 = vmatmul.f32.gmra.mxu0 %v2161
      %v2516 = vpop.f32.mrf.mxu0
      %v2517 = vadd.f32 0.0, %v2516
      %2518 = vmatmul.f32.gmra.mxu0 %v2164
      %v2519 = vpop.f32.mrf.mxu0
      %v2520 = vadd.f32 0.0, %v2519
      %2521 = vmatmul.f32.gmra.mxu0 %v2167
      %v2522 = vpop.f32.mrf.mxu0
      %v2523 = vadd.f32 0.0, %v2522
      %2524 = vmatmul.f32.gmra.mxu0 %v2170
      %v2525 = vpop.f32.mrf.mxu0
      %v2526 = vadd.f32 0.0, %v2525
      %2527 = vmatmul.f32.gmra.mxu0 %v2173
      %v2528 = vpop.f32.mrf.mxu0
      %v2529 = vadd.f32 0.0, %v2528
      %2530 = vmatmul.f32.gmra.mxu0 %v2176
      %v2531 = vpop.f32.mrf.mxu0
      %v2532 = vadd.f32 0.0, %v2531
      %2533 = vmatmul.f32.gmra.mxu0 %v2179
      %v2534 = vpop.f32.mrf.mxu0
      %v2535 = vadd.f32 0.0, %v2534
      %2536 = vmatmul.f32.gmra.mxu0 %v2182
      %v2537 = vpop.f32.mrf.mxu0
      %v2538 = vadd.f32 0.0, %v2537
      %2539 = vmatmul.f32.gmra.mxu0 %v2185
      %v2540 = vpop.f32.mrf.mxu0
      %v2541 = vadd.f32 0.0, %v2540
      %2542 = vmatmul.f32.gmra.mxu0 %v2188
      %v2543 = vpop.f32.mrf.mxu0
      %v2544 = vadd.f32 0.0, %v2543
      %2545 = vmatmul.f32.gmra.mxu0 %v2191
      %v2546 = vpop.f32.mrf.mxu0
      %v2547 = vadd.f32 0.0, %v2546
      %2548 = vmatmul.f32.gmra.mxu0 %v2194
      %v2549 = vpop.f32.mrf.mxu0
      %v2550 = vadd.f32 0.0, %v2549
      %2551 = vmatmul.f32.gmra.mxu0 %v2197
      %v2552 = vpop.f32.mrf.mxu0
      %v2553 = vadd.f32 0.0, %v2552
      %2554 = vmatmul.f32.gmra.mxu0 %v2200
      %v2555 = vpop.f32.mrf.mxu0
      %v2556 = vadd.f32 0.0, %v2555
      %2557 = vmatmul.f32.gmra.mxu0 %v2203
      %v2558 = vpop.f32.mrf.mxu0
      %v2559 = vadd.f32 0.0, %v2558
      %2560 = vmatmul.f32.gmra.mxu0 %v2206
      %v2561 = vpop.f32.mrf.mxu0
      %v2562 = vadd.f32 0.0, %v2561
      %2563 = vmatmul.f32.gmra.mxu0 %v2209
      %v2564 = vpop.f32.mrf.mxu0
      %v2565 = vadd.f32 0.0, %v2564
      %2566 = vmatmul.f32.gmra.mxu0 %v2212
      %v2567 = vpop.f32.mrf.mxu0
      %v2568 = vadd.f32 0.0, %v2567
      %2569 = vmatmul.f32.gmra.mxu0 %v2215
      %v2570 = vpop.f32.mrf.mxu0
      %v2571 = vadd.f32 0.0, %v2570
      %2572 = vmatmul.f32.gmra.mxu0 %v2218
      %v2573 = vpop.f32.mrf.mxu0
      %v2574 = vadd.f32 0.0, %v2573
      %2575 = vmatmul.f32.gmra.mxu0 %v2221
      %v2576 = vpop.f32.mrf.mxu0
      %v2577 = vadd.f32 0.0, %v2576
      %2578 = vmatmul.f32.gmra.mxu0 %v2224
      %v2579 = vpop.f32.mrf.mxu0
      %v2580 = vadd.f32 0.0, %v2579
      %2581 = vmatmul.f32.gmra.mxu0 %v2227
      %v2582 = vpop.f32.mrf.mxu0
      %v2583 = vadd.f32 0.0, %v2582
      %2584 = vmatmul.f32.gmra.mxu0 %v2230
      %v2585 = vpop.f32.mrf.mxu0
      %v2586 = vadd.f32 0.0, %v2585
      %2587 = vmatmul.f32.gmra.mxu0 %v2233
      %v2588 = vpop.f32.mrf.mxu0
      %v2589 = vadd.f32 0.0, %v2588
      %2590 = vmatmul.f32.gmra.mxu0 %v2236
      %v2591 = vpop.f32.mrf.mxu0
      %v2592 = vadd.f32 0.0, %v2591
      %2593 = vmatmul.f32.gmra.mxu0 %v2239
      %v2594 = vpop.f32.mrf.mxu0
      %v2595 = vadd.f32 0.0, %v2594
      %2596 = vmatmul.f32.gmra.mxu0 %v2242
      %v2597 = vpop.f32.mrf.mxu0
      %v2598 = vadd.f32 0.0, %v2597
      %2599 = vmatmul.f32.gmra.mxu0 %v2245
      %v2600 = vpop.f32.mrf.mxu0
      %v2601 = vadd.f32 0.0, %v2600
      %2602 = vmatmul.f32.gmra.mxu0 %v2248
      %v2603 = vpop.f32.mrf.mxu0
      %v2604 = vadd.f32 0.0, %v2603
      %2605 = vdwg.mxu0
      %s2606 = scalar_lea.vmem %s165, 2712
      %v2607 = vld [vmem:[%s2606] sm:$0xff]
      %v2608 = vld [vmem:[%s2606 + $0x8] sm:$0xff]
      %v2609 = vld [vmem:[%s2606 + $0x10] sm:$0xff]
      %v2610 = vld [vmem:[%s2606 + $0x18] sm:$0xff]
      %v2611 = vld [vmem:[%s2606 + $0x20] sm:$0xff]
      %v2612 = vld [vmem:[%s2606 + $0x28] sm:$0xff]
      %v2613 = vld [vmem:[%s2606 + $0x30] sm:$0xff]
      %v2614 = vld [vmem:[%s2606 + $0x38] sm:$0xff]
      %v2615 = vld [vmem:[%s2606 + $0x40] sm:$0xff]
      %v2616 = vld [vmem:[%s2606 + $0x48] sm:$0xff]
      %v2617 = vld [vmem:[%s2606 + $0x50] sm:$0xff]
      %v2618 = vld [vmem:[%s2606 + $0x58] sm:$0xff]
      %v2619 = vld [vmem:[%s2606 + $0x60] sm:$0xff]
      %v2620 = vld [vmem:[%s2606 + $0x68] sm:$0xff]
      %v2621 = vld [vmem:[%s2606 + $0x70] sm:$0xff]
      %v2622 = vld [vmem:[%s2606 + $0x78] sm:$0xff]
      %v2623 = vld [vmem:[%s2606 + $0x80] sm:$0xff]
      %v2624 = vld [vmem:[%s2606 + $0x88] sm:$0xff]
      %v2625 = vld [vmem:[%s2606 + $0x90] sm:$0xff]
      %v2626 = vld [vmem:[%s2606 + $0x98] sm:$0xff]
      %v2627 = vld [vmem:[%s2606 + $0xa0] sm:$0xff]
      %v2628 = vld [vmem:[%s2606 + $0xa8] sm:$0xff]
      %v2629 = vld [vmem:[%s2606 + $0xb0] sm:$0xff]
      %v2630 = vld [vmem:[%s2606 + $0xb8] sm:$0xff]
      %v2631 = vld [vmem:[%s2606 + $0xc0] sm:$0xff]
      %v2632 = vld [vmem:[%s2606 + $0xc8] sm:$0xff]
      %v2633 = vld [vmem:[%s2606 + $0xd0] sm:$0xff]
      %v2634 = vld [vmem:[%s2606 + $0xd8] sm:$0xff]
      %v2635 = vld [vmem:[%s2606 + $0xe0] sm:$0xff]
      %v2636 = vld [vmem:[%s2606 + $0xe8] sm:$0xff]
      %v2637 = vld [vmem:[%s2606 + $0xf0] sm:$0xff]
      %v2638 = vld [vmem:[%s2606 + $0xf8] sm:$0xff]
      %v2639 = vld [vmem:[%s2606 + $0x100] sm:$0xff]
      %v2640 = vld [vmem:[%s2606 + $0x108] sm:$0xff]
      %v2641 = vld [vmem:[%s2606 + $0x110] sm:$0xff]
      %v2642 = vld [vmem:[%s2606 + $0x118] sm:$0xff]
      %v2643 = vld [vmem:[%s2606 + $0x120] sm:$0xff]
      %v2644 = vld [vmem:[%s2606 + $0x128] sm:$0xff]
      %v2645 = vld [vmem:[%s2606 + $0x130] sm:$0xff]
      %v2646 = vld [vmem:[%s2606 + $0x138] sm:$0xff]
      %v2647 = vld [vmem:[%s2606 + $0x140] sm:$0xff]
      %v2648 = vld [vmem:[%s2606 + $0x148] sm:$0xff]
      %v2649 = vld [vmem:[%s2606 + $0x150] sm:$0xff]
      %v2650 = vld [vmem:[%s2606 + $0x158] sm:$0xff]
      %v2651 = vld [vmem:[%s2606 + $0x160] sm:$0xff]
      %v2652 = vld [vmem:[%s2606 + $0x168] sm:$0xff]
      %v2653 = vld [vmem:[%s2606 + $0x170] sm:$0xff]
      %v2654 = vld [vmem:[%s2606 + $0x178] sm:$0xff]
      %v2655 = vld [vmem:[%s2606 + $0x180] sm:$0xff]
      %v2656 = vld [vmem:[%s2606 + $0x188] sm:$0xff]
      %v2657 = vld [vmem:[%s2606 + $0x190] sm:$0xff]
      %v2658 = vld [vmem:[%s2606 + $0x198] sm:$0xff]
      %v2659 = vld [vmem:[%s2606 + $0x1a0] sm:$0xff]
      %v2660 = vld [vmem:[%s2606 + $0x1a8] sm:$0xff]
      %v2661 = vld [vmem:[%s2606 + $0x1b0] sm:$0xff]
      %v2662 = vld [vmem:[%s2606 + $0x1b8] sm:$0xff]
      %v2663 = vld [vmem:[%s2606 + $0x1c0] sm:$0xff]
      %v2664 = vld [vmem:[%s2606 + $0x1c8] sm:$0xff]
      %v2665 = vld [vmem:[%s2606 + $0x1d0] sm:$0xff]
      %v2666 = vld [vmem:[%s2606 + $0x1d8] sm:$0xff]
      %v2667 = vld [vmem:[%s2606 + $0x1e0] sm:$0xff]
      %v2668 = vld [vmem:[%s2606 + $0x1e8] sm:$0xff]
      %v2669 = vld [vmem:[%s2606 + $0x1f0] sm:$0xff]
      %v2670 = vld [vmem:[%s2606 + $0x1f8] sm:$0xff]
      %v2671 = vld [vmem:[%s2606 + $0x200] sm:$0xff]
      %v2672 = vld [vmem:[%s2606 + $0x208] sm:$0xff]
      %v2673 = vld [vmem:[%s2606 + $0x210] sm:$0xff]
      %v2674 = vld [vmem:[%s2606 + $0x218] sm:$0xff]
      %v2675 = vld [vmem:[%s2606 + $0x220] sm:$0xff]
      %v2676 = vld [vmem:[%s2606 + $0x228] sm:$0xff]
      %v2677 = vld [vmem:[%s2606 + $0x230] sm:$0xff]
      %v2678 = vld [vmem:[%s2606 + $0x238] sm:$0xff]
      %v2679 = vld [vmem:[%s2606 + $0x240] sm:$0xff]
      %v2680 = vld [vmem:[%s2606 + $0x248] sm:$0xff]
      %v2681 = vld [vmem:[%s2606 + $0x250] sm:$0xff]
      %v2682 = vld [vmem:[%s2606 + $0x258] sm:$0xff]
      %v2683 = vld [vmem:[%s2606 + $0x260] sm:$0xff]
      %v2684 = vld [vmem:[%s2606 + $0x268] sm:$0xff]
      %v2685 = vld [vmem:[%s2606 + $0x270] sm:$0xff]
      %v2686 = vld [vmem:[%s2606 + $0x278] sm:$0xff]
      %v2687 = vld [vmem:[%s2606 + $0x280] sm:$0xff]
      %v2688 = vld [vmem:[%s2606 + $0x288] sm:$0xff]
      %v2689 = vld [vmem:[%s2606 + $0x290] sm:$0xff]
      %v2690 = vld [vmem:[%s2606 + $0x298] sm:$0xff]
      %v2691 = vld [vmem:[%s2606 + $0x2a0] sm:$0xff]
      %v2692 = vld [vmem:[%s2606 + $0x2a8] sm:$0xff]
      %v2693 = vld [vmem:[%s2606 + $0x2b0] sm:$0xff]
      %v2694 = vld [vmem:[%s2606 + $0x2b8] sm:$0xff]
      %v2695 = vld [vmem:[%s2606 + $0x2c0] sm:$0xff]
      %v2696 = vld [vmem:[%s2606 + $0x2c8] sm:$0xff]
      %v2697 = vld [vmem:[%s2606 + $0x2d0] sm:$0xff]
      %v2698 = vld [vmem:[%s2606 + $0x2d8] sm:$0xff]
      %v2699 = vld [vmem:[%s2606 + $0x2e0] sm:$0xff]
      %v2700 = vld [vmem:[%s2606 + $0x2e8] sm:$0xff]
      %v2701 = vld [vmem:[%s2606 + $0x2f0] sm:$0xff]
      %v2702 = vld [vmem:[%s2606 + $0x2f8] sm:$0xff]
      %v2703 = vld [vmem:[%s2606 + $0x300] sm:$0xff]
      %v2704 = vld [vmem:[%s2606 + $0x308] sm:$0xff]
      %v2705 = vld [vmem:[%s2606 + $0x310] sm:$0xff]
      %v2706 = vld [vmem:[%s2606 + $0x318] sm:$0xff]
      %v2707 = vld [vmem:[%s2606 + $0x320] sm:$0xff]
      %v2708 = vld [vmem:[%s2606 + $0x328] sm:$0xff]
      %v2709 = vld [vmem:[%s2606 + $0x330] sm:$0xff]
      %v2710 = vld [vmem:[%s2606 + $0x338] sm:$0xff]
      %v2711 = vld [vmem:[%s2606 + $0x340] sm:$0xff]
      %v2712 = vld [vmem:[%s2606 + $0x348] sm:$0xff]
      %v2713 = vld [vmem:[%s2606 + $0x350] sm:$0xff]
      %v2714 = vld [vmem:[%s2606 + $0x358] sm:$0xff]
      %v2715 = vld [vmem:[%s2606 + $0x360] sm:$0xff]
      %v2716 = vld [vmem:[%s2606 + $0x368] sm:$0xff]
      %v2717 = vld [vmem:[%s2606 + $0x370] sm:$0xff]
      %v2718 = vld [vmem:[%s2606 + $0x378] sm:$0xff]
      %v2719 = vld [vmem:[%s2606 + $0x380] sm:$0xf]
      %v2721 = vsel %vm288, %v2607, 0
      %v2724 = vsel %vm288, %v2608, 0
      %v2727 = vsel %vm288, %v2609, 0
      %v2730 = vsel %vm288, %v2610, 0
      %v2733 = vsel %vm288, %v2611, 0
      %v2736 = vsel %vm288, %v2612, 0
      %v2739 = vsel %vm288, %v2613, 0
      %v2742 = vsel %vm288, %v2614, 0
      %v2745 = vsel %vm288, %v2615, 0
      %v2748 = vsel %vm288, %v2616, 0
      %v2751 = vsel %vm288, %v2617, 0
      %v2754 = vsel %vm288, %v2618, 0
      %v2757 = vsel %vm288, %v2619, 0
      %v2760 = vsel %vm288, %v2620, 0
      %v2763 = vsel %vm288, %v2621, 0
      %v2766 = vsel %vm288, %v2622, 0
      %v2769 = vsel %vm288, %v2623, 0
      %v2772 = vsel %vm288, %v2624, 0
      %v2775 = vsel %vm288, %v2625, 0
      %v2778 = vsel %vm288, %v2626, 0
      %v2781 = vsel %vm288, %v2627, 0
      %v2784 = vsel %vm288, %v2628, 0
      %v2787 = vsel %vm288, %v2629, 0
      %v2790 = vsel %vm288, %v2630, 0
      %v2793 = vsel %vm288, %v2631, 0
      %v2796 = vsel %vm288, %v2632, 0
      %v2799 = vsel %vm288, %v2633, 0
      %v2802 = vsel %vm288, %v2634, 0
      %v2805 = vsel %vm288, %v2635, 0
      %v2808 = vsel %vm288, %v2636, 0
      %v2811 = vsel %vm288, %v2637, 0
      %v2814 = vsel %vm288, %v2638, 0
      %v2817 = vsel %vm288, %v2639, 0
      %v2820 = vsel %vm288, %v2640, 0
      %v2823 = vsel %vm288, %v2641, 0
      %v2826 = vsel %vm288, %v2642, 0
      %v2829 = vsel %vm288, %v2643, 0
      %v2832 = vsel %vm288, %v2644, 0
      %v2835 = vsel %vm288, %v2645, 0
      %v2838 = vsel %vm288, %v2646, 0
      %v2841 = vsel %vm288, %v2647, 0
      %v2844 = vsel %vm288, %v2648, 0
      %v2847 = vsel %vm288, %v2649, 0
      %v2850 = vsel %vm288, %v2650, 0
      %v2853 = vsel %vm288, %v2651, 0
      %v2856 = vsel %vm288, %v2652, 0
      %v2859 = vsel %vm288, %v2653, 0
      %v2862 = vsel %vm288, %v2654, 0
      %v2865 = vsel %vm288, %v2655, 0
      %v2868 = vsel %vm288, %v2656, 0
      %v2871 = vsel %vm288, %v2657, 0
      %v2874 = vsel %vm288, %v2658, 0
      %v2877 = vsel %vm288, %v2659, 0
      %v2880 = vsel %vm288, %v2660, 0
      %v2883 = vsel %vm288, %v2661, 0
      %v2886 = vsel %vm288, %v2662, 0
      %v2889 = vsel %vm288, %v2663, 0
      %v2892 = vsel %vm288, %v2664, 0
      %v2895 = vsel %vm288, %v2665, 0
      %v2898 = vsel %vm288, %v2666, 0
      %v2901 = vsel %vm288, %v2667, 0
      %v2904 = vsel %vm288, %v2668, 0
      %v2907 = vsel %vm288, %v2669, 0
      %v2910 = vsel %vm288, %v2670, 0
      %v2913 = vsel %vm288, %v2671, 0
      %v2916 = vsel %vm288, %v2672, 0
      %v2919 = vsel %vm288, %v2673, 0
      %v2922 = vsel %vm288, %v2674, 0
      %v2925 = vsel %vm288, %v2675, 0
      %v2928 = vsel %vm288, %v2676, 0
      %v2931 = vsel %vm288, %v2677, 0
      %v2934 = vsel %vm288, %v2678, 0
      %v2937 = vsel %vm288, %v2679, 0
      %v2940 = vsel %vm288, %v2680, 0
      %v2943 = vsel %vm288, %v2681, 0
      %v2946 = vsel %vm288, %v2682, 0
      %v2949 = vsel %vm288, %v2683, 0
      %v2952 = vsel %vm288, %v2684, 0
      %v2955 = vsel %vm288, %v2685, 0
      %v2958 = vsel %vm288, %v2686, 0
      %v2961 = vsel %vm288, %v2687, 0
      %v2964 = vsel %vm288, %v2688, 0
      %v2967 = vsel %vm288, %v2689, 0
      %v2970 = vsel %vm288, %v2690, 0
      %v2973 = vsel %vm288, %v2691, 0
      %v2976 = vsel %vm288, %v2692, 0
      %v2979 = vsel %vm288, %v2693, 0
      %v2982 = vsel %vm288, %v2694, 0
      %v2985 = vsel %vm288, %v2695, 0
      %v2988 = vsel %vm288, %v2696, 0
      %v2991 = vsel %vm288, %v2697, 0
      %v2994 = vsel %vm288, %v2698, 0
      %v2997 = vsel %vm288, %v2699, 0
      %v3000 = vsel %vm288, %v2700, 0
      %v3003 = vsel %vm288, %v2701, 0
      %v3006 = vsel %vm288, %v2702, 0
      %v3009 = vsel %vm288, %v2703, 0
      %v3012 = vsel %vm288, %v2704, 0
      %v3015 = vsel %vm288, %v2705, 0
      %v3018 = vsel %vm288, %v2706, 0
      %v3021 = vsel %vm288, %v2707, 0
      %v3024 = vsel %vm288, %v2708, 0
      %v3027 = vsel %vm288, %v2709, 0
      %v3030 = vsel %vm288, %v2710, 0
      %v3033 = vsel %vm288, %v2711, 0
      %v3036 = vsel %vm288, %v2712, 0
      %v3039 = vsel %vm288, %v2713, 0
      %v3042 = vsel %vm288, %v2714, 0
      %v3045 = vsel %vm288, %v2715, 0
      %v3048 = vsel %vm288, %v2716, 0
      %v3051 = vsel %vm288, %v2717, 0
      %v3054 = vsel %vm288, %v2718, 0
      %v3057 = vsel %vm288, %v2719, 0
      %3059 = vmatpush.msra.mxu0 0.0
      %3060 = vmatpush.msra.mxu0 0.0
      %3061 = vmatpush.msra.mxu0 0.0
      %3062 = vmatpush.msra.mxu0 0.0
      %3063 = vmatpush.msra.mxu0 0.0
      %3064 = vmatpush.msra.mxu0 0.0
      %3065 = vmatpush.msra.mxu0 0.0
      %3066 = vmatpush.msra.mxu0 0.0
      %3067 = vmatpush.msra.mxu0 0.0
      %3068 = vmatpush.msra.mxu0 0.0
      %3069 = vmatpush.msra.mxu0 0.0
      %3070 = vmatpush.msra.mxu0 0.0
      %3071 = vmatpush.msra.mxu0 %v630
      %3072 = vmatpush.msra.mxu0 %v173
      %3073 = vmatpush.msra.mxu0 %v172
      %3074 = vmatpush.msra.mxu0 %v171
      %3075 = vmatmul.f32.gmra.mxu0 %v2721
      %v3076 = vpop.f32.mrf.mxu0
      %v3077 = vadd.f32 0.0, %v3076
      %3078 = vmatmul.f32.gmra.mxu0 %v2724
      %v3079 = vpop.f32.mrf.mxu0
      %v3080 = vadd.f32 0.0, %v3079
      %3081 = vmatmul.f32.gmra.mxu0 %v2727
      %v3082 = vpop.f32.mrf.mxu0
      %v3083 = vadd.f32 0.0, %v3082
      %3084 = vmatmul.f32.gmra.mxu0 %v2730
      %v3085 = vpop.f32.mrf.mxu0
      %v3086 = vadd.f32 0.0, %v3085
      %3087 = vmatmul.f32.gmra.mxu0 %v2733
      %v3088 = vpop.f32.mrf.mxu0
      %v3089 = vadd.f32 0.0, %v3088
      %3090 = vmatmul.f32.gmra.mxu0 %v2736
      %v3091 = vpop.f32.mrf.mxu0
      %v3092 = vadd.f32 0.0, %v3091
      %3093 = vmatmul.f32.gmra.mxu0 %v2739
      %v3094 = vpop.f32.mrf.mxu0
      %v3095 = vadd.f32 0.0, %v3094
      %3096 = vmatmul.f32.gmra.mxu0 %v2742
      %v3097 = vpop.f32.mrf.mxu0
      %v3098 = vadd.f32 0.0, %v3097
      %3099 = vmatmul.f32.gmra.mxu0 %v2745
      %v3100 = vpop.f32.mrf.mxu0
      %v3101 = vadd.f32 0.0, %v3100
      %3102 = vmatmul.f32.gmra.mxu0 %v2748
      %v3103 = vpop.f32.mrf.mxu0
      %v3104 = vadd.f32 0.0, %v3103
      %3105 = vmatmul.f32.gmra.mxu0 %v2751
      %v3106 = vpop.f32.mrf.mxu0
      %v3107 = vadd.f32 0.0, %v3106
      %3108 = vmatmul.f32.gmra.mxu0 %v2754
      %v3109 = vpop.f32.mrf.mxu0
      %v3110 = vadd.f32 0.0, %v3109
      %3111 = vmatmul.f32.gmra.mxu0 %v2757
      %v3112 = vpop.f32.mrf.mxu0
      %v3113 = vadd.f32 0.0, %v3112
      %3114 = vmatmul.f32.gmra.mxu0 %v2760
      %v3115 = vpop.f32.mrf.mxu0
      %v3116 = vadd.f32 0.0, %v3115
      %3117 = vmatmul.f32.gmra.mxu0 %v2763
      %v3118 = vpop.f32.mrf.mxu0
      %v3119 = vadd.f32 0.0, %v3118
      %3120 = vmatmul.f32.gmra.mxu0 %v2766
      %v3121 = vpop.f32.mrf.mxu0
      %v3122 = vadd.f32 0.0, %v3121
      %3123 = vmatmul.f32.gmra.mxu0 %v2769
      %v3124 = vpop.f32.mrf.mxu0
      %v3125 = vadd.f32 0.0, %v3124
      %3126 = vmatmul.f32.gmra.mxu0 %v2772
      %v3127 = vpop.f32.mrf.mxu0
      %v3128 = vadd.f32 0.0, %v3127
      %3129 = vmatmul.f32.gmra.mxu0 %v2775
      %v3130 = vpop.f32.mrf.mxu0
      %v3131 = vadd.f32 0.0, %v3130
      %3132 = vmatmul.f32.gmra.mxu0 %v2778
      %v3133 = vpop.f32.mrf.mxu0
      %v3134 = vadd.f32 0.0, %v3133
      %3135 = vmatmul.f32.gmra.mxu0 %v2781
      %v3136 = vpop.f32.mrf.mxu0
      %v3137 = vadd.f32 0.0, %v3136
      %3138 = vmatmul.f32.gmra.mxu0 %v2784
      %v3139 = vpop.f32.mrf.mxu0
      %v3140 = vadd.f32 0.0, %v3139
      %3141 = vmatmul.f32.gmra.mxu0 %v2787
      %v3142 = vpop.f32.mrf.mxu0
      %v3143 = vadd.f32 0.0, %v3142
      %3144 = vmatmul.f32.gmra.mxu0 %v2790
      %v3145 = vpop.f32.mrf.mxu0
      %v3146 = vadd.f32 0.0, %v3145
      %3147 = vmatmul.f32.gmra.mxu0 %v2793
      %v3148 = vpop.f32.mrf.mxu0
      %v3149 = vadd.f32 0.0, %v3148
      %3150 = vmatmul.f32.gmra.mxu0 %v2796
      %v3151 = vpop.f32.mrf.mxu0
      %v3152 = vadd.f32 0.0, %v3151
      %3153 = vmatmul.f32.gmra.mxu0 %v2799
      %v3154 = vpop.f32.mrf.mxu0
      %v3155 = vadd.f32 0.0, %v3154
      %3156 = vmatmul.f32.gmra.mxu0 %v2802
      %v3157 = vpop.f32.mrf.mxu0
      %v3158 = vadd.f32 0.0, %v3157
      %3159 = vmatmul.f32.gmra.mxu0 %v2805
      %v3160 = vpop.f32.mrf.mxu0
      %v3161 = vadd.f32 0.0, %v3160
      %3162 = vmatmul.f32.gmra.mxu0 %v2808
      %v3163 = vpop.f32.mrf.mxu0
      %v3164 = vadd.f32 0.0, %v3163
      %3165 = vmatmul.f32.gmra.mxu0 %v2811
      %v3166 = vpop.f32.mrf.mxu0
      %v3167 = vadd.f32 0.0, %v3166
      %3168 = vmatmul.f32.gmra.mxu0 %v2814
      %v3169 = vpop.f32.mrf.mxu0
      %v3170 = vadd.f32 0.0, %v3169
      %3171 = vmatmul.f32.gmra.mxu0 %v2817
      %v3172 = vpop.f32.mrf.mxu0
      %v3173 = vadd.f32 0.0, %v3172
      %3174 = vmatmul.f32.gmra.mxu0 %v2820
      %v3175 = vpop.f32.mrf.mxu0
      %v3176 = vadd.f32 0.0, %v3175
      %3177 = vmatmul.f32.gmra.mxu0 %v2823
      %v3178 = vpop.f32.mrf.mxu0
      %v3179 = vadd.f32 0.0, %v3178
      %3180 = vmatmul.f32.gmra.mxu0 %v2826
      %v3181 = vpop.f32.mrf.mxu0
      %v3182 = vadd.f32 0.0, %v3181
      %3183 = vmatmul.f32.gmra.mxu0 %v2829
      %v3184 = vpop.f32.mrf.mxu0
      %v3185 = vadd.f32 0.0, %v3184
      %3186 = vmatmul.f32.gmra.mxu0 %v2832
      %v3187 = vpop.f32.mrf.mxu0
      %v3188 = vadd.f32 0.0, %v3187
      %3189 = vmatmul.f32.gmra.mxu0 %v2835
      %v3190 = vpop.f32.mrf.mxu0
      %v3191 = vadd.f32 0.0, %v3190
      %3192 = vmatmul.f32.gmra.mxu0 %v2838
      %v3193 = vpop.f32.mrf.mxu0
      %v3194 = vadd.f32 0.0, %v3193
      %3195 = vmatmul.f32.gmra.mxu0 %v2841
      %v3196 = vpop.f32.mrf.mxu0
      %v3197 = vadd.f32 0.0, %v3196
      %3198 = vmatmul.f32.gmra.mxu0 %v2844
      %v3199 = vpop.f32.mrf.mxu0
      %v3200 = vadd.f32 0.0, %v3199
      %3201 = vmatmul.f32.gmra.mxu0 %v2847
      %v3202 = vpop.f32.mrf.mxu0
      %v3203 = vadd.f32 0.0, %v3202
      %3204 = vmatmul.f32.gmra.mxu0 %v2850
      %v3205 = vpop.f32.mrf.mxu0
      %v3206 = vadd.f32 0.0, %v3205
      %3207 = vmatmul.f32.gmra.mxu0 %v2853
      %v3208 = vpop.f32.mrf.mxu0
      %v3209 = vadd.f32 0.0, %v3208
      %3210 = vmatmul.f32.gmra.mxu0 %v2856
      %v3211 = vpop.f32.mrf.mxu0
      %v3212 = vadd.f32 0.0, %v3211
      %3213 = vmatmul.f32.gmra.mxu0 %v2859
      %v3214 = vpop.f32.mrf.mxu0
      %v3215 = vadd.f32 0.0, %v3214
      %3216 = vmatmul.f32.gmra.mxu0 %v2862
      %v3217 = vpop.f32.mrf.mxu0
      %v3218 = vadd.f32 0.0, %v3217
      %3219 = vmatmul.f32.gmra.mxu0 %v2865
      %v3220 = vpop.f32.mrf.mxu0
      %v3221 = vadd.f32 0.0, %v3220
      %3222 = vmatmul.f32.gmra.mxu0 %v2868
      %v3223 = vpop.f32.mrf.mxu0
      %v3224 = vadd.f32 0.0, %v3223
      %3225 = vmatmul.f32.gmra.mxu0 %v2871
      %v3226 = vpop.f32.mrf.mxu0
      %v3227 = vadd.f32 0.0, %v3226
      %3228 = vmatmul.f32.gmra.mxu0 %v2874
      %v3229 = vpop.f32.mrf.mxu0
      %v3230 = vadd.f32 0.0, %v3229
      %3231 = vmatmul.f32.gmra.mxu0 %v2877
      %v3232 = vpop.f32.mrf.mxu0
      %v3233 = vadd.f32 0.0, %v3232
      %3234 = vmatmul.f32.gmra.mxu0 %v2880
      %v3235 = vpop.f32.mrf.mxu0
      %v3236 = vadd.f32 0.0, %v3235
      %3237 = vmatmul.f32.gmra.mxu0 %v2883
      %v3238 = vpop.f32.mrf.mxu0
      %v3239 = vadd.f32 0.0, %v3238
      %3240 = vmatmul.f32.gmra.mxu0 %v2886
      %v3241 = vpop.f32.mrf.mxu0
      %v3242 = vadd.f32 0.0, %v3241
      %3243 = vmatmul.f32.gmra.mxu0 %v2889
      %v3244 = vpop.f32.mrf.mxu0
      %v3245 = vadd.f32 0.0, %v3244
      %3246 = vmatmul.f32.gmra.mxu0 %v2892
      %v3247 = vpop.f32.mrf.mxu0
      %v3248 = vadd.f32 0.0, %v3247
      %3249 = vmatmul.f32.gmra.mxu0 %v2895
      %v3250 = vpop.f32.mrf.mxu0
      %v3251 = vadd.f32 0.0, %v3250
      %3252 = vmatmul.f32.gmra.mxu0 %v2898
      %v3253 = vpop.f32.mrf.mxu0
      %v3254 = vadd.f32 0.0, %v3253
      %3255 = vmatmul.f32.gmra.mxu0 %v2901
      %v3256 = vpop.f32.mrf.mxu0
      %v3257 = vadd.f32 0.0, %v3256
      %3258 = vmatmul.f32.gmra.mxu0 %v2904
      %v3259 = vpop.f32.mrf.mxu0
      %v3260 = vadd.f32 0.0, %v3259
      %3261 = vmatmul.f32.gmra.mxu0 %v2907
      %v3262 = vpop.f32.mrf.mxu0
      %v3263 = vadd.f32 0.0, %v3262
      %3264 = vmatmul.f32.gmra.mxu0 %v2910
      %v3265 = vpop.f32.mrf.mxu0
      %v3266 = vadd.f32 0.0, %v3265
      %3267 = vmatmul.f32.gmra.mxu0 %v2913
      %v3268 = vpop.f32.mrf.mxu0
      %v3269 = vadd.f32 0.0, %v3268
      %3270 = vmatmul.f32.gmra.mxu0 %v2916
      %v3271 = vpop.f32.mrf.mxu0
      %v3272 = vadd.f32 0.0, %v3271
      %3273 = vmatmul.f32.gmra.mxu0 %v2919
      %v3274 = vpop.f32.mrf.mxu0
      %v3275 = vadd.f32 0.0, %v3274
      %3276 = vmatmul.f32.gmra.mxu0 %v2922
      %v3277 = vpop.f32.mrf.mxu0
      %v3278 = vadd.f32 0.0, %v3277
      %3279 = vmatmul.f32.gmra.mxu0 %v2925
      %v3280 = vpop.f32.mrf.mxu0
      %v3281 = vadd.f32 0.0, %v3280
      %3282 = vmatmul.f32.gmra.mxu0 %v2928
      %v3283 = vpop.f32.mrf.mxu0
      %v3284 = vadd.f32 0.0, %v3283
      %3285 = vmatmul.f32.gmra.mxu0 %v2931
      %v3286 = vpop.f32.mrf.mxu0
      %v3287 = vadd.f32 0.0, %v3286
      %3288 = vmatmul.f32.gmra.mxu0 %v2934
      %v3289 = vpop.f32.mrf.mxu0
      %v3290 = vadd.f32 0.0, %v3289
      %3291 = vmatmul.f32.gmra.mxu0 %v2937
      %v3292 = vpop.f32.mrf.mxu0
      %v3293 = vadd.f32 0.0, %v3292
      %3294 = vmatmul.f32.gmra.mxu0 %v2940
      %v3295 = vpop.f32.mrf.mxu0
      %v3296 = vadd.f32 0.0, %v3295
      %3297 = vmatmul.f32.gmra.mxu0 %v2943
      %v3298 = vpop.f32.mrf.mxu0
      %v3299 = vadd.f32 0.0, %v3298
      %3300 = vmatmul.f32.gmra.mxu0 %v2946
      %v3301 = vpop.f32.mrf.mxu0
      %v3302 = vadd.f32 0.0, %v3301
      %3303 = vmatmul.f32.gmra.mxu0 %v2949
      %v3304 = vpop.f32.mrf.mxu0
      %v3305 = vadd.f32 0.0, %v3304
      %3306 = vmatmul.f32.gmra.mxu0 %v2952
      %v3307 = vpop.f32.mrf.mxu0
      %v3308 = vadd.f32 0.0, %v3307
      %3309 = vmatmul.f32.gmra.mxu0 %v2955
      %v3310 = vpop.f32.mrf.mxu0
      %v3311 = vadd.f32 0.0, %v3310
      %3312 = vmatmul.f32.gmra.mxu0 %v2958
      %v3313 = vpop.f32.mrf.mxu0
      %v3314 = vadd.f32 0.0, %v3313
      %3315 = vmatmul.f32.gmra.mxu0 %v2961
      %v3316 = vpop.f32.mrf.mxu0
      %v3317 = vadd.f32 0.0, %v3316
      %3318 = vmatmul.f32.gmra.mxu0 %v2964
      %v3319 = vpop.f32.mrf.mxu0
      %v3320 = vadd.f32 0.0, %v3319
      %3321 = vmatmul.f32.gmra.mxu0 %v2967
      %v3322 = vpop.f32.mrf.mxu0
      %v3323 = vadd.f32 0.0, %v3322
      %3324 = vmatmul.f32.gmra.mxu0 %v2970
      %v3325 = vpop.f32.mrf.mxu0
      %v3326 = vadd.f32 0.0, %v3325
      %3327 = vmatmul.f32.gmra.mxu0 %v2973
      %v3328 = vpop.f32.mrf.mxu0
      %v3329 = vadd.f32 0.0, %v3328
      %3330 = vmatmul.f32.gmra.mxu0 %v2976
      %v3331 = vpop.f32.mrf.mxu0
      %v3332 = vadd.f32 0.0, %v3331
      %3333 = vmatmul.f32.gmra.mxu0 %v2979
      %v3334 = vpop.f32.mrf.mxu0
      %v3335 = vadd.f32 0.0, %v3334
      %3336 = vmatmul.f32.gmra.mxu0 %v2982
      %v3337 = vpop.f32.mrf.mxu0
      %v3338 = vadd.f32 0.0, %v3337
      %3339 = vmatmul.f32.gmra.mxu0 %v2985
      %v3340 = vpop.f32.mrf.mxu0
      %v3341 = vadd.f32 0.0, %v3340
      %3342 = vmatmul.f32.gmra.mxu0 %v2988
      %v3343 = vpop.f32.mrf.mxu0
      %v3344 = vadd.f32 0.0, %v3343
      %3345 = vmatmul.f32.gmra.mxu0 %v2991
      %v3346 = vpop.f32.mrf.mxu0
      %v3347 = vadd.f32 0.0, %v3346
      %3348 = vmatmul.f32.gmra.mxu0 %v2994
      %v3349 = vpop.f32.mrf.mxu0
      %v3350 = vadd.f32 0.0, %v3349
      %3351 = vmatmul.f32.gmra.mxu0 %v2997
      %v3352 = vpop.f32.mrf.mxu0
      %v3353 = vadd.f32 0.0, %v3352
      %3354 = vmatmul.f32.gmra.mxu0 %v3000
      %v3355 = vpop.f32.mrf.mxu0
      %v3356 = vadd.f32 0.0, %v3355
      %3357 = vmatmul.f32.gmra.mxu0 %v3003
      %v3358 = vpop.f32.mrf.mxu0
      %v3359 = vadd.f32 0.0, %v3358
      %3360 = vmatmul.f32.gmra.mxu0 %v3006
      %v3361 = vpop.f32.mrf.mxu0
      %v3362 = vadd.f32 0.0, %v3361
      %3363 = vmatmul.f32.gmra.mxu0 %v3009
      %v3364 = vpop.f32.mrf.mxu0
      %v3365 = vadd.f32 0.0, %v3364
      %3366 = vmatmul.f32.gmra.mxu0 %v3012
      %v3367 = vpop.f32.mrf.mxu0
      %v3368 = vadd.f32 0.0, %v3367
      %3369 = vmatmul.f32.gmra.mxu0 %v3015
      %v3370 = vpop.f32.mrf.mxu0
      %v3371 = vadd.f32 0.0, %v3370
      %3372 = vmatmul.f32.gmra.mxu0 %v3018
      %v3373 = vpop.f32.mrf.mxu0
      %v3374 = vadd.f32 0.0, %v3373
      %3375 = vmatmul.f32.gmra.mxu0 %v3021
      %v3376 = vpop.f32.mrf.mxu0
      %v3377 = vadd.f32 0.0, %v3376
      %3378 = vmatmul.f32.gmra.mxu0 %v3024
      %v3379 = vpop.f32.mrf.mxu0
      %v3380 = vadd.f32 0.0, %v3379
      %3381 = vmatmul.f32.gmra.mxu0 %v3027
      %v3382 = vpop.f32.mrf.mxu0
      %v3383 = vadd.f32 0.0, %v3382
      %3384 = vmatmul.f32.gmra.mxu0 %v3030
      %v3385 = vpop.f32.mrf.mxu0
      %v3386 = vadd.f32 0.0, %v3385
      %3387 = vmatmul.f32.gmra.mxu0 %v3033
      %v3388 = vpop.f32.mrf.mxu0
      %v3389 = vadd.f32 0.0, %v3388
      %3390 = vmatmul.f32.gmra.mxu0 %v3036
      %v3391 = vpop.f32.mrf.mxu0
      %v3392 = vadd.f32 0.0, %v3391
      %3393 = vmatmul.f32.gmra.mxu0 %v3039
      %v3394 = vpop.f32.mrf.mxu0
      %v3395 = vadd.f32 0.0, %v3394
      %3396 = vmatmul.f32.gmra.mxu0 %v3042
      %v3397 = vpop.f32.mrf.mxu0
      %v3398 = vadd.f32 0.0, %v3397
      %3399 = vmatmul.f32.gmra.mxu0 %v3045
      %v3400 = vpop.f32.mrf.mxu0
      %v3401 = vadd.f32 0.0, %v3400
      %3402 = vmatmul.f32.gmra.mxu0 %v3048
      %v3403 = vpop.f32.mrf.mxu0
      %v3404 = vadd.f32 0.0, %v3403
      %3405 = vmatmul.f32.gmra.mxu0 %v3051
      %v3406 = vpop.f32.mrf.mxu0
      %v3407 = vadd.f32 0.0, %v3406
      %3408 = vmatmul.f32.gmra.mxu0 %v3054
      %v3409 = vpop.f32.mrf.mxu0
      %v3410 = vadd.f32 0.0, %v3409
      %3411 = vmatmul.f32.gmra.mxu0 %v3057
      %v3412 = vpop.f32.mrf.mxu0
      %v3413 = vadd.f32 0.0, %v3412
      %3414 = vdwg.mxu0
      %v3415 = vmax.f32 %v650, %v1459
      %v3416 = vmax.f32 %v653, %v1462
      %v3417 = vmax.f32 %v656, %v1465
      %v3418 = vmax.f32 %v659, %v1468
      %v3419 = vmax.f32 %v662, %v1471
      %v3420 = vmax.f32 %v665, %v1474
      %v3421 = vmax.f32 %v668, %v1477
      %v3422 = vmax.f32 %v671, %v1480
      %v3423 = vmax.f32 %v674, %v1483
      %v3424 = vmax.f32 %v677, %v1486
      %v3425 = vmax.f32 %v680, %v1489
      %v3426 = vmax.f32 %v683, %v1492
      %v3427 = vmax.f32 %v686, %v1495
      %v3428 = vmax.f32 %v689, %v1498
      %v3429 = vmax.f32 %v692, %v1501
      %v3430 = vmax.f32 %v695, %v1504
      %v3431 = vmax.f32 %v698, %v1507
      %v3432 = vmax.f32 %v701, %v1510
      %v3433 = vmax.f32 %v704, %v1513
      %v3434 = vmax.f32 %v707, %v1516
      %v3435 = vmax.f32 %v710, %v1519
      %v3436 = vmax.f32 %v713, %v1522
      %v3437 = vmax.f32 %v716, %v1525
      %v3438 = vmax.f32 %v719, %v1528
      %v3439 = vmax.f32 %v722, %v1531
      %v3440 = vmax.f32 %v725, %v1534
      %v3441 = vmax.f32 %v728, %v1537
      %v3442 = vmax.f32 %v731, %v1540
      %v3443 = vmax.f32 %v734, %v1543
      %v3444 = vmax.f32 %v737, %v1546
      %v3445 = vmax.f32 %v740, %v1549
      %v3446 = vmax.f32 %v743, %v1552
      %v3447 = vmax.f32 %v746, %v1555
      %v3448 = vmax.f32 %v749, %v1558
      %v3449 = vmax.f32 %v752, %v1561
      %v3450 = vmax.f32 %v755, %v1564
      %v3451 = vmax.f32 %v758, %v1567
      %v3452 = vmax.f32 %v761, %v1570
      %v3453 = vmax.f32 %v764, %v1573
      %v3454 = vmax.f32 %v767, %v1576
      %v3455 = vmax.f32 %v770, %v1579
      %v3456 = vmax.f32 %v773, %v1582
      %v3457 = vmax.f32 %v776, %v1585
      %v3458 = vmax.f32 %v779, %v1588
      %v3459 = vmax.f32 %v782, %v1591
      %v3460 = vmax.f32 %v785, %v1594
      %v3461 = vmax.f32 %v788, %v1597
      %v3462 = vmax.f32 %v791, %v1600
      %v3463 = vmax.f32 %v794, %v1603
      %v3464 = vmax.f32 %v797, %v1606
      %v3465 = vmax.f32 %v800, %v1609
      %v3466 = vmax.f32 %v803, %v1612
      %v3467 = vmax.f32 %v806, %v1615
      %v3468 = vmax.f32 %v809, %v1618
      %v3469 = vmax.f32 %v812, %v1621
      %v3470 = vmax.f32 %v815, %v1624
      %v3471 = vmax.f32 %v818, %v1627
      %v3472 = vmax.f32 %v821, %v1630
      %v3473 = vmax.f32 %v824, %v1633
      %v3474 = vmax.f32 %v827, %v1636
      %v3475 = vmax.f32 %v830, %v1639
      %v3476 = vmax.f32 %v833, %v1642
      %v3477 = vmax.f32 %v836, %v1645
      %v3478 = vmax.f32 %v839, %v1648
      %v3479 = vmax.f32 %v842, %v1651
      %v3480 = vmax.f32 %v845, %v1654
      %v3481 = vmax.f32 %v848, %v1657
      %v3482 = vmax.f32 %v851, %v1660
      %v3483 = vmax.f32 %v854, %v1663
      %v3484 = vmax.f32 %v857, %v1666
      %v3485 = vmax.f32 %v860, %v1669
      %v3486 = vmax.f32 %v863, %v1672
      %v3487 = vmax.f32 %v866, %v1675
      %v3488 = vmax.f32 %v869, %v1678
      %v3489 = vmax.f32 %v872, %v1681
      %v3490 = vmax.f32 %v875, %v1684
      %v3491 = vmax.f32 %v878, %v1687
      %v3492 = vmax.f32 %v881, %v1690
      %v3493 = vmax.f32 %v884, %v1693
      %v3494 = vmax.f32 %v887, %v1696
      %v3495 = vmax.f32 %v890, %v1699
      %v3496 = vmax.f32 %v893, %v1702
      %v3497 = vmax.f32 %v896, %v1705
      %v3498 = vmax.f32 %v899, %v1708
      %v3499 = vmax.f32 %v902, %v1711
      %v3500 = vmax.f32 %v905, %v1714
      %v3501 = vmax.f32 %v908, %v1717
      %v3502 = vmax.f32 %v911, %v1720
      %v3503 = vmax.f32 %v914, %v1723
      %v3504 = vmax.f32 %v917, %v1726
      %v3505 = vmax.f32 %v920, %v1729
      %v3506 = vmax.f32 %v923, %v1732
      %v3507 = vmax.f32 %v926, %v1735
      %v3508 = vmax.f32 %v929, %v1738
      %v3509 = vmax.f32 %v932, %v1741
      %v3510 = vmax.f32 %v935, %v1744
      %v3511 = vmax.f32 %v938, %v1747
      %v3512 = vmax.f32 %v941, %v1750
      %v3513 = vmax.f32 %v944, %v1753
      %v3514 = vmax.f32 %v947, %v1756
      %v3515 = vmax.f32 %v950, %v1759
      %v3516 = vmax.f32 %v953, %v1762
      %v3517 = vmax.f32 %v956, %v1765
      %v3518 = vmax.f32 %v959, %v1768
      %v3519 = vmax.f32 %v962, %v1771
      %v3520 = vmax.f32 %v965, %v1774
      %v3521 = vmax.f32 %v968, %v1777
      %v3522 = vmax.f32 %v971, %v1780
      %v3523 = vmax.f32 %v974, %v1783
      %v3524 = vmax.f32 %v977, %v1786
      %v3525 = vmax.f32 %v980, %v1789
      %v3526 = vmax.f32 %v983, %v1792
      %v3527 = vmax.f32 %v986, %v1795
      %v3528 = vmax.f32 %v2268, %v3077
      %v3529 = vmax.f32 %v2271, %v3080
      %v3530 = vmax.f32 %v2274, %v3083
      %v3531 = vmax.f32 %v2277, %v3086
      %v3532 = vmax.f32 %v2280, %v3089
      %v3533 = vmax.f32 %v2283, %v3092
      %v3534 = vmax.f32 %v2286, %v3095
      %v3535 = vmax.f32 %v2289, %v3098
      %v3536 = vmax.f32 %v2292, %v3101
      %v3537 = vmax.f32 %v2295, %v3104
      %v3538 = vmax.f32 %v2298, %v3107
      %v3539 = vmax.f32 %v2301, %v3110
      %v3540 = vmax.f32 %v2304, %v3113
      %v3541 = vmax.f32 %v2307, %v3116
      %v3542 = vmax.f32 %v2310, %v3119
      %v3543 = vmax.f32 %v2313, %v3122
      %v3544 = vmax.f32 %v2316, %v3125
      %v3545 = vmax.f32 %v2319, %v3128
      %v3546 = vmax.f32 %v2322, %v3131
      %v3547 = vmax.f32 %v2325, %v3134
      %v3548 = vmax.f32 %v2328, %v3137
      %v3549 = vmax.f32 %v2331, %v3140
      %v3550 = vmax.f32 %v2334, %v3143
      %v3551 = vmax.f32 %v2337, %v3146
      %v3552 = vmax.f32 %v2340, %v3149
      %v3553 = vmax.f32 %v2343, %v3152
      %v3554 = vmax.f32 %v2346, %v3155
      %v3555 = vmax.f32 %v2349, %v3158
      %v3556 = vmax.f32 %v2352, %v3161
      %v3557 = vmax.f32 %v2355, %v3164
      %v3558 = vmax.f32 %v2358, %v3167
      %v3559 = vmax.f32 %v2361, %v3170
      %v3560 = vmax.f32 %v2364, %v3173
      %v3561 = vmax.f32 %v2367, %v3176
      %v3562 = vmax.f32 %v2370, %v3179
      %v3563 = vmax.f32 %v2373, %v3182
      %v3564 = vmax.f32 %v2376, %v3185
      %v3565 = vmax.f32 %v2379, %v3188
      %v3566 = vmax.f32 %v2382, %v3191
      %v3567 = vmax.f32 %v2385, %v3194
      %v3568 = vmax.f32 %v2388, %v3197
      %v3569 = vmax.f32 %v2391, %v3200
      %v3570 = vmax.f32 %v2394, %v3203
      %v3571 = vmax.f32 %v2397, %v3206
      %v3572 = vmax.f32 %v2400, %v3209
      %v3573 = vmax.f32 %v2403, %v3212
      %v3574 = vmax.f32 %v2406, %v3215
      %v3575 = vmax.f32 %v2409, %v3218
      %v3576 = vmax.f32 %v2412, %v3221
      %v3577 = vmax.f32 %v2415, %v3224
      %v3578 = vmax.f32 %v2418, %v3227
      %v3579 = vmax.f32 %v2421, %v3230
      %v3580 = vmax.f32 %v2424, %v3233
      %v3581 = vmax.f32 %v2427, %v3236
      %v3582 = vmax.f32 %v2430, %v3239
      %v3583 = vmax.f32 %v2433, %v3242
      %v3584 = vmax.f32 %v2436, %v3245
      %v3585 = vmax.f32 %v2439, %v3248
      %v3586 = vmax.f32 %v2442, %v3251
      %v3587 = vmax.f32 %v2445, %v3254
      %v3588 = vmax.f32 %v2448, %v3257
      %v3589 = vmax.f32 %v2451, %v3260
      %v3590 = vmax.f32 %v2454, %v3263
      %v3591 = vmax.f32 %v2457, %v3266
      %v3592 = vmax.f32 %v2460, %v3269
      %v3593 = vmax.f32 %v2463, %v3272
      %v3594 = vmax.f32 %v2466, %v3275
      %v3595 = vmax.f32 %v2469, %v3278
      %v3596 = vmax.f32 %v2472, %v3281
      %v3597 = vmax.f32 %v2475, %v3284
      %v3598 = vmax.f32 %v2478, %v3287
      %v3599 = vmax.f32 %v2481, %v3290
      %v3600 = vmax.f32 %v2484, %v3293
      %v3601 = vmax.f32 %v2487, %v3296
      %v3602 = vmax.f32 %v2490, %v3299
      %v3603 = vmax.f32 %v2493, %v3302
      %v3604 = vmax.f32 %v2496, %v3305
      %v3605 = vmax.f32 %v2499, %v3308
      %v3606 = vmax.f32 %v2502, %v3311
      %v3607 = vmax.f32 %v2505, %v3314
      %v3608 = vmax.f32 %v2508, %v3317
      %v3609 = vmax.f32 %v2511, %v3320
      %v3610 = vmax.f32 %v2514, %v3323
      %v3611 = vmax.f32 %v2517, %v3326
      %v3612 = vmax.f32 %v2520, %v3329
      %v3613 = vmax.f32 %v2523, %v3332
      %v3614 = vmax.f32 %v2526, %v3335
      %v3615 = vmax.f32 %v2529, %v3338
      %v3616 = vmax.f32 %v2532, %v3341
      %v3617 = vmax.f32 %v2535, %v3344
      %v3618 = vmax.f32 %v2538, %v3347
      %v3619 = vmax.f32 %v2541, %v3350
      %v3620 = vmax.f32 %v2544, %v3353
      %v3621 = vmax.f32 %v2547, %v3356
      %v3622 = vmax.f32 %v2550, %v3359
      %v3623 = vmax.f32 %v2553, %v3362
      %v3624 = vmax.f32 %v2556, %v3365
      %v3625 = vmax.f32 %v2559, %v3368
      %v3626 = vmax.f32 %v2562, %v3371
      %v3627 = vmax.f32 %v2565, %v3374
      %v3628 = vmax.f32 %v2568, %v3377
      %v3629 = vmax.f32 %v2571, %v3380
      %v3630 = vmax.f32 %v2574, %v3383
      %v3631 = vmax.f32 %v2577, %v3386
      %v3632 = vmax.f32 %v2580, %v3389
      %v3633 = vmax.f32 %v2583, %v3392
      %v3634 = vmax.f32 %v2586, %v3395
      %v3635 = vmax.f32 %v2589, %v3398
      %v3636 = vmax.f32 %v2592, %v3401
      %v3637 = vmax.f32 %v2595, %v3404
      %v3638 = vmax.f32 %v2598, %v3407
      %v3639 = vmax.f32 %v2601, %v3410
      %v3640 = vmax.f32 %v2604, %v3413
      %v3641 = vmax.f32 %v3415, %v3528
      %v3642 = vmax.f32 %v3416, %v3529
      %v3643 = vmax.f32 %v3417, %v3530
      %v3644 = vmax.f32 %v3418, %v3531
      %v3645 = vmax.f32 %v3419, %v3532
      %v3646 = vmax.f32 %v3420, %v3533
      %v3647 = vmax.f32 %v3421, %v3534
      %v3648 = vmax.f32 %v3422, %v3535
      %v3649 = vmax.f32 %v3423, %v3536
      %v3650 = vmax.f32 %v3424, %v3537
      %v3651 = vmax.f32 %v3425, %v3538
      %v3652 = vmax.f32 %v3426, %v3539
      %v3653 = vmax.f32 %v3427, %v3540
      %v3654 = vmax.f32 %v3428, %v3541
      %v3655 = vmax.f32 %v3429, %v3542
      %v3656 = vmax.f32 %v3430, %v3543
      %v3657 = vmax.f32 %v3431, %v3544
      %v3658 = vmax.f32 %v3432, %v3545
      %v3659 = vmax.f32 %v3433, %v3546
      %v3660 = vmax.f32 %v3434, %v3547
      %v3661 = vmax.f32 %v3435, %v3548
      %v3662 = vmax.f32 %v3436, %v3549
      %v3663 = vmax.f32 %v3437, %v3550
      %v3664 = vmax.f32 %v3438, %v3551
      %v3665 = vmax.f32 %v3439, %v3552
      %v3666 = vmax.f32 %v3440, %v3553
      %v3667 = vmax.f32 %v3441, %v3554
      %v3668 = vmax.f32 %v3442, %v3555
      %v3669 = vmax.f32 %v3443, %v3556
      %v3670 = vmax.f32 %v3444, %v3557
      %v3671 = vmax.f32 %v3445, %v3558
      %v3672 = vmax.f32 %v3446, %v3559
      %v3673 = vmax.f32 %v3447, %v3560
      %v3674 = vmax.f32 %v3448, %v3561
      %v3675 = vmax.f32 %v3449, %v3562
      %v3676 = vmax.f32 %v3450, %v3563
      %v3677 = vmax.f32 %v3451, %v3564
      %v3678 = vmax.f32 %v3452, %v3565
      %v3679 = vmax.f32 %v3453, %v3566
      %v3680 = vmax.f32 %v3454, %v3567
      %v3681 = vmax.f32 %v3455, %v3568
      %v3682 = vmax.f32 %v3456, %v3569
      %v3683 = vmax.f32 %v3457, %v3570
      %v3684 = vmax.f32 %v3458, %v3571
      %v3685 = vmax.f32 %v3459, %v3572
      %v3686 = vmax.f32 %v3460, %v3573
      %v3687 = vmax.f32 %v3461, %v3574
      %v3688 = vmax.f32 %v3462, %v3575
      %v3689 = vmax.f32 %v3463, %v3576
      %v3690 = vmax.f32 %v3464, %v3577
      %v3691 = vmax.f32 %v3465, %v3578
      %v3692 = vmax.f32 %v3466, %v3579
      %v3693 = vmax.f32 %v3467, %v3580
      %v3694 = vmax.f32 %v3468, %v3581
      %v3695 = vmax.f32 %v3469, %v3582
      %v3696 = vmax.f32 %v3470, %v3583
      %v3697 = vmax.f32 %v3471, %v3584
      %v3698 = vmax.f32 %v3472, %v3585
      %v3699 = vmax.f32 %v3473, %v3586
      %v3700 = vmax.f32 %v3474, %v3587
      %v3701 = vmax.f32 %v3475, %v3588
      %v3702 = vmax.f32 %v3476, %v3589
      %v3703 = vmax.f32 %v3477, %v3590
      %v3704 = vmax.f32 %v3478, %v3591
      %v3705 = vmax.f32 %v3479, %v3592
      %v3706 = vmax.f32 %v3480, %v3593
      %v3707 = vmax.f32 %v3481, %v3594
      %v3708 = vmax.f32 %v3482, %v3595
      %v3709 = vmax.f32 %v3483, %v3596
      %v3710 = vmax.f32 %v3484, %v3597
      %v3711 = vmax.f32 %v3485, %v3598
      %v3712 = vmax.f32 %v3486, %v3599
      %v3713 = vmax.f32 %v3487, %v3600
      %v3714 = vmax.f32 %v3488, %v3601
      %v3715 = vmax.f32 %v3489, %v3602
      %v3716 = vmax.f32 %v3490, %v3603
      %v3717 = vmax.f32 %v3491, %v3604
      %v3718 = vmax.f32 %v3492, %v3605
      %v3719 = vmax.f32 %v3493, %v3606
      %v3720 = vmax.f32 %v3494, %v3607
      %v3721 = vmax.f32 %v3495, %v3608
      %v3722 = vmax.f32 %v3496, %v3609
      %v3723 = vmax.f32 %v3497, %v3610
      %v3724 = vmax.f32 %v3498, %v3611
      %v3725 = vmax.f32 %v3499, %v3612
      %v3726 = vmax.f32 %v3500, %v3613
      %v3727 = vmax.f32 %v3501, %v3614
      %v3728 = vmax.f32 %v3502, %v3615
      %v3729 = vmax.f32 %v3503, %v3616
      %v3730 = vmax.f32 %v3504, %v3617
      %v3731 = vmax.f32 %v3505, %v3618
      %v3732 = vmax.f32 %v3506, %v3619
      %v3733 = vmax.f32 %v3507, %v3620
      %v3734 = vmax.f32 %v3508, %v3621
      %v3735 = vmax.f32 %v3509, %v3622
      %v3736 = vmax.f32 %v3510, %v3623
      %v3737 = vmax.f32 %v3511, %v3624
      %v3738 = vmax.f32 %v3512, %v3625
      %v3739 = vmax.f32 %v3513, %v3626
      %v3740 = vmax.f32 %v3514, %v3627
      %v3741 = vmax.f32 %v3515, %v3628
      %v3742 = vmax.f32 %v3516, %v3629
      %v3743 = vmax.f32 %v3517, %v3630
      %v3744 = vmax.f32 %v3518, %v3631
      %v3745 = vmax.f32 %v3519, %v3632
      %v3746 = vmax.f32 %v3520, %v3633
      %v3747 = vmax.f32 %v3521, %v3634
      %v3748 = vmax.f32 %v3522, %v3635
      %v3749 = vmax.f32 %v3523, %v3636
      %v3750 = vmax.f32 %v3524, %v3637
      %v3751 = vmax.f32 %v3525, %v3638
      %v3752 = vmax.f32 %v3526, %v3639
      %v3753 = vmax.f32 %v3527, %v3640
      %v3754 = vld [vmem:[%s2] sm:$0x1]
      %v3756 = vperm.slane %v3754, 0
      %v3758 = vadd.f32 %v3641, %v3756
      %v3759 = vadd.f32 %v3642, %v3756
      %v3760 = vadd.f32 %v3643, %v3756
      %v3761 = vadd.f32 %v3644, %v3756
      %v3762 = vadd.f32 %v3645, %v3756
      %v3763 = vadd.f32 %v3646, %v3756
      %v3764 = vadd.f32 %v3647, %v3756
      %v3765 = vadd.f32 %v3648, %v3756
      %v3766 = vadd.f32 %v3649, %v3756
      %v3767 = vadd.f32 %v3650, %v3756
      %v3768 = vadd.f32 %v3651, %v3756
      %v3769 = vadd.f32 %v3652, %v3756
      %v3770 = vadd.f32 %v3653, %v3756
      %v3771 = vadd.f32 %v3654, %v3756
      %v3772 = vadd.f32 %v3655, %v3756
      %v3773 = vadd.f32 %v3656, %v3756
      %v3774 = vadd.f32 %v3657, %v3756
      %v3775 = vadd.f32 %v3658, %v3756
      %v3776 = vadd.f32 %v3659, %v3756
      %v3777 = vadd.f32 %v3660, %v3756
      %v3778 = vadd.f32 %v3661, %v3756
      %v3779 = vadd.f32 %v3662, %v3756
      %v3780 = vadd.f32 %v3663, %v3756
      %v3781 = vadd.f32 %v3664, %v3756
      %v3782 = vadd.f32 %v3665, %v3756
      %v3783 = vadd.f32 %v3666, %v3756
      %v3784 = vadd.f32 %v3667, %v3756
      %v3785 = vadd.f32 %v3668, %v3756
      %v3786 = vadd.f32 %v3669, %v3756
      %v3787 = vadd.f32 %v3670, %v3756
      %v3788 = vadd.f32 %v3671, %v3756
      %v3789 = vadd.f32 %v3672, %v3756
      %v3790 = vadd.f32 %v3673, %v3756
      %v3791 = vadd.f32 %v3674, %v3756
      %v3792 = vadd.f32 %v3675, %v3756
      %v3793 = vadd.f32 %v3676, %v3756
      %v3794 = vadd.f32 %v3677, %v3756
      %v3795 = vadd.f32 %v3678, %v3756
      %v3796 = vadd.f32 %v3679, %v3756
      %v3797 = vadd.f32 %v3680, %v3756
      %v3798 = vadd.f32 %v3681, %v3756
      %v3799 = vadd.f32 %v3682, %v3756
      %v3800 = vadd.f32 %v3683, %v3756
      %v3801 = vadd.f32 %v3684, %v3756
      %v3802 = vadd.f32 %v3685, %v3756
      %v3803 = vadd.f32 %v3686, %v3756
      %v3804 = vadd.f32 %v3687, %v3756
      %v3805 = vadd.f32 %v3688, %v3756
      %v3806 = vadd.f32 %v3689, %v3756
      %v3807 = vadd.f32 %v3690, %v3756
      %v3808 = vadd.f32 %v3691, %v3756
      %v3809 = vadd.f32 %v3692, %v3756
      %v3810 = vadd.f32 %v3693, %v3756
      %v3811 = vadd.f32 %v3694, %v3756
      %v3812 = vadd.f32 %v3695, %v3756
      %v3813 = vadd.f32 %v3696, %v3756
      %v3814 = vadd.f32 %v3697, %v3756
      %v3815 = vadd.f32 %v3698, %v3756
      %v3816 = vadd.f32 %v3699, %v3756
      %v3817 = vadd.f32 %v3700, %v3756
      %v3818 = vadd.f32 %v3701, %v3756
      %v3819 = vadd.f32 %v3702, %v3756
      %v3820 = vadd.f32 %v3703, %v3756
      %v3821 = vadd.f32 %v3704, %v3756
      %v3822 = vadd.f32 %v3705, %v3756
      %v3823 = vadd.f32 %v3706, %v3756
      %v3824 = vadd.f32 %v3707, %v3756
      %v3825 = vadd.f32 %v3708, %v3756
      %v3826 = vadd.f32 %v3709, %v3756
      %v3827 = vadd.f32 %v3710, %v3756
      %v3828 = vadd.f32 %v3711, %v3756
      %v3829 = vadd.f32 %v3712, %v3756
      %v3830 = vadd.f32 %v3713, %v3756
      %v3831 = vadd.f32 %v3714, %v3756
      %v3832 = vadd.f32 %v3715, %v3756
      %v3833 = vadd.f32 %v3716, %v3756
      %v3834 = vadd.f32 %v3717, %v3756
      %v3835 = vadd.f32 %v3718, %v3756
      %v3836 = vadd.f32 %v3719, %v3756
      %v3837 = vadd.f32 %v3720, %v3756
      %v3838 = vadd.f32 %v3721, %v3756
      %v3839 = vadd.f32 %v3722, %v3756
      %v3840 = vadd.f32 %v3723, %v3756
      %v3841 = vadd.f32 %v3724, %v3756
      %v3842 = vadd.f32 %v3725, %v3756
      %v3843 = vadd.f32 %v3726, %v3756
      %v3844 = vadd.f32 %v3727, %v3756
      %v3845 = vadd.f32 %v3728, %v3756
      %v3846 = vadd.f32 %v3729, %v3756
      %v3847 = vadd.f32 %v3730, %v3756
      %v3848 = vadd.f32 %v3731, %v3756
      %v3849 = vadd.f32 %v3732, %v3756
      %v3850 = vadd.f32 %v3733, %v3756
      %v3851 = vadd.f32 %v3734, %v3756
      %v3852 = vadd.f32 %v3735, %v3756
      %v3853 = vadd.f32 %v3736, %v3756
      %v3854 = vadd.f32 %v3737, %v3756
      %v3855 = vadd.f32 %v3738, %v3756
      %v3856 = vadd.f32 %v3739, %v3756
      %v3857 = vadd.f32 %v3740, %v3756
      %v3858 = vadd.f32 %v3741, %v3756
      %v3859 = vadd.f32 %v3742, %v3756
      %v3860 = vadd.f32 %v3743, %v3756
      %v3861 = vadd.f32 %v3744, %v3756
      %v3862 = vadd.f32 %v3745, %v3756
      %v3863 = vadd.f32 %v3746, %v3756
      %v3864 = vadd.f32 %v3747, %v3756
      %v3865 = vadd.f32 %v3748, %v3756
      %v3866 = vadd.f32 %v3749, %v3756
      %v3867 = vadd.f32 %v3750, %v3756
      %v3868 = vadd.f32 %v3751, %v3756
      %v3869 = vadd.f32 %v3752, %v3756
      %v3870 = vadd.f32 %v3753, %v3756
      %v3871 = vmax.f32 %v3758, 0.0
      %v3872 = vmax.f32 %v3759, 0.0
      %v3873 = vmax.f32 %v3760, 0.0
      %v3874 = vmax.f32 %v3761, 0.0
      %v3875 = vmax.f32 %v3762, 0.0
      %v3876 = vmax.f32 %v3763, 0.0
      %v3877 = vmax.f32 %v3764, 0.0
      %v3878 = vmax.f32 %v3765, 0.0
      %v3879 = vmax.f32 %v3766, 0.0
      %v3880 = vmax.f32 %v3767, 0.0
      %v3881 = vmax.f32 %v3768, 0.0
      %v3882 = vmax.f32 %v3769, 0.0
      %v3883 = vmax.f32 %v3770, 0.0
      %v3884 = vmax.f32 %v3771, 0.0
      %v3885 = vmax.f32 %v3772, 0.0
      %v3886 = vmax.f32 %v3773, 0.0
      %v3887 = vmax.f32 %v3774, 0.0
      %v3888 = vmax.f32 %v3775, 0.0
      %v3889 = vmax.f32 %v3776, 0.0
      %v3890 = vmax.f32 %v3777, 0.0
      %v3891 = vmax.f32 %v3778, 0.0
      %v3892 = vmax.f32 %v3779, 0.0
      %v3893 = vmax.f32 %v3780, 0.0
      %v3894 = vmax.f32 %v3781, 0.0
      %v3895 = vmax.f32 %v3782, 0.0
      %v3896 = vmax.f32 %v3783, 0.0
      %v3897 = vmax.f32 %v3784, 0.0
      %v3898 = vmax.f32 %v3785, 0.0
      %v3899 = vmax.f32 %v3786, 0.0
      %v3900 = vmax.f32 %v3787, 0.0
      %v3901 = vmax.f32 %v3788, 0.0
      %v3902 = vmax.f32 %v3789, 0.0
      %v3903 = vmax.f32 %v3790, 0.0
      %v3904 = vmax.f32 %v3791, 0.0
      %v3905 = vmax.f32 %v3792, 0.0
      %v3906 = vmax.f32 %v3793, 0.0
      %v3907 = vmax.f32 %v3794, 0.0
      %v3908 = vmax.f32 %v3795, 0.0
      %v3909 = vmax.f32 %v3796, 0.0
      %v3910 = vmax.f32 %v3797, 0.0
      %v3911 = vmax.f32 %v3798, 0.0
      %v3912 = vmax.f32 %v3799, 0.0
      %v3913 = vmax.f32 %v3800, 0.0
      %v3914 = vmax.f32 %v3801, 0.0
      %v3915 = vmax.f32 %v3802, 0.0
      %v3916 = vmax.f32 %v3803, 0.0
      %v3917 = vmax.f32 %v3804, 0.0
      %v3918 = vmax.f32 %v3805, 0.0
      %v3919 = vmax.f32 %v3806, 0.0
      %v3920 = vmax.f32 %v3807, 0.0
      %v3921 = vmax.f32 %v3808, 0.0
      %v3922 = vmax.f32 %v3809, 0.0
      %v3923 = vmax.f32 %v3810, 0.0
      %v3924 = vmax.f32 %v3811, 0.0
      %v3925 = vmax.f32 %v3812, 0.0
      %v3926 = vmax.f32 %v3813, 0.0
      %v3927 = vmax.f32 %v3814, 0.0
      %v3928 = vmax.f32 %v3815, 0.0
      %v3929 = vmax.f32 %v3816, 0.0
      %v3930 = vmax.f32 %v3817, 0.0
      %v3931 = vmax.f32 %v3818, 0.0
      %v3932 = vmax.f32 %v3819, 0.0
      %v3933 = vmax.f32 %v3820, 0.0
      %v3934 = vmax.f32 %v3821, 0.0
      %v3935 = vmax.f32 %v3822, 0.0
      %v3936 = vmax.f32 %v3823, 0.0
      %v3937 = vmax.f32 %v3824, 0.0
      %v3938 = vmax.f32 %v3825, 0.0
      %v3939 = vmax.f32 %v3826, 0.0
      %v3940 = vmax.f32 %v3827, 0.0
      %v3941 = vmax.f32 %v3828, 0.0
      %v3942 = vmax.f32 %v3829, 0.0
      %v3943 = vmax.f32 %v3830, 0.0
      %v3944 = vmax.f32 %v3831, 0.0
      %v3945 = vmax.f32 %v3832, 0.0
      %v3946 = vmax.f32 %v3833, 0.0
      %v3947 = vmax.f32 %v3834, 0.0
      %v3948 = vmax.f32 %v3835, 0.0
      %v3949 = vmax.f32 %v3836, 0.0
      %v3950 = vmax.f32 %v3837, 0.0
      %v3951 = vmax.f32 %v3838, 0.0
      %v3952 = vmax.f32 %v3839, 0.0
      %v3953 = vmax.f32 %v3840, 0.0
      %v3954 = vmax.f32 %v3841, 0.0
      %v3955 = vmax.f32 %v3842, 0.0
      %v3956 = vmax.f32 %v3843, 0.0
      %v3957 = vmax.f32 %v3844, 0.0
      %v3958 = vmax.f32 %v3845, 0.0
      %v3959 = vmax.f32 %v3846, 0.0
      %v3960 = vmax.f32 %v3847, 0.0
      %v3961 = vmax.f32 %v3848, 0.0
      %v3962 = vmax.f32 %v3849, 0.0
      %v3963 = vmax.f32 %v3850, 0.0
      %v3964 = vmax.f32 %v3851, 0.0
      %v3965 = vmax.f32 %v3852, 0.0
      %v3966 = vmax.f32 %v3853, 0.0
      %v3967 = vmax.f32 %v3854, 0.0
      %v3968 = vmax.f32 %v3855, 0.0
      %v3969 = vmax.f32 %v3856, 0.0
      %v3970 = vmax.f32 %v3857, 0.0
      %v3971 = vmax.f32 %v3858, 0.0
      %v3972 = vmax.f32 %v3859, 0.0
      %v3973 = vmax.f32 %v3860, 0.0
      %v3974 = vmax.f32 %v3861, 0.0
      %v3975 = vmax.f32 %v3862, 0.0
      %v3976 = vmax.f32 %v3863, 0.0
      %v3977 = vmax.f32 %v3864, 0.0
      %v3978 = vmax.f32 %v3865, 0.0
      %v3979 = vmax.f32 %v3866, 0.0
      %v3980 = vmax.f32 %v3867, 0.0
      %v3981 = vmax.f32 %v3868, 0.0
      %v3982 = vmax.f32 %v3869, 0.0
      %v3983 = vmax.f32 %v3870, 0.0
      %vm3984 = vcmask 48128
      %3985 = vst.msk [vmem:[%s170] sm:$0xff] %vm3984, %v3871
      %3986 = vst.msk [vmem:[%s170 + $0x8] sm:$0xff] %vm3984, %v3872
      %3987 = vst.msk [vmem:[%s170 + $0x10] sm:$0xff] %vm3984, %v3873
      %3988 = vst.msk [vmem:[%s170 + $0x18] sm:$0xff] %vm3984, %v3874
      %3989 = vst.msk [vmem:[%s170 + $0x20] sm:$0xff] %vm3984, %v3875
      %3990 = vst.msk [vmem:[%s170 + $0x28] sm:$0xff] %vm3984, %v3876
      %3991 = vst.msk [vmem:[%s170 + $0x30] sm:$0xff] %vm3984, %v3877
      %3992 = vst.msk [vmem:[%s170 + $0x38] sm:$0xff] %vm3984, %v3878
      %3993 = vst.msk [vmem:[%s170 + $0x40] sm:$0xff] %vm3984, %v3879
      %3994 = vst.msk [vmem:[%s170 + $0x48] sm:$0xff] %vm3984, %v3880
      %3995 = vst.msk [vmem:[%s170 + $0x50] sm:$0xff] %vm3984, %v3881
      %3996 = vst.msk [vmem:[%s170 + $0x58] sm:$0xff] %vm3984, %v3882
      %3997 = vst.msk [vmem:[%s170 + $0x60] sm:$0xff] %vm3984, %v3883
      %3998 = vst.msk [vmem:[%s170 + $0x68] sm:$0xff] %vm3984, %v3884
      %3999 = vst.msk [vmem:[%s170 + $0x70] sm:$0xff] %vm3984, %v3885
      %4000 = vst.msk [vmem:[%s170 + $0x78] sm:$0xff] %vm3984, %v3886
      %4001 = vst.msk [vmem:[%s170 + $0x80] sm:$0xff] %vm3984, %v3887
      %4002 = vst.msk [vmem:[%s170 + $0x88] sm:$0xff] %vm3984, %v3888
      %4003 = vst.msk [vmem:[%s170 + $0x90] sm:$0xff] %vm3984, %v3889
      %4004 = vst.msk [vmem:[%s170 + $0x98] sm:$0xff] %vm3984, %v3890
      %4005 = vst.msk [vmem:[%s170 + $0xa0] sm:$0xff] %vm3984, %v3891
      %4006 = vst.msk [vmem:[%s170 + $0xa8] sm:$0xff] %vm3984, %v3892
      %4007 = vst.msk [vmem:[%s170 + $0xb0] sm:$0xff] %vm3984, %v3893
      %4008 = vst.msk [vmem:[%s170 + $0xb8] sm:$0xff] %vm3984, %v3894
      %4009 = vst.msk [vmem:[%s170 + $0xc0] sm:$0xff] %vm3984, %v3895
      %4010 = vst.msk [vmem:[%s170 + $0xc8] sm:$0xff] %vm3984, %v3896
      %4011 = vst.msk [vmem:[%s170 + $0xd0] sm:$0xff] %vm3984, %v3897
      %4012 = vst.msk [vmem:[%s170 + $0xd8] sm:$0xff] %vm3984, %v3898
      %4013 = vst.msk [vmem:[%s170 + $0xe0] sm:$0xff] %vm3984, %v3899
      %4014 = vst.msk [vmem:[%s170 + $0xe8] sm:$0xff] %vm3984, %v3900
      %4015 = vst.msk [vmem:[%s170 + $0xf0] sm:$0xff] %vm3984, %v3901
      %4016 = vst.msk [vmem:[%s170 + $0xf8] sm:$0xff] %vm3984, %v3902
      %4017 = vst.msk [vmem:[%s170 + $0x100] sm:$0xff] %vm3984, %v3903
      %4018 = vst.msk [vmem:[%s170 + $0x108] sm:$0xff] %vm3984, %v3904
      %4019 = vst.msk [vmem:[%s170 + $0x110] sm:$0xff] %vm3984, %v3905
      %4020 = vst.msk [vmem:[%s170 + $0x118] sm:$0xff] %vm3984, %v3906
      %4021 = vst.msk [vmem:[%s170 + $0x120] sm:$0xff] %vm3984, %v3907
      %4022 = vst.msk [vmem:[%s170 + $0x128] sm:$0xff] %vm3984, %v3908
      %4023 = vst.msk [vmem:[%s170 + $0x130] sm:$0xff] %vm3984, %v3909
      %4024 = vst.msk [vmem:[%s170 + $0x138] sm:$0xff] %vm3984, %v3910
      %4025 = vst.msk [vmem:[%s170 + $0x140] sm:$0xff] %vm3984, %v3911
      %4026 = vst.msk [vmem:[%s170 + $0x148] sm:$0xff] %vm3984, %v3912
      %4027 = vst.msk [vmem:[%s170 + $0x150] sm:$0xff] %vm3984, %v3913
      %4028 = vst.msk [vmem:[%s170 + $0x158] sm:$0xff] %vm3984, %v3914
      %4029 = vst.msk [vmem:[%s170 + $0x160] sm:$0xff] %vm3984, %v3915
      %4030 = vst.msk [vmem:[%s170 + $0x168] sm:$0xff] %vm3984, %v3916
      %4031 = vst.msk [vmem:[%s170 + $0x170] sm:$0xff] %vm3984, %v3917
      %4032 = vst.msk [vmem:[%s170 + $0x178] sm:$0xff] %vm3984, %v3918
      %4033 = vst.msk [vmem:[%s170 + $0x180] sm:$0xff] %vm3984, %v3919
      %4034 = vst.msk [vmem:[%s170 + $0x188] sm:$0xff] %vm3984, %v3920
      %4035 = vst.msk [vmem:[%s170 + $0x190] sm:$0xff] %vm3984, %v3921
      %4036 = vst.msk [vmem:[%s170 + $0x198] sm:$0xff] %vm3984, %v3922
      %4037 = vst.msk [vmem:[%s170 + $0x1a0] sm:$0xff] %vm3984, %v3923
      %4038 = vst.msk [vmem:[%s170 + $0x1a8] sm:$0xff] %vm3984, %v3924
      %4039 = vst.msk [vmem:[%s170 + $0x1b0] sm:$0xff] %vm3984, %v3925
      %4040 = vst.msk [vmem:[%s170 + $0x1b8] sm:$0xff] %vm3984, %v3926
      %4041 = vst.msk [vmem:[%s170 + $0x1c0] sm:$0xff] %vm3984, %v3927
      %4042 = vst.msk [vmem:[%s170 + $0x1c8] sm:$0xff] %vm3984, %v3928
      %4043 = vst.msk [vmem:[%s170 + $0x1d0] sm:$0xff] %vm3984, %v3929
      %4044 = vst.msk [vmem:[%s170 + $0x1d8] sm:$0xff] %vm3984, %v3930
      %4045 = vst.msk [vmem:[%s170 + $0x1e0] sm:$0xff] %vm3984, %v3931
      %4046 = vst.msk [vmem:[%s170 + $0x1e8] sm:$0xff] %vm3984, %v3932
      %4047 = vst.msk [vmem:[%s170 + $0x1f0] sm:$0xff] %vm3984, %v3933
      %4048 = vst.msk [vmem:[%s170 + $0x1f8] sm:$0xff] %vm3984, %v3934
      %4049 = vst.msk [vmem:[%s170 + $0x200] sm:$0xff] %vm3984, %v3935
      %4050 = vst.msk [vmem:[%s170 + $0x208] sm:$0xff] %vm3984, %v3936
      %4051 = vst.msk [vmem:[%s170 + $0x210] sm:$0xff] %vm3984, %v3937
      %4052 = vst.msk [vmem:[%s170 + $0x218] sm:$0xff] %vm3984, %v3938
      %4053 = vst.msk [vmem:[%s170 + $0x220] sm:$0xff] %vm3984, %v3939
      %4054 = vst.msk [vmem:[%s170 + $0x228] sm:$0xff] %vm3984, %v3940
      %4055 = vst.msk [vmem:[%s170 + $0x230] sm:$0xff] %vm3984, %v3941
      %4056 = vst.msk [vmem:[%s170 + $0x238] sm:$0xff] %vm3984, %v3942
      %4057 = vst.msk [vmem:[%s170 + $0x240] sm:$0xff] %vm3984, %v3943
      %4058 = vst.msk [vmem:[%s170 + $0x248] sm:$0xff] %vm3984, %v3944
      %4059 = vst.msk [vmem:[%s170 + $0x250] sm:$0xff] %vm3984, %v3945
      %4060 = vst.msk [vmem:[%s170 + $0x258] sm:$0xff] %vm3984, %v3946
      %4061 = vst.msk [vmem:[%s170 + $0x260] sm:$0xff] %vm3984, %v3947
      %4062 = vst.msk [vmem:[%s170 + $0x268] sm:$0xff] %vm3984, %v3948
      %4063 = vst.msk [vmem:[%s170 + $0x270] sm:$0xff] %vm3984, %v3949
      %4064 = vst.msk [vmem:[%s170 + $0x278] sm:$0xff] %vm3984, %v3950
      %4065 = vst.msk [vmem:[%s170 + $0x280] sm:$0xff] %vm3984, %v3951
      %4066 = vst.msk [vmem:[%s170 + $0x288] sm:$0xff] %vm3984, %v3952
      %4067 = vst.msk [vmem:[%s170 + $0x290] sm:$0xff] %vm3984, %v3953
      %4068 = vst.msk [vmem:[%s170 + $0x298] sm:$0xff] %vm3984, %v3954
      %4069 = vst.msk [vmem:[%s170 + $0x2a0] sm:$0xff] %vm3984, %v3955
      %4070 = vst.msk [vmem:[%s170 + $0x2a8] sm:$0xff] %vm3984, %v3956
      %4071 = vst.msk [vmem:[%s170 + $0x2b0] sm:$0xff] %vm3984, %v3957
      %4072 = vst.msk [vmem:[%s170 + $0x2b8] sm:$0xff] %vm3984, %v3958
      %4073 = vst.msk [vmem:[%s170 + $0x2c0] sm:$0xff] %vm3984, %v3959
      %4074 = vst.msk [vmem:[%s170 + $0x2c8] sm:$0xff] %vm3984, %v3960
      %4075 = vst.msk [vmem:[%s170 + $0x2d0] sm:$0xff] %vm3984, %v3961
      %4076 = vst.msk [vmem:[%s170 + $0x2d8] sm:$0xff] %vm3984, %v3962
      %4077 = vst.msk [vmem:[%s170 + $0x2e0] sm:$0xff] %vm3984, %v3963
      %4078 = vst.msk [vmem:[%s170 + $0x2e8] sm:$0xff] %vm3984, %v3964
      %4079 = vst.msk [vmem:[%s170 + $0x2f0] sm:$0xff] %vm3984, %v3965
      %4080 = vst.msk [vmem:[%s170 + $0x2f8] sm:$0xff] %vm3984, %v3966
      %4081 = vst.msk [vmem:[%s170 + $0x300] sm:$0xff] %vm3984, %v3967
      %4082 = vst.msk [vmem:[%s170 + $0x308] sm:$0xff] %vm3984, %v3968
      %4083 = vst.msk [vmem:[%s170 + $0x310] sm:$0xff] %vm3984, %v3969
      %4084 = vst.msk [vmem:[%s170 + $0x318] sm:$0xff] %vm3984, %v3970
      %4085 = vst.msk [vmem:[%s170 + $0x320] sm:$0xff] %vm3984, %v3971
      %4086 = vst.msk [vmem:[%s170 + $0x328] sm:$0xff] %vm3984, %v3972
      %4087 = vst.msk [vmem:[%s170 + $0x330] sm:$0xff] %vm3984, %v3973
      %4088 = vst.msk [vmem:[%s170 + $0x338] sm:$0xff] %vm3984, %v3974
      %4089 = vst.msk [vmem:[%s170 + $0x340] sm:$0xff] %vm3984, %v3975
      %4090 = vst.msk [vmem:[%s170 + $0x348] sm:$0xff] %vm3984, %v3976
      %4091 = vst.msk [vmem:[%s170 + $0x350] sm:$0xff] %vm3984, %v3977
      %4092 = vst.msk [vmem:[%s170 + $0x358] sm:$0xff] %vm3984, %v3978
      %4093 = vst.msk [vmem:[%s170 + $0x360] sm:$0xff] %vm3984, %v3979
      %4094 = vst.msk [vmem:[%s170 + $0x368] sm:$0xff] %vm3984, %v3980
      %4095 = vst.msk [vmem:[%s170 + $0x370] sm:$0xff] %vm3984, %v3981
      %4096 = vst.msk [vmem:[%s170 + $0x378] sm:$0xff] %vm3984, %v3982
      %vm4097 = vcmask 44032
      %4098 = vst.msk [vmem:[%s170 + $0x380] sm:$0xf] %vm4097, %v3983
      %p4099 = scmp.lt.s32.totalorder %s14, 1
      %s4100 = scalar_select %p4099, %s14, 1
      %s4101 = smul.addr %s4100, 113
      %s4102 = smul.addr %s4101, 8
      %s4103 = scalar_lea.vmem %s3, %s4102
      // Predicated region
      $region33: #{net_forward.3} parent=31 // pred_check
        %p4104 = pneg %p100
      $region34: #{net_forward.3} parent=31 // pred_check_branch
        %4106 = sbr.rel (%p4104) target = $region36
      $region35: #{net_forward.3} parent=31 // pred_region
        _
      $region36: #{net_forward.3} parent=31 // pred_fallthru
        _
    $region32: #{net_forward.3} parent=5 // pred_fallthru
      _
    %p4107 = scmp.le.s32.totalorder 2, %s9
    // Predicated region
    $region37: #{net_forward.3} parent=5 // pred_check
      %p4108 = pneg %p4107
    $region38: #{net_forward.3} parent=5 // pred_check_branch
      %4110 = sbr.rel (%p4108) target = $region40
    $region39: #{net_forward.3} parent=5 // pred_region
      %s4111 = ssub.s32 %s9, 2
      // Predicated region
      $region41: #{net_forward.3} parent=39 // pred_check
        %p4112 = pneg %p106
      $region42: #{net_forward.3} parent=39 // pred_check_branch
        %4114 = sbr.rel (%p4112) target = $region44
      $region43: #{net_forward.3} parent=39 // pred_region
        %p4115 = scmp.lt.s32.totalorder %s15, 1
        %s4116 = scalar_select %p4115, %s15, 1
        %s4117 = smul.addr %s4116, 113
        %s4118 = smul.addr %s4117, 8
        %s4119 = scalar_lea.vmem %s3, %s4118
      $region44: #{net_forward.3} parent=39 // pred_fallthru
        _
    $region40: #{net_forward.3} parent=5 // pred_fallthru
      _
  $region6: #{net_forward.3} parent=0 // loop_footer
    %s13 = sadd.s32 1, %s9
  $region7: #{net_forward.3} parent=0 // loop_footer_branch
    %8 = sbr.rel target = $region3
  $region8: #{net_forward.3} parent=0 // loop_exit
    _

// kernel: net_forward.4
$region0: #{net_forward.4}
  #allocation0 [shape = 'u32[]', space=smem, size = 0x4, offset = 0x4, fixed_abs, tag = 'smem constant byte address 0x4 - core index']
  #allocation1 [shape = 'u32[72,128]{1,0:T(1,128)}', space=vmem, size = 0x9000, scoped, tag = 'internal scratch']
  %s0 = inlined_call_operand.vmem [shape: f32[2,4,169,150], index: 0, kind: input, shape index: {}]
  %s1 = inlined_call_operand.vmem [shape: f32[150,16], index: 1, kind: input, shape index: {}]
  %s2 = inlined_call_operand.vmem [shape: f32[1,16], index: 2, kind: input, shape index: {}]
  %s3 = inlined_call_operand.vmem [shape: f32[2,169,16], index: 3, kind: output, shape index: {}]
  %s4 = sld [smem:[#allocation0]]
  $region45: #{net_forward.4} parent=0
    _
  %s6 = ssub.s32 1, %s4
  %s7 = scalar_select 0, %s6, %s4
  loop: start=0, step=1, limit=4
  $region2: #{net_forward.4} parent=0 // loop_pre_header
    _
  $region3: #{net_forward.4} parent=0 // loop_header
    %s9 = sphi 0, %s13
    %p10 = scmp.ge.s32.totalorder %s9, 4
    %s19 = sphi 0, %s21
    %s22 = sphi 0, %s19
    %s23 = sphi 0, %s22
    %s39 = sphi 0, %s23
    %s43 = sphi 0, %s43
    %s45 = sphi 0, %s43
    %s46 = sphi 0, %s45
    %s60 = sphi 0, %s46
    %s64 = sphi 0, %s64
    %s66 = sphi 0, %s64
    %s67 = sphi 0, %s66
    %s81 = sphi 0, %s67
    %s87 = sphi 0, %s89
    %s90 = sphi 0, %s87
    %s91 = sphi 0, %s90
    %s107 = sphi 0, %s91
  $region4: #{net_forward.4} parent=0 // loop_header_branch
    %12 = sbr.rel (%p10) target = $region8
  $region5: #{net_forward.4} parent=0 // loop_body
    %s14 = ssub.s32 %s9, 1
    %s15 = ssub.s32 %s9, 2
    %s16 = sadd.s32 %s9, 1
    %s17 = ssub.s32 %s9, %s16
    %p18 = scmp.eq.s32.totalorder %s17, 0
    %s20 = sadd.s32 %s19, 1
    %s21 = scalar_select %p18, %s19, %s20
    %p24 = pneg %p18
    %p25 = scmp.eq.s32.totalorder %s9, 1
    %p26 = por %p24, %p25
    %p27 = scmp.ne.s32.totalorder %s19, %s22
    %p28 = scmp.eq.s32.totalorder %s9, 0
    %p29 = por %p27, %p28
    %p30 = scmp.ne.s32.totalorder %s19, %s22
    %p31 = scmp.eq.s32.totalorder %s14, 1
    %p32 = por %p30, %p31
    %p33 = scmp.ne.s32.totalorder %s22, %s23
    %p34 = scmp.eq.s32.totalorder %s14, 0
    %p35 = por %p33, %p34
    %p36 = scmp.ne.s32.totalorder %s22, %s23
    %p37 = scmp.eq.s32.totalorder %s15, 1
    %p38 = por %p36, %p37
    %p40 = scmp.ne.s32.totalorder %s23, %s39
    %p41 = scmp.eq.s32.totalorder %s15, 0
    %p42 = por %p40, %p41
    %s44 = sadd.s32 %s43, 1
    %p47 = scmp.eq.s32.totalorder %s9, 1
    %p48 = scmp.ne.s32.totalorder %s43, %s45
    %p49 = scmp.eq.s32.totalorder %s9, 0
    %p50 = por %p48, %p49
    %p51 = scmp.ne.s32.totalorder %s43, %s45
    %p52 = scmp.eq.s32.totalorder %s14, 1
    %p53 = por %p51, %p52
    %p54 = scmp.ne.s32.totalorder %s45, %s46
    %p55 = scmp.eq.s32.totalorder %s14, 0
    %p56 = por %p54, %p55
    %p57 = scmp.ne.s32.totalorder %s45, %s46
    %p58 = scmp.eq.s32.totalorder %s15, 1
    %p59 = por %p57, %p58
    %p61 = scmp.ne.s32.totalorder %s46, %s60
    %p62 = scmp.eq.s32.totalorder %s15, 0
    %p63 = por %p61, %p62
    %s65 = sadd.s32 %s64, 1
    %p68 = scmp.eq.s32.totalorder %s9, 1
    %p69 = scmp.ne.s32.totalorder %s64, %s66
    %p70 = scmp.eq.s32.totalorder %s9, 0
    %p71 = por %p69, %p70
    %p72 = scmp.ne.s32.totalorder %s64, %s66
    %p73 = scmp.eq.s32.totalorder %s14, 1
    %p74 = por %p72, %p73
    %p75 = scmp.ne.s32.totalorder %s66, %s67
    %p76 = scmp.eq.s32.totalorder %s14, 0
    %p77 = por %p75, %p76
    %p78 = scmp.ne.s32.totalorder %s66, %s67
    %p79 = scmp.eq.s32.totalorder %s15, 1
    %p80 = por %p78, %p79
    %p82 = scmp.ne.s32.totalorder %s67, %s81
    %p83 = scmp.eq.s32.totalorder %s15, 0
    %p84 = por %p82, %p83
    %s85 = ssub.s32 %s9, %s16
    %p86 = scmp.eq.s32.totalorder %s85, 0
    %s88 = sadd.s32 %s87, 1
    %s89 = scalar_select %p86, %s87, %s88
    %p92 = pneg %p86
    %p93 = scmp.eq.s32.totalorder %s9, 1
    %p94 = por %p92, %p93
    %p95 = scmp.ne.s32.totalorder %s87, %s90
    %p96 = scmp.eq.s32.totalorder %s9, 0
    %p97 = por %p95, %p96
    %p98 = scmp.ne.s32.totalorder %s87, %s90
    %p99 = scmp.eq.s32.totalorder %s14, 1
    %p100 = por %p98, %p99
    %p101 = scmp.ne.s32.totalorder %s90, %s91
    %p102 = scmp.eq.s32.totalorder %s14, 0
    %p103 = por %p101, %p102
    %p104 = scmp.ne.s32.totalorder %s90, %s91
    %p105 = scmp.eq.s32.totalorder %s15, 1
    %p106 = por %p104, %p105
    %p108 = scmp.ne.s32.totalorder %s91, %s107
    %p109 = scmp.eq.s32.totalorder %s15, 0
    %p110 = por %p108, %p109
    %p111 = scmp.le.s32.totalorder 1, %s9
    %p112 = scmp.lt.s32.totalorder %s9, 3
    %p113 = pnand %p111, %p112
    %p114 = pneg %p113
    // Predicated region
    $region9: #{net_forward.4} parent=5 // pred_check
      _
    $region10: #{net_forward.4} parent=5 // pred_check_branch
      %116 = sbr.rel (%p113) target = $region12
    $region11: #{net_forward.4} parent=5 // pred_region
      %s117 = ssub.s32 %s9, 1
      // Predicated region
      $region13: #{net_forward.4} parent=11 // pred_check
        %p118 = pneg %p56
      $region14: #{net_forward.4} parent=11 // pred_check_branch
        %120 = sbr.rel (%p118) target = $region16
      $region15: #{net_forward.4} parent=11 // pred_region
        _
      $region16: #{net_forward.4} parent=11 // pred_fallthru
        _
      // Predicated region
      $region17: #{net_forward.4} parent=11 // pred_check
        %p121 = pneg %p77
      $region18: #{net_forward.4} parent=11 // pred_check_branch
        %123 = sbr.rel (%p121) target = $region20
      $region19: #{net_forward.4} parent=11 // pred_region
        _
      $region20: #{net_forward.4} parent=11 // pred_fallthru
        _
    $region12: #{net_forward.4} parent=5 // pred_fallthru
      _
    %p124 = scmp.lt.s32.totalorder %s9, 2
    // Predicated region
    $region21: #{net_forward.4} parent=5 // pred_check
      %p125 = pneg %p124
    $region22: #{net_forward.4} parent=5 // pred_check_branch
      %127 = sbr.rel (%p125) target = $region24
    $region23: #{net_forward.4} parent=5 // pred_region
      // Predicated region
      $region25: #{net_forward.4} parent=23 // pred_check
        %p128 = pneg %p29
      $region26: #{net_forward.4} parent=23 // pred_check_branch
        %130 = sbr.rel (%p128) target = $region28
      $region27: #{net_forward.4} parent=23 // pred_region
        %p131 = scmp.lt.s32.totalorder %s9, 1
        %s132 = scalar_select %p131, %s9, 1
        %s133 = smul.addr %s132, 176
        %s134 = smul.addr %s133, 8
        %s135 = scalar_lea.vmem %s0, %s134
      $region28: #{net_forward.4} parent=23 // pred_fallthru
        _
    $region24: #{net_forward.4} parent=5 // pred_fallthru
      _
    %p136 = scmp.le.s32.totalorder 1, %s9
    %p137 = scmp.lt.s32.totalorder %s9, 3
    %p138 = pnand %p136, %p137
    %p139 = pneg %p138
    // Predicated region
    $region29: #{net_forward.4} parent=5 // pred_check
      _
    $region30: #{net_forward.4} parent=5 // pred_check_branch
      %141 = sbr.rel (%p138) target = $region32
    $region31: #{net_forward.4} parent=5 // pred_region
      %s142 = ssub.s32 %s9, 1
      %p143 = scmp.lt.s32.totalorder %s14, 1
      %s144 = scalar_select %p143, %s14, 1
      %s145 = smul.addr %s144, 176
      %s146 = smul.addr %s145, 8
      %s147 = scalar_lea.vmem %s0, %s146
      %p148 = pneg %p35
      %p149 = pneg %p32
      %p150 = pneg %p56
      %p151 = pneg %p53
      %p152 = pneg %p77
      %p153 = pneg %p74
      %p154 = pneg %p103
      %p155 = pneg %p100
      %p156 = scmp.lt.s32.totalorder %s14, 1
      %s157 = scalar_select %p156, %s14, 1
      %s158 = smul.addr %s157, 22
      %s159 = smul.addr %s158, 8
      %s160 = scalar_lea.vmem %s3, %s159
      %p161 = scmp.lt.s32.totalorder %s14, 1
      %s162 = scalar_select %p161, %s14, 1
      %s163 = smul.addr %s162, 176
      %s164 = smul.addr %s163, 8
      %s165 = scalar_lea.vmem %s0, %s164
      %p166 = scmp.lt.s32.totalorder %s14, 1
      %s167 = scalar_select %p166, %s14, 1
      %s168 = smul.addr %s167, 22
      %s169 = smul.addr %s168, 8
      %s170 = scalar_lea.vmem %s3, %s169
      %v171 = vld [vmem:[%s1] sm:$0xff]
      %v172 = vld [vmem:[%s1 + $0x8] sm:$0xff]
      %v173 = vld [vmem:[%s1 + $0x10] sm:$0xff]
      %v174 = vld [vmem:[%s1 + $0x18] sm:$0xff]
      %v175 = vld [vmem:[%s1 + $0x20] sm:$0xff]
      %v176 = vld [vmem:[%s1 + $0x28] sm:$0xff]
      %v177 = vld [vmem:[%s1 + $0x30] sm:$0xff]
      %v178 = vld [vmem:[%s1 + $0x38] sm:$0xff]
      %v179 = vld [vmem:[%s1 + $0x40] sm:$0xff]
      %v180 = vld [vmem:[%s1 + $0x48] sm:$0xff]
      %v181 = vld [vmem:[%s1 + $0x50] sm:$0xff]
      %v182 = vld [vmem:[%s1 + $0x58] sm:$0xff]
      %v183 = vld [vmem:[%s1 + $0x60] sm:$0xff]
      %v184 = vld [vmem:[%s1 + $0x68] sm:$0xff]
      %v185 = vld [vmem:[%s1 + $0x70] sm:$0xff]
      %v186 = vld [vmem:[%s1 + $0x78] sm:$0xff]
      %v187 = vld [vmem:[%s1 + $0x80] sm:$0xff]
      %v188 = vld [vmem:[%s1 + $0x88] sm:$0xff]
      %v189 = vld [vmem:[%s1 + $0x90] sm:$0x3f]
      %v190 = vld [vmem:[%s165] sm:$0xff]
      %v191 = vld [vmem:[%s165 + $0x8] sm:$0xff]
      %v192 = vld [vmem:[%s165 + $0x10] sm:$0xff]
      %v193 = vld [vmem:[%s165 + $0x18] sm:$0xff]
      %v194 = vld [vmem:[%s165 + $0x20] sm:$0xff]
      %v195 = vld [vmem:[%s165 + $0x28] sm:$0xff]
      %v196 = vld [vmem:[%s165 + $0x30] sm:$0xff]
      %v197 = vld [vmem:[%s165 + $0x38] sm:$0xff]
      %v198 = vld [vmem:[%s165 + $0x40] sm:$0xff]
      %v199 = vld [vmem:[%s165 + $0x48] sm:$0xff]
      %v200 = vld [vmem:[%s165 + $0x50] sm:$0xff]
      %v201 = vld [vmem:[%s165 + $0x58] sm:$0xff]
      %v202 = vld [vmem:[%s165 + $0x60] sm:$0xff]
      %v203 = vld [vmem:[%s165 + $0x68] sm:$0xff]
      %v204 = vld [vmem:[%s165 + $0x70] sm:$0xff]
      %v205 = vld [vmem:[%s165 + $0x78] sm:$0xff]
      %v206 = vld [vmem:[%s165 + $0x80] sm:$0xff]
      %v207 = vld [vmem:[%s165 + $0x88] sm:$0xff]
      %v208 = vld [vmem:[%s165 + $0x90] sm:$0xff]
      %v209 = vld [vmem:[%s165 + $0x98] sm:$0xff]
      %v210 = vld [vmem:[%s165 + $0xa0] sm:$0xff]
      %v211 = vld [vmem:[%s165 + $0xa8] sm:$0xff]
      %v212 = vld [vmem:[%s165 + $0xb0] sm:$0xff]
      %v213 = vld [vmem:[%s165 + $0xb8] sm:$0xff]
      %v214 = vld [vmem:[%s165 + $0xc0] sm:$0xff]
      %v215 = vld [vmem:[%s165 + $0xc8] sm:$0xff]
      %v216 = vld [vmem:[%s165 + $0xd0] sm:$0xff]
      %v217 = vld [vmem:[%s165 + $0xd8] sm:$0xff]
      %v218 = vld [vmem:[%s165 + $0xe0] sm:$0xff]
      %v219 = vld [vmem:[%s165 + $0xe8] sm:$0xff]
      %v220 = vld [vmem:[%s165 + $0xf0] sm:$0xff]
      %v221 = vld [vmem:[%s165 + $0xf8] sm:$0xff]
      %v222 = vld [vmem:[%s165 + $0x100] sm:$0xff]
      %v223 = vld [vmem:[%s165 + $0x108] sm:$0xff]
      %v224 = vld [vmem:[%s165 + $0x110] sm:$0xff]
      %v225 = vld [vmem:[%s165 + $0x118] sm:$0xff]
      %v226 = vld [vmem:[%s165 + $0x120] sm:$0xff]
      %v227 = vld [vmem:[%s165 + $0x128] sm:$0xff]
      %v228 = vld [vmem:[%s165 + $0x130] sm:$0xff]
      %v229 = vld [vmem:[%s165 + $0x138] sm:$0xff]
      %v230 = vld [vmem:[%s165 + $0x140] sm:$0xff]
      %v231 = vld [vmem:[%s165 + $0x148] sm:$0xff]
      %v232 = vld [vmem:[%s165 + $0x150] sm:$0x1]
      %v233 = vld [vmem:[%s165 + $0x158] sm:$0x1]
      %vm234 = vcmask 179200
      %v236 = vsel %vm234, %v191, 0
      %v239 = vsel %vm234, %v193, 0
      %v242 = vsel %vm234, %v195, 0
      %v245 = vsel %vm234, %v197, 0
      %v248 = vsel %vm234, %v199, 0
      %v251 = vsel %vm234, %v201, 0
      %v254 = vsel %vm234, %v203, 0
      %v257 = vsel %vm234, %v205, 0
      %v260 = vsel %vm234, %v207, 0
      %v263 = vsel %vm234, %v209, 0
      %v266 = vsel %vm234, %v211, 0
      %v269 = vsel %vm234, %v213, 0
      %v272 = vsel %vm234, %v215, 0
      %v275 = vsel %vm234, %v217, 0
      %v278 = vsel %vm234, %v219, 0
      %v281 = vsel %vm234, %v221, 0
      %v284 = vsel %vm234, %v223, 0
      %v287 = vsel %vm234, %v225, 0
      %v290 = vsel %vm234, %v227, 0
      %v293 = vsel %vm234, %v229, 0
      %v296 = vsel %vm234, %v231, 0
      %v299 = vsel %vm234, %v233, 0
      %vm301 = vcmask 1045504
      %v303 = vsel %vm301, %v189, 0
      %305 = vmatpush.msra.mxu0 %v186
      %306 = vmatpush.msra.mxu0 %v185
      %307 = vmatpush.msra.mxu0 %v184
      %308 = vmatpush.msra.mxu0 %v183
      %309 = vmatpush.msra.mxu0 %v182
      %310 = vmatpush.msra.mxu0 %v181
      %311 = vmatpush.msra.mxu0 %v180
      %312 = vmatpush.msra.mxu0 %v179
      %313 = vmatpush.msra.mxu0 %v178
      %314 = vmatpush.msra.mxu0 %v177
      %315 = vmatpush.msra.mxu0 %v176
      %316 = vmatpush.msra.mxu0 %v175
      %317 = vmatpush.msra.mxu0 %v174
      %318 = vmatpush.msra.mxu0 %v173
      %319 = vmatpush.msra.mxu0 %v172
      %320 = vmatpush.msra.mxu0 %v171
      %321 = vmatmul.f32.gmra.mxu0 %v190
      %v322 = vpop.f32.mrf.mxu0
      %v323 = vadd.f32 0.0, %v322
      %324 = vmatmul.f32.gmra.mxu0 %v192
      %v325 = vpop.f32.mrf.mxu0
      %v326 = vadd.f32 0.0, %v325
      %327 = vmatmul.f32.gmra.mxu0 %v194
      %v328 = vpop.f32.mrf.mxu0
      %v329 = vadd.f32 0.0, %v328
      %330 = vmatmul.f32.gmra.mxu0 %v196
      %v331 = vpop.f32.mrf.mxu0
      %v332 = vadd.f32 0.0, %v331
      %333 = vmatmul.f32.gmra.mxu0 %v198
      %v334 = vpop.f32.mrf.mxu0
      %v335 = vadd.f32 0.0, %v334
      %336 = vmatmul.f32.gmra.mxu0 %v200
      %v337 = vpop.f32.mrf.mxu0
      %v338 = vadd.f32 0.0, %v337
      %339 = vmatmul.f32.gmra.mxu0 %v202
      %v340 = vpop.f32.mrf.mxu0
      %v341 = vadd.f32 0.0, %v340
      %342 = vmatmul.f32.gmra.mxu0 %v204
      %v343 = vpop.f32.mrf.mxu0
      %v344 = vadd.f32 0.0, %v343
      %345 = vmatmul.f32.gmra.mxu0 %v206
      %v346 = vpop.f32.mrf.mxu0
      %v347 = vadd.f32 0.0, %v346
      %348 = vmatmul.f32.gmra.mxu0 %v208
      %v349 = vpop.f32.mrf.mxu0
      %v350 = vadd.f32 0.0, %v349
      %351 = vmatmul.f32.gmra.mxu0 %v210
      %v352 = vpop.f32.mrf.mxu0
      %v353 = vadd.f32 0.0, %v352
      %354 = vmatmul.f32.gmra.mxu0 %v212
      %v355 = vpop.f32.mrf.mxu0
      %v356 = vadd.f32 0.0, %v355
      %357 = vmatmul.f32.gmra.mxu0 %v214
      %v358 = vpop.f32.mrf.mxu0
      %v359 = vadd.f32 0.0, %v358
      %360 = vmatmul.f32.gmra.mxu0 %v216
      %v361 = vpop.f32.mrf.mxu0
      %v362 = vadd.f32 0.0, %v361
      %363 = vmatmul.f32.gmra.mxu0 %v218
      %v364 = vpop.f32.mrf.mxu0
      %v365 = vadd.f32 0.0, %v364
      %366 = vmatmul.f32.gmra.mxu0 %v220
      %v367 = vpop.f32.mrf.mxu0
      %v368 = vadd.f32 0.0, %v367
      %369 = vmatmul.f32.gmra.mxu0 %v222
      %v370 = vpop.f32.mrf.mxu0
      %v371 = vadd.f32 0.0, %v370
      %372 = vmatmul.f32.gmra.mxu0 %v224
      %v373 = vpop.f32.mrf.mxu0
      %v374 = vadd.f32 0.0, %v373
      %375 = vmatmul.f32.gmra.mxu0 %v226
      %v376 = vpop.f32.mrf.mxu0
      %v377 = vadd.f32 0.0, %v376
      %378 = vmatmul.f32.gmra.mxu0 %v228
      %v379 = vpop.f32.mrf.mxu0
      %v380 = vadd.f32 0.0, %v379
      %381 = vmatmul.f32.gmra.mxu0 %v230
      %v382 = vpop.f32.mrf.mxu0
      %v383 = vadd.f32 0.0, %v382
      %384 = vmatmul.f32.gmra.mxu0 %v232
      %v385 = vpop.f32.mrf.mxu0
      %v386 = vadd.f32 0.0, %v385
      %387 = vdwg.mxu0
      %388 = vmatpush.msra.mxu0 0.0
      %389 = vmatpush.msra.mxu0 0.0
      %390 = vmatpush.msra.mxu0 0.0
      %391 = vmatpush.msra.mxu0 0.0
      %392 = vmatpush.msra.mxu0 0.0
      %393 = vmatpush.msra.mxu0 0.0
      %394 = vmatpush.msra.mxu0 0.0
      %395 = vmatpush.msra.mxu0 0.0
      %396 = vmatpush.msra.mxu0 0.0
      %397 = vmatpush.msra.mxu0 0.0
      %398 = vmatpush.msra.mxu0 0.0
      %399 = vmatpush.msra.mxu0 0.0
      %400 = vmatpush.msra.mxu0 0.0
      %401 = vmatpush.msra.mxu0 %v303
      %402 = vmatpush.msra.mxu0 %v188
      %403 = vmatpush.msra.mxu0 %v187
      %404 = vmatmul.f32.gmra.mxu0 %v236
      %v405 = vpop.f32.mrf.mxu0
      %v406 = vadd.f32 %v323, %v405
      %407 = vmatmul.f32.gmra.mxu0 %v239
      %v408 = vpop.f32.mrf.mxu0
      %v409 = vadd.f32 %v326, %v408
      %410 = vmatmul.f32.gmra.mxu0 %v242
      %v411 = vpop.f32.mrf.mxu0
      %v412 = vadd.f32 %v329, %v411
      %413 = vmatmul.f32.gmra.mxu0 %v245
      %v414 = vpop.f32.mrf.mxu0
      %v415 = vadd.f32 %v332, %v414
      %416 = vmatmul.f32.gmra.mxu0 %v248
      %v417 = vpop.f32.mrf.mxu0
      %v418 = vadd.f32 %v335, %v417
      %419 = vmatmul.f32.gmra.mxu0 %v251
      %v420 = vpop.f32.mrf.mxu0
      %v421 = vadd.f32 %v338, %v420
      %422 = vmatmul.f32.gmra.mxu0 %v254
      %v423 = vpop.f32.mrf.mxu0
      %v424 = vadd.f32 %v341, %v423
      %425 = vmatmul.f32.gmra.mxu0 %v257
      %v426 = vpop.f32.mrf.mxu0
      %v427 = vadd.f32 %v344, %v426
      %428 = vmatmul.f32.gmra.mxu0 %v260
      %v429 = vpop.f32.mrf.mxu0
      %v430 = vadd.f32 %v347, %v429
      %431 = vmatmul.f32.gmra.mxu0 %v263
      %v432 = vpop.f32.mrf.mxu0
      %v433 = vadd.f32 %v350, %v432
      %434 = vmatmul.f32.gmra.mxu0 %v266
      %v435 = vpop.f32.mrf.mxu0
      %v436 = vadd.f32 %v353, %v435
      %437 = vmatmul.f32.gmra.mxu0 %v269
      %v438 = vpop.f32.mrf.mxu0
      %v439 = vadd.f32 %v356, %v438
      %440 = vmatmul.f32.gmra.mxu0 %v272
      %v441 = vpop.f32.mrf.mxu0
      %v442 = vadd.f32 %v359, %v441
      %443 = vmatmul.f32.gmra.mxu0 %v275
      %v444 = vpop.f32.mrf.mxu0
      %v445 = vadd.f32 %v362, %v444
      %446 = vmatmul.f32.gmra.mxu0 %v278
      %v447 = vpop.f32.mrf.mxu0
      %v448 = vadd.f32 %v365, %v447
      %449 = vmatmul.f32.gmra.mxu0 %v281
      %v450 = vpop.f32.mrf.mxu0
      %v451 = vadd.f32 %v368, %v450
      %452 = vmatmul.f32.gmra.mxu0 %v284
      %v453 = vpop.f32.mrf.mxu0
      %v454 = vadd.f32 %v371, %v453
      %455 = vmatmul.f32.gmra.mxu0 %v287
      %v456 = vpop.f32.mrf.mxu0
      %v457 = vadd.f32 %v374, %v456
      %458 = vmatmul.f32.gmra.mxu0 %v290
      %v459 = vpop.f32.mrf.mxu0
      %v460 = vadd.f32 %v377, %v459
      %461 = vmatmul.f32.gmra.mxu0 %v293
      %v462 = vpop.f32.mrf.mxu0
      %v463 = vadd.f32 %v380, %v462
      %464 = vmatmul.f32.gmra.mxu0 %v296
      %v465 = vpop.f32.mrf.mxu0
      %v466 = vadd.f32 %v383, %v465
      %467 = vmatmul.f32.gmra.mxu0 %v299
      %v468 = vpop.f32.mrf.mxu0
      %v469 = vadd.f32 %v386, %v468
      %470 = vdwg.mxu0
      %s471 = scalar_lea.vmem %s165, 352
      %v472 = vld [vmem:[%s471] sm:$0xff]
      %v473 = vld [vmem:[%s471 + $0x8] sm:$0xff]
      %v474 = vld [vmem:[%s471 + $0x10] sm:$0xff]
      %v475 = vld [vmem:[%s471 + $0x18] sm:$0xff]
      %v476 = vld [vmem:[%s471 + $0x20] sm:$0xff]
      %v477 = vld [vmem:[%s471 + $0x28] sm:$0xff]
      %v478 = vld [vmem:[%s471 + $0x30] sm:$0xff]
      %v479 = vld [vmem:[%s471 + $0x38] sm:$0xff]
      %v480 = vld [vmem:[%s471 + $0x40] sm:$0xff]
      %v481 = vld [vmem:[%s471 + $0x48] sm:$0xff]
      %v482 = vld [vmem:[%s471 + $0x50] sm:$0xff]
      %v483 = vld [vmem:[%s471 + $0x58] sm:$0xff]
      %v484 = vld [vmem:[%s471 + $0x60] sm:$0xff]
      %v485 = vld [vmem:[%s471 + $0x68] sm:$0xff]
      %v486 = vld [vmem:[%s471 + $0x70] sm:$0xff]
      %v487 = vld [vmem:[%s471 + $0x78] sm:$0xff]
      %v488 = vld [vmem:[%s471 + $0x80] sm:$0xff]
      %v489 = vld [vmem:[%s471 + $0x88] sm:$0xff]
      %v490 = vld [vmem:[%s471 + $0x90] sm:$0xff]
      %v491 = vld [vmem:[%s471 + $0x98] sm:$0xff]
      %v492 = vld [vmem:[%s471 + $0xa0] sm:$0xff]
      %v493 = vld [vmem:[%s471 + $0xa8] sm:$0xff]
      %v494 = vld [vmem:[%s471 + $0xb0] sm:$0xff]
      %v495 = vld [vmem:[%s471 + $0xb8] sm:$0xff]
      %v496 = vld [vmem:[%s471 + $0xc0] sm:$0xff]
      %v497 = vld [vmem:[%s471 + $0xc8] sm:$0xff]
      %v498 = vld [vmem:[%s471 + $0xd0] sm:$0xff]
      %v499 = vld [vmem:[%s471 + $0xd8] sm:$0xff]
      %v500 = vld [vmem:[%s471 + $0xe0] sm:$0xff]
      %v501 = vld [vmem:[%s471 + $0xe8] sm:$0xff]
      %v502 = vld [vmem:[%s471 + $0xf0] sm:$0xff]
      %v503 = vld [vmem:[%s471 + $0xf8] sm:$0xff]
      %v504 = vld [vmem:[%s471 + $0x100] sm:$0xff]
      %v505 = vld [vmem:[%s471 + $0x108] sm:$0xff]
      %v506 = vld [vmem:[%s471 + $0x110] sm:$0xff]
      %v507 = vld [vmem:[%s471 + $0x118] sm:$0xff]
      %v508 = vld [vmem:[%s471 + $0x120] sm:$0xff]
      %v509 = vld [vmem:[%s471 + $0x128] sm:$0xff]
      %v510 = vld [vmem:[%s471 + $0x130] sm:$0xff]
      %v511 = vld [vmem:[%s471 + $0x138] sm:$0xff]
      %v512 = vld [vmem:[%s471 + $0x140] sm:$0xff]
      %v513 = vld [vmem:[%s471 + $0x148] sm:$0xff]
      %v514 = vld [vmem:[%s471 + $0x150] sm:$0x1]
      %v515 = vld [vmem:[%s471 + $0x158] sm:$0x1]
      %v517 = vsel %vm234, %v473, 0
      %v520 = vsel %vm234, %v475, 0
      %v523 = vsel %vm234, %v477, 0
      %v526 = vsel %vm234, %v479, 0
      %v529 = vsel %vm234, %v481, 0
      %v532 = vsel %vm234, %v483, 0
      %v535 = vsel %vm234, %v485, 0
      %v538 = vsel %vm234, %v487, 0
      %v541 = vsel %vm234, %v489, 0
      %v544 = vsel %vm234, %v491, 0
      %v547 = vsel %vm234, %v493, 0
      %v550 = vsel %vm234, %v495, 0
      %v553 = vsel %vm234, %v497, 0
      %v556 = vsel %vm234, %v499, 0
      %v559 = vsel %vm234, %v501, 0
      %v562 = vsel %vm234, %v503, 0
      %v565 = vsel %vm234, %v505, 0
      %v568 = vsel %vm234, %v507, 0
      %v571 = vsel %vm234, %v509, 0
      %v574 = vsel %vm234, %v511, 0
      %v577 = vsel %vm234, %v513, 0
      %v580 = vsel %vm234, %v515, 0
      %582 = vmatpush.msra.mxu0 %v186
      %583 = vmatpush.msra.mxu0 %v185
      %584 = vmatpush.msra.mxu0 %v184
      %585 = vmatpush.msra.mxu0 %v183
      %586 = vmatpush.msra.mxu0 %v182
      %587 = vmatpush.msra.mxu0 %v181
      %588 = vmatpush.msra.mxu0 %v180
      %589 = vmatpush.msra.mxu0 %v179
      %590 = vmatpush.msra.mxu0 %v178
      %591 = vmatpush.msra.mxu0 %v177
      %592 = vmatpush.msra.mxu0 %v176
      %593 = vmatpush.msra.mxu0 %v175
      %594 = vmatpush.msra.mxu0 %v174
      %595 = vmatpush.msra.mxu0 %v173
      %596 = vmatpush.msra.mxu0 %v172
      %597 = vmatpush.msra.mxu0 %v171
      %598 = vmatmul.f32.gmra.mxu0 %v472
      %v599 = vpop.f32.mrf.mxu0
      %v600 = vadd.f32 0.0, %v599
      %601 = vmatmul.f32.gmra.mxu0 %v474
      %v602 = vpop.f32.mrf.mxu0
      %v603 = vadd.f32 0.0, %v602
      %604 = vmatmul.f32.gmra.mxu0 %v476
      %v605 = vpop.f32.mrf.mxu0
      %v606 = vadd.f32 0.0, %v605
      %607 = vmatmul.f32.gmra.mxu0 %v478
      %v608 = vpop.f32.mrf.mxu0
      %v609 = vadd.f32 0.0, %v608
      %610 = vmatmul.f32.gmra.mxu0 %v480
      %v611 = vpop.f32.mrf.mxu0
      %v612 = vadd.f32 0.0, %v611
      %613 = vmatmul.f32.gmra.mxu0 %v482
      %v614 = vpop.f32.mrf.mxu0
      %v615 = vadd.f32 0.0, %v614
      %616 = vmatmul.f32.gmra.mxu0 %v484
      %v617 = vpop.f32.mrf.mxu0
      %v618 = vadd.f32 0.0, %v617
      %619 = vmatmul.f32.gmra.mxu0 %v486
      %v620 = vpop.f32.mrf.mxu0
      %v621 = vadd.f32 0.0, %v620
      %622 = vmatmul.f32.gmra.mxu0 %v488
      %v623 = vpop.f32.mrf.mxu0
      %v624 = vadd.f32 0.0, %v623
      %625 = vmatmul.f32.gmra.mxu0 %v490
      %v626 = vpop.f32.mrf.mxu0
      %v627 = vadd.f32 0.0, %v626
      %628 = vmatmul.f32.gmra.mxu0 %v492
      %v629 = vpop.f32.mrf.mxu0
      %v630 = vadd.f32 0.0, %v629
      %631 = vmatmul.f32.gmra.mxu0 %v494
      %v632 = vpop.f32.mrf.mxu0
      %v633 = vadd.f32 0.0, %v632
      %634 = vmatmul.f32.gmra.mxu0 %v496
      %v635 = vpop.f32.mrf.mxu0
      %v636 = vadd.f32 0.0, %v635
      %637 = vmatmul.f32.gmra.mxu0 %v498
      %v638 = vpop.f32.mrf.mxu0
      %v639 = vadd.f32 0.0, %v638
      %640 = vmatmul.f32.gmra.mxu0 %v500
      %v641 = vpop.f32.mrf.mxu0
      %v642 = vadd.f32 0.0, %v641
      %643 = vmatmul.f32.gmra.mxu0 %v502
      %v644 = vpop.f32.mrf.mxu0
      %v645 = vadd.f32 0.0, %v644
      %646 = vmatmul.f32.gmra.mxu0 %v504
      %v647 = vpop.f32.mrf.mxu0
      %v648 = vadd.f32 0.0, %v647
      %649 = vmatmul.f32.gmra.mxu0 %v506
      %v650 = vpop.f32.mrf.mxu0
      %v651 = vadd.f32 0.0, %v650
      %652 = vmatmul.f32.gmra.mxu0 %v508
      %v653 = vpop.f32.mrf.mxu0
      %v654 = vadd.f32 0.0, %v653
      %655 = vmatmul.f32.gmra.mxu0 %v510
      %v656 = vpop.f32.mrf.mxu0
      %v657 = vadd.f32 0.0, %v656
      %658 = vmatmul.f32.gmra.mxu0 %v512
      %v659 = vpop.f32.mrf.mxu0
      %v660 = vadd.f32 0.0, %v659
      %661 = vmatmul.f32.gmra.mxu0 %v514
      %v662 = vpop.f32.mrf.mxu0
      %v663 = vadd.f32 0.0, %v662
      %664 = vdwg.mxu0
      %665 = vmatpush.msra.mxu0 0.0
      %666 = vmatpush.msra.mxu0 0.0
      %667 = vmatpush.msra.mxu0 0.0
      %668 = vmatpush.msra.mxu0 0.0
      %669 = vmatpush.msra.mxu0 0.0
      %670 = vmatpush.msra.mxu0 0.0
      %671 = vmatpush.msra.mxu0 0.0
      %672 = vmatpush.msra.mxu0 0.0
      %673 = vmatpush.msra.mxu0 0.0
      %674 = vmatpush.msra.mxu0 0.0
      %675 = vmatpush.msra.mxu0 0.0
      %676 = vmatpush.msra.mxu0 0.0
      %677 = vmatpush.msra.mxu0 0.0
      %678 = vmatpush.msra.mxu0 %v303
      %679 = vmatpush.msra.mxu0 %v188
      %680 = vmatpush.msra.mxu0 %v187
      %681 = vmatmul.f32.gmra.mxu0 %v517
      %v682 = vpop.f32.mrf.mxu0
      %v683 = vadd.f32 %v600, %v682
      %684 = vmatmul.f32.gmra.mxu0 %v520
      %v685 = vpop.f32.mrf.mxu0
      %v686 = vadd.f32 %v603, %v685
      %687 = vmatmul.f32.gmra.mxu0 %v523
      %v688 = vpop.f32.mrf.mxu0
      %v689 = vadd.f32 %v606, %v688
      %690 = vmatmul.f32.gmra.mxu0 %v526
      %v691 = vpop.f32.mrf.mxu0
      %v692 = vadd.f32 %v609, %v691
      %693 = vmatmul.f32.gmra.mxu0 %v529
      %v694 = vpop.f32.mrf.mxu0
      %v695 = vadd.f32 %v612, %v694
      %696 = vmatmul.f32.gmra.mxu0 %v532
      %v697 = vpop.f32.mrf.mxu0
      %v698 = vadd.f32 %v615, %v697
      %699 = vmatmul.f32.gmra.mxu0 %v535
      %v700 = vpop.f32.mrf.mxu0
      %v701 = vadd.f32 %v618, %v700
      %702 = vmatmul.f32.gmra.mxu0 %v538
      %v703 = vpop.f32.mrf.mxu0
      %v704 = vadd.f32 %v621, %v703
      %705 = vmatmul.f32.gmra.mxu0 %v541
      %v706 = vpop.f32.mrf.mxu0
      %v707 = vadd.f32 %v624, %v706
      %708 = vmatmul.f32.gmra.mxu0 %v544
      %v709 = vpop.f32.mrf.mxu0
      %v710 = vadd.f32 %v627, %v709
      %711 = vmatmul.f32.gmra.mxu0 %v547
      %v712 = vpop.f32.mrf.mxu0
      %v713 = vadd.f32 %v630, %v712
      %714 = vmatmul.f32.gmra.mxu0 %v550
      %v715 = vpop.f32.mrf.mxu0
      %v716 = vadd.f32 %v633, %v715
      %717 = vmatmul.f32.gmra.mxu0 %v553
      %v718 = vpop.f32.mrf.mxu0
      %v719 = vadd.f32 %v636, %v718
      %720 = vmatmul.f32.gmra.mxu0 %v556
      %v721 = vpop.f32.mrf.mxu0
      %v722 = vadd.f32 %v639, %v721
      %723 = vmatmul.f32.gmra.mxu0 %v559
      %v724 = vpop.f32.mrf.mxu0
      %v725 = vadd.f32 %v642, %v724
      %726 = vmatmul.f32.gmra.mxu0 %v562
      %v727 = vpop.f32.mrf.mxu0
      %v728 = vadd.f32 %v645, %v727
      %729 = vmatmul.f32.gmra.mxu0 %v565
      %v730 = vpop.f32.mrf.mxu0
      %v731 = vadd.f32 %v648, %v730
      %732 = vmatmul.f32.gmra.mxu0 %v568
      %v733 = vpop.f32.mrf.mxu0
      %v734 = vadd.f32 %v651, %v733
      %735 = vmatmul.f32.gmra.mxu0 %v571
      %v736 = vpop.f32.mrf.mxu0
      %v737 = vadd.f32 %v654, %v736
      %738 = vmatmul.f32.gmra.mxu0 %v574
      %v739 = vpop.f32.mrf.mxu0
      %v740 = vadd.f32 %v657, %v739
      %741 = vmatmul.f32.gmra.mxu0 %v577
      %v742 = vpop.f32.mrf.mxu0
      %v743 = vadd.f32 %v660, %v742
      %744 = vmatmul.f32.gmra.mxu0 %v580
      %v745 = vpop.f32.mrf.mxu0
      %v746 = vadd.f32 %v663, %v745
      %747 = vdwg.mxu0
      %s748 = scalar_lea.vmem %s165, 704
      %v749 = vld [vmem:[%s748] sm:$0xff]
      %v750 = vld [vmem:[%s748 + $0x8] sm:$0xff]
      %v751 = vld [vmem:[%s748 + $0x10] sm:$0xff]
      %v752 = vld [vmem:[%s748 + $0x18] sm:$0xff]
      %v753 = vld [vmem:[%s748 + $0x20] sm:$0xff]
      %v754 = vld [vmem:[%s748 + $0x28] sm:$0xff]
      %v755 = vld [vmem:[%s748 + $0x30] sm:$0xff]
      %v756 = vld [vmem:[%s748 + $0x38] sm:$0xff]
      %v757 = vld [vmem:[%s748 + $0x40] sm:$0xff]
      %v758 = vld [vmem:[%s748 + $0x48] sm:$0xff]
      %v759 = vld [vmem:[%s748 + $0x50] sm:$0xff]
      %v760 = vld [vmem:[%s748 + $0x58] sm:$0xff]
      %v761 = vld [vmem:[%s748 + $0x60] sm:$0xff]
      %v762 = vld [vmem:[%s748 + $0x68] sm:$0xff]
      %v763 = vld [vmem:[%s748 + $0x70] sm:$0xff]
      %v764 = vld [vmem:[%s748 + $0x78] sm:$0xff]
      %v765 = vld [vmem:[%s748 + $0x80] sm:$0xff]
      %v766 = vld [vmem:[%s748 + $0x88] sm:$0xff]
      %v767 = vld [vmem:[%s748 + $0x90] sm:$0xff]
      %v768 = vld [vmem:[%s748 + $0x98] sm:$0xff]
      %v769 = vld [vmem:[%s748 + $0xa0] sm:$0xff]
      %v770 = vld [vmem:[%s748 + $0xa8] sm:$0xff]
      %v771 = vld [vmem:[%s748 + $0xb0] sm:$0xff]
      %v772 = vld [vmem:[%s748 + $0xb8] sm:$0xff]
      %v773 = vld [vmem:[%s748 + $0xc0] sm:$0xff]
      %v774 = vld [vmem:[%s748 + $0xc8] sm:$0xff]
      %v775 = vld [vmem:[%s748 + $0xd0] sm:$0xff]
      %v776 = vld [vmem:[%s748 + $0xd8] sm:$0xff]
      %v777 = vld [vmem:[%s748 + $0xe0] sm:$0xff]
      %v778 = vld [vmem:[%s748 + $0xe8] sm:$0xff]
      %v779 = vld [vmem:[%s748 + $0xf0] sm:$0xff]
      %v780 = vld [vmem:[%s748 + $0xf8] sm:$0xff]
      %v781 = vld [vmem:[%s748 + $0x100] sm:$0xff]
      %v782 = vld [vmem:[%s748 + $0x108] sm:$0xff]
      %v783 = vld [vmem:[%s748 + $0x110] sm:$0xff]
      %v784 = vld [vmem:[%s748 + $0x118] sm:$0xff]
      %v785 = vld [vmem:[%s748 + $0x120] sm:$0xff]
      %v786 = vld [vmem:[%s748 + $0x128] sm:$0xff]
      %v787 = vld [vmem:[%s748 + $0x130] sm:$0xff]
      %v788 = vld [vmem:[%s748 + $0x138] sm:$0xff]
      %v789 = vld [vmem:[%s748 + $0x140] sm:$0xff]
      %v790 = vld [vmem:[%s748 + $0x148] sm:$0xff]
      %v791 = vld [vmem:[%s748 + $0x150] sm:$0x1]
      %v792 = vld [vmem:[%s748 + $0x158] sm:$0x1]
      %v794 = vsel %vm234, %v750, 0
      %v797 = vsel %vm234, %v752, 0
      %v800 = vsel %vm234, %v754, 0
      %v803 = vsel %vm234, %v756, 0
      %v806 = vsel %vm234, %v758, 0
      %v809 = vsel %vm234, %v760, 0
      %v812 = vsel %vm234, %v762, 0
      %v815 = vsel %vm234, %v764, 0
      %v818 = vsel %vm234, %v766, 0
      %v821 = vsel %vm234, %v768, 0
      %v824 = vsel %vm234, %v770, 0
      %v827 = vsel %vm234, %v772, 0
      %v830 = vsel %vm234, %v774, 0
      %v833 = vsel %vm234, %v776, 0
      %v836 = vsel %vm234, %v778, 0
      %v839 = vsel %vm234, %v780, 0
      %v842 = vsel %vm234, %v782, 0
      %v845 = vsel %vm234, %v784, 0
      %v848 = vsel %vm234, %v786, 0
      %v851 = vsel %vm234, %v788, 0
      %v854 = vsel %vm234, %v790, 0
      %v857 = vsel %vm234, %v792, 0
      %859 = vmatpush.msra.mxu0 %v186
      %860 = vmatpush.msra.mxu0 %v185
      %861 = vmatpush.msra.mxu0 %v184
      %862 = vmatpush.msra.mxu0 %v183
      %863 = vmatpush.msra.mxu0 %v182
      %864 = vmatpush.msra.mxu0 %v181
      %865 = vmatpush.msra.mxu0 %v180
      %866 = vmatpush.msra.mxu0 %v179
      %867 = vmatpush.msra.mxu0 %v178
      %868 = vmatpush.msra.mxu0 %v177
      %869 = vmatpush.msra.mxu0 %v176
      %870 = vmatpush.msra.mxu0 %v175
      %871 = vmatpush.msra.mxu0 %v174
      %872 = vmatpush.msra.mxu0 %v173
      %873 = vmatpush.msra.mxu0 %v172
      %874 = vmatpush.msra.mxu0 %v171
      %875 = vmatmul.f32.gmra.mxu0 %v749
      %v876 = vpop.f32.mrf.mxu0
      %v877 = vadd.f32 0.0, %v876
      %878 = vmatmul.f32.gmra.mxu0 %v751
      %v879 = vpop.f32.mrf.mxu0
      %v880 = vadd.f32 0.0, %v879
      %881 = vmatmul.f32.gmra.mxu0 %v753
      %v882 = vpop.f32.mrf.mxu0
      %v883 = vadd.f32 0.0, %v882
      %884 = vmatmul.f32.gmra.mxu0 %v755
      %v885 = vpop.f32.mrf.mxu0
      %v886 = vadd.f32 0.0, %v885
      %887 = vmatmul.f32.gmra.mxu0 %v757
      %v888 = vpop.f32.mrf.mxu0
      %v889 = vadd.f32 0.0, %v888
      %890 = vmatmul.f32.gmra.mxu0 %v759
      %v891 = vpop.f32.mrf.mxu0
      %v892 = vadd.f32 0.0, %v891
      %893 = vmatmul.f32.gmra.mxu0 %v761
      %v894 = vpop.f32.mrf.mxu0
      %v895 = vadd.f32 0.0, %v894
      %896 = vmatmul.f32.gmra.mxu0 %v763
      %v897 = vpop.f32.mrf.mxu0
      %v898 = vadd.f32 0.0, %v897
      %899 = vmatmul.f32.gmra.mxu0 %v765
      %v900 = vpop.f32.mrf.mxu0
      %v901 = vadd.f32 0.0, %v900
      %902 = vmatmul.f32.gmra.mxu0 %v767
      %v903 = vpop.f32.mrf.mxu0
      %v904 = vadd.f32 0.0, %v903
      %905 = vmatmul.f32.gmra.mxu0 %v769
      %v906 = vpop.f32.mrf.mxu0
      %v907 = vadd.f32 0.0, %v906
      %908 = vmatmul.f32.gmra.mxu0 %v771
      %v909 = vpop.f32.mrf.mxu0
      %v910 = vadd.f32 0.0, %v909
      %911 = vmatmul.f32.gmra.mxu0 %v773
      %v912 = vpop.f32.mrf.mxu0
      %v913 = vadd.f32 0.0, %v912
      %914 = vmatmul.f32.gmra.mxu0 %v775
      %v915 = vpop.f32.mrf.mxu0
      %v916 = vadd.f32 0.0, %v915
      %917 = vmatmul.f32.gmra.mxu0 %v777
      %v918 = vpop.f32.mrf.mxu0
      %v919 = vadd.f32 0.0, %v918
      %920 = vmatmul.f32.gmra.mxu0 %v779
      %v921 = vpop.f32.mrf.mxu0
      %v922 = vadd.f32 0.0, %v921
      %923 = vmatmul.f32.gmra.mxu0 %v781
      %v924 = vpop.f32.mrf.mxu0
      %v925 = vadd.f32 0.0, %v924
      %926 = vmatmul.f32.gmra.mxu0 %v783
      %v927 = vpop.f32.mrf.mxu0
      %v928 = vadd.f32 0.0, %v927
      %929 = vmatmul.f32.gmra.mxu0 %v785
      %v930 = vpop.f32.mrf.mxu0
      %v931 = vadd.f32 0.0, %v930
      %932 = vmatmul.f32.gmra.mxu0 %v787
      %v933 = vpop.f32.mrf.mxu0
      %v934 = vadd.f32 0.0, %v933
      %935 = vmatmul.f32.gmra.mxu0 %v789
      %v936 = vpop.f32.mrf.mxu0
      %v937 = vadd.f32 0.0, %v936
      %938 = vmatmul.f32.gmra.mxu0 %v791
      %v939 = vpop.f32.mrf.mxu0
      %v940 = vadd.f32 0.0, %v939
      %941 = vdwg.mxu0
      %942 = vmatpush.msra.mxu0 0.0
      %943 = vmatpush.msra.mxu0 0.0
      %944 = vmatpush.msra.mxu0 0.0
      %945 = vmatpush.msra.mxu0 0.0
      %946 = vmatpush.msra.mxu0 0.0
      %947 = vmatpush.msra.mxu0 0.0
      %948 = vmatpush.msra.mxu0 0.0
      %949 = vmatpush.msra.mxu0 0.0
      %950 = vmatpush.msra.mxu0 0.0
      %951 = vmatpush.msra.mxu0 0.0
      %952 = vmatpush.msra.mxu0 0.0
      %953 = vmatpush.msra.mxu0 0.0
      %954 = vmatpush.msra.mxu0 0.0
      %955 = vmatpush.msra.mxu0 %v303
      %956 = vmatpush.msra.mxu0 %v188
      %957 = vmatpush.msra.mxu0 %v187
      %958 = vmatmul.f32.gmra.mxu0 %v794
      %v959 = vpop.f32.mrf.mxu0
      %v960 = vadd.f32 %v877, %v959
      %961 = vmatmul.f32.gmra.mxu0 %v797
      %v962 = vpop.f32.mrf.mxu0
      %v963 = vadd.f32 %v880, %v962
      %964 = vmatmul.f32.gmra.mxu0 %v800
      %v965 = vpop.f32.mrf.mxu0
      %v966 = vadd.f32 %v883, %v965
      %967 = vmatmul.f32.gmra.mxu0 %v803
      %v968 = vpop.f32.mrf.mxu0
      %v969 = vadd.f32 %v886, %v968
      %970 = vmatmul.f32.gmra.mxu0 %v806
      %v971 = vpop.f32.mrf.mxu0
      %v972 = vadd.f32 %v889, %v971
      %973 = vmatmul.f32.gmra.mxu0 %v809
      %v974 = vpop.f32.mrf.mxu0
      %v975 = vadd.f32 %v892, %v974
      %976 = vmatmul.f32.gmra.mxu0 %v812
      %v977 = vpop.f32.mrf.mxu0
      %v978 = vadd.f32 %v895, %v977
      %979 = vmatmul.f32.gmra.mxu0 %v815
      %v980 = vpop.f32.mrf.mxu0
      %v981 = vadd.f32 %v898, %v980
      %982 = vmatmul.f32.gmra.mxu0 %v818
      %v983 = vpop.f32.mrf.mxu0
      %v984 = vadd.f32 %v901, %v983
      %985 = vmatmul.f32.gmra.mxu0 %v821
      %v986 = vpop.f32.mrf.mxu0
      %v987 = vadd.f32 %v904, %v986
      %988 = vmatmul.f32.gmra.mxu0 %v824
      %v989 = vpop.f32.mrf.mxu0
      %v990 = vadd.f32 %v907, %v989
      %991 = vmatmul.f32.gmra.mxu0 %v827
      %v992 = vpop.f32.mrf.mxu0
      %v993 = vadd.f32 %v910, %v992
      %994 = vmatmul.f32.gmra.mxu0 %v830
      %v995 = vpop.f32.mrf.mxu0
      %v996 = vadd.f32 %v913, %v995
      %997 = vmatmul.f32.gmra.mxu0 %v833
      %v998 = vpop.f32.mrf.mxu0
      %v999 = vadd.f32 %v916, %v998
      %1000 = vmatmul.f32.gmra.mxu0 %v836
      %v1001 = vpop.f32.mrf.mxu0
      %v1002 = vadd.f32 %v919, %v1001
      %1003 = vmatmul.f32.gmra.mxu0 %v839
      %v1004 = vpop.f32.mrf.mxu0
      %v1005 = vadd.f32 %v922, %v1004
      %1006 = vmatmul.f32.gmra.mxu0 %v842
      %v1007 = vpop.f32.mrf.mxu0
      %v1008 = vadd.f32 %v925, %v1007
      %1009 = vmatmul.f32.gmra.mxu0 %v845
      %v1010 = vpop.f32.mrf.mxu0
      %v1011 = vadd.f32 %v928, %v1010
      %1012 = vmatmul.f32.gmra.mxu0 %v848
      %v1013 = vpop.f32.mrf.mxu0
      %v1014 = vadd.f32 %v931, %v1013
      %1015 = vmatmul.f32.gmra.mxu0 %v851
      %v1016 = vpop.f32.mrf.mxu0
      %v1017 = vadd.f32 %v934, %v1016
      %1018 = vmatmul.f32.gmra.mxu0 %v854
      %v1019 = vpop.f32.mrf.mxu0
      %v1020 = vadd.f32 %v937, %v1019
      %1021 = vmatmul.f32.gmra.mxu0 %v857
      %v1022 = vpop.f32.mrf.mxu0
      %v1023 = vadd.f32 %v940, %v1022
      %1024 = vdwg.mxu0
      %s1025 = scalar_lea.vmem %s165, 1056
      %v1026 = vld [vmem:[%s1025] sm:$0xff]
      %v1027 = vld [vmem:[%s1025 + $0x8] sm:$0xff]
      %v1028 = vld [vmem:[%s1025 + $0x10] sm:$0xff]
      %v1029 = vld [vmem:[%s1025 + $0x18] sm:$0xff]
      %v1030 = vld [vmem:[%s1025 + $0x20] sm:$0xff]
      %v1031 = vld [vmem:[%s1025 + $0x28] sm:$0xff]
      %v1032 = vld [vmem:[%s1025 + $0x30] sm:$0xff]
      %v1033 = vld [vmem:[%s1025 + $0x38] sm:$0xff]
      %v1034 = vld [vmem:[%s1025 + $0x40] sm:$0xff]
      %v1035 = vld [vmem:[%s1025 + $0x48] sm:$0xff]
      %v1036 = vld [vmem:[%s1025 + $0x50] sm:$0xff]
      %v1037 = vld [vmem:[%s1025 + $0x58] sm:$0xff]
      %v1038 = vld [vmem:[%s1025 + $0x60] sm:$0xff]
      %v1039 = vld [vmem:[%s1025 + $0x68] sm:$0xff]
      %v1040 = vld [vmem:[%s1025 + $0x70] sm:$0xff]
      %v1041 = vld [vmem:[%s1025 + $0x78] sm:$0xff]
      %v1042 = vld [vmem:[%s1025 + $0x80] sm:$0xff]
      %v1043 = vld [vmem:[%s1025 + $0x88] sm:$0xff]
      %v1044 = vld [vmem:[%s1025 + $0x90] sm:$0xff]
      %v1045 = vld [vmem:[%s1025 + $0x98] sm:$0xff]
      %v1046 = vld [vmem:[%s1025 + $0xa0] sm:$0xff]
      %v1047 = vld [vmem:[%s1025 + $0xa8] sm:$0xff]
      %v1048 = vld [vmem:[%s1025 + $0xb0] sm:$0xff]
      %v1049 = vld [vmem:[%s1025 + $0xb8] sm:$0xff]
      %v1050 = vld [vmem:[%s1025 + $0xc0] sm:$0xff]
      %v1051 = vld [vmem:[%s1025 + $0xc8] sm:$0xff]
      %v1052 = vld [vmem:[%s1025 + $0xd0] sm:$0xff]
      %v1053 = vld [vmem:[%s1025 + $0xd8] sm:$0xff]
      %v1054 = vld [vmem:[%s1025 + $0xe0] sm:$0xff]
      %v1055 = vld [vmem:[%s1025 + $0xe8] sm:$0xff]
      %v1056 = vld [vmem:[%s1025 + $0xf0] sm:$0xff]
      %v1057 = vld [vmem:[%s1025 + $0xf8] sm:$0xff]
      %v1058 = vld [vmem:[%s1025 + $0x100] sm:$0xff]
      %v1059 = vld [vmem:[%s1025 + $0x108] sm:$0xff]
      %v1060 = vld [vmem:[%s1025 + $0x110] sm:$0xff]
      %v1061 = vld [vmem:[%s1025 + $0x118] sm:$0xff]
      %v1062 = vld [vmem:[%s1025 + $0x120] sm:$0xff]
      %v1063 = vld [vmem:[%s1025 + $0x128] sm:$0xff]
      %v1064 = vld [vmem:[%s1025 + $0x130] sm:$0xff]
      %v1065 = vld [vmem:[%s1025 + $0x138] sm:$0xff]
      %v1066 = vld [vmem:[%s1025 + $0x140] sm:$0xff]
      %v1067 = vld [vmem:[%s1025 + $0x148] sm:$0xff]
      %v1068 = vld [vmem:[%s1025 + $0x150] sm:$0x1]
      %v1069 = vld [vmem:[%s1025 + $0x158] sm:$0x1]
      %v1071 = vsel %vm234, %v1027, 0
      %v1074 = vsel %vm234, %v1029, 0
      %v1077 = vsel %vm234, %v1031, 0
      %v1080 = vsel %vm234, %v1033, 0
      %v1083 = vsel %vm234, %v1035, 0
      %v1086 = vsel %vm234, %v1037, 0
      %v1089 = vsel %vm234, %v1039, 0
      %v1092 = vsel %vm234, %v1041, 0
      %v1095 = vsel %vm234, %v1043, 0
      %v1098 = vsel %vm234, %v1045, 0
      %v1101 = vsel %vm234, %v1047, 0
      %v1104 = vsel %vm234, %v1049, 0
      %v1107 = vsel %vm234, %v1051, 0
      %v1110 = vsel %vm234, %v1053, 0
      %v1113 = vsel %vm234, %v1055, 0
      %v1116 = vsel %vm234, %v1057, 0
      %v1119 = vsel %vm234, %v1059, 0
      %v1122 = vsel %vm234, %v1061, 0
      %v1125 = vsel %vm234, %v1063, 0
      %v1128 = vsel %vm234, %v1065, 0
      %v1131 = vsel %vm234, %v1067, 0
      %v1134 = vsel %vm234, %v1069, 0
      %1136 = vmatpush.msra.mxu0 %v186
      %1137 = vmatpush.msra.mxu0 %v185
      %1138 = vmatpush.msra.mxu0 %v184
      %1139 = vmatpush.msra.mxu0 %v183
      %1140 = vmatpush.msra.mxu0 %v182
      %1141 = vmatpush.msra.mxu0 %v181
      %1142 = vmatpush.msra.mxu0 %v180
      %1143 = vmatpush.msra.mxu0 %v179
      %1144 = vmatpush.msra.mxu0 %v178
      %1145 = vmatpush.msra.mxu0 %v177
      %1146 = vmatpush.msra.mxu0 %v176
      %1147 = vmatpush.msra.mxu0 %v175
      %1148 = vmatpush.msra.mxu0 %v174
      %1149 = vmatpush.msra.mxu0 %v173
      %1150 = vmatpush.msra.mxu0 %v172
      %1151 = vmatpush.msra.mxu0 %v171
      %1152 = vmatmul.f32.gmra.mxu0 %v1026
      %v1153 = vpop.f32.mrf.mxu0
      %v1154 = vadd.f32 0.0, %v1153
      %1155 = vmatmul.f32.gmra.mxu0 %v1028
      %v1156 = vpop.f32.mrf.mxu0
      %v1157 = vadd.f32 0.0, %v1156
      %1158 = vmatmul.f32.gmra.mxu0 %v1030
      %v1159 = vpop.f32.mrf.mxu0
      %v1160 = vadd.f32 0.0, %v1159
      %1161 = vmatmul.f32.gmra.mxu0 %v1032
      %v1162 = vpop.f32.mrf.mxu0
      %v1163 = vadd.f32 0.0, %v1162
      %1164 = vmatmul.f32.gmra.mxu0 %v1034
      %v1165 = vpop.f32.mrf.mxu0
      %v1166 = vadd.f32 0.0, %v1165
      %1167 = vmatmul.f32.gmra.mxu0 %v1036
      %v1168 = vpop.f32.mrf.mxu0
      %v1169 = vadd.f32 0.0, %v1168
      %1170 = vmatmul.f32.gmra.mxu0 %v1038
      %v1171 = vpop.f32.mrf.mxu0
      %v1172 = vadd.f32 0.0, %v1171
      %1173 = vmatmul.f32.gmra.mxu0 %v1040
      %v1174 = vpop.f32.mrf.mxu0
      %v1175 = vadd.f32 0.0, %v1174
      %1176 = vmatmul.f32.gmra.mxu0 %v1042
      %v1177 = vpop.f32.mrf.mxu0
      %v1178 = vadd.f32 0.0, %v1177
      %1179 = vmatmul.f32.gmra.mxu0 %v1044
      %v1180 = vpop.f32.mrf.mxu0
      %v1181 = vadd.f32 0.0, %v1180
      %1182 = vmatmul.f32.gmra.mxu0 %v1046
      %v1183 = vpop.f32.mrf.mxu0
      %v1184 = vadd.f32 0.0, %v1183
      %1185 = vmatmul.f32.gmra.mxu0 %v1048
      %v1186 = vpop.f32.mrf.mxu0
      %v1187 = vadd.f32 0.0, %v1186
      %1188 = vmatmul.f32.gmra.mxu0 %v1050
      %v1189 = vpop.f32.mrf.mxu0
      %v1190 = vadd.f32 0.0, %v1189
      %1191 = vmatmul.f32.gmra.mxu0 %v1052
      %v1192 = vpop.f32.mrf.mxu0
      %v1193 = vadd.f32 0.0, %v1192
      %1194 = vmatmul.f32.gmra.mxu0 %v1054
      %v1195 = vpop.f32.mrf.mxu0
      %v1196 = vadd.f32 0.0, %v1195
      %1197 = vmatmul.f32.gmra.mxu0 %v1056
      %v1198 = vpop.f32.mrf.mxu0
      %v1199 = vadd.f32 0.0, %v1198
      %1200 = vmatmul.f32.gmra.mxu0 %v1058
      %v1201 = vpop.f32.mrf.mxu0
      %v1202 = vadd.f32 0.0, %v1201
      %1203 = vmatmul.f32.gmra.mxu0 %v1060
      %v1204 = vpop.f32.mrf.mxu0
      %v1205 = vadd.f32 0.0, %v1204
      %1206 = vmatmul.f32.gmra.mxu0 %v1062
      %v1207 = vpop.f32.mrf.mxu0
      %v1208 = vadd.f32 0.0, %v1207
      %1209 = vmatmul.f32.gmra.mxu0 %v1064
      %v1210 = vpop.f32.mrf.mxu0
      %v1211 = vadd.f32 0.0, %v1210
      %1212 = vmatmul.f32.gmra.mxu0 %v1066
      %v1213 = vpop.f32.mrf.mxu0
      %v1214 = vadd.f32 0.0, %v1213
      %1215 = vmatmul.f32.gmra.mxu0 %v1068
      %v1216 = vpop.f32.mrf.mxu0
      %v1217 = vadd.f32 0.0, %v1216
      %1218 = vdwg.mxu0
      %1219 = vmatpush.msra.mxu0 0.0
      %1220 = vmatpush.msra.mxu0 0.0
      %1221 = vmatpush.msra.mxu0 0.0
      %1222 = vmatpush.msra.mxu0 0.0
      %1223 = vmatpush.msra.mxu0 0.0
      %1224 = vmatpush.msra.mxu0 0.0
      %1225 = vmatpush.msra.mxu0 0.0
      %1226 = vmatpush.msra.mxu0 0.0
      %1227 = vmatpush.msra.mxu0 0.0
      %1228 = vmatpush.msra.mxu0 0.0
      %1229 = vmatpush.msra.mxu0 0.0
      %1230 = vmatpush.msra.mxu0 0.0
      %1231 = vmatpush.msra.mxu0 0.0
      %1232 = vmatpush.msra.mxu0 %v303
      %1233 = vmatpush.msra.mxu0 %v188
      %1234 = vmatpush.msra.mxu0 %v187
      %1235 = vmatmul.f32.gmra.mxu0 %v1071
      %v1236 = vpop.f32.mrf.mxu0
      %v1237 = vadd.f32 %v1154, %v1236
      %1238 = vmatmul.f32.gmra.mxu0 %v1074
      %v1239 = vpop.f32.mrf.mxu0
      %v1240 = vadd.f32 %v1157, %v1239
      %1241 = vmatmul.f32.gmra.mxu0 %v1077
      %v1242 = vpop.f32.mrf.mxu0
      %v1243 = vadd.f32 %v1160, %v1242
      %1244 = vmatmul.f32.gmra.mxu0 %v1080
      %v1245 = vpop.f32.mrf.mxu0
      %v1246 = vadd.f32 %v1163, %v1245
      %1247 = vmatmul.f32.gmra.mxu0 %v1083
      %v1248 = vpop.f32.mrf.mxu0
      %v1249 = vadd.f32 %v1166, %v1248
      %1250 = vmatmul.f32.gmra.mxu0 %v1086
      %v1251 = vpop.f32.mrf.mxu0
      %v1252 = vadd.f32 %v1169, %v1251
      %1253 = vmatmul.f32.gmra.mxu0 %v1089
      %v1254 = vpop.f32.mrf.mxu0
      %v1255 = vadd.f32 %v1172, %v1254
      %1256 = vmatmul.f32.gmra.mxu0 %v1092
      %v1257 = vpop.f32.mrf.mxu0
      %v1258 = vadd.f32 %v1175, %v1257
      %1259 = vmatmul.f32.gmra.mxu0 %v1095
      %v1260 = vpop.f32.mrf.mxu0
      %v1261 = vadd.f32 %v1178, %v1260
      %1262 = vmatmul.f32.gmra.mxu0 %v1098
      %v1263 = vpop.f32.mrf.mxu0
      %v1264 = vadd.f32 %v1181, %v1263
      %1265 = vmatmul.f32.gmra.mxu0 %v1101
      %v1266 = vpop.f32.mrf.mxu0
      %v1267 = vadd.f32 %v1184, %v1266
      %1268 = vmatmul.f32.gmra.mxu0 %v1104
      %v1269 = vpop.f32.mrf.mxu0
      %v1270 = vadd.f32 %v1187, %v1269
      %1271 = vmatmul.f32.gmra.mxu0 %v1107
      %v1272 = vpop.f32.mrf.mxu0
      %v1273 = vadd.f32 %v1190, %v1272
      %1274 = vmatmul.f32.gmra.mxu0 %v1110
      %v1275 = vpop.f32.mrf.mxu0
      %v1276 = vadd.f32 %v1193, %v1275
      %1277 = vmatmul.f32.gmra.mxu0 %v1113
      %v1278 = vpop.f32.mrf.mxu0
      %v1279 = vadd.f32 %v1196, %v1278
      %1280 = vmatmul.f32.gmra.mxu0 %v1116
      %v1281 = vpop.f32.mrf.mxu0
      %v1282 = vadd.f32 %v1199, %v1281
      %1283 = vmatmul.f32.gmra.mxu0 %v1119
      %v1284 = vpop.f32.mrf.mxu0
      %v1285 = vadd.f32 %v1202, %v1284
      %1286 = vmatmul.f32.gmra.mxu0 %v1122
      %v1287 = vpop.f32.mrf.mxu0
      %v1288 = vadd.f32 %v1205, %v1287
      %1289 = vmatmul.f32.gmra.mxu0 %v1125
      %v1290 = vpop.f32.mrf.mxu0
      %v1291 = vadd.f32 %v1208, %v1290
      %1292 = vmatmul.f32.gmra.mxu0 %v1128
      %v1293 = vpop.f32.mrf.mxu0
      %v1294 = vadd.f32 %v1211, %v1293
      %1295 = vmatmul.f32.gmra.mxu0 %v1131
      %v1296 = vpop.f32.mrf.mxu0
      %v1297 = vadd.f32 %v1214, %v1296
      %1298 = vmatmul.f32.gmra.mxu0 %v1134
      %v1299 = vpop.f32.mrf.mxu0
      %v1300 = vadd.f32 %v1217, %v1299
      %1301 = vdwg.mxu0
      %v1302 = vmax.f32 %v406, %v683
      %v1303 = vmax.f32 %v409, %v686
      %v1304 = vmax.f32 %v412, %v689
      %v1305 = vmax.f32 %v415, %v692
      %v1306 = vmax.f32 %v418, %v695
      %v1307 = vmax.f32 %v421, %v698
      %v1308 = vmax.f32 %v424, %v701
      %v1309 = vmax.f32 %v427, %v704
      %v1310 = vmax.f32 %v430, %v707
      %v1311 = vmax.f32 %v433, %v710
      %v1312 = vmax.f32 %v436, %v713
      %v1313 = vmax.f32 %v439, %v716
      %v1314 = vmax.f32 %v442, %v719
      %v1315 = vmax.f32 %v445, %v722
      %v1316 = vmax.f32 %v448, %v725
      %v1317 = vmax.f32 %v451, %v728
      %v1318 = vmax.f32 %v454, %v731
      %v1319 = vmax.f32 %v457, %v734
      %v1320 = vmax.f32 %v460, %v737
      %v1321 = vmax.f32 %v463, %v740
      %v1322 = vmax.f32 %v466, %v743
      %v1323 = vmax.f32 %v469, %v746
      %v1324 = vmax.f32 %v960, %v1237
      %v1325 = vmax.f32 %v963, %v1240
      %v1326 = vmax.f32 %v966, %v1243
      %v1327 = vmax.f32 %v969, %v1246
      %v1328 = vmax.f32 %v972, %v1249
      %v1329 = vmax.f32 %v975, %v1252
      %v1330 = vmax.f32 %v978, %v1255
      %v1331 = vmax.f32 %v981, %v1258
      %v1332 = vmax.f32 %v984, %v1261
      %v1333 = vmax.f32 %v987, %v1264
      %v1334 = vmax.f32 %v990, %v1267
      %v1335 = vmax.f32 %v993, %v1270
      %v1336 = vmax.f32 %v996, %v1273
      %v1337 = vmax.f32 %v999, %v1276
      %v1338 = vmax.f32 %v1002, %v1279
      %v1339 = vmax.f32 %v1005, %v1282
      %v1340 = vmax.f32 %v1008, %v1285
      %v1341 = vmax.f32 %v1011, %v1288
      %v1342 = vmax.f32 %v1014, %v1291
      %v1343 = vmax.f32 %v1017, %v1294
      %v1344 = vmax.f32 %v1020, %v1297
      %v1345 = vmax.f32 %v1023, %v1300
      %v1346 = vmax.f32 %v1302, %v1324
      %v1347 = vmax.f32 %v1303, %v1325
      %v1348 = vmax.f32 %v1304, %v1326
      %v1349 = vmax.f32 %v1305, %v1327
      %v1350 = vmax.f32 %v1306, %v1328
      %v1351 = vmax.f32 %v1307, %v1329
      %v1352 = vmax.f32 %v1308, %v1330
      %v1353 = vmax.f32 %v1309, %v1331
      %v1354 = vmax.f32 %v1310, %v1332
      %v1355 = vmax.f32 %v1311, %v1333
      %v1356 = vmax.f32 %v1312, %v1334
      %v1357 = vmax.f32 %v1313, %v1335
      %v1358 = vmax.f32 %v1314, %v1336
      %v1359 = vmax.f32 %v1315, %v1337
      %v1360 = vmax.f32 %v1316, %v1338
      %v1361 = vmax.f32 %v1317, %v1339
      %v1362 = vmax.f32 %v1318, %v1340
      %v1363 = vmax.f32 %v1319, %v1341
      %v1364 = vmax.f32 %v1320, %v1342
      %v1365 = vmax.f32 %v1321, %v1343
      %v1366 = vmax.f32 %v1322, %v1344
      %v1367 = vmax.f32 %v1323, %v1345
      %v1368 = vld [vmem:[%s2] sm:$0x1]
      %v1370 = vperm.slane %v1368, 0
      %v1372 = vadd.f32 %v1346, %v1370
      %v1373 = vadd.f32 %v1347, %v1370
      %v1374 = vadd.f32 %v1348, %v1370
      %v1375 = vadd.f32 %v1349, %v1370
      %v1376 = vadd.f32 %v1350, %v1370
      %v1377 = vadd.f32 %v1351, %v1370
      %v1378 = vadd.f32 %v1352, %v1370
      %v1379 = vadd.f32 %v1353, %v1370
      %v1380 = vadd.f32 %v1354, %v1370
      %v1381 = vadd.f32 %v1355, %v1370
      %v1382 = vadd.f32 %v1356, %v1370
      %v1383 = vadd.f32 %v1357, %v1370
      %v1384 = vadd.f32 %v1358, %v1370
      %v1385 = vadd.f32 %v1359, %v1370
      %v1386 = vadd.f32 %v1360, %v1370
      %v1387 = vadd.f32 %v1361, %v1370
      %v1388 = vadd.f32 %v1362, %v1370
      %v1389 = vadd.f32 %v1363, %v1370
      %v1390 = vadd.f32 %v1364, %v1370
      %v1391 = vadd.f32 %v1365, %v1370
      %v1392 = vadd.f32 %v1366, %v1370
      %v1393 = vadd.f32 %v1367, %v1370
      %v1394 = vmax.f32 %v1372, 0.0
      %v1395 = vmax.f32 %v1373, 0.0
      %v1396 = vmax.f32 %v1374, 0.0
      %v1397 = vmax.f32 %v1375, 0.0
      %v1398 = vmax.f32 %v1376, 0.0
      %v1399 = vmax.f32 %v1377, 0.0
      %v1400 = vmax.f32 %v1378, 0.0
      %v1401 = vmax.f32 %v1379, 0.0
      %v1402 = vmax.f32 %v1380, 0.0
      %v1403 = vmax.f32 %v1381, 0.0
      %v1404 = vmax.f32 %v1382, 0.0
      %v1405 = vmax.f32 %v1383, 0.0
      %v1406 = vmax.f32 %v1384, 0.0
      %v1407 = vmax.f32 %v1385, 0.0
      %v1408 = vmax.f32 %v1386, 0.0
      %v1409 = vmax.f32 %v1387, 0.0
      %v1410 = vmax.f32 %v1388, 0.0
      %v1411 = vmax.f32 %v1389, 0.0
      %v1412 = vmax.f32 %v1390, 0.0
      %v1413 = vmax.f32 %v1391, 0.0
      %v1414 = vmax.f32 %v1392, 0.0
      %v1415 = vmax.f32 %v1393, 0.0
      %vm1416 = vcmask 130048
      %1417 = vst.msk [vmem:[%s170] sm:$0xff] %vm1416, %v1394
      %1418 = vst.msk [vmem:[%s170 + $0x8] sm:$0xff] %vm1416, %v1395
      %1419 = vst.msk [vmem:[%s170 + $0x10] sm:$0xff] %vm1416, %v1396
      %1420 = vst.msk [vmem:[%s170 + $0x18] sm:$0xff] %vm1416, %v1397
      %1421 = vst.msk [vmem:[%s170 + $0x20] sm:$0xff] %vm1416, %v1398
      %1422 = vst.msk [vmem:[%s170 + $0x28] sm:$0xff] %vm1416, %v1399
      %1423 = vst.msk [vmem:[%s170 + $0x30] sm:$0xff] %vm1416, %v1400
      %1424 = vst.msk [vmem:[%s170 + $0x38] sm:$0xff] %vm1416, %v1401
      %1425 = vst.msk [vmem:[%s170 + $0x40] sm:$0xff] %vm1416, %v1402
      %1426 = vst.msk [vmem:[%s170 + $0x48] sm:$0xff] %vm1416, %v1403
      %1427 = vst.msk [vmem:[%s170 + $0x50] sm:$0xff] %vm1416, %v1404
      %1428 = vst.msk [vmem:[%s170 + $0x58] sm:$0xff] %vm1416, %v1405
      %1429 = vst.msk [vmem:[%s170 + $0x60] sm:$0xff] %vm1416, %v1406
      %1430 = vst.msk [vmem:[%s170 + $0x68] sm:$0xff] %vm1416, %v1407
      %1431 = vst.msk [vmem:[%s170 + $0x70] sm:$0xff] %vm1416, %v1408
      %1432 = vst.msk [vmem:[%s170 + $0x78] sm:$0xff] %vm1416, %v1409
      %1433 = vst.msk [vmem:[%s170 + $0x80] sm:$0xff] %vm1416, %v1410
      %1434 = vst.msk [vmem:[%s170 + $0x88] sm:$0xff] %vm1416, %v1411
      %1435 = vst.msk [vmem:[%s170 + $0x90] sm:$0xff] %vm1416, %v1412
      %1436 = vst.msk [vmem:[%s170 + $0x98] sm:$0xff] %vm1416, %v1413
      %1437 = vst.msk [vmem:[%s170 + $0xa0] sm:$0xff] %vm1416, %v1414
      %vm1438 = vcmask 122880
      %1439 = vst.msk [vmem:[%s170 + $0xa8] sm:$0x1] %vm1438, %v1415
      %p1440 = scmp.lt.s32.totalorder %s14, 1
      %s1441 = scalar_select %p1440, %s14, 1
      %s1442 = smul.addr %s1441, 22
      %s1443 = smul.addr %s1442, 8
      %s1444 = scalar_lea.vmem %s3, %s1443
      // Predicated region
      $region33: #{net_forward.4} parent=31 // pred_check
        %p1445 = pneg %p100
      $region34: #{net_forward.4} parent=31 // pred_check_branch
        %1447 = sbr.rel (%p1445) target = $region36
      $region35: #{net_forward.4} parent=31 // pred_region
        _
      $region36: #{net_forward.4} parent=31 // pred_fallthru
        _
    $region32: #{net_forward.4} parent=5 // pred_fallthru
      _
    %p1448 = scmp.le.s32.totalorder 2, %s9
    // Predicated region
    $region37: #{net_forward.4} parent=5 // pred_check
      %p1449 = pneg %p1448
    $region38: #{net_forward.4} parent=5 // pred_check_branch
      %1451 = sbr.rel (%p1449) target = $region40
    $region39: #{net_forward.4} parent=5 // pred_region
      %s1452 = ssub.s32 %s9, 2
      // Predicated region
      $region41: #{net_forward.4} parent=39 // pred_check
        %p1453 = pneg %p106
      $region42: #{net_forward.4} parent=39 // pred_check_branch
        %1455 = sbr.rel (%p1453) target = $region44
      $region43: #{net_forward.4} parent=39 // pred_region
        %p1456 = scmp.lt.s32.totalorder %s15, 1
        %s1457 = scalar_select %p1456, %s15, 1
        %s1458 = smul.addr %s1457, 22
        %s1459 = smul.addr %s1458, 8
        %s1460 = scalar_lea.vmem %s3, %s1459
      $region44: #{net_forward.4} parent=39 // pred_fallthru
        _
    $region40: #{net_forward.4} parent=5 // pred_fallthru
      _
  $region6: #{net_forward.4} parent=0 // loop_footer
    %s13 = sadd.s32 1, %s9
  $region7: #{net_forward.4} parent=0 // loop_footer_branch
    %8 = sbr.rel target = $region3
  $region8: #{net_forward.4} parent=0 // loop_exit
    _

// kernel: net_forward.5
$region0: #{net_forward.5}
  #allocation0 [shape = 'u32[]', space=smem, size = 0x4, offset = 0x4, fixed_abs, tag = 'smem constant byte address 0x4 - core index']
  #allocation1 [shape = 'u32[72,128]{1,0:T(1,128)}', space=vmem, size = 0x9000, scoped, tag = 'internal scratch']
  %s0 = inlined_call_operand.vmem [shape: f32[2,2704], index: 0, kind: input, shape index: {}]
  %s1 = inlined_call_operand.vmem [shape: bf16[2704,240], index: 1, kind: input, shape index: {}]
  %s2 = inlined_call_operand.vmem [shape: f32[1,240], index: 2, kind: input, shape index: {}]
  %s3 = inlined_call_operand.vmem [shape: f32[240,128], index: 3, kind: input, shape index: {}]
  %s4 = inlined_call_operand.vmem [shape: f32[1,128], index: 4, kind: input, shape index: {}]
  %s5 = inlined_call_operand.hbm [shape: f32[2,128], index: 5, kind: output, shape index: {}]
  %s6 = sld [smem:[#allocation0]]
  $region30: #{net_forward.5} parent=0
    _
  %s8 = ssub.s32 1, %s6
  %s9 = scalar_select 0, %s8, %s6
  $region1: #{net_forward.5} parent=0
    #allocation2 [shape = 'u8[1024]{0}', space=vmem, size = 0x400, scoped, tag = 'output window, operand 0, single buffered']
    #allocation3 [shape = 's32[1]{0}', space=sflag, size = 0x4, scoped, tag = 'scoped memory for net_forward.5']
    %10 = vsyncpa [#allocation3], 0
    // Predicated region
    $region2: #{net_forward.5} parent=1 // pred_check
      _
    $region3: #{net_forward.5} parent=1 // pred_check_branch
      %12 = sbr.rel (0) target = $region5
    $region4: #{net_forward.5} parent=1 // pred_region
      _
    $region5: #{net_forward.5} parent=1 // pred_fallthru
      _
    // Predicated region
    $region6: #{net_forward.5} parent=1 // pred_check
      _
    $region7: #{net_forward.5} parent=1 // pred_check_branch
      %14 = sbr.rel (0) target = $region9
    $region8: #{net_forward.5} parent=1 // pred_region
      _
    $region9: #{net_forward.5} parent=1 // pred_fallthru
      _
    // Predicated region
    $region10: #{net_forward.5} parent=1 // pred_check
      _
    $region11: #{net_forward.5} parent=1 // pred_check_branch
      %16 = sbr.rel (0) target = $region13
    $region12: #{net_forward.5} parent=1 // pred_region
      _
    $region13: #{net_forward.5} parent=1 // pred_fallthru
      _
    // Predicated region
    $region14: #{net_forward.5} parent=1 // pred_check
      _
    $region15: #{net_forward.5} parent=1 // pred_check_branch
      %18 = sbr.rel (0) target = $region17
    $region16: #{net_forward.5} parent=1 // pred_region
      _
    $region17: #{net_forward.5} parent=1 // pred_fallthru
      _
    // Predicated region
    $region18: #{net_forward.5} parent=1 // pred_check
      _
    $region19: #{net_forward.5} parent=1 // pred_check_branch
      %20 = sbr.rel (0) target = $region21
    $region20: #{net_forward.5} parent=1 // pred_region
      _
    $region21: #{net_forward.5} parent=1 // pred_fallthru
      _
    %v22 = vld [vmem:[%s0] sm:$0xff]
    %v23 = vld [vmem:[%s0 + $0x8] sm:$0xff]
    %v24 = vld [vmem:[%s0 + $0x10] sm:$0xff]
    %v25 = vld [vmem:[%s0 + $0x18] sm:$0xff]
    %v26 = vld [vmem:[%s0 + $0x20] sm:$0xff]
    %v27 = vld [vmem:[%s0 + $0x28] sm:$0xf]
    %34 = vst [vmem:[#allocation1] ss:$4 sm:$0xff] %v22
    %s35 = scalar_lea.vmem [#allocation1], 32
    %36 = vst [vmem:[%s35] ss:$4 sm:$0xff] %v23
    %v37 = vld.sshfl [vmem:[#allocation1] sm:$0xff pattern:$0x73625140]
    %v38 = vld.sshfl [vmem:[#allocation1 + $0x8] sm:$0xff pattern:$0x73625140]
    %v39 = vld.sshfl [vmem:[#allocation1 + $0x10] sm:$0xff pattern:$0x73625140]
    %v40 = vld.sshfl [vmem:[#allocation1 + $0x18] sm:$0xff pattern:$0x73625140]
    %v41 = vld.sshfl [vmem:[#allocation1 + $0x20] sm:$0xff pattern:$0x73625140]
    %v42 = vld.sshfl [vmem:[#allocation1 + $0x28] sm:$0xff pattern:$0x73625140]
    %v43 = vld.sshfl [vmem:[#allocation1 + $0x30] sm:$0xff pattern:$0x73625140]
    %v44 = vld.sshfl [vmem:[#allocation1 + $0x38] sm:$0xff pattern:$0x73625140]
    %45 = vst [vmem:[#allocation1] ss:$4 sm:$0xff] %v24
    %46 = vst [vmem:[%s35] ss:$4 sm:$0xff] %v25
    %v47 = vld.sshfl [vmem:[#allocation1] sm:$0xff pattern:$0x73625140]
    %v48 = vld.sshfl [vmem:[#allocation1 + $0x8] sm:$0xff pattern:$0x73625140]
    %v49 = vld.sshfl [vmem:[#allocation1 + $0x10] sm:$0xff pattern:$0x73625140]
    %v50 = vld.sshfl [vmem:[#allocation1 + $0x18] sm:$0xff pattern:$0x73625140]
    %v51 = vld.sshfl [vmem:[#allocation1 + $0x20] sm:$0xff pattern:$0x73625140]
    %v52 = vld.sshfl [vmem:[#allocation1 + $0x28] sm:$0xff pattern:$0x73625140]
    %v53 = vld.sshfl [vmem:[#allocation1 + $0x30] sm:$0xff pattern:$0x73625140]
    %v54 = vld.sshfl [vmem:[#allocation1 + $0x38] sm:$0xff pattern:$0x73625140]
    %55 = vst [vmem:[#allocation1] ss:$4 sm:$0xff] %v26
    %56 = vst [vmem:[%s35] ss:$4 sm:$0xff] %v27
    %v57 = vld.sshfl [vmem:[#allocation1] sm:$0xff pattern:$0x73625140]
    %v58 = vld.sshfl [vmem:[#allocation1 + $0x8] sm:$0xff pattern:$0x73625140]
    %v59 = vld.sshfl [vmem:[#allocation1 + $0x10] sm:$0xff pattern:$0x73625140]
    %v60 = vld.sshfl [vmem:[#allocation1 + $0x18] sm:$0xff pattern:$0x73625140]
    %v61 = vld.sshfl [vmem:[#allocation1 + $0x20] sm:$0xff pattern:$0x73625140]
    %v62 = vld.sshfl [vmem:[#allocation1 + $0x28] sm:$0xff pattern:$0x73625140]
    %v85 = vpack.c.bf16 %v37, %v37
    %v86 = vpack.c.bf16 %v38, %v38
    %v87 = vpack.c.bf16 %v39, %v39
    %v88 = vpack.c.bf16 %v40, %v40
    %v89 = vpack.c.bf16 %v41, %v41
    %v90 = vpack.c.bf16 %v42, %v42
    %v91 = vpack.c.bf16 %v43, %v43
    %v92 = vpack.c.bf16 %v44, %v44
    %v93 = vpack.c.bf16 %v47, %v47
    %v94 = vpack.c.bf16 %v48, %v48
    %v95 = vpack.c.bf16 %v49, %v49
    %v96 = vpack.c.bf16 %v50, %v50
    %v97 = vpack.c.bf16 %v51, %v51
    %v98 = vpack.c.bf16 %v52, %v52
    %v99 = vpack.c.bf16 %v53, %v53
    %v100 = vpack.c.bf16 %v54, %v54
    %v101 = vpack.c.bf16 %v57, %v57
    %v102 = vpack.c.bf16 %v58, %v58
    %v103 = vpack.c.bf16 %v59, %v59
    %v104 = vpack.c.bf16 %v60, %v60
    %v105 = vpack.c.bf16 %v61, %v61
    %v106 = vpack.c.bf16 %v62, %v62
    %v107 = vld [vmem:[%s1] sm:$0xff]
    %v108 = vld [vmem:[%s1 + $0x8] sm:$0xff]
    %v109 = vld [vmem:[%s1 + $0x10] sm:$0xff]
    %v110 = vld [vmem:[%s1 + $0x18] sm:$0xff]
    %v111 = vld [vmem:[%s1 + $0x20] sm:$0xff]
    %v112 = vld [vmem:[%s1 + $0x28] sm:$0xff]
    %v113 = vld [vmem:[%s1 + $0x30] sm:$0xff]
    %v114 = vld [vmem:[%s1 + $0x38] sm:$0xff]
    %v115 = vld [vmem:[%s1 + $0x40] sm:$0xff]
    %v116 = vld [vmem:[%s1 + $0x48] sm:$0xff]
    %v117 = vld [vmem:[%s1 + $0x50] sm:$0xff]
    %v118 = vld [vmem:[%s1 + $0x58] sm:$0xff]
    %v119 = vld [vmem:[%s1 + $0x60] sm:$0xff]
    %v120 = vld [vmem:[%s1 + $0x68] sm:$0xff]
    %v121 = vld [vmem:[%s1 + $0x70] sm:$0xff]
    %v122 = vld [vmem:[%s1 + $0x78] sm:$0xff]
    %v123 = vld [vmem:[%s1 + $0x80] sm:$0xff]
    %v124 = vld [vmem:[%s1 + $0x88] sm:$0xff]
    %v125 = vld [vmem:[%s1 + $0x90] sm:$0xff]
    %v126 = vld [vmem:[%s1 + $0x98] sm:$0xff]
    %v127 = vld [vmem:[%s1 + $0xa0] sm:$0xff]
    %v128 = vld [vmem:[%s1 + $0xa8] sm:$0xff]
    %v129 = vld [vmem:[%s1 + $0xb0] sm:$0xff]
    %v130 = vld [vmem:[%s1 + $0xb8] sm:$0xff]
    %v131 = vld [vmem:[%s1 + $0xc0] sm:$0xff]
    %v132 = vld [vmem:[%s1 + $0xc8] sm:$0xff]
    %v133 = vld [vmem:[%s1 + $0xd0] sm:$0xff]
    %v134 = vld [vmem:[%s1 + $0xd8] sm:$0xff]
    %v135 = vld [vmem:[%s1 + $0xe0] sm:$0xff]
    %v136 = vld [vmem:[%s1 + $0xe8] sm:$0xff]
    %v137 = vld [vmem:[%s1 + $0xf0] sm:$0xff]
    %v138 = vld [vmem:[%s1 + $0xf8] sm:$0xff]
    %v139 = vld [vmem:[%s1 + $0x100] sm:$0xff]
    %v140 = vld [vmem:[%s1 + $0x108] sm:$0xff]
    %v141 = vld [vmem:[%s1 + $0x110] sm:$0xff]
    %v142 = vld [vmem:[%s1 + $0x118] sm:$0xff]
    %v143 = vld [vmem:[%s1 + $0x120] sm:$0xff]
    %v144 = vld [vmem:[%s1 + $0x128] sm:$0xff]
    %v145 = vld [vmem:[%s1 + $0x130] sm:$0xff]
    %v146 = vld [vmem:[%s1 + $0x138] sm:$0xff]
    %v147 = vld [vmem:[%s1 + $0x140] sm:$0xff]
    %v148 = vld [vmem:[%s1 + $0x148] sm:$0xff]
    %v149 = vld [vmem:[%s1 + $0x150] sm:$0xff]
    %v150 = vld [vmem:[%s1 + $0x158] sm:$0xff]
    %v151 = vld [vmem:[%s1 + $0x160] sm:$0xff]
    %v152 = vld [vmem:[%s1 + $0x168] sm:$0xff]
    %v153 = vld [vmem:[%s1 + $0x170] sm:$0xff]
    %v154 = vld [vmem:[%s1 + $0x178] sm:$0xff]
    %v155 = vld [vmem:[%s1 + $0x180] sm:$0xff]
    %v156 = vld [vmem:[%s1 + $0x188] sm:$0xff]
    %v157 = vld [vmem:[%s1 + $0x190] sm:$0xff]
    %v158 = vld [vmem:[%s1 + $0x198] sm:$0xff]
    %v159 = vld [vmem:[%s1 + $0x1a0] sm:$0xff]
    %v160 = vld [vmem:[%s1 + $0x1a8] sm:$0xff]
    %v161 = vld [vmem:[%s1 + $0x1b0] sm:$0xff]
    %v162 = vld [vmem:[%s1 + $0x1b8] sm:$0xff]
    %v163 = vld [vmem:[%s1 + $0x1c0] sm:$0xff]
    %v164 = vld [vmem:[%s1 + $0x1c8] sm:$0xff]
    %v165 = vld [vmem:[%s1 + $0x1d0] sm:$0xff]
    %v166 = vld [vmem:[%s1 + $0x1d8] sm:$0xff]
    %v167 = vld [vmem:[%s1 + $0x1e0] sm:$0xff]
    %v168 = vld [vmem:[%s1 + $0x1e8] sm:$0xff]
    %v169 = vld [vmem:[%s1 + $0x1f0] sm:$0xff]
    %v170 = vld [vmem:[%s1 + $0x1f8] sm:$0xff]
    %v171 = vld [vmem:[%s1 + $0x200] sm:$0xff]
    %v172 = vld [vmem:[%s1 + $0x208] sm:$0xff]
    %v173 = vld [vmem:[%s1 + $0x210] sm:$0xff]
    %v174 = vld [vmem:[%s1 + $0x218] sm:$0xff]
    %v175 = vld [vmem:[%s1 + $0x220] sm:$0xff]
    %v176 = vld [vmem:[%s1 + $0x228] sm:$0xff]
    %v177 = vld [vmem:[%s1 + $0x230] sm:$0xff]
    %v178 = vld [vmem:[%s1 + $0x238] sm:$0xff]
    %v179 = vld [vmem:[%s1 + $0x240] sm:$0xff]
    %v180 = vld [vmem:[%s1 + $0x248] sm:$0xff]
    %v181 = vld [vmem:[%s1 + $0x250] sm:$0xff]
    %v182 = vld [vmem:[%s1 + $0x258] sm:$0xff]
    %v183 = vld [vmem:[%s1 + $0x260] sm:$0xff]
    %v184 = vld [vmem:[%s1 + $0x268] sm:$0xff]
    %v185 = vld [vmem:[%s1 + $0x270] sm:$0xff]
    %v186 = vld [vmem:[%s1 + $0x278] sm:$0xff]
    %v187 = vld [vmem:[%s1 + $0x280] sm:$0xff]
    %v188 = vld [vmem:[%s1 + $0x288] sm:$0xff]
    %v189 = vld [vmem:[%s1 + $0x290] sm:$0xff]
    %v190 = vld [vmem:[%s1 + $0x298] sm:$0xff]
    %v191 = vld [vmem:[%s1 + $0x2a0] sm:$0xff]
    %v192 = vld [vmem:[%s1 + $0x2a8] sm:$0xff]
    %v193 = vld [vmem:[%s1 + $0x2b0] sm:$0xff]
    %v194 = vld [vmem:[%s1 + $0x2b8] sm:$0xff]
    %v195 = vld [vmem:[%s1 + $0x2c0] sm:$0xff]
    %v196 = vld [vmem:[%s1 + $0x2c8] sm:$0xff]
    %v197 = vld [vmem:[%s1 + $0x2d0] sm:$0xff]
    %v198 = vld [vmem:[%s1 + $0x2d8] sm:$0xff]
    %v199 = vld [vmem:[%s1 + $0x2e0] sm:$0xff]
    %v200 = vld [vmem:[%s1 + $0x2e8] sm:$0xff]
    %v201 = vld [vmem:[%s1 + $0x2f0] sm:$0xff]
    %v202 = vld [vmem:[%s1 + $0x2f8] sm:$0xff]
    %v203 = vld [vmem:[%s1 + $0x300] sm:$0xff]
    %v204 = vld [vmem:[%s1 + $0x308] sm:$0xff]
    %v205 = vld [vmem:[%s1 + $0x310] sm:$0xff]
    %v206 = vld [vmem:[%s1 + $0x318] sm:$0xff]
    %v207 = vld [vmem:[%s1 + $0x320] sm:$0xff]
    %v208 = vld [vmem:[%s1 + $0x328] sm:$0xff]
    %v209 = vld [vmem:[%s1 + $0x330] sm:$0xff]
    %v210 = vld [vmem:[%s1 + $0x338] sm:$0xff]
    %v211 = vld [vmem:[%s1 + $0x340] sm:$0xff]
    %v212 = vld [vmem:[%s1 + $0x348] sm:$0xff]
    %v213 = vld [vmem:[%s1 + $0x350] sm:$0xff]
    %v214 = vld [vmem:[%s1 + $0x358] sm:$0xff]
    %v215 = vld [vmem:[%s1 + $0x360] sm:$0xff]
    %v216 = vld [vmem:[%s1 + $0x368] sm:$0xff]
    %v217 = vld [vmem:[%s1 + $0x370] sm:$0xff]
    %v218 = vld [vmem:[%s1 + $0x378] sm:$0xff]
    %v219 = vld [vmem:[%s1 + $0x380] sm:$0xff]
    %v220 = vld [vmem:[%s1 + $0x388] sm:$0xff]
    %v221 = vld [vmem:[%s1 + $0x390] sm:$0xff]
    %v222 = vld [vmem:[%s1 + $0x398] sm:$0xff]
    %v223 = vld [vmem:[%s1 + $0x3a0] sm:$0xff]
    %v224 = vld [vmem:[%s1 + $0x3a8] sm:$0xff]
    %v225 = vld [vmem:[%s1 + $0x3b0] sm:$0xff]
    %v226 = vld [vmem:[%s1 + $0x3b8] sm:$0xff]
    %v227 = vld [vmem:[%s1 + $0x3c0] sm:$0xff]
    %v228 = vld [vmem:[%s1 + $0x3c8] sm:$0xff]
    %v229 = vld [vmem:[%s1 + $0x3d0] sm:$0xff]
    %v230 = vld [vmem:[%s1 + $0x3d8] sm:$0xff]
    %v231 = vld [vmem:[%s1 + $0x3e0] sm:$0xff]
    %v232 = vld [vmem:[%s1 + $0x3e8] sm:$0xff]
    %v233 = vld [vmem:[%s1 + $0x3f0] sm:$0xff]
    %v234 = vld [vmem:[%s1 + $0x3f8] sm:$0xff]
    %v235 = vld [vmem:[%s1 + $0x400] sm:$0xff]
    %v236 = vld [vmem:[%s1 + $0x408] sm:$0xff]
    %v237 = vld [vmem:[%s1 + $0x410] sm:$0xff]
    %v238 = vld [vmem:[%s1 + $0x418] sm:$0xff]
    %v239 = vld [vmem:[%s1 + $0x420] sm:$0xff]
    %v240 = vld [vmem:[%s1 + $0x428] sm:$0xff]
    %v241 = vld [vmem:[%s1 + $0x430] sm:$0xff]
    %v242 = vld [vmem:[%s1 + $0x438] sm:$0xff]
    %v243 = vld [vmem:[%s1 + $0x440] sm:$0xff]
    %v244 = vld [vmem:[%s1 + $0x448] sm:$0xff]
    %v245 = vld [vmem:[%s1 + $0x450] sm:$0xff]
    %v246 = vld [vmem:[%s1 + $0x458] sm:$0xff]
    %v247 = vld [vmem:[%s1 + $0x460] sm:$0xff]
    %v248 = vld [vmem:[%s1 + $0x468] sm:$0xff]
    %v249 = vld [vmem:[%s1 + $0x470] sm:$0xff]
    %v250 = vld [vmem:[%s1 + $0x478] sm:$0xff]
    %v251 = vld [vmem:[%s1 + $0x480] sm:$0xff]
    %v252 = vld [vmem:[%s1 + $0x488] sm:$0xff]
    %v253 = vld [vmem:[%s1 + $0x490] sm:$0xff]
    %v254 = vld [vmem:[%s1 + $0x498] sm:$0xff]
    %v255 = vld [vmem:[%s1 + $0x4a0] sm:$0xff]
    %v256 = vld [vmem:[%s1 + $0x4a8] sm:$0xff]
    %v257 = vld [vmem:[%s1 + $0x4b0] sm:$0xff]
    %v258 = vld [vmem:[%s1 + $0x4b8] sm:$0xff]
    %v259 = vld [vmem:[%s1 + $0x4c0] sm:$0xff]
    %v260 = vld [vmem:[%s1 + $0x4c8] sm:$0xff]
    %v261 = vld [vmem:[%s1 + $0x4d0] sm:$0xff]
    %v262 = vld [vmem:[%s1 + $0x4d8] sm:$0xff]
    %v263 = vld [vmem:[%s1 + $0x4e0] sm:$0xff]
    %v264 = vld [vmem:[%s1 + $0x4e8] sm:$0xff]
    %v265 = vld [vmem:[%s1 + $0x4f0] sm:$0xff]
    %v266 = vld [vmem:[%s1 + $0x4f8] sm:$0xff]
    %v267 = vld [vmem:[%s1 + $0x500] sm:$0xff]
    %v268 = vld [vmem:[%s1 + $0x508] sm:$0xff]
    %v269 = vld [vmem:[%s1 + $0x510] sm:$0xff]
    %v270 = vld [vmem:[%s1 + $0x518] sm:$0xff]
    %v271 = vld [vmem:[%s1 + $0x520] sm:$0xff]
    %v272 = vld [vmem:[%s1 + $0x528] sm:$0xff]
    %v273 = vld [vmem:[%s1 + $0x530] sm:$0xff]
    %v274 = vld [vmem:[%s1 + $0x538] sm:$0xff]
    %v275 = vld [vmem:[%s1 + $0x540] sm:$0xff]
    %v276 = vld [vmem:[%s1 + $0x548] sm:$0xff]
    %v277 = vld [vmem:[%s1 + $0x550] sm:$0xff]
    %v278 = vld [vmem:[%s1 + $0x558] sm:$0xff]
    %v279 = vld [vmem:[%s1 + $0x560] sm:$0xff]
    %v280 = vld [vmem:[%s1 + $0x568] sm:$0xff]
    %v281 = vld [vmem:[%s1 + $0x570] sm:$0xff]
    %v282 = vld [vmem:[%s1 + $0x578] sm:$0xff]
    %v283 = vld [vmem:[%s1 + $0x580] sm:$0xff]
    %v284 = vld [vmem:[%s1 + $0x588] sm:$0xff]
    %v285 = vld [vmem:[%s1 + $0x590] sm:$0xff]
    %v286 = vld [vmem:[%s1 + $0x598] sm:$0xff]
    %v287 = vld [vmem:[%s1 + $0x5a0] sm:$0xff]
    %v288 = vld [vmem:[%s1 + $0x5a8] sm:$0xff]
    %v289 = vld [vmem:[%s1 + $0x5b0] sm:$0xff]
    %v290 = vld [vmem:[%s1 + $0x5b8] sm:$0xff]
    %v291 = vld [vmem:[%s1 + $0x5c0] sm:$0xff]
    %v292 = vld [vmem:[%s1 + $0x5c8] sm:$0xff]
    %v293 = vld [vmem:[%s1 + $0x5d0] sm:$0xff]
    %v294 = vld [vmem:[%s1 + $0x5d8] sm:$0xff]
    %v295 = vld [vmem:[%s1 + $0x5e0] sm:$0xff]
    %v296 = vld [vmem:[%s1 + $0x5e8] sm:$0xff]
    %v297 = vld [vmem:[%s1 + $0x5f0] sm:$0xff]
    %v298 = vld [vmem:[%s1 + $0x5f8] sm:$0xff]
    %v299 = vld [vmem:[%s1 + $0x600] sm:$0xff]
    %v300 = vld [vmem:[%s1 + $0x608] sm:$0xff]
    %v301 = vld [vmem:[%s1 + $0x610] sm:$0xff]
    %v302 = vld [vmem:[%s1 + $0x618] sm:$0xff]
    %v303 = vld [vmem:[%s1 + $0x620] sm:$0xff]
    %v304 = vld [vmem:[%s1 + $0x628] sm:$0xff]
    %v305 = vld [vmem:[%s1 + $0x630] sm:$0xff]
    %v306 = vld [vmem:[%s1 + $0x638] sm:$0xff]
    %v307 = vld [vmem:[%s1 + $0x640] sm:$0xff]
    %v308 = vld [vmem:[%s1 + $0x648] sm:$0xff]
    %v309 = vld [vmem:[%s1 + $0x650] sm:$0xff]
    %v310 = vld [vmem:[%s1 + $0x658] sm:$0xff]
    %v311 = vld [vmem:[%s1 + $0x660] sm:$0xff]
    %v312 = vld [vmem:[%s1 + $0x668] sm:$0xff]
    %v313 = vld [vmem:[%s1 + $0x670] sm:$0xff]
    %v314 = vld [vmem:[%s1 + $0x678] sm:$0xff]
    %v315 = vld [vmem:[%s1 + $0x680] sm:$0xff]
    %v316 = vld [vmem:[%s1 + $0x688] sm:$0xff]
    %v317 = vld [vmem:[%s1 + $0x690] sm:$0xff]
    %v318 = vld [vmem:[%s1 + $0x698] sm:$0xff]
    %v319 = vld [vmem:[%s1 + $0x6a0] sm:$0xff]
    %v320 = vld [vmem:[%s1 + $0x6a8] sm:$0xff]
    %v321 = vld [vmem:[%s1 + $0x6b0] sm:$0xff]
    %v322 = vld [vmem:[%s1 + $0x6b8] sm:$0xff]
    %v323 = vld [vmem:[%s1 + $0x6c0] sm:$0xff]
    %v324 = vld [vmem:[%s1 + $0x6c8] sm:$0xff]
    %v325 = vld [vmem:[%s1 + $0x6d0] sm:$0xff]
    %v326 = vld [vmem:[%s1 + $0x6d8] sm:$0xff]
    %v327 = vld [vmem:[%s1 + $0x6e0] sm:$0xff]
    %v328 = vld [vmem:[%s1 + $0x6e8] sm:$0xff]
    %v329 = vld [vmem:[%s1 + $0x6f0] sm:$0xff]
    %v330 = vld [vmem:[%s1 + $0x6f8] sm:$0xff]
    %v331 = vld [vmem:[%s1 + $0x700] sm:$0xff]
    %v332 = vld [vmem:[%s1 + $0x708] sm:$0xff]
    %v333 = vld [vmem:[%s1 + $0x710] sm:$0xff]
    %v334 = vld [vmem:[%s1 + $0x718] sm:$0xff]
    %v335 = vld [vmem:[%s1 + $0x720] sm:$0xff]
    %v336 = vld [vmem:[%s1 + $0x728] sm:$0xff]
    %v337 = vld [vmem:[%s1 + $0x730] sm:$0xff]
    %v338 = vld [vmem:[%s1 + $0x738] sm:$0xff]
    %v339 = vld [vmem:[%s1 + $0x740] sm:$0xff]
    %v340 = vld [vmem:[%s1 + $0x748] sm:$0xff]
    %v341 = vld [vmem:[%s1 + $0x750] sm:$0xff]
    %v342 = vld [vmem:[%s1 + $0x758] sm:$0xff]
    %v343 = vld [vmem:[%s1 + $0x760] sm:$0xff]
    %v344 = vld [vmem:[%s1 + $0x768] sm:$0xff]
    %v345 = vld [vmem:[%s1 + $0x770] sm:$0xff]
    %v346 = vld [vmem:[%s1 + $0x778] sm:$0xff]
    %v347 = vld [vmem:[%s1 + $0x780] sm:$0xff]
    %v348 = vld [vmem:[%s1 + $0x788] sm:$0xff]
    %v349 = vld [vmem:[%s1 + $0x790] sm:$0xff]
    %v350 = vld [vmem:[%s1 + $0x798] sm:$0xff]
    %v351 = vld [vmem:[%s1 + $0x7a0] sm:$0xff]
    %v352 = vld [vmem:[%s1 + $0x7a8] sm:$0xff]
    %v353 = vld [vmem:[%s1 + $0x7b0] sm:$0xff]
    %v354 = vld [vmem:[%s1 + $0x7b8] sm:$0xff]
    %v355 = vld [vmem:[%s1 + $0x7c0] sm:$0xff]
    %v356 = vld [vmem:[%s1 + $0x7c8] sm:$0xff]
    %v357 = vld [vmem:[%s1 + $0x7d0] sm:$0xff]
    %v358 = vld [vmem:[%s1 + $0x7d8] sm:$0xff]
    %v359 = vld [vmem:[%s1 + $0x7e0] sm:$0xff]
    %v360 = vld [vmem:[%s1 + $0x7e8] sm:$0xff]
    %v361 = vld [vmem:[%s1 + $0x7f0] sm:$0xff]
    %v362 = vld [vmem:[%s1 + $0x7f8] sm:$0xff]
    %v363 = vld [vmem:[%s1 + $0x800] sm:$0xff]
    %v364 = vld [vmem:[%s1 + $0x808] sm:$0xff]
    %v365 = vld [vmem:[%s1 + $0x810] sm:$0xff]
    %v366 = vld [vmem:[%s1 + $0x818] sm:$0xff]
    %v367 = vld [vmem:[%s1 + $0x820] sm:$0xff]
    %v368 = vld [vmem:[%s1 + $0x828] sm:$0xff]
    %v369 = vld [vmem:[%s1 + $0x830] sm:$0xff]
    %v370 = vld [vmem:[%s1 + $0x838] sm:$0xff]
    %v371 = vld [vmem:[%s1 + $0x840] sm:$0xff]
    %v372 = vld [vmem:[%s1 + $0x848] sm:$0xff]
    %v373 = vld [vmem:[%s1 + $0x850] sm:$0xff]
    %v374 = vld [vmem:[%s1 + $0x858] sm:$0xff]
    %v375 = vld [vmem:[%s1 + $0x860] sm:$0xff]
    %v376 = vld [vmem:[%s1 + $0x868] sm:$0xff]
    %v377 = vld [vmem:[%s1 + $0x870] sm:$0xff]
    %v378 = vld [vmem:[%s1 + $0x878] sm:$0xff]
    %v379 = vld [vmem:[%s1 + $0x880] sm:$0xff]
    %v380 = vld [vmem:[%s1 + $0x888] sm:$0xff]
    %v381 = vld [vmem:[%s1 + $0x890] sm:$0xff]
    %v382 = vld [vmem:[%s1 + $0x898] sm:$0xff]
    %v383 = vld [vmem:[%s1 + $0x8a0] sm:$0xff]
    %v384 = vld [vmem:[%s1 + $0x8a8] sm:$0xff]
    %v385 = vld [vmem:[%s1 + $0x8b0] sm:$0xff]
    %v386 = vld [vmem:[%s1 + $0x8b8] sm:$0xff]
    %v387 = vld [vmem:[%s1 + $0x8c0] sm:$0xff]
    %v388 = vld [vmem:[%s1 + $0x8c8] sm:$0xff]
    %v389 = vld [vmem:[%s1 + $0x8d0] sm:$0xff]
    %v390 = vld [vmem:[%s1 + $0x8d8] sm:$0xff]
    %v391 = vld [vmem:[%s1 + $0x8e0] sm:$0xff]
    %v392 = vld [vmem:[%s1 + $0x8e8] sm:$0xff]
    %v393 = vld [vmem:[%s1 + $0x8f0] sm:$0xff]
    %v394 = vld [vmem:[%s1 + $0x8f8] sm:$0xff]
    %v395 = vld [vmem:[%s1 + $0x900] sm:$0xff]
    %v396 = vld [vmem:[%s1 + $0x908] sm:$0xff]
    %v397 = vld [vmem:[%s1 + $0x910] sm:$0xff]
    %v398 = vld [vmem:[%s1 + $0x918] sm:$0xff]
    %v399 = vld [vmem:[%s1 + $0x920] sm:$0xff]
    %v400 = vld [vmem:[%s1 + $0x928] sm:$0xff]
    %v401 = vld [vmem:[%s1 + $0x930] sm:$0xff]
    %v402 = vld [vmem:[%s1 + $0x938] sm:$0xff]
    %v403 = vld [vmem:[%s1 + $0x940] sm:$0xff]
    %v404 = vld [vmem:[%s1 + $0x948] sm:$0xff]
    %v405 = vld [vmem:[%s1 + $0x950] sm:$0xff]
    %v406 = vld [vmem:[%s1 + $0x958] sm:$0xff]
    %v407 = vld [vmem:[%s1 + $0x960] sm:$0xff]
    %v408 = vld [vmem:[%s1 + $0x968] sm:$0xff]
    %v409 = vld [vmem:[%s1 + $0x970] sm:$0xff]
    %v410 = vld [vmem:[%s1 + $0x978] sm:$0xff]
    %v411 = vld [vmem:[%s1 + $0x980] sm:$0xff]
    %v412 = vld [vmem:[%s1 + $0x988] sm:$0xff]
    %v413 = vld [vmem:[%s1 + $0x990] sm:$0xff]
    %v414 = vld [vmem:[%s1 + $0x998] sm:$0xff]
    %v415 = vld [vmem:[%s1 + $0x9a0] sm:$0xff]
    %v416 = vld [vmem:[%s1 + $0x9a8] sm:$0xff]
    %v417 = vld [vmem:[%s1 + $0x9b0] sm:$0xff]
    %v418 = vld [vmem:[%s1 + $0x9b8] sm:$0xff]
    %v419 = vld [vmem:[%s1 + $0x9c0] sm:$0xff]
    %v420 = vld [vmem:[%s1 + $0x9c8] sm:$0xff]
    %v421 = vld [vmem:[%s1 + $0x9d0] sm:$0xff]
    %v422 = vld [vmem:[%s1 + $0x9d8] sm:$0xff]
    %v423 = vld [vmem:[%s1 + $0x9e0] sm:$0xff]
    %v424 = vld [vmem:[%s1 + $0x9e8] sm:$0xff]
    %v425 = vld [vmem:[%s1 + $0x9f0] sm:$0xff]
    %v426 = vld [vmem:[%s1 + $0x9f8] sm:$0xff]
    %v427 = vld [vmem:[%s1 + $0xa00] sm:$0xff]
    %v428 = vld [vmem:[%s1 + $0xa08] sm:$0xff]
    %v429 = vld [vmem:[%s1 + $0xa10] sm:$0xff]
    %v430 = vld [vmem:[%s1 + $0xa18] sm:$0xff]
    %v431 = vld [vmem:[%s1 + $0xa20] sm:$0xff]
    %v432 = vld [vmem:[%s1 + $0xa28] sm:$0xff]
    %v433 = vld [vmem:[%s1 + $0xa30] sm:$0xff]
    %v434 = vld [vmem:[%s1 + $0xa38] sm:$0xff]
    %v435 = vld [vmem:[%s1 + $0xa40] sm:$0xff]
    %v436 = vld [vmem:[%s1 + $0xa48] sm:$0xff]
    %v437 = vld [vmem:[%s1 + $0xa50] sm:$0xff]
    %v438 = vld [vmem:[%s1 + $0xa58] sm:$0xff]
    %v439 = vld [vmem:[%s1 + $0xa60] sm:$0xff]
    %v440 = vld [vmem:[%s1 + $0xa68] sm:$0xff]
    %v441 = vld [vmem:[%s1 + $0xa70] sm:$0xff]
    %v442 = vld [vmem:[%s1 + $0xa78] sm:$0xff]
    %v443 = vld [vmem:[%s1 + $0xa80] sm:$0xff]
    %v444 = vld [vmem:[%s1 + $0xa88] sm:$0xff]
    %v445 = vld [vmem:[%s2] sm:$0x3]
    %v447 = vperm.slane %v445, 0
    %v448 = vperm.slane %v445, 1
    %v789 = vunpack.c.l.b16 %v107
    %v790 = vunpack.c.h.b16 %v107
    %v791 = vunpack.c.l.b16 %v108
    %v792 = vunpack.c.h.b16 %v108
    %v793 = vunpack.c.l.b16 %v109
    %v794 = vunpack.c.h.b16 %v109
    %v795 = vunpack.c.l.b16 %v110
    %v796 = vunpack.c.h.b16 %v110
    %v797 = vunpack.c.l.b16 %v111
    %v798 = vunpack.c.h.b16 %v111
    %v799 = vunpack.c.l.b16 %v112
    %v800 = vunpack.c.h.b16 %v112
    %v801 = vunpack.c.l.b16 %v113
    %v802 = vunpack.c.h.b16 %v113
    %v803 = vunpack.c.l.b16 %v114
    %v804 = vunpack.c.h.b16 %v114
    %v805 = vunpack.c.l.b16 %v115
    %v806 = vunpack.c.h.b16 %v115
    %v807 = vunpack.c.l.b16 %v116
    %v808 = vunpack.c.h.b16 %v116
    %v809 = vunpack.c.l.b16 %v117
    %v810 = vunpack.c.h.b16 %v117
    %v811 = vunpack.c.l.b16 %v118
    %v812 = vunpack.c.h.b16 %v118
    %v813 = vunpack.c.l.b16 %v119
    %v814 = vunpack.c.h.b16 %v119
    %v815 = vunpack.c.l.b16 %v120
    %v816 = vunpack.c.h.b16 %v120
    %v817 = vunpack.c.l.b16 %v121
    %v818 = vunpack.c.h.b16 %v121
    %v819 = vunpack.c.l.b16 %v122
    %v820 = vunpack.c.h.b16 %v122
    %v821 = vunpack.c.l.b16 %v123
    %v822 = vunpack.c.h.b16 %v123
    %v823 = vunpack.c.l.b16 %v124
    %v824 = vunpack.c.h.b16 %v124
    %v825 = vunpack.c.l.b16 %v125
    %v826 = vunpack.c.h.b16 %v125
    %v827 = vunpack.c.l.b16 %v126
    %v828 = vunpack.c.h.b16 %v126
    %v829 = vunpack.c.l.b16 %v127
    %v830 = vunpack.c.h.b16 %v127
    %v831 = vunpack.c.l.b16 %v128
    %v832 = vunpack.c.h.b16 %v128
    %v833 = vunpack.c.l.b16 %v129
    %v834 = vunpack.c.h.b16 %v129
    %v835 = vunpack.c.l.b16 %v130
    %v836 = vunpack.c.h.b16 %v130
    %v837 = vunpack.c.l.b16 %v131
    %v838 = vunpack.c.h.b16 %v131
    %v839 = vunpack.c.l.b16 %v132
    %v840 = vunpack.c.h.b16 %v132
    %v841 = vunpack.c.l.b16 %v133
    %v842 = vunpack.c.h.b16 %v133
    %v843 = vunpack.c.l.b16 %v134
    %v844 = vunpack.c.h.b16 %v134
    %v845 = vunpack.c.l.b16 %v135
    %v846 = vunpack.c.h.b16 %v135
    %v847 = vunpack.c.l.b16 %v136
    %v848 = vunpack.c.h.b16 %v136
    %v849 = vunpack.c.l.b16 %v137
    %v850 = vunpack.c.h.b16 %v137
    %v851 = vunpack.c.l.b16 %v138
    %v852 = vunpack.c.h.b16 %v138
    %v853 = vunpack.c.l.b16 %v139
    %v854 = vunpack.c.h.b16 %v139
    %v855 = vunpack.c.l.b16 %v140
    %v856 = vunpack.c.h.b16 %v140
    %v857 = vunpack.c.l.b16 %v141
    %v858 = vunpack.c.h.b16 %v141
    %v859 = vunpack.c.l.b16 %v142
    %v860 = vunpack.c.h.b16 %v142
    %v861 = vunpack.c.l.b16 %v143
    %v862 = vunpack.c.h.b16 %v143
    %v863 = vunpack.c.l.b16 %v144
    %v864 = vunpack.c.h.b16 %v144
    %v865 = vunpack.c.l.b16 %v145
    %v866 = vunpack.c.h.b16 %v145
    %v867 = vunpack.c.l.b16 %v146
    %v868 = vunpack.c.h.b16 %v146
    %v869 = vunpack.c.l.b16 %v147
    %v870 = vunpack.c.h.b16 %v147
    %v871 = vunpack.c.l.b16 %v148
    %v872 = vunpack.c.h.b16 %v148
    %v873 = vunpack.c.l.b16 %v149
    %v874 = vunpack.c.h.b16 %v149
    %v875 = vunpack.c.l.b16 %v150
    %v876 = vunpack.c.h.b16 %v150
    %v877 = vunpack.c.l.b16 %v151
    %v878 = vunpack.c.h.b16 %v151
    %v879 = vunpack.c.l.b16 %v152
    %v880 = vunpack.c.h.b16 %v152
    %v881 = vunpack.c.l.b16 %v153
    %v882 = vunpack.c.h.b16 %v153
    %v883 = vunpack.c.l.b16 %v154
    %v884 = vunpack.c.h.b16 %v154
    %v885 = vunpack.c.l.b16 %v155
    %v886 = vunpack.c.h.b16 %v155
    %v887 = vunpack.c.l.b16 %v156
    %v888 = vunpack.c.h.b16 %v156
    %v889 = vunpack.c.l.b16 %v157
    %v890 = vunpack.c.h.b16 %v157
    %v891 = vunpack.c.l.b16 %v158
    %v892 = vunpack.c.h.b16 %v158
    %v893 = vunpack.c.l.b16 %v159
    %v894 = vunpack.c.h.b16 %v159
    %v895 = vunpack.c.l.b16 %v160
    %v896 = vunpack.c.h.b16 %v160
    %v897 = vunpack.c.l.b16 %v161
    %v898 = vunpack.c.h.b16 %v161
    %v899 = vunpack.c.l.b16 %v162
    %v900 = vunpack.c.h.b16 %v162
    %v901 = vunpack.c.l.b16 %v163
    %v902 = vunpack.c.h.b16 %v163
    %v903 = vunpack.c.l.b16 %v164
    %v904 = vunpack.c.h.b16 %v164
    %v905 = vunpack.c.l.b16 %v165
    %v906 = vunpack.c.h.b16 %v165
    %v907 = vunpack.c.l.b16 %v166
    %v908 = vunpack.c.h.b16 %v166
    %v909 = vunpack.c.l.b16 %v167
    %v910 = vunpack.c.h.b16 %v167
    %v911 = vunpack.c.l.b16 %v168
    %v912 = vunpack.c.h.b16 %v168
    %v913 = vunpack.c.l.b16 %v169
    %v914 = vunpack.c.h.b16 %v169
    %v915 = vunpack.c.l.b16 %v170
    %v916 = vunpack.c.h.b16 %v170
    %v917 = vunpack.c.l.b16 %v171
    %v918 = vunpack.c.h.b16 %v171
    %v919 = vunpack.c.l.b16 %v172
    %v920 = vunpack.c.h.b16 %v172
    %v921 = vunpack.c.l.b16 %v173
    %v922 = vunpack.c.h.b16 %v173
    %v923 = vunpack.c.l.b16 %v174
    %v924 = vunpack.c.h.b16 %v174
    %v925 = vunpack.c.l.b16 %v175
    %v926 = vunpack.c.h.b16 %v175
    %v927 = vunpack.c.l.b16 %v176
    %v928 = vunpack.c.h.b16 %v176
    %v929 = vunpack.c.l.b16 %v177
    %v930 = vunpack.c.h.b16 %v177
    %v931 = vunpack.c.l.b16 %v178
    %v932 = vunpack.c.h.b16 %v178
    %v933 = vunpack.c.l.b16 %v179
    %v934 = vunpack.c.h.b16 %v179
    %v935 = vunpack.c.l.b16 %v180
    %v936 = vunpack.c.h.b16 %v180
    %v937 = vunpack.c.l.b16 %v181
    %v938 = vunpack.c.h.b16 %v181
    %v939 = vunpack.c.l.b16 %v182
    %v940 = vunpack.c.h.b16 %v182
    %v941 = vunpack.c.l.b16 %v183
    %v942 = vunpack.c.h.b16 %v183
    %v943 = vunpack.c.l.b16 %v184
    %v944 = vunpack.c.h.b16 %v184
    %v945 = vunpack.c.l.b16 %v185
    %v946 = vunpack.c.h.b16 %v185
    %v947 = vunpack.c.l.b16 %v186
    %v948 = vunpack.c.h.b16 %v186
    %v949 = vunpack.c.l.b16 %v187
    %v950 = vunpack.c.h.b16 %v187
    %v951 = vunpack.c.l.b16 %v188
    %v952 = vunpack.c.h.b16 %v188
    %v953 = vunpack.c.l.b16 %v189
    %v954 = vunpack.c.h.b16 %v189
    %v955 = vunpack.c.l.b16 %v190
    %v956 = vunpack.c.h.b16 %v190
    %v957 = vunpack.c.l.b16 %v191
    %v958 = vunpack.c.h.b16 %v191
    %v959 = vunpack.c.l.b16 %v192
    %v960 = vunpack.c.h.b16 %v192
    %v961 = vunpack.c.l.b16 %v193
    %v962 = vunpack.c.h.b16 %v193
    %v963 = vunpack.c.l.b16 %v194
    %v964 = vunpack.c.h.b16 %v194
    %v965 = vunpack.c.l.b16 %v195
    %v966 = vunpack.c.h.b16 %v195
    %v967 = vunpack.c.l.b16 %v196
    %v968 = vunpack.c.h.b16 %v196
    %v969 = vunpack.c.l.b16 %v197
    %v970 = vunpack.c.h.b16 %v197
    %v971 = vunpack.c.l.b16 %v198
    %v972 = vunpack.c.h.b16 %v198
    %v973 = vunpack.c.l.b16 %v199
    %v974 = vunpack.c.h.b16 %v199
    %v975 = vunpack.c.l.b16 %v200
    %v976 = vunpack.c.h.b16 %v200
    %v977 = vunpack.c.l.b16 %v201
    %v978 = vunpack.c.h.b16 %v201
    %v979 = vunpack.c.l.b16 %v202
    %v980 = vunpack.c.h.b16 %v202
    %v981 = vunpack.c.l.b16 %v203
    %v982 = vunpack.c.h.b16 %v203
    %v983 = vunpack.c.l.b16 %v204
    %v984 = vunpack.c.h.b16 %v204
    %v985 = vunpack.c.l.b16 %v205
    %v986 = vunpack.c.h.b16 %v205
    %v987 = vunpack.c.l.b16 %v206
    %v988 = vunpack.c.h.b16 %v206
    %v989 = vunpack.c.l.b16 %v207
    %v990 = vunpack.c.h.b16 %v207
    %v991 = vunpack.c.l.b16 %v208
    %v992 = vunpack.c.h.b16 %v208
    %v993 = vunpack.c.l.b16 %v209
    %v994 = vunpack.c.h.b16 %v209
    %v995 = vunpack.c.l.b16 %v210
    %v996 = vunpack.c.h.b16 %v210
    %v997 = vunpack.c.l.b16 %v211
    %v998 = vunpack.c.h.b16 %v211
    %v999 = vunpack.c.l.b16 %v212
    %v1000 = vunpack.c.h.b16 %v212
    %v1001 = vunpack.c.l.b16 %v213
    %v1002 = vunpack.c.h.b16 %v213
    %v1003 = vunpack.c.l.b16 %v214
    %v1004 = vunpack.c.h.b16 %v214
    %v1005 = vunpack.c.l.b16 %v215
    %v1006 = vunpack.c.h.b16 %v215
    %v1007 = vunpack.c.l.b16 %v216
    %v1008 = vunpack.c.h.b16 %v216
    %v1009 = vunpack.c.l.b16 %v217
    %v1010 = vunpack.c.h.b16 %v217
    %v1011 = vunpack.c.l.b16 %v218
    %v1012 = vunpack.c.h.b16 %v218
    %v1013 = vunpack.c.l.b16 %v219
    %v1014 = vunpack.c.h.b16 %v219
    %v1015 = vunpack.c.l.b16 %v220
    %v1016 = vunpack.c.h.b16 %v220
    %v1017 = vunpack.c.l.b16 %v221
    %v1018 = vunpack.c.h.b16 %v221
    %v1019 = vunpack.c.l.b16 %v222
    %v1020 = vunpack.c.h.b16 %v222
    %v1021 = vunpack.c.l.b16 %v223
    %v1022 = vunpack.c.h.b16 %v223
    %v1023 = vunpack.c.l.b16 %v224
    %v1024 = vunpack.c.h.b16 %v224
    %v1025 = vunpack.c.l.b16 %v225
    %v1026 = vunpack.c.h.b16 %v225
    %v1027 = vunpack.c.l.b16 %v226
    %v1028 = vunpack.c.h.b16 %v226
    %v1029 = vunpack.c.l.b16 %v227
    %v1030 = vunpack.c.h.b16 %v227
    %v1031 = vunpack.c.l.b16 %v228
    %v1032 = vunpack.c.h.b16 %v228
    %v1033 = vunpack.c.l.b16 %v229
    %v1034 = vunpack.c.h.b16 %v229
    %v1035 = vunpack.c.l.b16 %v230
    %v1036 = vunpack.c.h.b16 %v230
    %v1037 = vunpack.c.l.b16 %v231
    %v1038 = vunpack.c.h.b16 %v231
    %v1039 = vunpack.c.l.b16 %v232
    %v1040 = vunpack.c.h.b16 %v232
    %v1041 = vunpack.c.l.b16 %v233
    %v1042 = vunpack.c.h.b16 %v233
    %v1043 = vunpack.c.l.b16 %v234
    %v1044 = vunpack.c.h.b16 %v234
    %v1045 = vunpack.c.l.b16 %v235
    %v1046 = vunpack.c.h.b16 %v235
    %v1047 = vunpack.c.l.b16 %v236
    %v1048 = vunpack.c.h.b16 %v236
    %v1049 = vunpack.c.l.b16 %v237
    %v1050 = vunpack.c.h.b16 %v237
    %v1051 = vunpack.c.l.b16 %v238
    %v1052 = vunpack.c.h.b16 %v238
    %v1053 = vunpack.c.l.b16 %v239
    %v1054 = vunpack.c.h.b16 %v239
    %v1055 = vunpack.c.l.b16 %v240
    %v1056 = vunpack.c.h.b16 %v240
    %v1057 = vunpack.c.l.b16 %v241
    %v1058 = vunpack.c.h.b16 %v241
    %v1059 = vunpack.c.l.b16 %v242
    %v1060 = vunpack.c.h.b16 %v242
    %v1061 = vunpack.c.l.b16 %v243
    %v1062 = vunpack.c.h.b16 %v243
    %v1063 = vunpack.c.l.b16 %v244
    %v1064 = vunpack.c.h.b16 %v244
    %v1065 = vunpack.c.l.b16 %v245
    %v1066 = vunpack.c.h.b16 %v245
    %v1067 = vunpack.c.l.b16 %v246
    %v1068 = vunpack.c.h.b16 %v246
    %v1069 = vunpack.c.l.b16 %v247
    %v1070 = vunpack.c.h.b16 %v247
    %v1071 = vunpack.c.l.b16 %v248
    %v1072 = vunpack.c.h.b16 %v248
    %v1073 = vunpack.c.l.b16 %v249
    %v1074 = vunpack.c.h.b16 %v249
    %v1075 = vunpack.c.l.b16 %v250
    %v1076 = vunpack.c.h.b16 %v250
    %v1077 = vunpack.c.l.b16 %v251
    %v1078 = vunpack.c.h.b16 %v251
    %v1079 = vunpack.c.l.b16 %v252
    %v1080 = vunpack.c.h.b16 %v252
    %v1081 = vunpack.c.l.b16 %v253
    %v1082 = vunpack.c.h.b16 %v253
    %v1083 = vunpack.c.l.b16 %v254
    %v1084 = vunpack.c.h.b16 %v254
    %v1085 = vunpack.c.l.b16 %v255
    %v1086 = vunpack.c.h.b16 %v255
    %v1087 = vunpack.c.l.b16 %v256
    %v1088 = vunpack.c.h.b16 %v256
    %v1089 = vunpack.c.l.b16 %v257
    %v1090 = vunpack.c.h.b16 %v257
    %v1091 = vunpack.c.l.b16 %v258
    %v1092 = vunpack.c.h.b16 %v258
    %v1093 = vunpack.c.l.b16 %v259
    %v1094 = vunpack.c.h.b16 %v259
    %v1095 = vunpack.c.l.b16 %v260
    %v1096 = vunpack.c.h.b16 %v260
    %v1097 = vunpack.c.l.b16 %v261
    %v1098 = vunpack.c.h.b16 %v261
    %v1099 = vunpack.c.l.b16 %v262
    %v1100 = vunpack.c.h.b16 %v262
    %v1101 = vunpack.c.l.b16 %v263
    %v1102 = vunpack.c.h.b16 %v263
    %v1103 = vunpack.c.l.b16 %v264
    %v1104 = vunpack.c.h.b16 %v264
    %v1105 = vunpack.c.l.b16 %v265
    %v1106 = vunpack.c.h.b16 %v265
    %v1107 = vunpack.c.l.b16 %v266
    %v1108 = vunpack.c.h.b16 %v266
    %v1109 = vunpack.c.l.b16 %v267
    %v1110 = vunpack.c.h.b16 %v267
    %v1111 = vunpack.c.l.b16 %v268
    %v1112 = vunpack.c.h.b16 %v268
    %v1113 = vunpack.c.l.b16 %v269
    %v1114 = vunpack.c.h.b16 %v269
    %v1115 = vunpack.c.l.b16 %v270
    %v1116 = vunpack.c.h.b16 %v270
    %v1117 = vunpack.c.l.b16 %v271
    %v1118 = vunpack.c.h.b16 %v271
    %v1119 = vunpack.c.l.b16 %v272
    %v1120 = vunpack.c.h.b16 %v272
    %v1121 = vunpack.c.l.b16 %v273
    %v1122 = vunpack.c.h.b16 %v273
    %v1123 = vunpack.c.l.b16 %v274
    %v1124 = vunpack.c.h.b16 %v274
    %v1125 = vunpack.c.l.b16 %v275
    %v1126 = vunpack.c.h.b16 %v275
    %v1127 = vunpack.c.l.b16 %v276
    %v1128 = vunpack.c.h.b16 %v276
    %v1129 = vunpack.c.l.b16 %v277
    %v1130 = vunpack.c.h.b16 %v277
    %v1131 = vunpack.c.l.b16 %v278
    %v1132 = vunpack.c.h.b16 %v278
    %v1133 = vunpack.c.l.b16 %v279
    %v1134 = vunpack.c.h.b16 %v279
    %v1135 = vunpack.c.l.b16 %v280
    %v1136 = vunpack.c.h.b16 %v280
    %v1137 = vunpack.c.l.b16 %v281
    %v1138 = vunpack.c.h.b16 %v281
    %v1139 = vunpack.c.l.b16 %v282
    %v1140 = vunpack.c.h.b16 %v282
    %v1141 = vunpack.c.l.b16 %v283
    %v1142 = vunpack.c.h.b16 %v283
    %v1143 = vunpack.c.l.b16 %v284
    %v1144 = vunpack.c.h.b16 %v284
    %v1145 = vunpack.c.l.b16 %v285
    %v1146 = vunpack.c.h.b16 %v285
    %v1147 = vunpack.c.l.b16 %v286
    %v1148 = vunpack.c.h.b16 %v286
    %v1149 = vunpack.c.l.b16 %v287
    %v1150 = vunpack.c.h.b16 %v287
    %v1151 = vunpack.c.l.b16 %v288
    %v1152 = vunpack.c.h.b16 %v288
    %v1153 = vunpack.c.l.b16 %v289
    %v1154 = vunpack.c.h.b16 %v289
    %v1155 = vunpack.c.l.b16 %v290
    %v1156 = vunpack.c.h.b16 %v290
    %v1157 = vunpack.c.l.b16 %v291
    %v1158 = vunpack.c.h.b16 %v291
    %v1159 = vunpack.c.l.b16 %v292
    %v1160 = vunpack.c.h.b16 %v292
    %v1161 = vunpack.c.l.b16 %v293
    %v1162 = vunpack.c.h.b16 %v293
    %v1163 = vunpack.c.l.b16 %v294
    %v1164 = vunpack.c.h.b16 %v294
    %v1165 = vunpack.c.l.b16 %v295
    %v1166 = vunpack.c.h.b16 %v295
    %v1167 = vunpack.c.l.b16 %v296
    %v1168 = vunpack.c.h.b16 %v296
    %v1169 = vunpack.c.l.b16 %v297
    %v1170 = vunpack.c.h.b16 %v297
    %v1171 = vunpack.c.l.b16 %v298
    %v1172 = vunpack.c.h.b16 %v298
    %v1173 = vunpack.c.l.b16 %v299
    %v1174 = vunpack.c.h.b16 %v299
    %v1175 = vunpack.c.l.b16 %v300
    %v1176 = vunpack.c.h.b16 %v300
    %v1177 = vunpack.c.l.b16 %v301
    %v1178 = vunpack.c.h.b16 %v301
    %v1179 = vunpack.c.l.b16 %v302
    %v1180 = vunpack.c.h.b16 %v302
    %v1181 = vunpack.c.l.b16 %v303
    %v1182 = vunpack.c.h.b16 %v303
    %v1183 = vunpack.c.l.b16 %v304
    %v1184 = vunpack.c.h.b16 %v304
    %v1185 = vunpack.c.l.b16 %v305
    %v1186 = vunpack.c.h.b16 %v305
    %v1187 = vunpack.c.l.b16 %v306
    %v1188 = vunpack.c.h.b16 %v306
    %v1189 = vunpack.c.l.b16 %v307
    %v1190 = vunpack.c.h.b16 %v307
    %v1191 = vunpack.c.l.b16 %v308
    %v1192 = vunpack.c.h.b16 %v308
    %v1193 = vunpack.c.l.b16 %v309
    %v1194 = vunpack.c.h.b16 %v309
    %v1195 = vunpack.c.l.b16 %v310
    %v1196 = vunpack.c.h.b16 %v310
    %v1197 = vunpack.c.l.b16 %v311
    %v1198 = vunpack.c.h.b16 %v311
    %v1199 = vunpack.c.l.b16 %v312
    %v1200 = vunpack.c.h.b16 %v312
    %v1201 = vunpack.c.l.b16 %v313
    %v1202 = vunpack.c.h.b16 %v313
    %v1203 = vunpack.c.l.b16 %v314
    %v1204 = vunpack.c.h.b16 %v314
    %v1205 = vunpack.c.l.b16 %v315
    %v1206 = vunpack.c.h.b16 %v315
    %v1207 = vunpack.c.l.b16 %v316
    %v1208 = vunpack.c.h.b16 %v316
    %v1209 = vunpack.c.l.b16 %v317
    %v1210 = vunpack.c.h.b16 %v317
    %v1211 = vunpack.c.l.b16 %v318
    %v1212 = vunpack.c.h.b16 %v318
    %v1213 = vunpack.c.l.b16 %v319
    %v1214 = vunpack.c.h.b16 %v319
    %v1215 = vunpack.c.l.b16 %v320
    %v1216 = vunpack.c.h.b16 %v320
    %v1217 = vunpack.c.l.b16 %v321
    %v1218 = vunpack.c.h.b16 %v321
    %v1219 = vunpack.c.l.b16 %v322
    %v1220 = vunpack.c.h.b16 %v322
    %v1221 = vunpack.c.l.b16 %v323
    %v1222 = vunpack.c.h.b16 %v323
    %v1223 = vunpack.c.l.b16 %v324
    %v1224 = vunpack.c.h.b16 %v324
    %v1225 = vunpack.c.l.b16 %v325
    %v1226 = vunpack.c.h.b16 %v325
    %v1227 = vunpack.c.l.b16 %v326
    %v1228 = vunpack.c.h.b16 %v326
    %v1229 = vunpack.c.l.b16 %v327
    %v1230 = vunpack.c.h.b16 %v327
    %v1231 = vunpack.c.l.b16 %v328
    %v1232 = vunpack.c.h.b16 %v328
    %v1233 = vunpack.c.l.b16 %v329
    %v1234 = vunpack.c.h.b16 %v329
    %v1235 = vunpack.c.l.b16 %v330
    %v1236 = vunpack.c.h.b16 %v330
    %v1237 = vunpack.c.l.b16 %v331
    %v1238 = vunpack.c.h.b16 %v331
    %v1239 = vunpack.c.l.b16 %v332
    %v1240 = vunpack.c.h.b16 %v332
    %v1241 = vunpack.c.l.b16 %v333
    %v1242 = vunpack.c.h.b16 %v333
    %v1243 = vunpack.c.l.b16 %v334
    %v1244 = vunpack.c.h.b16 %v334
    %v1245 = vunpack.c.l.b16 %v335
    %v1246 = vunpack.c.h.b16 %v335
    %v1247 = vunpack.c.l.b16 %v336
    %v1248 = vunpack.c.h.b16 %v336
    %v1249 = vunpack.c.l.b16 %v337
    %v1250 = vunpack.c.h.b16 %v337
    %v1251 = vunpack.c.l.b16 %v338
    %v1252 = vunpack.c.h.b16 %v338
    %v1253 = vunpack.c.l.b16 %v339
    %v1254 = vunpack.c.h.b16 %v339
    %v1255 = vunpack.c.l.b16 %v340
    %v1256 = vunpack.c.h.b16 %v340
    %v1257 = vunpack.c.l.b16 %v341
    %v1258 = vunpack.c.h.b16 %v341
    %v1259 = vunpack.c.l.b16 %v342
    %v1260 = vunpack.c.h.b16 %v342
    %v1261 = vunpack.c.l.b16 %v343
    %v1262 = vunpack.c.h.b16 %v343
    %v1263 = vunpack.c.l.b16 %v344
    %v1264 = vunpack.c.h.b16 %v344
    %v1265 = vunpack.c.l.b16 %v345
    %v1266 = vunpack.c.h.b16 %v345
    %v1267 = vunpack.c.l.b16 %v346
    %v1268 = vunpack.c.h.b16 %v346
    %v1269 = vunpack.c.l.b16 %v347
    %v1270 = vunpack.c.h.b16 %v347
    %v1271 = vunpack.c.l.b16 %v348
    %v1272 = vunpack.c.h.b16 %v348
    %v1273 = vunpack.c.l.b16 %v349
    %v1274 = vunpack.c.h.b16 %v349
    %v1275 = vunpack.c.l.b16 %v350
    %v1276 = vunpack.c.h.b16 %v350
    %v1277 = vunpack.c.l.b16 %v351
    %v1278 = vunpack.c.h.b16 %v351
    %v1279 = vunpack.c.l.b16 %v352
    %v1280 = vunpack.c.h.b16 %v352
    %v1281 = vunpack.c.l.b16 %v353
    %v1282 = vunpack.c.h.b16 %v353
    %v1283 = vunpack.c.l.b16 %v354
    %v1284 = vunpack.c.h.b16 %v354
    %v1285 = vunpack.c.l.b16 %v355
    %v1286 = vunpack.c.h.b16 %v355
    %v1287 = vunpack.c.l.b16 %v356
    %v1288 = vunpack.c.h.b16 %v356
    %v1289 = vunpack.c.l.b16 %v357
    %v1290 = vunpack.c.h.b16 %v357
    %v1291 = vunpack.c.l.b16 %v358
    %v1292 = vunpack.c.h.b16 %v358
    %v1293 = vunpack.c.l.b16 %v359
    %v1294 = vunpack.c.h.b16 %v359
    %v1295 = vunpack.c.l.b16 %v360
    %v1296 = vunpack.c.h.b16 %v360
    %v1297 = vunpack.c.l.b16 %v361
    %v1298 = vunpack.c.h.b16 %v361
    %v1299 = vunpack.c.l.b16 %v362
    %v1300 = vunpack.c.h.b16 %v362
    %v1301 = vunpack.c.l.b16 %v363
    %v1302 = vunpack.c.h.b16 %v363
    %v1303 = vunpack.c.l.b16 %v364
    %v1304 = vunpack.c.h.b16 %v364
    %v1305 = vunpack.c.l.b16 %v365
    %v1306 = vunpack.c.h.b16 %v365
    %v1307 = vunpack.c.l.b16 %v366
    %v1308 = vunpack.c.h.b16 %v366
    %v1309 = vunpack.c.l.b16 %v367
    %v1310 = vunpack.c.h.b16 %v367
    %v1311 = vunpack.c.l.b16 %v368
    %v1312 = vunpack.c.h.b16 %v368
    %v1313 = vunpack.c.l.b16 %v369
    %v1314 = vunpack.c.h.b16 %v369
    %v1315 = vunpack.c.l.b16 %v370
    %v1316 = vunpack.c.h.b16 %v370
    %v1317 = vunpack.c.l.b16 %v371
    %v1318 = vunpack.c.h.b16 %v371
    %v1319 = vunpack.c.l.b16 %v372
    %v1320 = vunpack.c.h.b16 %v372
    %v1321 = vunpack.c.l.b16 %v373
    %v1322 = vunpack.c.h.b16 %v373
    %v1323 = vunpack.c.l.b16 %v374
    %v1324 = vunpack.c.h.b16 %v374
    %v1325 = vunpack.c.l.b16 %v375
    %v1326 = vunpack.c.h.b16 %v375
    %v1327 = vunpack.c.l.b16 %v376
    %v1328 = vunpack.c.h.b16 %v376
    %v1329 = vunpack.c.l.b16 %v377
    %v1330 = vunpack.c.h.b16 %v377
    %v1331 = vunpack.c.l.b16 %v378
    %v1332 = vunpack.c.h.b16 %v378
    %v1333 = vunpack.c.l.b16 %v379
    %v1334 = vunpack.c.h.b16 %v379
    %v1335 = vunpack.c.l.b16 %v380
    %v1336 = vunpack.c.h.b16 %v380
    %v1337 = vunpack.c.l.b16 %v381
    %v1338 = vunpack.c.h.b16 %v381
    %v1339 = vunpack.c.l.b16 %v382
    %v1340 = vunpack.c.h.b16 %v382
    %v1341 = vunpack.c.l.b16 %v383
    %v1342 = vunpack.c.h.b16 %v383
    %v1343 = vunpack.c.l.b16 %v384
    %v1344 = vunpack.c.h.b16 %v384
    %v1345 = vunpack.c.l.b16 %v385
    %v1346 = vunpack.c.h.b16 %v385
    %v1347 = vunpack.c.l.b16 %v386
    %v1348 = vunpack.c.h.b16 %v386
    %v1349 = vunpack.c.l.b16 %v387
    %v1350 = vunpack.c.h.b16 %v387
    %v1351 = vunpack.c.l.b16 %v388
    %v1352 = vunpack.c.h.b16 %v388
    %v1353 = vunpack.c.l.b16 %v389
    %v1354 = vunpack.c.h.b16 %v389
    %v1355 = vunpack.c.l.b16 %v390
    %v1356 = vunpack.c.h.b16 %v390
    %v1357 = vunpack.c.l.b16 %v391
    %v1358 = vunpack.c.h.b16 %v391
    %v1359 = vunpack.c.l.b16 %v392
    %v1360 = vunpack.c.h.b16 %v392
    %v1361 = vunpack.c.l.b16 %v393
    %v1362 = vunpack.c.h.b16 %v393
    %v1363 = vunpack.c.l.b16 %v394
    %v1364 = vunpack.c.h.b16 %v394
    %v1365 = vunpack.c.l.b16 %v395
    %v1366 = vunpack.c.h.b16 %v395
    %v1367 = vunpack.c.l.b16 %v396
    %v1368 = vunpack.c.h.b16 %v396
    %v1369 = vunpack.c.l.b16 %v397
    %v1370 = vunpack.c.h.b16 %v397
    %v1371 = vunpack.c.l.b16 %v398
    %v1372 = vunpack.c.h.b16 %v398
    %v1373 = vunpack.c.l.b16 %v399
    %v1374 = vunpack.c.h.b16 %v399
    %v1375 = vunpack.c.l.b16 %v400
    %v1376 = vunpack.c.h.b16 %v400
    %v1377 = vunpack.c.l.b16 %v401
    %v1378 = vunpack.c.h.b16 %v401
    %v1379 = vunpack.c.l.b16 %v402
    %v1380 = vunpack.c.h.b16 %v402
    %v1381 = vunpack.c.l.b16 %v403
    %v1382 = vunpack.c.h.b16 %v403
    %v1383 = vunpack.c.l.b16 %v404
    %v1384 = vunpack.c.h.b16 %v404
    %v1385 = vunpack.c.l.b16 %v405
    %v1386 = vunpack.c.h.b16 %v405
    %v1387 = vunpack.c.l.b16 %v406
    %v1388 = vunpack.c.h.b16 %v406
    %v1389 = vunpack.c.l.b16 %v407
    %v1390 = vunpack.c.h.b16 %v407
    %v1391 = vunpack.c.l.b16 %v408
    %v1392 = vunpack.c.h.b16 %v408
    %v1393 = vunpack.c.l.b16 %v409
    %v1394 = vunpack.c.h.b16 %v409
    %v1395 = vunpack.c.l.b16 %v410
    %v1396 = vunpack.c.h.b16 %v410
    %v1397 = vunpack.c.l.b16 %v411
    %v1398 = vunpack.c.h.b16 %v411
    %v1399 = vunpack.c.l.b16 %v412
    %v1400 = vunpack.c.h.b16 %v412
    %v1401 = vunpack.c.l.b16 %v413
    %v1402 = vunpack.c.h.b16 %v413
    %v1403 = vunpack.c.l.b16 %v414
    %v1404 = vunpack.c.h.b16 %v414
    %v1405 = vunpack.c.l.b16 %v415
    %v1406 = vunpack.c.h.b16 %v415
    %v1407 = vunpack.c.l.b16 %v416
    %v1408 = vunpack.c.h.b16 %v416
    %v1409 = vunpack.c.l.b16 %v417
    %v1410 = vunpack.c.h.b16 %v417
    %v1411 = vunpack.c.l.b16 %v418
    %v1412 = vunpack.c.h.b16 %v418
    %v1413 = vunpack.c.l.b16 %v419
    %v1414 = vunpack.c.h.b16 %v419
    %v1415 = vunpack.c.l.b16 %v420
    %v1416 = vunpack.c.h.b16 %v420
    %v1417 = vunpack.c.l.b16 %v421
    %v1418 = vunpack.c.h.b16 %v421
    %v1419 = vunpack.c.l.b16 %v422
    %v1420 = vunpack.c.h.b16 %v422
    %v1421 = vunpack.c.l.b16 %v423
    %v1422 = vunpack.c.h.b16 %v423
    %v1423 = vunpack.c.l.b16 %v424
    %v1424 = vunpack.c.h.b16 %v424
    %v1425 = vunpack.c.l.b16 %v425
    %v1426 = vunpack.c.h.b16 %v425
    %v1427 = vunpack.c.l.b16 %v426
    %v1428 = vunpack.c.h.b16 %v426
    %v1429 = vunpack.c.l.b16 %v427
    %v1430 = vunpack.c.h.b16 %v427
    %v1431 = vunpack.c.l.b16 %v428
    %v1432 = vunpack.c.h.b16 %v428
    %v1433 = vunpack.c.l.b16 %v429
    %v1434 = vunpack.c.h.b16 %v429
    %v1435 = vunpack.c.l.b16 %v430
    %v1436 = vunpack.c.h.b16 %v430
    %v1437 = vunpack.c.l.b16 %v431
    %v1438 = vunpack.c.h.b16 %v431
    %v1439 = vunpack.c.l.b16 %v432
    %v1440 = vunpack.c.h.b16 %v432
    %v1441 = vunpack.c.l.b16 %v433
    %v1442 = vunpack.c.h.b16 %v433
    %v1443 = vunpack.c.l.b16 %v434
    %v1444 = vunpack.c.h.b16 %v434
    %v1445 = vunpack.c.l.b16 %v435
    %v1446 = vunpack.c.h.b16 %v435
    %v1447 = vunpack.c.l.b16 %v436
    %v1448 = vunpack.c.h.b16 %v436
    %v1449 = vunpack.c.l.b16 %v437
    %v1450 = vunpack.c.h.b16 %v437
    %v1451 = vunpack.c.l.b16 %v438
    %v1452 = vunpack.c.h.b16 %v438
    %v1453 = vunpack.c.l.b16 %v439
    %v1454 = vunpack.c.h.b16 %v439
    %v1455 = vunpack.c.l.b16 %v440
    %v1456 = vunpack.c.h.b16 %v440
    %v1457 = vunpack.c.l.b16 %v441
    %v1458 = vunpack.c.h.b16 %v441
    %v1459 = vunpack.c.l.b16 %v442
    %v1460 = vunpack.c.h.b16 %v442
    %v1461 = vunpack.c.l.b16 %v443
    %v1462 = vunpack.c.h.b16 %v443
    %v1463 = vunpack.c.l.b16 %v444
    %v1464 = vunpack.c.h.b16 %v444
    %v1465 = vpack.c.b16 %v791, %v789
    %v1466 = vpack.c.b16 %v792, %v790
    %v1467 = vpack.c.b16 %v795, %v793
    %v1468 = vpack.c.b16 %v796, %v794
    %v1469 = vpack.c.b16 %v799, %v797
    %v1470 = vpack.c.b16 %v800, %v798
    %v1471 = vpack.c.b16 %v803, %v801
    %v1472 = vpack.c.b16 %v804, %v802
    %v1473 = vpack.c.b16 %v807, %v805
    %v1474 = vpack.c.b16 %v808, %v806
    %v1475 = vpack.c.b16 %v811, %v809
    %v1476 = vpack.c.b16 %v812, %v810
    %v1477 = vpack.c.b16 %v815, %v813
    %v1478 = vpack.c.b16 %v816, %v814
    %v1479 = vpack.c.b16 %v819, %v817
    %v1480 = vpack.c.b16 %v820, %v818
    %v1481 = vpack.c.b16 %v823, %v821
    %v1482 = vpack.c.b16 %v824, %v822
    %v1483 = vpack.c.b16 %v827, %v825
    %v1484 = vpack.c.b16 %v828, %v826
    %v1485 = vpack.c.b16 %v831, %v829
    %v1486 = vpack.c.b16 %v832, %v830
    %v1487 = vpack.c.b16 %v835, %v833
    %v1488 = vpack.c.b16 %v836, %v834
    %v1489 = vpack.c.b16 %v839, %v837
    %v1490 = vpack.c.b16 %v840, %v838
    %v1491 = vpack.c.b16 %v843, %v841
    %v1492 = vpack.c.b16 %v844, %v842
    %v1493 = vpack.c.b16 %v847, %v845
    %v1494 = vpack.c.b16 %v848, %v846
    %v1495 = vpack.c.b16 %v851, %v849
    %v1496 = vpack.c.b16 %v852, %v850
    %v1497 = vpack.c.b16 %v855, %v853
    %v1498 = vpack.c.b16 %v856, %v854
    %v1499 = vpack.c.b16 %v859, %v857
    %v1500 = vpack.c.b16 %v860, %v858
    %v1501 = vpack.c.b16 %v863, %v861
    %v1502 = vpack.c.b16 %v864, %v862
    %v1503 = vpack.c.b16 %v867, %v865
    %v1504 = vpack.c.b16 %v868, %v866
    %v1505 = vpack.c.b16 %v871, %v869
    %v1506 = vpack.c.b16 %v872, %v870
    %v1507 = vpack.c.b16 %v875, %v873
    %v1508 = vpack.c.b16 %v876, %v874
    %v1509 = vpack.c.b16 %v879, %v877
    %v1510 = vpack.c.b16 %v880, %v878
    %v1511 = vpack.c.b16 %v883, %v881
    %v1512 = vpack.c.b16 %v884, %v882
    %v1513 = vpack.c.b16 %v887, %v885
    %v1514 = vpack.c.b16 %v888, %v886
    %v1515 = vpack.c.b16 %v891, %v889
    %v1516 = vpack.c.b16 %v892, %v890
    %v1517 = vpack.c.b16 %v895, %v893
    %v1518 = vpack.c.b16 %v896, %v894
    %v1519 = vpack.c.b16 %v899, %v897
    %v1520 = vpack.c.b16 %v900, %v898
    %v1521 = vpack.c.b16 %v903, %v901
    %v1522 = vpack.c.b16 %v904, %v902
    %v1523 = vpack.c.b16 %v907, %v905
    %v1524 = vpack.c.b16 %v908, %v906
    %v1525 = vpack.c.b16 %v911, %v909
    %v1526 = vpack.c.b16 %v912, %v910
    %v1527 = vpack.c.b16 %v915, %v913
    %v1528 = vpack.c.b16 %v916, %v914
    %v1529 = vpack.c.b16 %v919, %v917
    %v1530 = vpack.c.b16 %v920, %v918
    %v1531 = vpack.c.b16 %v923, %v921
    %v1532 = vpack.c.b16 %v924, %v922
    %v1533 = vpack.c.b16 %v927, %v925
    %v1534 = vpack.c.b16 %v928, %v926
    %v1535 = vpack.c.b16 %v931, %v929
    %v1536 = vpack.c.b16 %v932, %v930
    %v1537 = vpack.c.b16 %v935, %v933
    %v1538 = vpack.c.b16 %v936, %v934
    %v1539 = vpack.c.b16 %v939, %v937
    %v1540 = vpack.c.b16 %v940, %v938
    %v1541 = vpack.c.b16 %v943, %v941
    %v1542 = vpack.c.b16 %v944, %v942
    %v1543 = vpack.c.b16 %v947, %v945
    %v1544 = vpack.c.b16 %v948, %v946
    %v1545 = vpack.c.b16 %v951, %v949
    %v1546 = vpack.c.b16 %v952, %v950
    %v1547 = vpack.c.b16 %v955, %v953
    %v1548 = vpack.c.b16 %v956, %v954
    %v1549 = vpack.c.b16 %v959, %v957
    %v1550 = vpack.c.b16 %v960, %v958
    %v1551 = vpack.c.b16 %v963, %v961
    %v1552 = vpack.c.b16 %v964, %v962
    %v1553 = vpack.c.b16 %v967, %v965
    %v1554 = vpack.c.b16 %v968, %v966
    %v1555 = vpack.c.b16 %v971, %v969
    %v1556 = vpack.c.b16 %v972, %v970
    %v1557 = vpack.c.b16 %v975, %v973
    %v1558 = vpack.c.b16 %v976, %v974
    %v1559 = vpack.c.b16 %v979, %v977
    %v1560 = vpack.c.b16 %v980, %v978
    %v1561 = vpack.c.b16 %v983, %v981
    %v1562 = vpack.c.b16 %v984, %v982
    %v1563 = vpack.c.b16 %v987, %v985
    %v1564 = vpack.c.b16 %v988, %v986
    %v1565 = vpack.c.b16 %v991, %v989
    %v1566 = vpack.c.b16 %v992, %v990
    %v1567 = vpack.c.b16 %v995, %v993
    %v1568 = vpack.c.b16 %v996, %v994
    %v1569 = vpack.c.b16 %v999, %v997
    %v1570 = vpack.c.b16 %v1000, %v998
    %v1571 = vpack.c.b16 %v1003, %v1001
    %v1572 = vpack.c.b16 %v1004, %v1002
    %v1573 = vpack.c.b16 %v1007, %v1005
    %v1574 = vpack.c.b16 %v1008, %v1006
    %v1575 = vpack.c.b16 %v1011, %v1009
    %v1576 = vpack.c.b16 %v1012, %v1010
    %v1577 = vpack.c.b16 %v1015, %v1013
    %v1578 = vpack.c.b16 %v1016, %v1014
    %v1579 = vpack.c.b16 %v1019, %v1017
    %v1580 = vpack.c.b16 %v1020, %v1018
    %v1581 = vpack.c.b16 %v1023, %v1021
    %v1582 = vpack.c.b16 %v1024, %v1022
    %v1583 = vpack.c.b16 %v1027, %v1025
    %v1584 = vpack.c.b16 %v1028, %v1026
    %v1585 = vpack.c.b16 %v1031, %v1029
    %v1586 = vpack.c.b16 %v1032, %v1030
    %v1587 = vpack.c.b16 %v1035, %v1033
    %v1588 = vpack.c.b16 %v1036, %v1034
    %v1589 = vpack.c.b16 %v1039, %v1037
    %v1590 = vpack.c.b16 %v1040, %v1038
    %v1591 = vpack.c.b16 %v1043, %v1041
    %v1592 = vpack.c.b16 %v1044, %v1042
    %v1593 = vpack.c.b16 %v1047, %v1045
    %v1594 = vpack.c.b16 %v1048, %v1046
    %v1595 = vpack.c.b16 %v1051, %v1049
    %v1596 = vpack.c.b16 %v1052, %v1050
    %v1597 = vpack.c.b16 %v1055, %v1053
    %v1598 = vpack.c.b16 %v1056, %v1054
    %v1599 = vpack.c.b16 %v1059, %v1057
    %v1600 = vpack.c.b16 %v1060, %v1058
    %v1601 = vpack.c.b16 %v1063, %v1061
    %v1602 = vpack.c.b16 %v1064, %v1062
    %v1603 = vpack.c.b16 %v1067, %v1065
    %v1604 = vpack.c.b16 %v1068, %v1066
    %v1605 = vpack.c.b16 %v1071, %v1069
    %v1606 = vpack.c.b16 %v1072, %v1070
    %v1607 = vpack.c.b16 %v1075, %v1073
    %v1608 = vpack.c.b16 %v1076, %v1074
    %v1609 = vpack.c.b16 %v1079, %v1077
    %v1610 = vpack.c.b16 %v1080, %v1078
    %v1611 = vpack.c.b16 %v1083, %v1081
    %v1612 = vpack.c.b16 %v1084, %v1082
    %v1613 = vpack.c.b16 %v1087, %v1085
    %v1614 = vpack.c.b16 %v1088, %v1086
    %v1615 = vpack.c.b16 %v1091, %v1089
    %v1616 = vpack.c.b16 %v1092, %v1090
    %v1617 = vpack.c.b16 %v1095, %v1093
    %v1618 = vpack.c.b16 %v1096, %v1094
    %v1619 = vpack.c.b16 %v1099, %v1097
    %v1620 = vpack.c.b16 %v1100, %v1098
    %v1621 = vpack.c.b16 %v1103, %v1101
    %v1622 = vpack.c.b16 %v1104, %v1102
    %v1623 = vpack.c.b16 %v1107, %v1105
    %v1624 = vpack.c.b16 %v1108, %v1106
    %v1625 = vpack.c.b16 %v1111, %v1109
    %v1626 = vpack.c.b16 %v1112, %v1110
    %v1627 = vpack.c.b16 %v1115, %v1113
    %v1628 = vpack.c.b16 %v1116, %v1114
    %v1629 = vpack.c.b16 %v1119, %v1117
    %v1630 = vpack.c.b16 %v1120, %v1118
    %v1631 = vpack.c.b16 %v1123, %v1121
    %v1632 = vpack.c.b16 %v1124, %v1122
    %v1633 = vpack.c.b16 %v1127, %v1125
    %v1634 = vpack.c.b16 %v1128, %v1126
    %v1635 = vpack.c.b16 %v1131, %v1129
    %v1636 = vpack.c.b16 %v1132, %v1130
    %v1637 = vpack.c.b16 %v1135, %v1133
    %v1638 = vpack.c.b16 %v1136, %v1134
    %v1639 = vpack.c.b16 %v1139, %v1137
    %v1640 = vpack.c.b16 %v1140, %v1138
    %v1641 = vpack.c.b16 %v1143, %v1141
    %v1642 = vpack.c.b16 %v1144, %v1142
    %v1643 = vpack.c.b16 %v1147, %v1145
    %v1644 = vpack.c.b16 %v1148, %v1146
    %v1645 = vpack.c.b16 %v1151, %v1149
    %v1646 = vpack.c.b16 %v1152, %v1150
    %v1647 = vpack.c.b16 %v1155, %v1153
    %v1648 = vpack.c.b16 %v1156, %v1154
    %v1649 = vpack.c.b16 %v1159, %v1157
    %v1650 = vpack.c.b16 %v1160, %v1158
    %v1651 = vpack.c.b16 %v1163, %v1161
    %v1652 = vpack.c.b16 %v1164, %v1162
    %v1653 = vpack.c.b16 %v1167, %v1165
    %v1654 = vpack.c.b16 %v1168, %v1166
    %v1655 = vpack.c.b16 %v1171, %v1169
    %v1656 = vpack.c.b16 %v1172, %v1170
    %v1657 = vpack.c.b16 %v1175, %v1173
    %v1658 = vpack.c.b16 %v1176, %v1174
    %v1659 = vpack.c.b16 %v1179, %v1177
    %v1660 = vpack.c.b16 %v1180, %v1178
    %v1661 = vpack.c.b16 %v1183, %v1181
    %v1662 = vpack.c.b16 %v1184, %v1182
    %v1663 = vpack.c.b16 %v1187, %v1185
    %v1664 = vpack.c.b16 %v1188, %v1186
    %v1665 = vpack.c.b16 %v1191, %v1189
    %v1666 = vpack.c.b16 %v1192, %v1190
    %v1667 = vpack.c.b16 %v1195, %v1193
    %v1668 = vpack.c.b16 %v1196, %v1194
    %v1669 = vpack.c.b16 %v1199, %v1197
    %v1670 = vpack.c.b16 %v1200, %v1198
    %v1671 = vpack.c.b16 %v1203, %v1201
    %v1672 = vpack.c.b16 %v1204, %v1202
    %v1673 = vpack.c.b16 %v1207, %v1205
    %v1674 = vpack.c.b16 %v1208, %v1206
    %v1675 = vpack.c.b16 %v1211, %v1209
    %v1676 = vpack.c.b16 %v1212, %v1210
    %v1677 = vpack.c.b16 %v1215, %v1213
    %v1678 = vpack.c.b16 %v1216, %v1214
    %v1679 = vpack.c.b16 %v1219, %v1217
    %v1680 = vpack.c.b16 %v1220, %v1218
    %v1681 = vpack.c.b16 %v1223, %v1221
    %v1682 = vpack.c.b16 %v1224, %v1222
    %v1683 = vpack.c.b16 %v1227, %v1225
    %v1684 = vpack.c.b16 %v1228, %v1226
    %v1685 = vpack.c.b16 %v1231, %v1229
    %v1686 = vpack.c.b16 %v1232, %v1230
    %v1687 = vpack.c.b16 %v1235, %v1233
    %v1688 = vpack.c.b16 %v1236, %v1234
    %v1689 = vpack.c.b16 %v1239, %v1237
    %v1690 = vpack.c.b16 %v1240, %v1238
    %v1691 = vpack.c.b16 %v1243, %v1241
    %v1692 = vpack.c.b16 %v1244, %v1242
    %v1693 = vpack.c.b16 %v1247, %v1245
    %v1694 = vpack.c.b16 %v1248, %v1246
    %v1695 = vpack.c.b16 %v1251, %v1249
    %v1696 = vpack.c.b16 %v1252, %v1250
    %v1697 = vpack.c.b16 %v1255, %v1253
    %v1698 = vpack.c.b16 %v1256, %v1254
    %v1699 = vpack.c.b16 %v1259, %v1257
    %v1700 = vpack.c.b16 %v1260, %v1258
    %v1701 = vpack.c.b16 %v1263, %v1261
    %v1702 = vpack.c.b16 %v1264, %v1262
    %v1703 = vpack.c.b16 %v1267, %v1265
    %v1704 = vpack.c.b16 %v1268, %v1266
    %v1705 = vpack.c.b16 %v1271, %v1269
    %v1706 = vpack.c.b16 %v1272, %v1270
    %v1707 = vpack.c.b16 %v1275, %v1273
    %v1708 = vpack.c.b16 %v1276, %v1274
    %v1709 = vpack.c.b16 %v1279, %v1277
    %v1710 = vpack.c.b16 %v1280, %v1278
    %v1711 = vpack.c.b16 %v1283, %v1281
    %v1712 = vpack.c.b16 %v1284, %v1282
    %v1713 = vpack.c.b16 %v1287, %v1285
    %v1714 = vpack.c.b16 %v1288, %v1286
    %v1715 = vpack.c.b16 %v1291, %v1289
    %v1716 = vpack.c.b16 %v1292, %v1290
    %v1717 = vpack.c.b16 %v1295, %v1293
    %v1718 = vpack.c.b16 %v1296, %v1294
    %v1719 = vpack.c.b16 %v1299, %v1297
    %v1720 = vpack.c.b16 %v1300, %v1298
    %v1721 = vpack.c.b16 %v1303, %v1301
    %v1722 = vpack.c.b16 %v1304, %v1302
    %v1723 = vpack.c.b16 %v1307, %v1305
    %v1724 = vpack.c.b16 %v1308, %v1306
    %v1725 = vpack.c.b16 %v1311, %v1309
    %v1726 = vpack.c.b16 %v1312, %v1310
    %v1727 = vpack.c.b16 %v1315, %v1313
    %v1728 = vpack.c.b16 %v1316, %v1314
    %v1729 = vpack.c.b16 %v1319, %v1317
    %v1730 = vpack.c.b16 %v1320, %v1318
    %v1731 = vpack.c.b16 %v1323, %v1321
    %v1732 = vpack.c.b16 %v1324, %v1322
    %v1733 = vpack.c.b16 %v1327, %v1325
    %v1734 = vpack.c.b16 %v1328, %v1326
    %v1735 = vpack.c.b16 %v1331, %v1329
    %v1736 = vpack.c.b16 %v1332, %v1330
    %v1737 = vpack.c.b16 %v1335, %v1333
    %v1738 = vpack.c.b16 %v1336, %v1334
    %v1739 = vpack.c.b16 %v1339, %v1337
    %v1740 = vpack.c.b16 %v1340, %v1338
    %v1741 = vpack.c.b16 %v1343, %v1341
    %v1742 = vpack.c.b16 %v1344, %v1342
    %v1743 = vpack.c.b16 %v1347, %v1345
    %v1744 = vpack.c.b16 %v1348, %v1346
    %v1745 = vpack.c.b16 %v1351, %v1349
    %v1746 = vpack.c.b16 %v1352, %v1350
    %v1747 = vpack.c.b16 %v1355, %v1353
    %v1748 = vpack.c.b16 %v1356, %v1354
    %v1749 = vpack.c.b16 %v1359, %v1357
    %v1750 = vpack.c.b16 %v1360, %v1358
    %v1751 = vpack.c.b16 %v1363, %v1361
    %v1752 = vpack.c.b16 %v1364, %v1362
    %v1753 = vpack.c.b16 %v1367, %v1365
    %v1754 = vpack.c.b16 %v1368, %v1366
    %v1755 = vpack.c.b16 %v1371, %v1369
    %v1756 = vpack.c.b16 %v1372, %v1370
    %v1757 = vpack.c.b16 %v1375, %v1373
    %v1758 = vpack.c.b16 %v1376, %v1374
    %v1759 = vpack.c.b16 %v1379, %v1377
    %v1760 = vpack.c.b16 %v1380, %v1378
    %v1761 = vpack.c.b16 %v1383, %v1381
    %v1762 = vpack.c.b16 %v1384, %v1382
    %v1763 = vpack.c.b16 %v1387, %v1385
    %v1764 = vpack.c.b16 %v1388, %v1386
    %v1765 = vpack.c.b16 %v1391, %v1389
    %v1766 = vpack.c.b16 %v1392, %v1390
    %v1767 = vpack.c.b16 %v1395, %v1393
    %v1768 = vpack.c.b16 %v1396, %v1394
    %v1769 = vpack.c.b16 %v1399, %v1397
    %v1770 = vpack.c.b16 %v1400, %v1398
    %v1771 = vpack.c.b16 %v1403, %v1401
    %v1772 = vpack.c.b16 %v1404, %v1402
    %v1773 = vpack.c.b16 %v1407, %v1405
    %v1774 = vpack.c.b16 %v1408, %v1406
    %v1775 = vpack.c.b16 %v1411, %v1409
    %v1776 = vpack.c.b16 %v1412, %v1410
    %v1777 = vpack.c.b16 %v1415, %v1413
    %v1778 = vpack.c.b16 %v1416, %v1414
    %v1779 = vpack.c.b16 %v1419, %v1417
    %v1780 = vpack.c.b16 %v1420, %v1418
    %v1781 = vpack.c.b16 %v1423, %v1421
    %v1782 = vpack.c.b16 %v1424, %v1422
    %v1783 = vpack.c.b16 %v1427, %v1425
    %v1784 = vpack.c.b16 %v1428, %v1426
    %v1785 = vpack.c.b16 %v1431, %v1429
    %v1786 = vpack.c.b16 %v1432, %v1430
    %v1787 = vpack.c.b16 %v1435, %v1433
    %v1788 = vpack.c.b16 %v1436, %v1434
    %v1789 = vpack.c.b16 %v1439, %v1437
    %v1790 = vpack.c.b16 %v1440, %v1438
    %v1791 = vpack.c.b16 %v1443, %v1441
    %v1792 = vpack.c.b16 %v1444, %v1442
    %v1793 = vpack.c.b16 %v1447, %v1445
    %v1794 = vpack.c.b16 %v1448, %v1446
    %v1795 = vpack.c.b16 %v1451, %v1449
    %v1796 = vpack.c.b16 %v1452, %v1450
    %v1797 = vpack.c.b16 %v1455, %v1453
    %v1798 = vpack.c.b16 %v1456, %v1454
    %v1799 = vpack.c.b16 %v1459, %v1457
    %v1800 = vpack.c.b16 %v1460, %v1458
    %v1801 = vpack.c.b16 %v1463, %v1461
    %v1802 = vpack.c.b16 %v1464, %v1462
    %vm2141 = vcmask 130048
    %v2143 = vsel %vm2141, %v106, 0
    %2145 = vmatpush.bf16.msra.mxu0 %v1479
    %2146 = vmatpush.bf16.msra.mxu0 %v1477
    %2147 = vmatpush.bf16.msra.mxu0 %v1475
    %2148 = vmatpush.bf16.msra.mxu0 %v1473
    %2149 = vmatpush.bf16.msra.mxu0 %v1471
    %2150 = vmatpush.bf16.msra.mxu0 %v1469
    %2151 = vmatpush.bf16.msra.mxu0 %v1467
    %2152 = vmatpush.bf16.msra.mxu0 %v1465
    %2153 = vmatmul.bf16.gmra.mxu0 %v85
    %v2154 = vpop.f32.mrf.mxu0
    %v2155 = vadd.f32 %v447, %v2154
    %v2156 = vpop.f32.mrf.mxu0
    %2157 = vdwg.mxu0
    %2158 = vmatpush.bf16.msra.mxu0 %v1495
    %2159 = vmatpush.bf16.msra.mxu0 %v1493
    %2160 = vmatpush.bf16.msra.mxu0 %v1491
    %2161 = vmatpush.bf16.msra.mxu0 %v1489
    %2162 = vmatpush.bf16.msra.mxu0 %v1487
    %2163 = vmatpush.bf16.msra.mxu0 %v1485
    %2164 = vmatpush.bf16.msra.mxu0 %v1483
    %2165 = vmatpush.bf16.msra.mxu0 %v1481
    %2166 = vmatmul.bf16.gmra.mxu0 %v86
    %v2167 = vpop.f32.mrf.mxu0
    %v2168 = vadd.f32 %v2155, %v2167
    %v2169 = vpop.f32.mrf.mxu0
    %2170 = vdwg.mxu0
    %2171 = vmatpush.bf16.msra.mxu0 %v1511
    %2172 = vmatpush.bf16.msra.mxu0 %v1509
    %2173 = vmatpush.bf16.msra.mxu0 %v1507
    %2174 = vmatpush.bf16.msra.mxu0 %v1505
    %2175 = vmatpush.bf16.msra.mxu0 %v1503
    %2176 = vmatpush.bf16.msra.mxu0 %v1501
    %2177 = vmatpush.bf16.msra.mxu0 %v1499
    %2178 = vmatpush.bf16.msra.mxu0 %v1497
    %2179 = vmatmul.bf16.gmra.mxu0 %v87
    %v2180 = vpop.f32.mrf.mxu0
    %v2181 = vadd.f32 %v2168, %v2180
    %v2182 = vpop.f32.mrf.mxu0
    %2183 = vdwg.mxu0
    %2184 = vmatpush.bf16.msra.mxu0 %v1527
    %2185 = vmatpush.bf16.msra.mxu0 %v1525
    %2186 = vmatpush.bf16.msra.mxu0 %v1523
    %2187 = vmatpush.bf16.msra.mxu0 %v1521
    %2188 = vmatpush.bf16.msra.mxu0 %v1519
    %2189 = vmatpush.bf16.msra.mxu0 %v1517
    %2190 = vmatpush.bf16.msra.mxu0 %v1515
    %2191 = vmatpush.bf16.msra.mxu0 %v1513
    %2192 = vmatmul.bf16.gmra.mxu0 %v88
    %v2193 = vpop.f32.mrf.mxu0
    %v2194 = vadd.f32 %v2181, %v2193
    %v2195 = vpop.f32.mrf.mxu0
    %2196 = vdwg.mxu0
    %2197 = vmatpush.bf16.msra.mxu0 %v1543
    %2198 = vmatpush.bf16.msra.mxu0 %v1541
    %2199 = vmatpush.bf16.msra.mxu0 %v1539
    %2200 = vmatpush.bf16.msra.mxu0 %v1537
    %2201 = vmatpush.bf16.msra.mxu0 %v1535
    %2202 = vmatpush.bf16.msra.mxu0 %v1533
    %2203 = vmatpush.bf16.msra.mxu0 %v1531
    %2204 = vmatpush.bf16.msra.mxu0 %v1529
    %2205 = vmatmul.bf16.gmra.mxu0 %v89
    %v2206 = vpop.f32.mrf.mxu0
    %v2207 = vadd.f32 %v2194, %v2206
    %v2208 = vpop.f32.mrf.mxu0
    %2209 = vdwg.mxu0
    %2210 = vmatpush.bf16.msra.mxu0 %v1559
    %2211 = vmatpush.bf16.msra.mxu0 %v1557
    %2212 = vmatpush.bf16.msra.mxu0 %v1555
    %2213 = vmatpush.bf16.msra.mxu0 %v1553
    %2214 = vmatpush.bf16.msra.mxu0 %v1551
    %2215 = vmatpush.bf16.msra.mxu0 %v1549
    %2216 = vmatpush.bf16.msra.mxu0 %v1547
    %2217 = vmatpush.bf16.msra.mxu0 %v1545
    %2218 = vmatmul.bf16.gmra.mxu0 %v90
    %v2219 = vpop.f32.mrf.mxu0
    %v2220 = vadd.f32 %v2207, %v2219
    %v2221 = vpop.f32.mrf.mxu0
    %2222 = vdwg.mxu0
    %2223 = vmatpush.bf16.msra.mxu0 %v1575
    %2224 = vmatpush.bf16.msra.mxu0 %v1573
    %2225 = vmatpush.bf16.msra.mxu0 %v1571
    %2226 = vmatpush.bf16.msra.mxu0 %v1569
    %2227 = vmatpush.bf16.msra.mxu0 %v1567
    %2228 = vmatpush.bf16.msra.mxu0 %v1565
    %2229 = vmatpush.bf16.msra.mxu0 %v1563
    %2230 = vmatpush.bf16.msra.mxu0 %v1561
    %2231 = vmatmul.bf16.gmra.mxu0 %v91
    %v2232 = vpop.f32.mrf.mxu0
    %v2233 = vadd.f32 %v2220, %v2232
    %v2234 = vpop.f32.mrf.mxu0
    %2235 = vdwg.mxu0
    %2236 = vmatpush.bf16.msra.mxu0 %v1591
    %2237 = vmatpush.bf16.msra.mxu0 %v1589
    %2238 = vmatpush.bf16.msra.mxu0 %v1587
    %2239 = vmatpush.bf16.msra.mxu0 %v1585
    %2240 = vmatpush.bf16.msra.mxu0 %v1583
    %2241 = vmatpush.bf16.msra.mxu0 %v1581
    %2242 = vmatpush.bf16.msra.mxu0 %v1579
    %2243 = vmatpush.bf16.msra.mxu0 %v1577
    %2244 = vmatmul.bf16.gmra.mxu0 %v92
    %v2245 = vpop.f32.mrf.mxu0
    %v2246 = vadd.f32 %v2233, %v2245
    %v2247 = vpop.f32.mrf.mxu0
    %2248 = vdwg.mxu0
    %2249 = vmatpush.bf16.msra.mxu0 %v1607
    %2250 = vmatpush.bf16.msra.mxu0 %v1605
    %2251 = vmatpush.bf16.msra.mxu0 %v1603
    %2252 = vmatpush.bf16.msra.mxu0 %v1601
    %2253 = vmatpush.bf16.msra.mxu0 %v1599
    %2254 = vmatpush.bf16.msra.mxu0 %v1597
    %2255 = vmatpush.bf16.msra.mxu0 %v1595
    %2256 = vmatpush.bf16.msra.mxu0 %v1593
    %2257 = vmatmul.bf16.gmra.mxu0 %v93
    %v2258 = vpop.f32.mrf.mxu0
    %v2259 = vadd.f32 %v2246, %v2258
    %v2260 = vpop.f32.mrf.mxu0
    %2261 = vdwg.mxu0
    %2262 = vmatpush.bf16.msra.mxu0 %v1623
    %2263 = vmatpush.bf16.msra.mxu0 %v1621
    %2264 = vmatpush.bf16.msra.mxu0 %v1619
    %2265 = vmatpush.bf16.msra.mxu0 %v1617
    %2266 = vmatpush.bf16.msra.mxu0 %v1615
    %2267 = vmatpush.bf16.msra.mxu0 %v1613
    %2268 = vmatpush.bf16.msra.mxu0 %v1611
    %2269 = vmatpush.bf16.msra.mxu0 %v1609
    %2270 = vmatmul.bf16.gmra.mxu0 %v94
    %v2271 = vpop.f32.mrf.mxu0
    %v2272 = vadd.f32 %v2259, %v2271
    %v2273 = vpop.f32.mrf.mxu0
    %2274 = vdwg.mxu0
    %2275 = vmatpush.bf16.msra.mxu0 %v1639
    %2276 = vmatpush.bf16.msra.mxu0 %v1637
    %2277 = vmatpush.bf16.msra.mxu0 %v1635
    %2278 = vmatpush.bf16.msra.mxu0 %v1633
    %2279 = vmatpush.bf16.msra.mxu0 %v1631
    %2280 = vmatpush.bf16.msra.mxu0 %v1629
    %2281 = vmatpush.bf16.msra.mxu0 %v1627
    %2282 = vmatpush.bf16.msra.mxu0 %v1625
    %2283 = vmatmul.bf16.gmra.mxu0 %v95
    %v2284 = vpop.f32.mrf.mxu0
    %v2285 = vadd.f32 %v2272, %v2284
    %v2286 = vpop.f32.mrf.mxu0
    %2287 = vdwg.mxu0
    %2288 = vmatpush.bf16.msra.mxu0 %v1655
    %2289 = vmatpush.bf16.msra.mxu0 %v1653
    %2290 = vmatpush.bf16.msra.mxu0 %v1651
    %2291 = vmatpush.bf16.msra.mxu0 %v1649
    %2292 = vmatpush.bf16.msra.mxu0 %v1647
    %2293 = vmatpush.bf16.msra.mxu0 %v1645
    %2294 = vmatpush.bf16.msra.mxu0 %v1643
    %2295 = vmatpush.bf16.msra.mxu0 %v1641
    %2296 = vmatmul.bf16.gmra.mxu0 %v96
    %v2297 = vpop.f32.mrf.mxu0
    %v2298 = vadd.f32 %v2285, %v2297
    %v2299 = vpop.f32.mrf.mxu0
    %2300 = vdwg.mxu0
    %2301 = vmatpush.bf16.msra.mxu0 %v1671
    %2302 = vmatpush.bf16.msra.mxu0 %v1669
    %2303 = vmatpush.bf16.msra.mxu0 %v1667
    %2304 = vmatpush.bf16.msra.mxu0 %v1665
    %2305 = vmatpush.bf16.msra.mxu0 %v1663
    %2306 = vmatpush.bf16.msra.mxu0 %v1661
    %2307 = vmatpush.bf16.msra.mxu0 %v1659
    %2308 = vmatpush.bf16.msra.mxu0 %v1657
    %2309 = vmatmul.bf16.gmra.mxu0 %v97
    %v2310 = vpop.f32.mrf.mxu0
    %v2311 = vadd.f32 %v2298, %v2310
    %v2312 = vpop.f32.mrf.mxu0
    %2313 = vdwg.mxu0
    %2314 = vmatpush.bf16.msra.mxu0 %v1687
    %2315 = vmatpush.bf16.msra.mxu0 %v1685
    %2316 = vmatpush.bf16.msra.mxu0 %v1683
    %2317 = vmatpush.bf16.msra.mxu0 %v1681
    %2318 = vmatpush.bf16.msra.mxu0 %v1679
    %2319 = vmatpush.bf16.msra.mxu0 %v1677
    %2320 = vmatpush.bf16.msra.mxu0 %v1675
    %2321 = vmatpush.bf16.msra.mxu0 %v1673
    %2322 = vmatmul.bf16.gmra.mxu0 %v98
    %v2323 = vpop.f32.mrf.mxu0
    %v2324 = vadd.f32 %v2311, %v2323
    %v2325 = vpop.f32.mrf.mxu0
    %2326 = vdwg.mxu0
    %2327 = vmatpush.bf16.msra.mxu0 %v1703
    %2328 = vmatpush.bf16.msra.mxu0 %v1701
    %2329 = vmatpush.bf16.msra.mxu0 %v1699
    %2330 = vmatpush.bf16.msra.mxu0 %v1697
    %2331 = vmatpush.bf16.msra.mxu0 %v1695
    %2332 = vmatpush.bf16.msra.mxu0 %v1693
    %2333 = vmatpush.bf16.msra.mxu0 %v1691
    %2334 = vmatpush.bf16.msra.mxu0 %v1689
    %2335 = vmatmul.bf16.gmra.mxu0 %v99
    %v2336 = vpop.f32.mrf.mxu0
    %v2337 = vadd.f32 %v2324, %v2336
    %v2338 = vpop.f32.mrf.mxu0
    %2339 = vdwg.mxu0
    %2340 = vmatpush.bf16.msra.mxu0 %v1719
    %2341 = vmatpush.bf16.msra.mxu0 %v1717
    %2342 = vmatpush.bf16.msra.mxu0 %v1715
    %2343 = vmatpush.bf16.msra.mxu0 %v1713
    %2344 = vmatpush.bf16.msra.mxu0 %v1711
    %2345 = vmatpush.bf16.msra.mxu0 %v1709
    %2346 = vmatpush.bf16.msra.mxu0 %v1707
    %2347 = vmatpush.bf16.msra.mxu0 %v1705
    %2348 = vmatmul.bf16.gmra.mxu0 %v100
    %v2349 = vpop.f32.mrf.mxu0
    %v2350 = vadd.f32 %v2337, %v2349
    %v2351 = vpop.f32.mrf.mxu0
    %2352 = vdwg.mxu0
    %2353 = vmatpush.bf16.msra.mxu0 %v1735
    %2354 = vmatpush.bf16.msra.mxu0 %v1733
    %2355 = vmatpush.bf16.msra.mxu0 %v1731
    %2356 = vmatpush.bf16.msra.mxu0 %v1729
    %2357 = vmatpush.bf16.msra.mxu0 %v1727
    %2358 = vmatpush.bf16.msra.mxu0 %v1725
    %2359 = vmatpush.bf16.msra.mxu0 %v1723
    %2360 = vmatpush.bf16.msra.mxu0 %v1721
    %2361 = vmatmul.bf16.gmra.mxu0 %v101
    %v2362 = vpop.f32.mrf.mxu0
    %v2363 = vadd.f32 %v2350, %v2362
    %v2364 = vpop.f32.mrf.mxu0
    %2365 = vdwg.mxu0
    %2366 = vmatpush.bf16.msra.mxu0 %v1751
    %2367 = vmatpush.bf16.msra.mxu0 %v1749
    %2368 = vmatpush.bf16.msra.mxu0 %v1747
    %2369 = vmatpush.bf16.msra.mxu0 %v1745
    %2370 = vmatpush.bf16.msra.mxu0 %v1743
    %2371 = vmatpush.bf16.msra.mxu0 %v1741
    %2372 = vmatpush.bf16.msra.mxu0 %v1739
    %2373 = vmatpush.bf16.msra.mxu0 %v1737
    %2374 = vmatmul.bf16.gmra.mxu0 %v102
    %v2375 = vpop.f32.mrf.mxu0
    %v2376 = vadd.f32 %v2363, %v2375
    %v2377 = vpop.f32.mrf.mxu0
    %2378 = vdwg.mxu0
    %2379 = vmatpush.bf16.msra.mxu0 %v1767
    %2380 = vmatpush.bf16.msra.mxu0 %v1765
    %2381 = vmatpush.bf16.msra.mxu0 %v1763
    %2382 = vmatpush.bf16.msra.mxu0 %v1761
    %2383 = vmatpush.bf16.msra.mxu0 %v1759
    %2384 = vmatpush.bf16.msra.mxu0 %v1757
    %2385 = vmatpush.bf16.msra.mxu0 %v1755
    %2386 = vmatpush.bf16.msra.mxu0 %v1753
    %2387 = vmatmul.bf16.gmra.mxu0 %v103
    %v2388 = vpop.f32.mrf.mxu0
    %v2389 = vadd.f32 %v2376, %v2388
    %v2390 = vpop.f32.mrf.mxu0
    %2391 = vdwg.mxu0
    %2392 = vmatpush.bf16.msra.mxu0 %v1783
    %2393 = vmatpush.bf16.msra.mxu0 %v1781
    %2394 = vmatpush.bf16.msra.mxu0 %v1779
    %2395 = vmatpush.bf16.msra.mxu0 %v1777
    %2396 = vmatpush.bf16.msra.mxu0 %v1775
    %2397 = vmatpush.bf16.msra.mxu0 %v1773
    %2398 = vmatpush.bf16.msra.mxu0 %v1771
    %2399 = vmatpush.bf16.msra.mxu0 %v1769
    %2400 = vmatmul.bf16.gmra.mxu0 %v104
    %v2401 = vpop.f32.mrf.mxu0
    %v2402 = vadd.f32 %v2389, %v2401
    %v2403 = vpop.f32.mrf.mxu0
    %2404 = vdwg.mxu0
    %2405 = vmatpush.bf16.msra.mxu0 %v1799
    %2406 = vmatpush.bf16.msra.mxu0 %v1797
    %2407 = vmatpush.bf16.msra.mxu0 %v1795
    %2408 = vmatpush.bf16.msra.mxu0 %v1793
    %2409 = vmatpush.bf16.msra.mxu0 %v1791
    %2410 = vmatpush.bf16.msra.mxu0 %v1789
    %2411 = vmatpush.bf16.msra.mxu0 %v1787
    %2412 = vmatpush.bf16.msra.mxu0 %v1785
    %2413 = vmatmul.bf16.gmra.mxu0 %v105
    %v2414 = vpop.f32.mrf.mxu0
    %v2415 = vadd.f32 %v2402, %v2414
    %v2416 = vpop.f32.mrf.mxu0
    %2417 = vdwg.mxu0
    %2418 = vmatpush.bf16.msra.mxu0 0
    %2419 = vmatpush.bf16.msra.mxu0 0
    %2420 = vmatpush.bf16.msra.mxu0 0
    %2421 = vmatpush.bf16.msra.mxu0 0
    %2422 = vmatpush.bf16.msra.mxu0 0
    %2423 = vmatpush.bf16.msra.mxu0 0
    %2424 = vmatpush.bf16.msra.mxu0 0
    %2425 = vmatpush.bf16.msra.mxu0 %v1801
    %2426 = vmatmul.bf16.gmra.mxu0 %v2143
    %v2427 = vpop.f32.mrf.mxu0
    %v2428 = vadd.f32 %v2415, %v2427
    %v2429 = vpop.f32.mrf.mxu0
    %2430 = vdwg.mxu0
    %2431 = vmatpush.bf16.msra.mxu0 %v1480
    %2432 = vmatpush.bf16.msra.mxu0 %v1478
    %2433 = vmatpush.bf16.msra.mxu0 %v1476
    %2434 = vmatpush.bf16.msra.mxu0 %v1474
    %2435 = vmatpush.bf16.msra.mxu0 %v1472
    %2436 = vmatpush.bf16.msra.mxu0 %v1470
    %2437 = vmatpush.bf16.msra.mxu0 %v1468
    %2438 = vmatpush.bf16.msra.mxu0 %v1466
    %2439 = vmatmul.bf16.gmra.mxu0 %v85
    %v2440 = vpop.f32.mrf.mxu0
    %v2441 = vadd.f32 %v448, %v2440
    %v2442 = vpop.f32.mrf.mxu0
    %2443 = vdwg.mxu0
    %2444 = vmatpush.bf16.msra.mxu0 %v1496
    %2445 = vmatpush.bf16.msra.mxu0 %v1494
    %2446 = vmatpush.bf16.msra.mxu0 %v1492
    %2447 = vmatpush.bf16.msra.mxu0 %v1490
    %2448 = vmatpush.bf16.msra.mxu0 %v1488
    %2449 = vmatpush.bf16.msra.mxu0 %v1486
    %2450 = vmatpush.bf16.msra.mxu0 %v1484
    %2451 = vmatpush.bf16.msra.mxu0 %v1482
    %2452 = vmatmul.bf16.gmra.mxu0 %v86
    %v2453 = vpop.f32.mrf.mxu0
    %v2454 = vadd.f32 %v2441, %v2453
    %v2455 = vpop.f32.mrf.mxu0
    %2456 = vdwg.mxu0
    %2457 = vmatpush.bf16.msra.mxu0 %v1512
    %2458 = vmatpush.bf16.msra.mxu0 %v1510
    %2459 = vmatpush.bf16.msra.mxu0 %v1508
    %2460 = vmatpush.bf16.msra.mxu0 %v1506
    %2461 = vmatpush.bf16.msra.mxu0 %v1504
    %2462 = vmatpush.bf16.msra.mxu0 %v1502
    %2463 = vmatpush.bf16.msra.mxu0 %v1500
    %2464 = vmatpush.bf16.msra.mxu0 %v1498
    %2465 = vmatmul.bf16.gmra.mxu0 %v87
    %v2466 = vpop.f32.mrf.mxu0
    %v2467 = vadd.f32 %v2454, %v2466
    %v2468 = vpop.f32.mrf.mxu0
    %2469 = vdwg.mxu0
    %2470 = vmatpush.bf16.msra.mxu0 %v1528
    %2471 = vmatpush.bf16.msra.mxu0 %v1526
    %2472 = vmatpush.bf16.msra.mxu0 %v1524
    %2473 = vmatpush.bf16.msra.mxu0 %v1522
    %2474 = vmatpush.bf16.msra.mxu0 %v1520
    %2475 = vmatpush.bf16.msra.mxu0 %v1518
    %2476 = vmatpush.bf16.msra.mxu0 %v1516
    %2477 = vmatpush.bf16.msra.mxu0 %v1514
    %2478 = vmatmul.bf16.gmra.mxu0 %v88
    %v2479 = vpop.f32.mrf.mxu0
    %v2480 = vadd.f32 %v2467, %v2479
    %v2481 = vpop.f32.mrf.mxu0
    %2482 = vdwg.mxu0
    %2483 = vmatpush.bf16.msra.mxu0 %v1544
    %2484 = vmatpush.bf16.msra.mxu0 %v1542
    %2485 = vmatpush.bf16.msra.mxu0 %v1540
    %2486 = vmatpush.bf16.msra.mxu0 %v1538
    %2487 = vmatpush.bf16.msra.mxu0 %v1536
    %2488 = vmatpush.bf16.msra.mxu0 %v1534
    %2489 = vmatpush.bf16.msra.mxu0 %v1532
    %2490 = vmatpush.bf16.msra.mxu0 %v1530
    %2491 = vmatmul.bf16.gmra.mxu0 %v89
    %v2492 = vpop.f32.mrf.mxu0
    %v2493 = vadd.f32 %v2480, %v2492
    %v2494 = vpop.f32.mrf.mxu0
    %2495 = vdwg.mxu0
    %2496 = vmatpush.bf16.msra.mxu0 %v1560
    %2497 = vmatpush.bf16.msra.mxu0 %v1558
    %2498 = vmatpush.bf16.msra.mxu0 %v1556
    %2499 = vmatpush.bf16.msra.mxu0 %v1554
    %2500 = vmatpush.bf16.msra.mxu0 %v1552
    %2501 = vmatpush.bf16.msra.mxu0 %v1550
    %2502 = vmatpush.bf16.msra.mxu0 %v1548
    %2503 = vmatpush.bf16.msra.mxu0 %v1546
    %2504 = vmatmul.bf16.gmra.mxu0 %v90
    %v2505 = vpop.f32.mrf.mxu0
    %v2506 = vadd.f32 %v2493, %v2505
    %v2507 = vpop.f32.mrf.mxu0
    %2508 = vdwg.mxu0
    %2509 = vmatpush.bf16.msra.mxu0 %v1576
    %2510 = vmatpush.bf16.msra.mxu0 %v1574
    %2511 = vmatpush.bf16.msra.mxu0 %v1572
    %2512 = vmatpush.bf16.msra.mxu0 %v1570
    %2513 = vmatpush.bf16.msra.mxu0 %v1568
    %2514 = vmatpush.bf16.msra.mxu0 %v1566
    %2515 = vmatpush.bf16.msra.mxu0 %v1564
    %2516 = vmatpush.bf16.msra.mxu0 %v1562
    %2517 = vmatmul.bf16.gmra.mxu0 %v91
    %v2518 = vpop.f32.mrf.mxu0
    %v2519 = vadd.f32 %v2506, %v2518
    %v2520 = vpop.f32.mrf.mxu0
    %2521 = vdwg.mxu0
    %2522 = vmatpush.bf16.msra.mxu0 %v1592
    %2523 = vmatpush.bf16.msra.mxu0 %v1590
    %2524 = vmatpush.bf16.msra.mxu0 %v1588
    %2525 = vmatpush.bf16.msra.mxu0 %v1586
    %2526 = vmatpush.bf16.msra.mxu0 %v1584
    %2527 = vmatpush.bf16.msra.mxu0 %v1582
    %2528 = vmatpush.bf16.msra.mxu0 %v1580
    %2529 = vmatpush.bf16.msra.mxu0 %v1578
    %2530 = vmatmul.bf16.gmra.mxu0 %v92
    %v2531 = vpop.f32.mrf.mxu0
    %v2532 = vadd.f32 %v2519, %v2531
    %v2533 = vpop.f32.mrf.mxu0
    %2534 = vdwg.mxu0
    %2535 = vmatpush.bf16.msra.mxu0 %v1608
    %2536 = vmatpush.bf16.msra.mxu0 %v1606
    %2537 = vmatpush.bf16.msra.mxu0 %v1604
    %2538 = vmatpush.bf16.msra.mxu0 %v1602
    %2539 = vmatpush.bf16.msra.mxu0 %v1600
    %2540 = vmatpush.bf16.msra.mxu0 %v1598
    %2541 = vmatpush.bf16.msra.mxu0 %v1596
    %2542 = vmatpush.bf16.msra.mxu0 %v1594
    %2543 = vmatmul.bf16.gmra.mxu0 %v93
    %v2544 = vpop.f32.mrf.mxu0
    %v2545 = vadd.f32 %v2532, %v2544
    %v2546 = vpop.f32.mrf.mxu0
    %2547 = vdwg.mxu0
    %2548 = vmatpush.bf16.msra.mxu0 %v1624
    %2549 = vmatpush.bf16.msra.mxu0 %v1622
    %2550 = vmatpush.bf16.msra.mxu0 %v1620
    %2551 = vmatpush.bf16.msra.mxu0 %v1618
    %2552 = vmatpush.bf16.msra.mxu0 %v1616
    %2553 = vmatpush.bf16.msra.mxu0 %v1614
    %2554 = vmatpush.bf16.msra.mxu0 %v1612
    %2555 = vmatpush.bf16.msra.mxu0 %v1610
    %2556 = vmatmul.bf16.gmra.mxu0 %v94
    %v2557 = vpop.f32.mrf.mxu0
    %v2558 = vadd.f32 %v2545, %v2557
    %v2559 = vpop.f32.mrf.mxu0
    %2560 = vdwg.mxu0
    %2561 = vmatpush.bf16.msra.mxu0 %v1640
    %2562 = vmatpush.bf16.msra.mxu0 %v1638
    %2563 = vmatpush.bf16.msra.mxu0 %v1636
    %2564 = vmatpush.bf16.msra.mxu0 %v1634
    %2565 = vmatpush.bf16.msra.mxu0 %v1632
    %2566 = vmatpush.bf16.msra.mxu0 %v1630
    %2567 = vmatpush.bf16.msra.mxu0 %v1628
    %2568 = vmatpush.bf16.msra.mxu0 %v1626
    %2569 = vmatmul.bf16.gmra.mxu0 %v95
    %v2570 = vpop.f32.mrf.mxu0
    %v2571 = vadd.f32 %v2558, %v2570
    %v2572 = vpop.f32.mrf.mxu0
    %2573 = vdwg.mxu0
    %2574 = vmatpush.bf16.msra.mxu0 %v1656
    %2575 = vmatpush.bf16.msra.mxu0 %v1654
    %2576 = vmatpush.bf16.msra.mxu0 %v1652
    %2577 = vmatpush.bf16.msra.mxu0 %v1650
    %2578 = vmatpush.bf16.msra.mxu0 %v1648
    %2579 = vmatpush.bf16.msra.mxu0 %v1646
    %2580 = vmatpush.bf16.msra.mxu0 %v1644
    %2581 = vmatpush.bf16.msra.mxu0 %v1642
    %2582 = vmatmul.bf16.gmra.mxu0 %v96
    %v2583 = vpop.f32.mrf.mxu0
    %v2584 = vadd.f32 %v2571, %v2583
    %v2585 = vpop.f32.mrf.mxu0
    %2586 = vdwg.mxu0
    %2587 = vmatpush.bf16.msra.mxu0 %v1672
    %2588 = vmatpush.bf16.msra.mxu0 %v1670
    %2589 = vmatpush.bf16.msra.mxu0 %v1668
    %2590 = vmatpush.bf16.msra.mxu0 %v1666
    %2591 = vmatpush.bf16.msra.mxu0 %v1664
    %2592 = vmatpush.bf16.msra.mxu0 %v1662
    %2593 = vmatpush.bf16.msra.mxu0 %v1660
    %2594 = vmatpush.bf16.msra.mxu0 %v1658
    %2595 = vmatmul.bf16.gmra.mxu0 %v97
    %v2596 = vpop.f32.mrf.mxu0
    %v2597 = vadd.f32 %v2584, %v2596
    %v2598 = vpop.f32.mrf.mxu0
    %2599 = vdwg.mxu0
    %2600 = vmatpush.bf16.msra.mxu0 %v1688
    %2601 = vmatpush.bf16.msra.mxu0 %v1686
    %2602 = vmatpush.bf16.msra.mxu0 %v1684
    %2603 = vmatpush.bf16.msra.mxu0 %v1682
    %2604 = vmatpush.bf16.msra.mxu0 %v1680
    %2605 = vmatpush.bf16.msra.mxu0 %v1678
    %2606 = vmatpush.bf16.msra.mxu0 %v1676
    %2607 = vmatpush.bf16.msra.mxu0 %v1674
    %2608 = vmatmul.bf16.gmra.mxu0 %v98
    %v2609 = vpop.f32.mrf.mxu0
    %v2610 = vadd.f32 %v2597, %v2609
    %v2611 = vpop.f32.mrf.mxu0
    %2612 = vdwg.mxu0
    %2613 = vmatpush.bf16.msra.mxu0 %v1704
    %2614 = vmatpush.bf16.msra.mxu0 %v1702
    %2615 = vmatpush.bf16.msra.mxu0 %v1700
    %2616 = vmatpush.bf16.msra.mxu0 %v1698
    %2617 = vmatpush.bf16.msra.mxu0 %v1696
    %2618 = vmatpush.bf16.msra.mxu0 %v1694
    %2619 = vmatpush.bf16.msra.mxu0 %v1692
    %2620 = vmatpush.bf16.msra.mxu0 %v1690
    %2621 = vmatmul.bf16.gmra.mxu0 %v99
    %v2622 = vpop.f32.mrf.mxu0
    %v2623 = vadd.f32 %v2610, %v2622
    %v2624 = vpop.f32.mrf.mxu0
    %2625 = vdwg.mxu0
    %2626 = vmatpush.bf16.msra.mxu0 %v1720
    %2627 = vmatpush.bf16.msra.mxu0 %v1718
    %2628 = vmatpush.bf16.msra.mxu0 %v1716
    %2629 = vmatpush.bf16.msra.mxu0 %v1714
    %2630 = vmatpush.bf16.msra.mxu0 %v1712
    %2631 = vmatpush.bf16.msra.mxu0 %v1710
    %2632 = vmatpush.bf16.msra.mxu0 %v1708
    %2633 = vmatpush.bf16.msra.mxu0 %v1706
    %2634 = vmatmul.bf16.gmra.mxu0 %v100
    %v2635 = vpop.f32.mrf.mxu0
    %v2636 = vadd.f32 %v2623, %v2635
    %v2637 = vpop.f32.mrf.mxu0
    %2638 = vdwg.mxu0
    %2639 = vmatpush.bf16.msra.mxu0 %v1736
    %2640 = vmatpush.bf16.msra.mxu0 %v1734
    %2641 = vmatpush.bf16.msra.mxu0 %v1732
    %2642 = vmatpush.bf16.msra.mxu0 %v1730
    %2643 = vmatpush.bf16.msra.mxu0 %v1728
    %2644 = vmatpush.bf16.msra.mxu0 %v1726
    %2645 = vmatpush.bf16.msra.mxu0 %v1724
    %2646 = vmatpush.bf16.msra.mxu0 %v1722
    %2647 = vmatmul.bf16.gmra.mxu0 %v101
    %v2648 = vpop.f32.mrf.mxu0
    %v2649 = vadd.f32 %v2636, %v2648
    %v2650 = vpop.f32.mrf.mxu0
    %2651 = vdwg.mxu0
    %2652 = vmatpush.bf16.msra.mxu0 %v1752
    %2653 = vmatpush.bf16.msra.mxu0 %v1750
    %2654 = vmatpush.bf16.msra.mxu0 %v1748
    %2655 = vmatpush.bf16.msra.mxu0 %v1746
    %2656 = vmatpush.bf16.msra.mxu0 %v1744
    %2657 = vmatpush.bf16.msra.mxu0 %v1742
    %2658 = vmatpush.bf16.msra.mxu0 %v1740
    %2659 = vmatpush.bf16.msra.mxu0 %v1738
    %2660 = vmatmul.bf16.gmra.mxu0 %v102
    %v2661 = vpop.f32.mrf.mxu0
    %v2662 = vadd.f32 %v2649, %v2661
    %v2663 = vpop.f32.mrf.mxu0
    %2664 = vdwg.mxu0
    %2665 = vmatpush.bf16.msra.mxu0 %v1768
    %2666 = vmatpush.bf16.msra.mxu0 %v1766
    %2667 = vmatpush.bf16.msra.mxu0 %v1764
    %2668 = vmatpush.bf16.msra.mxu0 %v1762
    %2669 = vmatpush.bf16.msra.mxu0 %v1760
    %2670 = vmatpush.bf16.msra.mxu0 %v1758
    %2671 = vmatpush.bf16.msra.mxu0 %v1756
    %2672 = vmatpush.bf16.msra.mxu0 %v1754
    %2673 = vmatmul.bf16.gmra.mxu0 %v103
    %v2674 = vpop.f32.mrf.mxu0
    %v2675 = vadd.f32 %v2662, %v2674
    %v2676 = vpop.f32.mrf.mxu0
    %2677 = vdwg.mxu0
    %2678 = vmatpush.bf16.msra.mxu0 %v1784
    %2679 = vmatpush.bf16.msra.mxu0 %v1782
    %2680 = vmatpush.bf16.msra.mxu0 %v1780
    %2681 = vmatpush.bf16.msra.mxu0 %v1778
    %2682 = vmatpush.bf16.msra.mxu0 %v1776
    %2683 = vmatpush.bf16.msra.mxu0 %v1774
    %2684 = vmatpush.bf16.msra.mxu0 %v1772
    %2685 = vmatpush.bf16.msra.mxu0 %v1770
    %2686 = vmatmul.bf16.gmra.mxu0 %v104
    %v2687 = vpop.f32.mrf.mxu0
    %v2688 = vadd.f32 %v2675, %v2687
    %v2689 = vpop.f32.mrf.mxu0
    %2690 = vdwg.mxu0
    %2691 = vmatpush.bf16.msra.mxu0 %v1800
    %2692 = vmatpush.bf16.msra.mxu0 %v1798
    %2693 = vmatpush.bf16.msra.mxu0 %v1796
    %2694 = vmatpush.bf16.msra.mxu0 %v1794
    %2695 = vmatpush.bf16.msra.mxu0 %v1792
    %2696 = vmatpush.bf16.msra.mxu0 %v1790
    %2697 = vmatpush.bf16.msra.mxu0 %v1788
    %2698 = vmatpush.bf16.msra.mxu0 %v1786
    %2699 = vmatmul.bf16.gmra.mxu0 %v105
    %v2700 = vpop.f32.mrf.mxu0
    %v2701 = vadd.f32 %v2688, %v2700
    %v2702 = vpop.f32.mrf.mxu0
    %2703 = vdwg.mxu0
    %2704 = vmatpush.bf16.msra.mxu0 0
    %2705 = vmatpush.bf16.msra.mxu0 0
    %2706 = vmatpush.bf16.msra.mxu0 0
    %2707 = vmatpush.bf16.msra.mxu0 0
    %2708 = vmatpush.bf16.msra.mxu0 0
    %2709 = vmatpush.bf16.msra.mxu0 0
    %2710 = vmatpush.bf16.msra.mxu0 0
    %2711 = vmatpush.bf16.msra.mxu0 %v1802
    %2712 = vmatmul.bf16.gmra.mxu0 %v2143
    %v2713 = vpop.f32.mrf.mxu0
    %v2714 = vadd.f32 %v2701, %v2713
    %v2715 = vpop.f32.mrf.mxu0
    %2716 = vdwg.mxu0
    %v2717 = vmax.f32 %v2428, 0.0
    %v2718 = vmax.f32 %v2714, 0.0
    %v2719 = vld [vmem:[%s3] sm:$0xff]
    %v2720 = vld [vmem:[%s3 + $0x8] sm:$0xff]
    %v2721 = vld [vmem:[%s3 + $0x10] sm:$0xff]
    %v2722 = vld [vmem:[%s3 + $0x18] sm:$0xff]
    %v2723 = vld [vmem:[%s3 + $0x20] sm:$0xff]
    %v2724 = vld [vmem:[%s3 + $0x28] sm:$0xff]
    %v2725 = vld [vmem:[%s3 + $0x30] sm:$0xff]
    %v2726 = vld [vmem:[%s3 + $0x38] sm:$0xff]
    %v2727 = vld [vmem:[%s3 + $0x40] sm:$0xff]
    %v2728 = vld [vmem:[%s3 + $0x48] sm:$0xff]
    %v2729 = vld [vmem:[%s3 + $0x50] sm:$0xff]
    %v2730 = vld [vmem:[%s3 + $0x58] sm:$0xff]
    %v2731 = vld [vmem:[%s3 + $0x60] sm:$0xff]
    %v2732 = vld [vmem:[%s3 + $0x68] sm:$0xff]
    %v2733 = vld [vmem:[%s3 + $0x70] sm:$0xff]
    %v2734 = vld [vmem:[%s3 + $0x78] sm:$0xff]
    %v2735 = vld [vmem:[%s3 + $0x80] sm:$0xff]
    %v2736 = vld [vmem:[%s3 + $0x88] sm:$0xff]
    %v2737 = vld [vmem:[%s3 + $0x90] sm:$0xff]
    %v2738 = vld [vmem:[%s3 + $0x98] sm:$0xff]
    %v2739 = vld [vmem:[%s3 + $0xa0] sm:$0xff]
    %v2740 = vld [vmem:[%s3 + $0xa8] sm:$0xff]
    %v2741 = vld [vmem:[%s3 + $0xb0] sm:$0xff]
    %v2742 = vld [vmem:[%s3 + $0xb8] sm:$0xff]
    %v2743 = vld [vmem:[%s3 + $0xc0] sm:$0xff]
    %v2744 = vld [vmem:[%s3 + $0xc8] sm:$0xff]
    %v2745 = vld [vmem:[%s3 + $0xd0] sm:$0xff]
    %v2746 = vld [vmem:[%s3 + $0xd8] sm:$0xff]
    %v2747 = vld [vmem:[%s3 + $0xe0] sm:$0xff]
    %v2748 = vld [vmem:[%s3 + $0xe8] sm:$0xff]
    %v2749 = vld [vmem:[%s4] sm:$0x1]
    %v2751 = vperm.slane %v2749, 0
    %vm2753 = vcmask 916480
    %v2755 = vsel %vm2753, %v2718, 0
    %2757 = vmatpush.msra.mxu0 %v2734
    %2758 = vmatpush.msra.mxu0 %v2733
    %2759 = vmatpush.msra.mxu0 %v2732
    %2760 = vmatpush.msra.mxu0 %v2731
    %2761 = vmatpush.msra.mxu0 %v2730
    %2762 = vmatpush.msra.mxu0 %v2729
    %2763 = vmatpush.msra.mxu0 %v2728
    %2764 = vmatpush.msra.mxu0 %v2727
    %2765 = vmatpush.msra.mxu0 %v2726
    %2766 = vmatpush.msra.mxu0 %v2725
    %2767 = vmatpush.msra.mxu0 %v2724
    %2768 = vmatpush.msra.mxu0 %v2723
    %2769 = vmatpush.msra.mxu0 %v2722
    %2770 = vmatpush.msra.mxu0 %v2721
    %2771 = vmatpush.msra.mxu0 %v2720
    %2772 = vmatpush.msra.mxu0 %v2719
    %2773 = vmatmul.f32.gmra.mxu0 %v2717
    %v2774 = vpop.f32.mrf.mxu0
    %v2775 = vadd.f32 %v2751, %v2774
    %2776 = vdwg.mxu0
    %2777 = vmatpush.msra.mxu0 0.0
    %2778 = vmatpush.msra.mxu0 0.0
    %2779 = vmatpush.msra.mxu0 %v2748
    %2780 = vmatpush.msra.mxu0 %v2747
    %2781 = vmatpush.msra.mxu0 %v2746
    %2782 = vmatpush.msra.mxu0 %v2745
    %2783 = vmatpush.msra.mxu0 %v2744
    %2784 = vmatpush.msra.mxu0 %v2743
    %2785 = vmatpush.msra.mxu0 %v2742
    %2786 = vmatpush.msra.mxu0 %v2741
    %2787 = vmatpush.msra.mxu0 %v2740
    %2788 = vmatpush.msra.mxu0 %v2739
    %2789 = vmatpush.msra.mxu0 %v2738
    %2790 = vmatpush.msra.mxu0 %v2737
    %2791 = vmatpush.msra.mxu0 %v2736
    %2792 = vmatpush.msra.mxu0 %v2735
    %2793 = vmatmul.f32.gmra.mxu0 %v2755
    %v2794 = vpop.f32.mrf.mxu0
    %v2795 = vadd.f32 %v2775, %v2794
    %2796 = vdwg.mxu0
    %vm2797 = vcmask 1041408
    %v2798 = vsel %vm2797, %v2795, -inf
    %2799 = vmax.xlane.f32.xlu0 %v2798
    %v2800 = vpop.xlane.xlu0 %2799
    %v2801 = vsub.f32 %v2795, %v2800
    %v2802 = vmul.f32 %v2801, 1.442695
    %v2803 = vpow.pop %v2802
    %v2804 = vsel %vm2797, %v2803, 0.0
    %2805 = vadd.xlane.f32.xlu0 %v2804
    %v2806 = vpop.xlane.xlu0 %2805
    %v2807 = vlog2.pop %v2806
    %v2808 = vmul.f32 %v2807, 0.6931472
    %v2809 = vsub.f32 %v2801, %v2808
    %2810 = vst [vmem:[#allocation2] sm:$0x3] %v2809
    // Predicated region
    $region22: #{net_forward.5} parent=1 // pred_check
      _
    $region23: #{net_forward.5} parent=1 // pred_check_branch
      %2812 = sbr.rel (0) target = $region25
    $region24: #{net_forward.5} parent=1 // pred_region
      %2814 = vsyncadd [#allocation3], 0
      %s2816 = sshll.u32 [#allocation2], 4
      %s2817 = int_to_ptr.vmem [resolvable:$true] %s2816
      %s2818 = sshll.u32 %s5, 4
      %s2819 = int_to_ptr.hbm [resolvable:$true] %s2818
      %2821 = dma.vmem_to_hbm [thread:$0]  %s2817, 32, %s2819, [#allocation3]
    $region25: #{net_forward.5} parent=1 // pred_fallthru
      _
    // Predicated region
    $region26: #{net_forward.5} parent=1 // pred_check
      _
    $region27: #{net_forward.5} parent=1 // pred_check_branch
      %2823 = sbr.rel (0) target = $region29
    $region28: #{net_forward.5} parent=1 // pred_region
      %2825 = dma.done [#allocation3], 32
    $region29: #{net_forward.5} parent=1 // pred_fallthru
      _
    %2826 = vsyncpa [#allocation3], 1

</llo_original>
